<compile_context>
chip_gen: v5e
topology: v5e:2x2
jax: 0.10.0
libtpu: 0.0.40
codegen_flags: <defaults>
</compile_context>

<pallas_src>
import jax
import jax.numpy as jnp
from jax import lax
from jax.experimental import pallas as pl
from jax.experimental.pallas import tpu as pltpu


S_T_PAIR = [(64, 256), (128, 512), (256, 1024), (512, 2048)]
NUM_CLASSES = 7
BN_EPS = 1e-5
_TILE_M_MAX = 512
_VMEM_LIMIT = 48 * 1024 * 1024   # <= v7x's 64 MiB physical VMEM; plenty on v5e/v6e


def _round_up(x, m):
    return ((x + m - 1) // m) * m


# ----------------------------------------------------------------------------
# Pallas kernel 1: streaming BN statistics (colsum + Gram matrix of x)
# ----------------------------------------------------------------------------
def _stats_kernel(x_ref, sum_ref, gram_ref):
    # x_ref: (tile_m, Cin) bf16.  Outputs are resident accumulators (same
    # block for every grid step along the reduction axis).
    @pl.when(pl.program_id(0) == 0)
    def _init():
        sum_ref[...] = jnp.zeros_like(sum_ref)
        gram_ref[...] = jnp.zeros_like(gram_ref)

    x = x_ref[...]
    sum_ref[...] += jnp.sum(x.astype(jnp.float32), axis=0, keepdims=True)
    # G += x^T x  (contract over the row axis of both operands, f32 accum)
    gram_ref[...] += lax.dot_general(
        x, x, (((0,), (0,)), ((), ())), preferred_element_type=jnp.float32)


# ----------------------------------------------------------------------------
# Pallas kernel 2: 1x1 conv (matmul) + folded BN affine + ReLU, per M tile
# ----------------------------------------------------------------------------
def _apply_kernel(x_ref, w_ref, scale_ref, shift_ref, o_ref):
    # x_ref: (tile_m, Cin) bf16, w_ref: (Cin, Cout) bf16,
    # scale/shift: (1, Cout) f32, o_ref: (tile_m, Cout) f32 (lane-dense).
    y = jnp.dot(x_ref[...], w_ref[...], preferred_element_type=jnp.float32)
    o_ref[...] = jnp.maximum(y * scale_ref[...] + shift_ref[...], 0.0)


def connector_apply(x_nhwc, w, gamma, beta):
    """conv1x1 + BatchNorm2d(batch stats) + ReLU for one student feature map.

    x_nhwc: (N, H, W, Cin) float32
    w:      (Cin, Cout)    float32  (1x1 conv weight, transposed vs torch)
    gamma, beta: (Cout,)   float32
    returns (N, H, W, Cout) float32
    """
    N, H, W, Cin = x_nhwc.shape
    Cout = w.shape[1]
    M = N * H * W

    x_flat = x_nhwc.reshape(M, Cin).astype(jnp.bfloat16)
    w_bf = w.astype(jnp.bfloat16)

    # Tile the row axis: big lane/sublane-aligned tiles; pad tail with zeros
    # (zero rows contribute nothing to colsum/Gram; divisor stays true M).
    tile_m = min(_TILE_M_MAX, _round_up(M, 8))
    m_pad = _round_up(M, tile_m)
    if m_pad != M:
        x_flat = jnp.pad(x_flat, ((0, m_pad - M), (0, 0)))
    num_tiles = m_pad // tile_m

    # Pass 1: streaming statistics of x (no (M, Cout) activation needed).
    col_sum, gram = pl.pallas_call(
        _stats_kernel,
        out_shape=(jax.ShapeDtypeStruct((1, Cin), jnp.float32),
                   jax.ShapeDtypeStruct((Cin, Cin), jnp.float32)),
        grid=(num_tiles,),
        in_specs=[pl.BlockSpec((tile_m, Cin), lambda i: (i, 0))],
        out_specs=(pl.BlockSpec((1, Cin), lambda i: (0, 0)),
                   pl.BlockSpec((Cin, Cin), lambda i: (0, 0))),
        compiler_params=pltpu.CompilerParams(
            dimension_semantics=("arbitrary",),
            vmem_limit_bytes=_VMEM_LIMIT),
    )(x_flat)

    # Closed-form batch statistics of y = x @ w (tiny ops, plain XLA):
    #   mean = colsum(x) @ w / M,   E[y^2] = diag(w^T G w) / M
    w_f32 = w_bf.astype(jnp.float32)
    inv_m = 1.0 / float(M)
    mean = (col_sum @ w_f32) * inv_m                                   # (1, Cout)
    ey2 = jnp.sum(w_f32 * (gram @ w_f32), axis=0, keepdims=True) * inv_m
    var = jnp.maximum(ey2 - mean * mean, 0.0)                          # biased var
    inv_std = lax.rsqrt(var + BN_EPS)
    scale = gamma.reshape(1, Cout) * inv_std
    shift = beta.reshape(1, Cout) - mean * scale

    # Pass 2: tiled matmul + fused affine + ReLU (independent tiles -> parallel).
    out_flat = pl.pallas_call(
        _apply_kernel,
        out_shape=jax.ShapeDtypeStruct((m_pad, Cout), jnp.float32),
        grid=(num_tiles,),
        in_specs=[pl.BlockSpec((tile_m, Cin), lambda i: (i, 0)),
                  pl.BlockSpec((Cin, Cout), lambda i: (0, 0)),
                  pl.BlockSpec((1, Cout), lambda i: (0, 0)),
                  pl.BlockSpec((1, Cout), lambda i: (0, 0))],
        out_specs=pl.BlockSpec((tile_m, Cout), lambda i: (i, 0)),
        compiler_params=pltpu.CompilerParams(
            dimension_semantics=("parallel",),
            vmem_limit_bytes=_VMEM_LIMIT),
    )(x_flat, w_bf, scale, shift)

    return out_flat[:M].reshape(N, H, W, Cout)


# ----------------------------------------------------------------------------
# Deterministic stand-in student / teacher backbones (plain JAX glue, NHWC).
# Each returns [feat0, feat1, feat2, feat3, logits] (inter_layer=True style).
# ----------------------------------------------------------------------------
def _stub_backbone(x_nhwc, stage_ws, fc_w):
    feats = []
    h = x_nhwc
    for w in stage_ws:
        # stride-2 average pool (spatial downsample)
        h = lax.reduce_window(
            h, 0.0, lax.add, (1, 2, 2, 1), (1, 2, 2, 1), "VALID") * 0.25
        # 1x1 channel projection + ReLU
        h = jnp.maximum(jnp.einsum("nhwc,cd->nhwd", h, w), 0.0)
        feats.append(h)
    pooled = jnp.mean(feats[-1], axis=(1, 2))            # (N, C_last)
    feats.append(pooled @ fc_w)                          # (N, num_classes)
    return feats


def _make_backbone_params(key, in_ch, channels, num_classes):
    ws = []
    c_prev = in_ch
    for c in channels:
        key, sub = jax.random.split(key)
        ws.append(jax.random.normal(sub, (c_prev, c), jnp.float32) * 0.05)
        c_prev = c
    key, sub = jax.random.split(key)
    fc_w = jax.random.normal(sub, (c_prev, num_classes), jnp.float32) * 0.05
    return ws, fc_w


def _make_connector_params(key):
    params = []
    for (s, t) in S_T_PAIR:
        key, k_w, k_g, k_b = jax.random.split(key, 4)
        w = jax.random.normal(k_w, (s, t), jnp.float32) * (1.0 / jnp.sqrt(s))
        gamma = 1.0 + 0.01 * jax.random.normal(k_g, (t,), jnp.float32)
        beta = 0.01 * jax.random.normal(k_b, (t,), jnp.float32)
        params.append((w, gamma, beta))
    return params


# ----------------------------------------------------------------------------
# ChannelDistillModel.forward
# ----------------------------------------------------------------------------
@jax.jit
def channel_distill_forward(x_nchw, student_params, teacher_params,
                            connector_params):
    # NCHW -> NHWC once at the entry; everything downstream stays NHWC.
    x = jnp.transpose(x_nchw, (0, 2, 3, 1))
    s_ws, s_fc = student_params
    t_ws, t_fc = teacher_params
    ss = _stub_backbone(x, s_ws, s_fc)
    ts = _stub_backbone(x, t_ws, t_fc)
    for i in range(len(S_T_PAIR)):
        w, gamma, beta = connector_params[i]
        ss[i] = connector_apply(ss[i], w, gamma, beta)
    # Back to the PyTorch NCHW contract once at the exit.
    to_nchw = lambda f: jnp.transpose(f, (0, 3, 1, 2)) if f.ndim == 4 else f
    return tuple(to_nchw(f) for f in ss), tuple(to_nchw(f) for f in ts)


if __name__ == "__main__":
    key = jax.random.PRNGKey(0)
    k_x, k_s, k_t, k_c = jax.random.split(key, 4)

    # Small input: N=2, 3-channel 16x16 image (NCHW, like the PyTorch module).
    x = jax.random.normal(k_x, (2, 3, 16, 16), jnp.float32)

    student_channels = [s for s, _ in S_T_PAIR]   # [64, 128, 256, 512]
    teacher_channels = [t for _, t in S_T_PAIR]   # [256, 512, 1024, 2048]

    student_params = _make_backbone_params(k_s, 3, student_channels, NUM_CLASSES)
    teacher_params = _make_backbone_params(k_t, 3, teacher_channels, NUM_CLASSES)
    connector_params = _make_connector_params(k_c)

    ss, ts = channel_distill_forward(x, student_params, teacher_params,
                                     connector_params)
    jax.block_until_ready((ss, ts))

    # Sanity: after connectors, student feature channel dims match teacher's.
    for i, (_, t_ch) in enumerate(S_T_PAIR):
        assert ss[i].shape[1] == t_ch == ts[i].shape[1], (ss[i].shape, ts[i].shape)
    assert ss[-1].shape == (2, NUM_CLASSES) and ts[-1].shape == (2, NUM_CLASSES)

    print("KERNEL_OK")
</pallas_src>

<mosaic_0001>
module attributes {stable_mosaic.version = 11 : i64} {
  func.func @_stats_kernel(%arg0: i32, %arg1: memref<8x512xbf16, #tpu.memory_space<vmem>>, %arg2: memref<1x512xf32, #tpu.memory_space<vmem>>, %arg3: memref<512x512xf32, #tpu.memory_space<vmem>>) attributes {dimension_semantics = [#tpu.dimension_semantics<arbitrary>], iteration_bounds = array<i64: 1>, scalar_prefetch = 0 : i64, scratch_operands = 0 : i64, tpu.core_type = #tpu.core_type<tc>, window_params = [{transform_indices = @transform_0, window_bounds = array<i64: 8, 512>}, {pipeline_mode = #tpu.pipeline_mode<synchronous>, transform_indices = @transform_1, window_bounds = array<i64: 1, 512>}, {pipeline_mode = #tpu.pipeline_mode<synchronous>, transform_indices = @transform_2, window_bounds = array<i64: 512, 512>}]} {
    %c0_i32 = arith.constant 0 : i32
    %0 = arith.cmpi eq, %arg0, %c0_i32 : i32
    %1 = arith.extui %0 : i1 to i32
    %c0_i32_0 = arith.constant 0 : i32
    %2 = arith.cmpi ne, %1, %c0_i32_0 : i32
    scf.if %2 {
      %cst_11 = arith.constant 0.000000e+00 : f32
      %14 = vector.broadcast %cst_11 : f32 to vector<1x512xf32>
      %c0_12 = arith.constant 0 : index
      %c0_13 = arith.constant 0 : index
      %15 = vector.load %arg2[%c0_12, %c0_13] : memref<1x512xf32, #tpu.memory_space<vmem>>, vector<1x512xf32>
      tpu.vector_store %arg2[%c0_12, %c0_13], %14 {strides = array<i32>} : memref<1x512xf32, #tpu.memory_space<vmem>>, vector<1x512xf32>,
      %cst_14 = arith.constant 0.000000e+00 : f32
      %16 = vector.broadcast %cst_14 : f32 to vector<512x512xf32>
      %c0_15 = arith.constant 0 : index
      %c0_16 = arith.constant 0 : index
      %17 = vector.load %arg3[%c0_15, %c0_16] : memref<512x512xf32, #tpu.memory_space<vmem>>, vector<512x512xf32>
      tpu.vector_store %arg3[%c0_15, %c0_16], %16 {strides = array<i32>} : memref<512x512xf32, #tpu.memory_space<vmem>>, vector<512x512xf32>,
    } else {
    }
    %c0 = arith.constant 0 : index
    %c0_1 = arith.constant 0 : index
    %3 = vector.load %arg1[%c0, %c0_1] : memref<8x512xbf16, #tpu.memory_space<vmem>>, vector<8x512xbf16>
    %c0_2 = arith.constant 0 : index
    %c0_3 = arith.constant 0 : index
    %4 = vector.load %arg2[%c0_2, %c0_3] : memref<1x512xf32, #tpu.memory_space<vmem>>, vector<1x512xf32>
    %5 = arith.extf %3 : vector<8x512xbf16> to vector<8x512xf32>
    %cst = arith.constant dense<0.000000e+00> : vector<512xf32>
    %6 = vector.multi_reduction <add>, %5, %cst [0] : vector<8x512xf32> to vector<512xf32>
    %7 = vector.shape_cast %6 : vector<512xf32> to vector<1x512xf32>
    %8 = arith.addf %4, %7 : vector<1x512xf32>
    %c0_4 = arith.constant 0 : index
    %c0_5 = arith.constant 0 : index
    %9 = vector.load %arg2[%c0_4, %c0_5] : memref<1x512xf32, #tpu.memory_space<vmem>>, vector<1x512xf32>
    tpu.vector_store %arg2[%c0_4, %c0_5], %8 {strides = array<i32>} : memref<1x512xf32, #tpu.memory_space<vmem>>, vector<1x512xf32>,
    %c0_6 = arith.constant 0 : index
    %c0_7 = arith.constant 0 : index
    %10 = vector.load %arg3[%c0_6, %c0_7] : memref<512x512xf32, #tpu.memory_space<vmem>>, vector<512x512xf32>
    %cst_8 = arith.constant dense<0.000000e+00> : vector<512x512xf32>
    %11 = tpu.matmul %3, %3, %cst_8 {dimension_numbers = #tpu.dot_dimension_numbers<[0], [0], [1], [1], [0, 1, 1, 1], [], []>} : vector<8x512xbf16>, vector<8x512xbf16>, vector<512x512xf32> -> vector<512x512xf32>
    %12 = arith.addf %10, %11 : vector<512x512xf32>
    %c0_9 = arith.constant 0 : index
    %c0_10 = arith.constant 0 : index
    %13 = vector.load %arg3[%c0_9, %c0_10] : memref<512x512xf32, #tpu.memory_space<vmem>>, vector<512x512xf32>
    tpu.vector_store %arg3[%c0_9, %c0_10], %12 {strides = array<i32>} : memref<512x512xf32, #tpu.memory_space<vmem>>, vector<512x512xf32>,
    return
  }
  func.func @transform_0(%arg0: i32) -> (i32, i32) {
    %c0_i32 = arith.constant 0 : i32
    %c0_i32_0 = arith.constant 0 : i32
    return %arg0, %c0_i32 : i32, i32
  }
  func.func @transform_1(%arg0: i32) -> (i32, i32) {
    %c0_i32 = arith.constant 0 : i32
    %c0_i32_0 = arith.constant 0 : i32
    %c0_i32_1 = arith.constant 0 : i32
    return %c0_i32, %c0_i32_0 : i32, i32
  }
  func.func @transform_2(%arg0: i32) -> (i32, i32) {
    %c0_i32 = arith.constant 0 : i32
    %c0_i32_0 = arith.constant 0 : i32
    %c0_i32_1 = arith.constant 0 : i32
    return %c0_i32, %c0_i32_0 : i32, i32
  }
}

module attributes {stable_mosaic.version = 11 : i64} {
  func.func @_apply_kernel(%arg0: i32, %arg1: memref<8x512xbf16, #tpu.memory_space<vmem>>, %arg2: memref<512x2048xbf16, #tpu.memory_space<vmem>>, %arg3: memref<1x2048xf32, #tpu.memory_space<vmem>>, %arg4: memref<1x2048xf32, #tpu.memory_space<vmem>>, %arg5: memref<8x2048xf32, #tpu.memory_space<vmem>>) attributes {dimension_semantics = [#tpu.dimension_semantics<parallel>], iteration_bounds = array<i64: 1>, scalar_prefetch = 0 : i64, scratch_operands = 0 : i64, tpu.core_type = #tpu.core_type<tc>, window_params = [{transform_indices = @transform_0, window_bounds = array<i64: 8, 512>}, {pipeline_mode = #tpu.pipeline_mode<synchronous>, transform_indices = @transform_1, window_bounds = array<i64: 512, 2048>}, {pipeline_mode = #tpu.pipeline_mode<synchronous>, transform_indices = @transform_2, window_bounds = array<i64: 1, 2048>}, {pipeline_mode = #tpu.pipeline_mode<synchronous>, transform_indices = @transform_3, window_bounds = array<i64: 1, 2048>}, {transform_indices = @transform_4, window_bounds = array<i64: 8, 2048>}]} {
    %c0 = arith.constant 0 : index
    %c0_0 = arith.constant 0 : index
    %0 = vector.load %arg1[%c0, %c0_0] : memref<8x512xbf16, #tpu.memory_space<vmem>>, vector<8x512xbf16>
    %c0_1 = arith.constant 0 : index
    %c0_2 = arith.constant 0 : index
    %1 = vector.load %arg2[%c0_1, %c0_2] : memref<512x2048xbf16, #tpu.memory_space<vmem>>, vector<512x2048xbf16>
    %cst = arith.constant dense<0.000000e+00> : vector<8x2048xf32>
    %2 = tpu.matmul %0, %1, %cst {dimension_numbers = #tpu.dot_dimension_numbers<[1], [0], [0], [1], [0, 0, 1, 1], [], []>} : vector<8x512xbf16>, vector<512x2048xbf16>, vector<8x2048xf32> -> vector<8x2048xf32>
    %c0_3 = arith.constant 0 : index
    %c0_4 = arith.constant 0 : index
    %3 = vector.load %arg3[%c0_3, %c0_4] : memref<1x2048xf32, #tpu.memory_space<vmem>>, vector<1x2048xf32>
    %4 = vector.broadcast %3 : vector<1x2048xf32> to vector<8x2048xf32>
    %5 = arith.mulf %2, %4 : vector<8x2048xf32>
    %c0_5 = arith.constant 0 : index
    %c0_6 = arith.constant 0 : index
    %6 = vector.load %arg4[%c0_5, %c0_6] : memref<1x2048xf32, #tpu.memory_space<vmem>>, vector<1x2048xf32>
    %7 = vector.broadcast %6 : vector<1x2048xf32> to vector<8x2048xf32>
    %8 = arith.addf %5, %7 : vector<8x2048xf32>
    %cst_7 = arith.constant 0.000000e+00 : f32
    %9 = vector.broadcast %cst_7 : f32 to vector<8x2048xf32>
    %10 = arith.maximumf %8, %9 : vector<8x2048xf32>
    %c0_8 = arith.constant 0 : index
    %c0_9 = arith.constant 0 : index
    %11 = vector.load %arg5[%c0_8, %c0_9] : memref<8x2048xf32, #tpu.memory_space<vmem>>, vector<8x2048xf32>
    tpu.vector_store %arg5[%c0_8, %c0_9], %10 {strides = array<i32>} : memref<8x2048xf32, #tpu.memory_space<vmem>>, vector<8x2048xf32>,
    return
  }
  func.func @transform_0(%arg0: i32) -> (i32, i32) {
    %c0_i32 = arith.constant 0 : i32
    %c0_i32_0 = arith.constant 0 : i32
    return %arg0, %c0_i32 : i32, i32
  }
  func.func @transform_1(%arg0: i32) -> (i32, i32) {
    %c0_i32 = arith.constant 0 : i32
    %c0_i32_0 = arith.constant 0 : i32
    %c0_i32_1 = arith.constant 0 : i32
    return %c0_i32, %c0_i32_0 : i32, i32
  }
  func.func @transform_2(%arg0: i32) -> (i32, i32) {
    %c0_i32 = arith.constant 0 : i32
    %c0_i32_0 = arith.constant 0 : i32
    %c0_i32_1 = arith.constant 0 : i32
    return %c0_i32, %c0_i32_0 : i32, i32
  }
  func.func @transform_3(%arg0: i32) -> (i32, i32) {
    %c0_i32 = arith.constant 0 : i32
    %c0_i32_0 = arith.constant 0 : i32
    %c0_i32_1 = arith.constant 0 : i32
    return %c0_i32, %c0_i32_0 : i32, i32
  }
  func.func @transform_4(%arg0: i32) -> (i32, i32) {
    %c0_i32 = arith.constant 0 : i32
    %c0_i32_0 = arith.constant 0 : i32
    return %arg0, %c0_i32 : i32, i32
  }
}

module attributes {stable_mosaic.version = 11 : i64} {
  func.func @_stats_kernel(%arg0: i32, %arg1: memref<8x256xbf16, #tpu.memory_space<vmem>>, %arg2: memref<1x256xf32, #tpu.memory_space<vmem>>, %arg3: memref<256x256xf32, #tpu.memory_space<vmem>>) attributes {dimension_semantics = [#tpu.dimension_semantics<arbitrary>], iteration_bounds = array<i64: 1>, scalar_prefetch = 0 : i64, scratch_operands = 0 : i64, tpu.core_type = #tpu.core_type<tc>, window_params = [{transform_indices = @transform_0, window_bounds = array<i64: 8, 256>}, {pipeline_mode = #tpu.pipeline_mode<synchronous>, transform_indices = @transform_1, window_bounds = array<i64: 1, 256>}, {pipeline_mode = #tpu.pipeline_mode<synchronous>, transform_indices = @transform_2, window_bounds = array<i64: 256, 256>}]} {
    %c0_i32 = arith.constant 0 : i32
    %0 = arith.cmpi eq, %arg0, %c0_i32 : i32
    %1 = arith.extui %0 : i1 to i32
    %c0_i32_0 = arith.constant 0 : i32
    %2 = arith.cmpi ne, %1, %c0_i32_0 : i32
    scf.if %2 {
      %cst_11 = arith.constant 0.000000e+00 : f32
      %14 = vector.broadcast %cst_11 : f32 to vector<1x256xf32>
      %c0_12 = arith.constant 0 : index
      %c0_13 = arith.constant 0 : index
      %15 = vector.load %arg2[%c0_12, %c0_13] : memref<1x256xf32, #tpu.memory_space<vmem>>, vector<1x256xf32>
      tpu.vector_store %arg2[%c0_12, %c0_13], %14 {strides = array<i32>} : memref<1x256xf32, #tpu.memory_space<vmem>>, vector<1x256xf32>,
      %cst_14 = arith.constant 0.000000e+00 : f32
      %16 = vector.broadcast %cst_14 : f32 to vector<256x256xf32>
      %c0_15 = arith.constant 0 : index
      %c0_16 = arith.constant 0 : index
      %17 = vector.load %arg3[%c0_15, %c0_16] : memref<256x256xf32, #tpu.memory_space<vmem>>, vector<256x256xf32>
      tpu.vector_store %arg3[%c0_15, %c0_16], %16 {strides = array<i32>} : memref<256x256xf32, #tpu.memory_space<vmem>>, vector<256x256xf32>,
    } else {
    }
    %c0 = arith.constant 0 : index
    %c0_1 = arith.constant 0 : index
    %3 = vector.load %arg1[%c0, %c0_1] : memref<8x256xbf16, #tpu.memory_space<vmem>>, vector<8x256xbf16>
    %c0_2 = arith.constant 0 : index
    %c0_3 = arith.constant 0 : index
    %4 = vector.load %arg2[%c0_2, %c0_3] : memref<1x256xf32, #tpu.memory_space<vmem>>, vector<1x256xf32>
    %5 = arith.extf %3 : vector<8x256xbf16> to vector<8x256xf32>
    %cst = arith.constant dense<0.000000e+00> : vector<256xf32>
    %6 = vector.multi_reduction <add>, %5, %cst [0] : vector<8x256xf32> to vector<256xf32>
    %7 = vector.shape_cast %6 : vector<256xf32> to vector<1x256xf32>
    %8 = arith.addf %4, %7 : vector<1x256xf32>
    %c0_4 = arith.constant 0 : index
    %c0_5 = arith.constant 0 : index
    %9 = vector.load %arg2[%c0_4, %c0_5] : memref<1x256xf32, #tpu.memory_space<vmem>>, vector<1x256xf32>
    tpu.vector_store %arg2[%c0_4, %c0_5], %8 {strides = array<i32>} : memref<1x256xf32, #tpu.memory_space<vmem>>, vector<1x256xf32>,
    %c0_6 = arith.constant 0 : index
    %c0_7 = arith.constant 0 : index
    %10 = vector.load %arg3[%c0_6, %c0_7] : memref<256x256xf32, #tpu.memory_space<vmem>>, vector<256x256xf32>
    %cst_8 = arith.constant dense<0.000000e+00> : vector<256x256xf32>
    %11 = tpu.matmul %3, %3, %cst_8 {dimension_numbers = #tpu.dot_dimension_numbers<[0], [0], [1], [1], [0, 1, 1, 1], [], []>} : vector<8x256xbf16>, vector<8x256xbf16>, vector<256x256xf32> -> vector<256x256xf32>
    %12 = arith.addf %10, %11 : vector<256x256xf32>
    %c0_9 = arith.constant 0 : index
    %c0_10 = arith.constant 0 : index
    %13 = vector.load %arg3[%c0_9, %c0_10] : memref<256x256xf32, #tpu.memory_space<vmem>>, vector<256x256xf32>
    tpu.vector_store %arg3[%c0_9, %c0_10], %12 {strides = array<i32>} : memref<256x256xf32, #tpu.memory_space<vmem>>, vector<256x256xf32>,
    return
  }
  func.func @transform_0(%arg0: i32) -> (i32, i32) {
    %c0_i32 = arith.constant 0 : i32
    %c0_i32_0 = arith.constant 0 : i32
    return %arg0, %c0_i32 : i32, i32
  }
  func.func @transform_1(%arg0: i32) -> (i32, i32) {
    %c0_i32 = arith.constant 0 : i32
    %c0_i32_0 = arith.constant 0 : i32
    %c0_i32_1 = arith.constant 0 : i32
    return %c0_i32, %c0_i32_0 : i32, i32
  }
  func.func @transform_2(%arg0: i32) -> (i32, i32) {
    %c0_i32 = arith.constant 0 : i32
    %c0_i32_0 = arith.constant 0 : i32
    %c0_i32_1 = arith.constant 0 : i32
    return %c0_i32, %c0_i32_0 : i32, i32
  }
}

module attributes {stable_mosaic.version = 11 : i64} {
  func.func @_apply_kernel(%arg0: i32, %arg1: memref<8x256xbf16, #tpu.memory_space<vmem>>, %arg2: memref<256x1024xbf16, #tpu.memory_space<vmem>>, %arg3: memref<1x1024xf32, #tpu.memory_space<vmem>>, %arg4: memref<1x1024xf32, #tpu.memory_space<vmem>>, %arg5: memref<8x1024xf32, #tpu.memory_space<vmem>>) attributes {dimension_semantics = [#tpu.dimension_semantics<parallel>], iteration_bounds = array<i64: 1>, scalar_prefetch = 0 : i64, scratch_operands = 0 : i64, tpu.core_type = #tpu.core_type<tc>, window_params = [{transform_indices = @transform_0, window_bounds = array<i64: 8, 256>}, {pipeline_mode = #tpu.pipeline_mode<synchronous>, transform_indices = @transform_1, window_bounds = array<i64: 256, 1024>}, {pipeline_mode = #tpu.pipeline_mode<synchronous>, transform_indices = @transform_2, window_bounds = array<i64: 1, 1024>}, {pipeline_mode = #tpu.pipeline_mode<synchronous>, transform_indices = @transform_3, window_bounds = array<i64: 1, 1024>}, {transform_indices = @transform_4, window_bounds = array<i64: 8, 1024>}]} {
    %c0 = arith.constant 0 : index
    %c0_0 = arith.constant 0 : index
    %0 = vector.load %arg1[%c0, %c0_0] : memref<8x256xbf16, #tpu.memory_space<vmem>>, vector<8x256xbf16>
    %c0_1 = arith.constant 0 : index
    %c0_2 = arith.constant 0 : index
    %1 = vector.load %arg2[%c0_1, %c0_2] : memref<256x1024xbf16, #tpu.memory_space<vmem>>, vector<256x1024xbf16>
    %cst = arith.constant dense<0.000000e+00> : vector<8x1024xf32>
    %2 = tpu.matmul %0, %1, %cst {dimension_numbers = #tpu.dot_dimension_numbers<[1], [0], [0], [1], [0, 0, 1, 1], [], []>} : vector<8x256xbf16>, vector<256x1024xbf16>, vector<8x1024xf32> -> vector<8x1024xf32>
    %c0_3 = arith.constant 0 : index
    %c0_4 = arith.constant 0 : index
    %3 = vector.load %arg3[%c0_3, %c0_4] : memref<1x1024xf32, #tpu.memory_space<vmem>>, vector<1x1024xf32>
    %4 = vector.broadcast %3 : vector<1x1024xf32> to vector<8x1024xf32>
    %5 = arith.mulf %2, %4 : vector<8x1024xf32>
    %c0_5 = arith.constant 0 : index
    %c0_6 = arith.constant 0 : index
    %6 = vector.load %arg4[%c0_5, %c0_6] : memref<1x1024xf32, #tpu.memory_space<vmem>>, vector<1x1024xf32>
    %7 = vector.broadcast %6 : vector<1x1024xf32> to vector<8x1024xf32>
    %8 = arith.addf %5, %7 : vector<8x1024xf32>
    %cst_7 = arith.constant 0.000000e+00 : f32
    %9 = vector.broadcast %cst_7 : f32 to vector<8x1024xf32>
    %10 = arith.maximumf %8, %9 : vector<8x1024xf32>
    %c0_8 = arith.constant 0 : index
    %c0_9 = arith.constant 0 : index
    %11 = vector.load %arg5[%c0_8, %c0_9] : memref<8x1024xf32, #tpu.memory_space<vmem>>, vector<8x1024xf32>
    tpu.vector_store %arg5[%c0_8, %c0_9], %10 {strides = array<i32>} : memref<8x1024xf32, #tpu.memory_space<vmem>>, vector<8x1024xf32>,
    return
  }
  func.func @transform_0(%arg0: i32) -> (i32, i32) {
    %c0_i32 = arith.constant 0 : i32
    %c0_i32_0 = arith.constant 0 : i32
    return %arg0, %c0_i32 : i32, i32
  }
  func.func @transform_1(%arg0: i32) -> (i32, i32) {
    %c0_i32 = arith.constant 0 : i32
    %c0_i32_0 = arith.constant 0 : i32
    %c0_i32_1 = arith.constant 0 : i32
    return %c0_i32, %c0_i32_0 : i32, i32
  }
  func.func @transform_2(%arg0: i32) -> (i32, i32) {
    %c0_i32 = arith.constant 0 : i32
    %c0_i32_0 = arith.constant 0 : i32
    %c0_i32_1 = arith.constant 0 : i32
    return %c0_i32, %c0_i32_0 : i32, i32
  }
  func.func @transform_3(%arg0: i32) -> (i32, i32) {
    %c0_i32 = arith.constant 0 : i32
    %c0_i32_0 = arith.constant 0 : i32
    %c0_i32_1 = arith.constant 0 : i32
    return %c0_i32, %c0_i32_0 : i32, i32
  }
  func.func @transform_4(%arg0: i32) -> (i32, i32) {
    %c0_i32 = arith.constant 0 : i32
    %c0_i32_0 = arith.constant 0 : i32
    return %arg0, %c0_i32 : i32, i32
  }
}

module attributes {stable_mosaic.version = 11 : i64} {
  func.func @_stats_kernel(%arg0: i32, %arg1: memref<32x128xbf16, #tpu.memory_space<vmem>>, %arg2: memref<1x128xf32, #tpu.memory_space<vmem>>, %arg3: memref<128x128xf32, #tpu.memory_space<vmem>>) attributes {dimension_semantics = [#tpu.dimension_semantics<arbitrary>], iteration_bounds = array<i64: 1>, scalar_prefetch = 0 : i64, scratch_operands = 0 : i64, tpu.core_type = #tpu.core_type<tc>, window_params = [{transform_indices = @transform_0, window_bounds = array<i64: 32, 128>}, {pipeline_mode = #tpu.pipeline_mode<synchronous>, transform_indices = @transform_1, window_bounds = array<i64: 1, 128>}, {pipeline_mode = #tpu.pipeline_mode<synchronous>, transform_indices = @transform_2, window_bounds = array<i64: 128, 128>}]} {
    %c0_i32 = arith.constant 0 : i32
    %0 = arith.cmpi eq, %arg0, %c0_i32 : i32
    %1 = arith.extui %0 : i1 to i32
    %c0_i32_0 = arith.constant 0 : i32
    %2 = arith.cmpi ne, %1, %c0_i32_0 : i32
    scf.if %2 {
      %cst_11 = arith.constant 0.000000e+00 : f32
      %14 = vector.broadcast %cst_11 : f32 to vector<1x128xf32>
      %c0_12 = arith.constant 0 : index
      %c0_13 = arith.constant 0 : index
      %15 = vector.load %arg2[%c0_12, %c0_13] : memref<1x128xf32, #tpu.memory_space<vmem>>, vector<1x128xf32>
      tpu.vector_store %arg2[%c0_12, %c0_13], %14 {strides = array<i32>} : memref<1x128xf32, #tpu.memory_space<vmem>>, vector<1x128xf32>,
      %cst_14 = arith.constant 0.000000e+00 : f32
      %16 = vector.broadcast %cst_14 : f32 to vector<128x128xf32>
      %c0_15 = arith.constant 0 : index
      %c0_16 = arith.constant 0 : index
      %17 = vector.load %arg3[%c0_15, %c0_16] : memref<128x128xf32, #tpu.memory_space<vmem>>, vector<128x128xf32>
      tpu.vector_store %arg3[%c0_15, %c0_16], %16 {strides = array<i32>} : memref<128x128xf32, #tpu.memory_space<vmem>>, vector<128x128xf32>,
    } else {
    }
    %c0 = arith.constant 0 : index
    %c0_1 = arith.constant 0 : index
    %3 = vector.load %arg1[%c0, %c0_1] : memref<32x128xbf16, #tpu.memory_space<vmem>>, vector<32x128xbf16>
    %c0_2 = arith.constant 0 : index
    %c0_3 = arith.constant 0 : index
    %4 = vector.load %arg2[%c0_2, %c0_3] : memref<1x128xf32, #tpu.memory_space<vmem>>, vector<1x128xf32>
    %5 = arith.extf %3 : vector<32x128xbf16> to vector<32x128xf32>
    %cst = arith.constant dense<0.000000e+00> : vector<128xf32>
    %6 = vector.multi_reduction <add>, %5, %cst [0] : vector<32x128xf32> to vector<128xf32>
    %7 = vector.shape_cast %6 : vector<128xf32> to vector<1x128xf32>
    %8 = arith.addf %4, %7 : vector<1x128xf32>
    %c0_4 = arith.constant 0 : index
    %c0_5 = arith.constant 0 : index
    %9 = vector.load %arg2[%c0_4, %c0_5] : memref<1x128xf32, #tpu.memory_space<vmem>>, vector<1x128xf32>
    tpu.vector_store %arg2[%c0_4, %c0_5], %8 {strides = array<i32>} : memref<1x128xf32, #tpu.memory_space<vmem>>, vector<1x128xf32>,
    %c0_6 = arith.constant 0 : index
    %c0_7 = arith.constant 0 : index
    %10 = vector.load %arg3[%c0_6, %c0_7] : memref<128x128xf32, #tpu.memory_space<vmem>>, vector<128x128xf32>
    %cst_8 = arith.constant dense<0.000000e+00> : vector<128x128xf32>
    %11 = tpu.matmul %3, %3, %cst_8 {dimension_numbers = #tpu.dot_dimension_numbers<[0], [0], [1], [1], [0, 1, 1, 1], [], []>} : vector<32x128xbf16>, vector<32x128xbf16>, vector<128x128xf32> -> vector<128x128xf32>
    %12 = arith.addf %10, %11 : vector<128x128xf32>
    %c0_9 = arith.constant 0 : index
    %c0_10 = arith.constant 0 : index
    %13 = vector.load %arg3[%c0_9, %c0_10] : memref<128x128xf32, #tpu.memory_space<vmem>>, vector<128x128xf32>
    tpu.vector_store %arg3[%c0_9, %c0_10], %12 {strides = array<i32>} : memref<128x128xf32, #tpu.memory_space<vmem>>, vector<128x128xf32>,
    return
  }
  func.func @transform_0(%arg0: i32) -> (i32, i32) {
    %c0_i32 = arith.constant 0 : i32
    %c0_i32_0 = arith.constant 0 : i32
    return %arg0, %c0_i32 : i32, i32
  }
  func.func @transform_1(%arg0: i32) -> (i32, i32) {
    %c0_i32 = arith.constant 0 : i32
    %c0_i32_0 = arith.constant 0 : i32
    %c0_i32_1 = arith.constant 0 : i32
    return %c0_i32, %c0_i32_0 : i32, i32
  }
  func.func @transform_2(%arg0: i32) -> (i32, i32) {
    %c0_i32 = arith.constant 0 : i32
    %c0_i32_0 = arith.constant 0 : i32
    %c0_i32_1 = arith.constant 0 : i32
    return %c0_i32, %c0_i32_0 : i32, i32
  }
}

module attributes {stable_mosaic.version = 11 : i64} {
  func.func @_apply_kernel(%arg0: i32, %arg1: memref<32x128xbf16, #tpu.memory_space<vmem>>, %arg2: memref<128x512xbf16, #tpu.memory_space<vmem>>, %arg3: memref<1x512xf32, #tpu.memory_space<vmem>>, %arg4: memref<1x512xf32, #tpu.memory_space<vmem>>, %arg5: memref<32x512xf32, #tpu.memory_space<vmem>>) attributes {dimension_semantics = [#tpu.dimension_semantics<parallel>], iteration_bounds = array<i64: 1>, scalar_prefetch = 0 : i64, scratch_operands = 0 : i64, tpu.core_type = #tpu.core_type<tc>, window_params = [{transform_indices = @transform_0, window_bounds = array<i64: 32, 128>}, {pipeline_mode = #tpu.pipeline_mode<synchronous>, transform_indices = @transform_1, window_bounds = array<i64: 128, 512>}, {pipeline_mode = #tpu.pipeline_mode<synchronous>, transform_indices = @transform_2, window_bounds = array<i64: 1, 512>}, {pipeline_mode = #tpu.pipeline_mode<synchronous>, transform_indices = @transform_3, window_bounds = array<i64: 1, 512>}, {transform_indices = @transform_4, window_bounds = array<i64: 32, 512>}]} {
    %c0 = arith.constant 0 : index
    %c0_0 = arith.constant 0 : index
    %0 = vector.load %arg1[%c0, %c0_0] : memref<32x128xbf16, #tpu.memory_space<vmem>>, vector<32x128xbf16>
    %c0_1 = arith.constant 0 : index
    %c0_2 = arith.constant 0 : index
    %1 = vector.load %arg2[%c0_1, %c0_2] : memref<128x512xbf16, #tpu.memory_space<vmem>>, vector<128x512xbf16>
    %cst = arith.constant dense<0.000000e+00> : vector<32x512xf32>
    %2 = tpu.matmul %0, %1, %cst {dimension_numbers = #tpu.dot_dimension_numbers<[1], [0], [0], [1], [0, 0, 1, 1], [], []>} : vector<32x128xbf16>, vector<128x512xbf16>, vector<32x512xf32> -> vector<32x512xf32>
    %c0_3 = arith.constant 0 : index
    %c0_4 = arith.constant 0 : index
    %3 = vector.load %arg3[%c0_3, %c0_4] : memref<1x512xf32, #tpu.memory_space<vmem>>, vector<1x512xf32>
    %4 = vector.broadcast %3 : vector<1x512xf32> to vector<32x512xf32>
    %5 = arith.mulf %2, %4 : vector<32x512xf32>
    %c0_5 = arith.constant 0 : index
    %c0_6 = arith.constant 0 : index
    %6 = vector.load %arg4[%c0_5, %c0_6] : memref<1x512xf32, #tpu.memory_space<vmem>>, vector<1x512xf32>
    %7 = vector.broadcast %6 : vector<1x512xf32> to vector<32x512xf32>
    %8 = arith.addf %5, %7 : vector<32x512xf32>
    %cst_7 = arith.constant 0.000000e+00 : f32
    %9 = vector.broadcast %cst_7 : f32 to vector<32x512xf32>
    %10 = arith.maximumf %8, %9 : vector<32x512xf32>
    %c0_8 = arith.constant 0 : index
    %c0_9 = arith.constant 0 : index
    %11 = vector.load %arg5[%c0_8, %c0_9] : memref<32x512xf32, #tpu.memory_space<vmem>>, vector<32x512xf32>
    tpu.vector_store %arg5[%c0_8, %c0_9], %10 {strides = array<i32>} : memref<32x512xf32, #tpu.memory_space<vmem>>, vector<32x512xf32>,
    return
  }
  func.func @transform_0(%arg0: i32) -> (i32, i32) {
    %c0_i32 = arith.constant 0 : i32
    %c0_i32_0 = arith.constant 0 : i32
    return %arg0, %c0_i32 : i32, i32
  }
  func.func @transform_1(%arg0: i32) -> (i32, i32) {
    %c0_i32 = arith.constant 0 : i32
    %c0_i32_0 = arith.constant 0 : i32
    %c0_i32_1 = arith.constant 0 : i32
    return %c0_i32, %c0_i32_0 : i32, i32
  }
  func.func @transform_2(%arg0: i32) -> (i32, i32) {
    %c0_i32 = arith.constant 0 : i32
    %c0_i32_0 = arith.constant 0 : i32
    %c0_i32_1 = arith.constant 0 : i32
    return %c0_i32, %c0_i32_0 : i32, i32
  }
  func.func @transform_3(%arg0: i32) -> (i32, i32) {
    %c0_i32 = arith.constant 0 : i32
    %c0_i32_0 = arith.constant 0 : i32
    %c0_i32_1 = arith.constant 0 : i32
    return %c0_i32, %c0_i32_0 : i32, i32
  }
  func.func @transform_4(%arg0: i32) -> (i32, i32) {
    %c0_i32 = arith.constant 0 : i32
    %c0_i32_0 = arith.constant 0 : i32
    return %arg0, %c0_i32 : i32, i32
  }
}

module attributes {stable_mosaic.version = 11 : i64} {
  func.func @_stats_kernel(%arg0: i32, %arg1: memref<128x64xbf16, #tpu.memory_space<vmem>>, %arg2: memref<1x64xf32, #tpu.memory_space<vmem>>, %arg3: memref<64x64xf32, #tpu.memory_space<vmem>>) attributes {dimension_semantics = [#tpu.dimension_semantics<arbitrary>], iteration_bounds = array<i64: 1>, scalar_prefetch = 0 : i64, scratch_operands = 0 : i64, tpu.core_type = #tpu.core_type<tc>, window_params = [{transform_indices = @transform_0, window_bounds = array<i64: 128, 64>}, {pipeline_mode = #tpu.pipeline_mode<synchronous>, transform_indices = @transform_1, window_bounds = array<i64: 1, 64>}, {pipeline_mode = #tpu.pipeline_mode<synchronous>, transform_indices = @transform_2, window_bounds = array<i64: 64, 64>}]} {
    %c0_i32 = arith.constant 0 : i32
    %0 = arith.cmpi eq, %arg0, %c0_i32 : i32
    %1 = arith.extui %0 : i1 to i32
    %c0_i32_0 = arith.constant 0 : i32
    %2 = arith.cmpi ne, %1, %c0_i32_0 : i32
    scf.if %2 {
      %cst_11 = arith.constant 0.000000e+00 : f32
      %14 = vector.broadcast %cst_11 : f32 to vector<1x64xf32>
      %c0_12 = arith.constant 0 : index
      %c0_13 = arith.constant 0 : index
      %15 = vector.load %arg2[%c0_12, %c0_13] : memref<1x64xf32, #tpu.memory_space<vmem>>, vector<1x64xf32>
      tpu.vector_store %arg2[%c0_12, %c0_13], %14 {strides = array<i32>} : memref<1x64xf32, #tpu.memory_space<vmem>>, vector<1x64xf32>,
      %cst_14 = arith.constant 0.000000e+00 : f32
      %16 = vector.broadcast %cst_14 : f32 to vector<64x64xf32>
      %c0_15 = arith.constant 0 : index
      %c0_16 = arith.constant 0 : index
      %17 = vector.load %arg3[%c0_15, %c0_16] : memref<64x64xf32, #tpu.memory_space<vmem>>, vector<64x64xf32>
      tpu.vector_store %arg3[%c0_15, %c0_16], %16 {strides = array<i32>} : memref<64x64xf32, #tpu.memory_space<vmem>>, vector<64x64xf32>,
    } else {
    }
    %c0 = arith.constant 0 : index
    %c0_1 = arith.constant 0 : index
    %3 = vector.load %arg1[%c0, %c0_1] : memref<128x64xbf16, #tpu.memory_space<vmem>>, vector<128x64xbf16>
    %c0_2 = arith.constant 0 : index
    %c0_3 = arith.constant 0 : index
    %4 = vector.load %arg2[%c0_2, %c0_3] : memref<1x64xf32, #tpu.memory_space<vmem>>, vector<1x64xf32>
    %5 = arith.extf %3 : vector<128x64xbf16> to vector<128x64xf32>
    %cst = arith.constant dense<0.000000e+00> : vector<64xf32>
    %6 = vector.multi_reduction <add>, %5, %cst [0] : vector<128x64xf32> to vector<64xf32>
    %7 = vector.shape_cast %6 : vector<64xf32> to vector<1x64xf32>
    %8 = arith.addf %4, %7 : vector<1x64xf32>
    %c0_4 = arith.constant 0 : index
    %c0_5 = arith.constant 0 : index
    %9 = vector.load %arg2[%c0_4, %c0_5] : memref<1x64xf32, #tpu.memory_space<vmem>>, vector<1x64xf32>
    tpu.vector_store %arg2[%c0_4, %c0_5], %8 {strides = array<i32>} : memref<1x64xf32, #tpu.memory_space<vmem>>, vector<1x64xf32>,
    %c0_6 = arith.constant 0 : index
    %c0_7 = arith.constant 0 : index
    %10 = vector.load %arg3[%c0_6, %c0_7] : memref<64x64xf32, #tpu.memory_space<vmem>>, vector<64x64xf32>
    %cst_8 = arith.constant dense<0.000000e+00> : vector<64x64xf32>
    %11 = tpu.matmul %3, %3, %cst_8 {dimension_numbers = #tpu.dot_dimension_numbers<[0], [0], [1], [1], [0, 1, 1, 1], [], []>} : vector<128x64xbf16>, vector<128x64xbf16>, vector<64x64xf32> -> vector<64x64xf32>
    %12 = arith.addf %10, %11 : vector<64x64xf32>
    %c0_9 = arith.constant 0 : index
    %c0_10 = arith.constant 0 : index
    %13 = vector.load %arg3[%c0_9, %c0_10] : memref<64x64xf32, #tpu.memory_space<vmem>>, vector<64x64xf32>
    tpu.vector_store %arg3[%c0_9, %c0_10], %12 {strides = array<i32>} : memref<64x64xf32, #tpu.memory_space<vmem>>, vector<64x64xf32>,
    return
  }
  func.func @transform_0(%arg0: i32) -> (i32, i32) {
    %c0_i32 = arith.constant 0 : i32
    %c0_i32_0 = arith.constant 0 : i32
    return %arg0, %c0_i32 : i32, i32
  }
  func.func @transform_1(%arg0: i32) -> (i32, i32) {
    %c0_i32 = arith.constant 0 : i32
    %c0_i32_0 = arith.constant 0 : i32
    %c0_i32_1 = arith.constant 0 : i32
    return %c0_i32, %c0_i32_0 : i32, i32
  }
  func.func @transform_2(%arg0: i32) -> (i32, i32) {
    %c0_i32 = arith.constant 0 : i32
    %c0_i32_0 = arith.constant 0 : i32
    %c0_i32_1 = arith.constant 0 : i32
    return %c0_i32, %c0_i32_0 : i32, i32
  }
}

module attributes {stable_mosaic.version = 11 : i64} {
  func.func @_apply_kernel(%arg0: i32, %arg1: memref<128x64xbf16, #tpu.memory_space<vmem>>, %arg2: memref<64x256xbf16, #tpu.memory_space<vmem>>, %arg3: memref<1x256xf32, #tpu.memory_space<vmem>>, %arg4: memref<1x256xf32, #tpu.memory_space<vmem>>, %arg5: memref<128x256xf32, #tpu.memory_space<vmem>>) attributes {dimension_semantics = [#tpu.dimension_semantics<parallel>], iteration_bounds = array<i64: 1>, scalar_prefetch = 0 : i64, scratch_operands = 0 : i64, tpu.core_type = #tpu.core_type<tc>, window_params = [{transform_indices = @transform_0, window_bounds = array<i64: 128, 64>}, {pipeline_mode = #tpu.pipeline_mode<synchronous>, transform_indices = @transform_1, window_bounds = array<i64: 64, 256>}, {pipeline_mode = #tpu.pipeline_mode<synchronous>, transform_indices = @transform_2, window_bounds = array<i64: 1, 256>}, {pipeline_mode = #tpu.pipeline_mode<synchronous>, transform_indices = @transform_3, window_bounds = array<i64: 1, 256>}, {transform_indices = @transform_4, window_bounds = array<i64: 128, 256>}]} {
    %c0 = arith.constant 0 : index
    %c0_0 = arith.constant 0 : index
    %0 = vector.load %arg1[%c0, %c0_0] : memref<128x64xbf16, #tpu.memory_space<vmem>>, vector<128x64xbf16>
    %c0_1 = arith.constant 0 : index
    %c0_2 = arith.constant 0 : index
    %1 = vector.load %arg2[%c0_1, %c0_2] : memref<64x256xbf16, #tpu.memory_space<vmem>>, vector<64x256xbf16>
    %cst = arith.constant dense<0.000000e+00> : vector<128x256xf32>
    %2 = tpu.matmul %0, %1, %cst {dimension_numbers = #tpu.dot_dimension_numbers<[1], [0], [0], [1], [0, 0, 1, 1], [], []>} : vector<128x64xbf16>, vector<64x256xbf16>, vector<128x256xf32> -> vector<128x256xf32>
    %c0_3 = arith.constant 0 : index
    %c0_4 = arith.constant 0 : index
    %3 = vector.load %arg3[%c0_3, %c0_4] : memref<1x256xf32, #tpu.memory_space<vmem>>, vector<1x256xf32>
    %4 = vector.broadcast %3 : vector<1x256xf32> to vector<128x256xf32>
    %5 = arith.mulf %2, %4 : vector<128x256xf32>
    %c0_5 = arith.constant 0 : index
    %c0_6 = arith.constant 0 : index
    %6 = vector.load %arg4[%c0_5, %c0_6] : memref<1x256xf32, #tpu.memory_space<vmem>>, vector<1x256xf32>
    %7 = vector.broadcast %6 : vector<1x256xf32> to vector<128x256xf32>
    %8 = arith.addf %5, %7 : vector<128x256xf32>
    %cst_7 = arith.constant 0.000000e+00 : f32
    %9 = vector.broadcast %cst_7 : f32 to vector<128x256xf32>
    %10 = arith.maximumf %8, %9 : vector<128x256xf32>
    %c0_8 = arith.constant 0 : index
    %c0_9 = arith.constant 0 : index
    %11 = vector.load %arg5[%c0_8, %c0_9] : memref<128x256xf32, #tpu.memory_space<vmem>>, vector<128x256xf32>
    tpu.vector_store %arg5[%c0_8, %c0_9], %10 {strides = array<i32>} : memref<128x256xf32, #tpu.memory_space<vmem>>, vector<128x256xf32>,
    return
  }
  func.func @transform_0(%arg0: i32) -> (i32, i32) {
    %c0_i32 = arith.constant 0 : i32
    %c0_i32_0 = arith.constant 0 : i32
    return %arg0, %c0_i32 : i32, i32
  }
  func.func @transform_1(%arg0: i32) -> (i32, i32) {
    %c0_i32 = arith.constant 0 : i32
    %c0_i32_0 = arith.constant 0 : i32
    %c0_i32_1 = arith.constant 0 : i32
    return %c0_i32, %c0_i32_0 : i32, i32
  }
  func.func @transform_2(%arg0: i32) -> (i32, i32) {
    %c0_i32 = arith.constant 0 : i32
    %c0_i32_0 = arith.constant 0 : i32
    %c0_i32_1 = arith.constant 0 : i32
    return %c0_i32, %c0_i32_0 : i32, i32
  }
  func.func @transform_3(%arg0: i32) -> (i32, i32) {
    %c0_i32 = arith.constant 0 : i32
    %c0_i32_0 = arith.constant 0 : i32
    %c0_i32_1 = arith.constant 0 : i32
    return %c0_i32, %c0_i32_0 : i32, i32
  }
  func.func @transform_4(%arg0: i32) -> (i32, i32) {
    %c0_i32 = arith.constant 0 : i32
    %c0_i32_0 = arith.constant 0 : i32
    return %arg0, %c0_i32 : i32, i32
  }
}

</mosaic_0001>

<llo_original>
// kernel: channel_distill_forward.14
$region0: #{channel_distill_forward.14}
  #allocation0 [shape = 'u32[]', space=smem, size = 0x4, offset = 0x4, fixed_abs, tag = 'smem constant byte address 0x4 - core index']
  #allocation1 [shape = 'u32[72,128]{1,0:T(1,128)}', space=vmem, size = 0x9000, scoped, tag = 'internal scratch']
  %s0 = inlined_call_operand.vmem [shape: bf16[8,512], index: 0, kind: input, shape index: {}]
  %s1 = inlined_call_operand.vmem [shape: f32[1,512], index: 1, kind: output, shape index: {0}]
  %s2 = inlined_call_operand.vmem [shape: f32[512,512], index: 2, kind: output, shape index: {1}]
  %3 = xla_tuple %s1, %s2
  %s4 = sld [smem:[#allocation0]]
  $region26: #{channel_distill_forward.14} parent=0
    _
  %s6 = ssub.s32 1, %s4
  %s7 = scalar_select 0, %s6, %s4
  // Predicated region
  $region2: #{channel_distill_forward.14} parent=0 // pred_check
    _
  $region3: #{channel_distill_forward.14} parent=0 // pred_check_branch
    %9 = sbr.rel (0) target = $region5
  $region4: #{channel_distill_forward.14} parent=0 // pred_region
    _
  $region5: #{channel_distill_forward.14} parent=0 // pred_fallthru
    _
  %p11 = scmp.eq.s32.totalorder 0, 0
  // Predicated region
  $region6: #{channel_distill_forward.14} parent=0 // pred_check
    %p12 = pneg %p11
  $region7: #{channel_distill_forward.14} parent=0 // pred_check_branch
    %14 = sbr.rel (%p12) target = $region9
  $region8: #{channel_distill_forward.14} parent=0 // pred_region
    %v15 = vlaneseq
    %vm16 = vcmp.ge.s32.totalorder %v15, 0
    %vm17 = vcmp.lt.s32.totalorder %v15, 512
    %vm18 = vmand %vm16, %vm17
    %19 = vst.msk [vmem:[%s1] sm:$0xf] %vm18, 0.0
    %20 = vst [vmem:[%s2] sm:$0xff] 0.0
    %21 = vst [vmem:[%s2 + $0x8] sm:$0xff] 0.0
    %22 = vst [vmem:[%s2 + $0x10] sm:$0xff] 0.0
    %23 = vst [vmem:[%s2 + $0x18] sm:$0xff] 0.0
    %24 = vst [vmem:[%s2 + $0x20] sm:$0xff] 0.0
    %25 = vst [vmem:[%s2 + $0x28] sm:$0xff] 0.0
    %26 = vst [vmem:[%s2 + $0x30] sm:$0xff] 0.0
    %27 = vst [vmem:[%s2 + $0x38] sm:$0xff] 0.0
    %28 = vst [vmem:[%s2 + $0x40] sm:$0xff] 0.0
    %29 = vst [vmem:[%s2 + $0x48] sm:$0xff] 0.0
    %30 = vst [vmem:[%s2 + $0x50] sm:$0xff] 0.0
    %31 = vst [vmem:[%s2 + $0x58] sm:$0xff] 0.0
    %32 = vst [vmem:[%s2 + $0x60] sm:$0xff] 0.0
    %33 = vst [vmem:[%s2 + $0x68] sm:$0xff] 0.0
    %34 = vst [vmem:[%s2 + $0x70] sm:$0xff] 0.0
    %35 = vst [vmem:[%s2 + $0x78] sm:$0xff] 0.0
    %36 = vst [vmem:[%s2 + $0x80] sm:$0xff] 0.0
    %37 = vst [vmem:[%s2 + $0x88] sm:$0xff] 0.0
    %38 = vst [vmem:[%s2 + $0x90] sm:$0xff] 0.0
    %39 = vst [vmem:[%s2 + $0x98] sm:$0xff] 0.0
    %40 = vst [vmem:[%s2 + $0xa0] sm:$0xff] 0.0
    %41 = vst [vmem:[%s2 + $0xa8] sm:$0xff] 0.0
    %42 = vst [vmem:[%s2 + $0xb0] sm:$0xff] 0.0
    %43 = vst [vmem:[%s2 + $0xb8] sm:$0xff] 0.0
    %44 = vst [vmem:[%s2 + $0xc0] sm:$0xff] 0.0
    %45 = vst [vmem:[%s2 + $0xc8] sm:$0xff] 0.0
    %46 = vst [vmem:[%s2 + $0xd0] sm:$0xff] 0.0
    %47 = vst [vmem:[%s2 + $0xd8] sm:$0xff] 0.0
    %48 = vst [vmem:[%s2 + $0xe0] sm:$0xff] 0.0
    %49 = vst [vmem:[%s2 + $0xe8] sm:$0xff] 0.0
    %50 = vst [vmem:[%s2 + $0xf0] sm:$0xff] 0.0
    %51 = vst [vmem:[%s2 + $0xf8] sm:$0xff] 0.0
    %52 = vst [vmem:[%s2 + $0x100] sm:$0xff] 0.0
    %53 = vst [vmem:[%s2 + $0x108] sm:$0xff] 0.0
    %54 = vst [vmem:[%s2 + $0x110] sm:$0xff] 0.0
    %55 = vst [vmem:[%s2 + $0x118] sm:$0xff] 0.0
    %56 = vst [vmem:[%s2 + $0x120] sm:$0xff] 0.0
    %57 = vst [vmem:[%s2 + $0x128] sm:$0xff] 0.0
    %58 = vst [vmem:[%s2 + $0x130] sm:$0xff] 0.0
    %59 = vst [vmem:[%s2 + $0x138] sm:$0xff] 0.0
    %60 = vst [vmem:[%s2 + $0x140] sm:$0xff] 0.0
    %61 = vst [vmem:[%s2 + $0x148] sm:$0xff] 0.0
    %62 = vst [vmem:[%s2 + $0x150] sm:$0xff] 0.0
    %63 = vst [vmem:[%s2 + $0x158] sm:$0xff] 0.0
    %64 = vst [vmem:[%s2 + $0x160] sm:$0xff] 0.0
    %65 = vst [vmem:[%s2 + $0x168] sm:$0xff] 0.0
    %66 = vst [vmem:[%s2 + $0x170] sm:$0xff] 0.0
    %67 = vst [vmem:[%s2 + $0x178] sm:$0xff] 0.0
    %68 = vst [vmem:[%s2 + $0x180] sm:$0xff] 0.0
    %69 = vst [vmem:[%s2 + $0x188] sm:$0xff] 0.0
    %70 = vst [vmem:[%s2 + $0x190] sm:$0xff] 0.0
    %71 = vst [vmem:[%s2 + $0x198] sm:$0xff] 0.0
    %72 = vst [vmem:[%s2 + $0x1a0] sm:$0xff] 0.0
    %73 = vst [vmem:[%s2 + $0x1a8] sm:$0xff] 0.0
    %74 = vst [vmem:[%s2 + $0x1b0] sm:$0xff] 0.0
    %75 = vst [vmem:[%s2 + $0x1b8] sm:$0xff] 0.0
    %76 = vst [vmem:[%s2 + $0x1c0] sm:$0xff] 0.0
    %77 = vst [vmem:[%s2 + $0x1c8] sm:$0xff] 0.0
    %78 = vst [vmem:[%s2 + $0x1d0] sm:$0xff] 0.0
    %79 = vst [vmem:[%s2 + $0x1d8] sm:$0xff] 0.0
    %80 = vst [vmem:[%s2 + $0x1e0] sm:$0xff] 0.0
    %81 = vst [vmem:[%s2 + $0x1e8] sm:$0xff] 0.0
    %82 = vst [vmem:[%s2 + $0x1f0] sm:$0xff] 0.0
    %83 = vst [vmem:[%s2 + $0x1f8] sm:$0xff] 0.0
    %84 = vst [vmem:[%s2 + $0x200] sm:$0xff] 0.0
    %85 = vst [vmem:[%s2 + $0x208] sm:$0xff] 0.0
    %86 = vst [vmem:[%s2 + $0x210] sm:$0xff] 0.0
    %87 = vst [vmem:[%s2 + $0x218] sm:$0xff] 0.0
    %88 = vst [vmem:[%s2 + $0x220] sm:$0xff] 0.0
    %89 = vst [vmem:[%s2 + $0x228] sm:$0xff] 0.0
    %90 = vst [vmem:[%s2 + $0x230] sm:$0xff] 0.0
    %91 = vst [vmem:[%s2 + $0x238] sm:$0xff] 0.0
    %92 = vst [vmem:[%s2 + $0x240] sm:$0xff] 0.0
    %93 = vst [vmem:[%s2 + $0x248] sm:$0xff] 0.0
    %94 = vst [vmem:[%s2 + $0x250] sm:$0xff] 0.0
    %95 = vst [vmem:[%s2 + $0x258] sm:$0xff] 0.0
    %96 = vst [vmem:[%s2 + $0x260] sm:$0xff] 0.0
    %97 = vst [vmem:[%s2 + $0x268] sm:$0xff] 0.0
    %98 = vst [vmem:[%s2 + $0x270] sm:$0xff] 0.0
    %99 = vst [vmem:[%s2 + $0x278] sm:$0xff] 0.0
    %100 = vst [vmem:[%s2 + $0x280] sm:$0xff] 0.0
    %101 = vst [vmem:[%s2 + $0x288] sm:$0xff] 0.0
    %102 = vst [vmem:[%s2 + $0x290] sm:$0xff] 0.0
    %103 = vst [vmem:[%s2 + $0x298] sm:$0xff] 0.0
    %104 = vst [vmem:[%s2 + $0x2a0] sm:$0xff] 0.0
    %105 = vst [vmem:[%s2 + $0x2a8] sm:$0xff] 0.0
    %106 = vst [vmem:[%s2 + $0x2b0] sm:$0xff] 0.0
    %107 = vst [vmem:[%s2 + $0x2b8] sm:$0xff] 0.0
    %108 = vst [vmem:[%s2 + $0x2c0] sm:$0xff] 0.0
    %109 = vst [vmem:[%s2 + $0x2c8] sm:$0xff] 0.0
    %110 = vst [vmem:[%s2 + $0x2d0] sm:$0xff] 0.0
    %111 = vst [vmem:[%s2 + $0x2d8] sm:$0xff] 0.0
    %112 = vst [vmem:[%s2 + $0x2e0] sm:$0xff] 0.0
    %113 = vst [vmem:[%s2 + $0x2e8] sm:$0xff] 0.0
    %114 = vst [vmem:[%s2 + $0x2f0] sm:$0xff] 0.0
    %115 = vst [vmem:[%s2 + $0x2f8] sm:$0xff] 0.0
    %116 = vst [vmem:[%s2 + $0x300] sm:$0xff] 0.0
    %117 = vst [vmem:[%s2 + $0x308] sm:$0xff] 0.0
    %118 = vst [vmem:[%s2 + $0x310] sm:$0xff] 0.0
    %119 = vst [vmem:[%s2 + $0x318] sm:$0xff] 0.0
    %120 = vst [vmem:[%s2 + $0x320] sm:$0xff] 0.0
    %121 = vst [vmem:[%s2 + $0x328] sm:$0xff] 0.0
    %122 = vst [vmem:[%s2 + $0x330] sm:$0xff] 0.0
    %123 = vst [vmem:[%s2 + $0x338] sm:$0xff] 0.0
    %124 = vst [vmem:[%s2 + $0x340] sm:$0xff] 0.0
    %125 = vst [vmem:[%s2 + $0x348] sm:$0xff] 0.0
    %126 = vst [vmem:[%s2 + $0x350] sm:$0xff] 0.0
    %127 = vst [vmem:[%s2 + $0x358] sm:$0xff] 0.0
    %128 = vst [vmem:[%s2 + $0x360] sm:$0xff] 0.0
    %129 = vst [vmem:[%s2 + $0x368] sm:$0xff] 0.0
    %130 = vst [vmem:[%s2 + $0x370] sm:$0xff] 0.0
    %131 = vst [vmem:[%s2 + $0x378] sm:$0xff] 0.0
    %132 = vst [vmem:[%s2 + $0x380] sm:$0xff] 0.0
    %133 = vst [vmem:[%s2 + $0x388] sm:$0xff] 0.0
    %134 = vst [vmem:[%s2 + $0x390] sm:$0xff] 0.0
    %135 = vst [vmem:[%s2 + $0x398] sm:$0xff] 0.0
    %136 = vst [vmem:[%s2 + $0x3a0] sm:$0xff] 0.0
    %137 = vst [vmem:[%s2 + $0x3a8] sm:$0xff] 0.0
    %138 = vst [vmem:[%s2 + $0x3b0] sm:$0xff] 0.0
    %139 = vst [vmem:[%s2 + $0x3b8] sm:$0xff] 0.0
    %140 = vst [vmem:[%s2 + $0x3c0] sm:$0xff] 0.0
    %141 = vst [vmem:[%s2 + $0x3c8] sm:$0xff] 0.0
    %142 = vst [vmem:[%s2 + $0x3d0] sm:$0xff] 0.0
    %143 = vst [vmem:[%s2 + $0x3d8] sm:$0xff] 0.0
    %144 = vst [vmem:[%s2 + $0x3e0] sm:$0xff] 0.0
    %145 = vst [vmem:[%s2 + $0x3e8] sm:$0xff] 0.0
    %146 = vst [vmem:[%s2 + $0x3f0] sm:$0xff] 0.0
    %147 = vst [vmem:[%s2 + $0x3f8] sm:$0xff] 0.0
    %148 = vst [vmem:[%s2 + $0x400] sm:$0xff] 0.0
    %149 = vst [vmem:[%s2 + $0x408] sm:$0xff] 0.0
    %150 = vst [vmem:[%s2 + $0x410] sm:$0xff] 0.0
    %151 = vst [vmem:[%s2 + $0x418] sm:$0xff] 0.0
    %152 = vst [vmem:[%s2 + $0x420] sm:$0xff] 0.0
    %153 = vst [vmem:[%s2 + $0x428] sm:$0xff] 0.0
    %154 = vst [vmem:[%s2 + $0x430] sm:$0xff] 0.0
    %155 = vst [vmem:[%s2 + $0x438] sm:$0xff] 0.0
    %156 = vst [vmem:[%s2 + $0x440] sm:$0xff] 0.0
    %157 = vst [vmem:[%s2 + $0x448] sm:$0xff] 0.0
    %158 = vst [vmem:[%s2 + $0x450] sm:$0xff] 0.0
    %159 = vst [vmem:[%s2 + $0x458] sm:$0xff] 0.0
    %160 = vst [vmem:[%s2 + $0x460] sm:$0xff] 0.0
    %161 = vst [vmem:[%s2 + $0x468] sm:$0xff] 0.0
    %162 = vst [vmem:[%s2 + $0x470] sm:$0xff] 0.0
    %163 = vst [vmem:[%s2 + $0x478] sm:$0xff] 0.0
    %164 = vst [vmem:[%s2 + $0x480] sm:$0xff] 0.0
    %165 = vst [vmem:[%s2 + $0x488] sm:$0xff] 0.0
    %166 = vst [vmem:[%s2 + $0x490] sm:$0xff] 0.0
    %167 = vst [vmem:[%s2 + $0x498] sm:$0xff] 0.0
    %168 = vst [vmem:[%s2 + $0x4a0] sm:$0xff] 0.0
    %169 = vst [vmem:[%s2 + $0x4a8] sm:$0xff] 0.0
    %170 = vst [vmem:[%s2 + $0x4b0] sm:$0xff] 0.0
    %171 = vst [vmem:[%s2 + $0x4b8] sm:$0xff] 0.0
    %172 = vst [vmem:[%s2 + $0x4c0] sm:$0xff] 0.0
    %173 = vst [vmem:[%s2 + $0x4c8] sm:$0xff] 0.0
    %174 = vst [vmem:[%s2 + $0x4d0] sm:$0xff] 0.0
    %175 = vst [vmem:[%s2 + $0x4d8] sm:$0xff] 0.0
    %176 = vst [vmem:[%s2 + $0x4e0] sm:$0xff] 0.0
    %177 = vst [vmem:[%s2 + $0x4e8] sm:$0xff] 0.0
    %178 = vst [vmem:[%s2 + $0x4f0] sm:$0xff] 0.0
    %179 = vst [vmem:[%s2 + $0x4f8] sm:$0xff] 0.0
    %180 = vst [vmem:[%s2 + $0x500] sm:$0xff] 0.0
    %181 = vst [vmem:[%s2 + $0x508] sm:$0xff] 0.0
    %182 = vst [vmem:[%s2 + $0x510] sm:$0xff] 0.0
    %183 = vst [vmem:[%s2 + $0x518] sm:$0xff] 0.0
    %184 = vst [vmem:[%s2 + $0x520] sm:$0xff] 0.0
    %185 = vst [vmem:[%s2 + $0x528] sm:$0xff] 0.0
    %186 = vst [vmem:[%s2 + $0x530] sm:$0xff] 0.0
    %187 = vst [vmem:[%s2 + $0x538] sm:$0xff] 0.0
    %188 = vst [vmem:[%s2 + $0x540] sm:$0xff] 0.0
    %189 = vst [vmem:[%s2 + $0x548] sm:$0xff] 0.0
    %190 = vst [vmem:[%s2 + $0x550] sm:$0xff] 0.0
    %191 = vst [vmem:[%s2 + $0x558] sm:$0xff] 0.0
    %192 = vst [vmem:[%s2 + $0x560] sm:$0xff] 0.0
    %193 = vst [vmem:[%s2 + $0x568] sm:$0xff] 0.0
    %194 = vst [vmem:[%s2 + $0x570] sm:$0xff] 0.0
    %195 = vst [vmem:[%s2 + $0x578] sm:$0xff] 0.0
    %196 = vst [vmem:[%s2 + $0x580] sm:$0xff] 0.0
    %197 = vst [vmem:[%s2 + $0x588] sm:$0xff] 0.0
    %198 = vst [vmem:[%s2 + $0x590] sm:$0xff] 0.0
    %199 = vst [vmem:[%s2 + $0x598] sm:$0xff] 0.0
    %200 = vst [vmem:[%s2 + $0x5a0] sm:$0xff] 0.0
    %201 = vst [vmem:[%s2 + $0x5a8] sm:$0xff] 0.0
    %202 = vst [vmem:[%s2 + $0x5b0] sm:$0xff] 0.0
    %203 = vst [vmem:[%s2 + $0x5b8] sm:$0xff] 0.0
    %204 = vst [vmem:[%s2 + $0x5c0] sm:$0xff] 0.0
    %205 = vst [vmem:[%s2 + $0x5c8] sm:$0xff] 0.0
    %206 = vst [vmem:[%s2 + $0x5d0] sm:$0xff] 0.0
    %207 = vst [vmem:[%s2 + $0x5d8] sm:$0xff] 0.0
    %208 = vst [vmem:[%s2 + $0x5e0] sm:$0xff] 0.0
    %209 = vst [vmem:[%s2 + $0x5e8] sm:$0xff] 0.0
    %210 = vst [vmem:[%s2 + $0x5f0] sm:$0xff] 0.0
    %211 = vst [vmem:[%s2 + $0x5f8] sm:$0xff] 0.0
    %212 = vst [vmem:[%s2 + $0x600] sm:$0xff] 0.0
    %213 = vst [vmem:[%s2 + $0x608] sm:$0xff] 0.0
    %214 = vst [vmem:[%s2 + $0x610] sm:$0xff] 0.0
    %215 = vst [vmem:[%s2 + $0x618] sm:$0xff] 0.0
    %216 = vst [vmem:[%s2 + $0x620] sm:$0xff] 0.0
    %217 = vst [vmem:[%s2 + $0x628] sm:$0xff] 0.0
    %218 = vst [vmem:[%s2 + $0x630] sm:$0xff] 0.0
    %219 = vst [vmem:[%s2 + $0x638] sm:$0xff] 0.0
    %220 = vst [vmem:[%s2 + $0x640] sm:$0xff] 0.0
    %221 = vst [vmem:[%s2 + $0x648] sm:$0xff] 0.0
    %222 = vst [vmem:[%s2 + $0x650] sm:$0xff] 0.0
    %223 = vst [vmem:[%s2 + $0x658] sm:$0xff] 0.0
    %224 = vst [vmem:[%s2 + $0x660] sm:$0xff] 0.0
    %225 = vst [vmem:[%s2 + $0x668] sm:$0xff] 0.0
    %226 = vst [vmem:[%s2 + $0x670] sm:$0xff] 0.0
    %227 = vst [vmem:[%s2 + $0x678] sm:$0xff] 0.0
    %228 = vst [vmem:[%s2 + $0x680] sm:$0xff] 0.0
    %229 = vst [vmem:[%s2 + $0x688] sm:$0xff] 0.0
    %230 = vst [vmem:[%s2 + $0x690] sm:$0xff] 0.0
    %231 = vst [vmem:[%s2 + $0x698] sm:$0xff] 0.0
    %232 = vst [vmem:[%s2 + $0x6a0] sm:$0xff] 0.0
    %233 = vst [vmem:[%s2 + $0x6a8] sm:$0xff] 0.0
    %234 = vst [vmem:[%s2 + $0x6b0] sm:$0xff] 0.0
    %235 = vst [vmem:[%s2 + $0x6b8] sm:$0xff] 0.0
    %236 = vst [vmem:[%s2 + $0x6c0] sm:$0xff] 0.0
    %237 = vst [vmem:[%s2 + $0x6c8] sm:$0xff] 0.0
    %238 = vst [vmem:[%s2 + $0x6d0] sm:$0xff] 0.0
    %239 = vst [vmem:[%s2 + $0x6d8] sm:$0xff] 0.0
    %240 = vst [vmem:[%s2 + $0x6e0] sm:$0xff] 0.0
    %241 = vst [vmem:[%s2 + $0x6e8] sm:$0xff] 0.0
    %242 = vst [vmem:[%s2 + $0x6f0] sm:$0xff] 0.0
    %243 = vst [vmem:[%s2 + $0x6f8] sm:$0xff] 0.0
    %244 = vst [vmem:[%s2 + $0x700] sm:$0xff] 0.0
    %245 = vst [vmem:[%s2 + $0x708] sm:$0xff] 0.0
    %246 = vst [vmem:[%s2 + $0x710] sm:$0xff] 0.0
    %247 = vst [vmem:[%s2 + $0x718] sm:$0xff] 0.0
    %248 = vst [vmem:[%s2 + $0x720] sm:$0xff] 0.0
    %249 = vst [vmem:[%s2 + $0x728] sm:$0xff] 0.0
    %250 = vst [vmem:[%s2 + $0x730] sm:$0xff] 0.0
    %251 = vst [vmem:[%s2 + $0x738] sm:$0xff] 0.0
    %252 = vst [vmem:[%s2 + $0x740] sm:$0xff] 0.0
    %253 = vst [vmem:[%s2 + $0x748] sm:$0xff] 0.0
    %254 = vst [vmem:[%s2 + $0x750] sm:$0xff] 0.0
    %255 = vst [vmem:[%s2 + $0x758] sm:$0xff] 0.0
    %256 = vst [vmem:[%s2 + $0x760] sm:$0xff] 0.0
    %257 = vst [vmem:[%s2 + $0x768] sm:$0xff] 0.0
    %258 = vst [vmem:[%s2 + $0x770] sm:$0xff] 0.0
    %259 = vst [vmem:[%s2 + $0x778] sm:$0xff] 0.0
    %260 = vst [vmem:[%s2 + $0x780] sm:$0xff] 0.0
    %261 = vst [vmem:[%s2 + $0x788] sm:$0xff] 0.0
    %262 = vst [vmem:[%s2 + $0x790] sm:$0xff] 0.0
    %263 = vst [vmem:[%s2 + $0x798] sm:$0xff] 0.0
    %264 = vst [vmem:[%s2 + $0x7a0] sm:$0xff] 0.0
    %265 = vst [vmem:[%s2 + $0x7a8] sm:$0xff] 0.0
    %266 = vst [vmem:[%s2 + $0x7b0] sm:$0xff] 0.0
    %267 = vst [vmem:[%s2 + $0x7b8] sm:$0xff] 0.0
    %268 = vst [vmem:[%s2 + $0x7c0] sm:$0xff] 0.0
    %269 = vst [vmem:[%s2 + $0x7c8] sm:$0xff] 0.0
    %270 = vst [vmem:[%s2 + $0x7d0] sm:$0xff] 0.0
    %271 = vst [vmem:[%s2 + $0x7d8] sm:$0xff] 0.0
    %272 = vst [vmem:[%s2 + $0x7e0] sm:$0xff] 0.0
    %273 = vst [vmem:[%s2 + $0x7e8] sm:$0xff] 0.0
    %274 = vst [vmem:[%s2 + $0x7f0] sm:$0xff] 0.0
    %275 = vst [vmem:[%s2 + $0x7f8] sm:$0xff] 0.0
  $region9: #{channel_distill_forward.14} parent=0 // pred_fallthru
    _
  %v276 = vld [vmem:[%s0] sm:$0xff]
  %v277 = vld [vmem:[%s0 + $0x8] sm:$0xff]
  %v278 = vld [vmem:[%s1] sm:$0xf]
  %v279 = vunpack.c.l.bf16 %v276
  %v280 = vunpack.c.h.bf16 %v276
  %v281 = vunpack.c.l.bf16 %v277
  %v282 = vunpack.c.h.bf16 %v277
  %v283 = vrot.slane %v279, 4
  %v284 = vadd.f32 %v279, %v283
  %v285 = vrot.slane %v284, 2
  %v286 = vadd.f32 %v284, %v285
  %v287 = vrot.slane %v286, 1
  %v288 = vadd.f32 %v286, %v287
  %v289 = vrot.slane %v280, 4
  %v290 = vadd.f32 %v280, %v289
  %v291 = vrot.slane %v290, 2
  %v292 = vadd.f32 %v290, %v291
  %v293 = vrot.slane %v292, 1
  %v294 = vadd.f32 %v292, %v293
  %v295 = vrot.slane %v281, 4
  %v296 = vadd.f32 %v281, %v295
  %v297 = vrot.slane %v296, 2
  %v298 = vadd.f32 %v296, %v297
  %v299 = vrot.slane %v298, 1
  %v300 = vadd.f32 %v298, %v299
  %v301 = vrot.slane %v282, 4
  %v302 = vadd.f32 %v282, %v301
  %v303 = vrot.slane %v302, 2
  %v304 = vadd.f32 %v302, %v303
  %v305 = vrot.slane %v304, 1
  %v306 = vadd.f32 %v304, %v305
  %v311 = vrot.slane %v294, 7
  %v312 = vrot.slane %v300, 6
  %v313 = vrot.slane %v306, 5
  %vm314 = vcmask 1040384
  %v315 = vsel %vm314, %v288, %v311
  %vm316 = vcmask 1042434
  %v317 = vsel %vm316, %v312, %v313
  %vm318 = vcmask 1041408
  %v319 = vsel %vm318, %v315, %v317
  %v321 = vadd.f32 %v278, %v319
  %v322 = vlaneseq
  %vm323 = vcmp.ge.s32.totalorder %v322, 0
  %vm324 = vcmp.lt.s32.totalorder %v322, 512
  %vm325 = vmand %vm323, %vm324
  %326 = vst.msk [vmem:[%s1] sm:$0xf] %vm325, %v321
  %v327 = vld [vmem:[%s2] sm:$0xff]
  %v328 = vld [vmem:[%s2 + $0x8] sm:$0xff]
  %v329 = vld [vmem:[%s2 + $0x10] sm:$0xff]
  %v330 = vld [vmem:[%s2 + $0x18] sm:$0xff]
  %v331 = vld [vmem:[%s2 + $0x20] sm:$0xff]
  %v332 = vld [vmem:[%s2 + $0x28] sm:$0xff]
  %v333 = vld [vmem:[%s2 + $0x30] sm:$0xff]
  %v334 = vld [vmem:[%s2 + $0x38] sm:$0xff]
  %v335 = vld [vmem:[%s2 + $0x40] sm:$0xff]
  %v336 = vld [vmem:[%s2 + $0x48] sm:$0xff]
  %v337 = vld [vmem:[%s2 + $0x50] sm:$0xff]
  %v338 = vld [vmem:[%s2 + $0x58] sm:$0xff]
  %v339 = vld [vmem:[%s2 + $0x60] sm:$0xff]
  %v340 = vld [vmem:[%s2 + $0x68] sm:$0xff]
  %v341 = vld [vmem:[%s2 + $0x70] sm:$0xff]
  %v342 = vld [vmem:[%s2 + $0x78] sm:$0xff]
  %v343 = vld [vmem:[%s2 + $0x80] sm:$0xff]
  %v344 = vld [vmem:[%s2 + $0x88] sm:$0xff]
  %v345 = vld [vmem:[%s2 + $0x90] sm:$0xff]
  %v346 = vld [vmem:[%s2 + $0x98] sm:$0xff]
  %v347 = vld [vmem:[%s2 + $0xa0] sm:$0xff]
  %v348 = vld [vmem:[%s2 + $0xa8] sm:$0xff]
  %v349 = vld [vmem:[%s2 + $0xb0] sm:$0xff]
  %v350 = vld [vmem:[%s2 + $0xb8] sm:$0xff]
  %v351 = vld [vmem:[%s2 + $0xc0] sm:$0xff]
  %v352 = vld [vmem:[%s2 + $0xc8] sm:$0xff]
  %v353 = vld [vmem:[%s2 + $0xd0] sm:$0xff]
  %v354 = vld [vmem:[%s2 + $0xd8] sm:$0xff]
  %v355 = vld [vmem:[%s2 + $0xe0] sm:$0xff]
  %v356 = vld [vmem:[%s2 + $0xe8] sm:$0xff]
  %v357 = vld [vmem:[%s2 + $0xf0] sm:$0xff]
  %v358 = vld [vmem:[%s2 + $0xf8] sm:$0xff]
  %v359 = vld [vmem:[%s2 + $0x100] sm:$0xff]
  %v360 = vld [vmem:[%s2 + $0x108] sm:$0xff]
  %v361 = vld [vmem:[%s2 + $0x110] sm:$0xff]
  %v362 = vld [vmem:[%s2 + $0x118] sm:$0xff]
  %v363 = vld [vmem:[%s2 + $0x120] sm:$0xff]
  %v364 = vld [vmem:[%s2 + $0x128] sm:$0xff]
  %v365 = vld [vmem:[%s2 + $0x130] sm:$0xff]
  %v366 = vld [vmem:[%s2 + $0x138] sm:$0xff]
  %v367 = vld [vmem:[%s2 + $0x140] sm:$0xff]
  %v368 = vld [vmem:[%s2 + $0x148] sm:$0xff]
  %v369 = vld [vmem:[%s2 + $0x150] sm:$0xff]
  %v370 = vld [vmem:[%s2 + $0x158] sm:$0xff]
  %v371 = vld [vmem:[%s2 + $0x160] sm:$0xff]
  %v372 = vld [vmem:[%s2 + $0x168] sm:$0xff]
  %v373 = vld [vmem:[%s2 + $0x170] sm:$0xff]
  %v374 = vld [vmem:[%s2 + $0x178] sm:$0xff]
  %v375 = vld [vmem:[%s2 + $0x180] sm:$0xff]
  %v376 = vld [vmem:[%s2 + $0x188] sm:$0xff]
  %v377 = vld [vmem:[%s2 + $0x190] sm:$0xff]
  %v378 = vld [vmem:[%s2 + $0x198] sm:$0xff]
  %v379 = vld [vmem:[%s2 + $0x1a0] sm:$0xff]
  %v380 = vld [vmem:[%s2 + $0x1a8] sm:$0xff]
  %v381 = vld [vmem:[%s2 + $0x1b0] sm:$0xff]
  %v382 = vld [vmem:[%s2 + $0x1b8] sm:$0xff]
  %v383 = vld [vmem:[%s2 + $0x1c0] sm:$0xff]
  %v384 = vld [vmem:[%s2 + $0x1c8] sm:$0xff]
  %v385 = vld [vmem:[%s2 + $0x1d0] sm:$0xff]
  %v386 = vld [vmem:[%s2 + $0x1d8] sm:$0xff]
  %v387 = vld [vmem:[%s2 + $0x1e0] sm:$0xff]
  %v388 = vld [vmem:[%s2 + $0x1e8] sm:$0xff]
  %v389 = vld [vmem:[%s2 + $0x1f0] sm:$0xff]
  %v390 = vld [vmem:[%s2 + $0x1f8] sm:$0xff]
  %v391 = vld [vmem:[%s2 + $0x200] sm:$0xff]
  %v392 = vld [vmem:[%s2 + $0x208] sm:$0xff]
  %v393 = vld [vmem:[%s2 + $0x210] sm:$0xff]
  %v394 = vld [vmem:[%s2 + $0x218] sm:$0xff]
  %v395 = vld [vmem:[%s2 + $0x220] sm:$0xff]
  %v396 = vld [vmem:[%s2 + $0x228] sm:$0xff]
  %v397 = vld [vmem:[%s2 + $0x230] sm:$0xff]
  %v398 = vld [vmem:[%s2 + $0x238] sm:$0xff]
  %v399 = vld [vmem:[%s2 + $0x240] sm:$0xff]
  %v400 = vld [vmem:[%s2 + $0x248] sm:$0xff]
  %v401 = vld [vmem:[%s2 + $0x250] sm:$0xff]
  %v402 = vld [vmem:[%s2 + $0x258] sm:$0xff]
  %v403 = vld [vmem:[%s2 + $0x260] sm:$0xff]
  %v404 = vld [vmem:[%s2 + $0x268] sm:$0xff]
  %v405 = vld [vmem:[%s2 + $0x270] sm:$0xff]
  %v406 = vld [vmem:[%s2 + $0x278] sm:$0xff]
  %v407 = vld [vmem:[%s2 + $0x280] sm:$0xff]
  %v408 = vld [vmem:[%s2 + $0x288] sm:$0xff]
  %v409 = vld [vmem:[%s2 + $0x290] sm:$0xff]
  %v410 = vld [vmem:[%s2 + $0x298] sm:$0xff]
  %v411 = vld [vmem:[%s2 + $0x2a0] sm:$0xff]
  %v412 = vld [vmem:[%s2 + $0x2a8] sm:$0xff]
  %v413 = vld [vmem:[%s2 + $0x2b0] sm:$0xff]
  %v414 = vld [vmem:[%s2 + $0x2b8] sm:$0xff]
  %v415 = vld [vmem:[%s2 + $0x2c0] sm:$0xff]
  %v416 = vld [vmem:[%s2 + $0x2c8] sm:$0xff]
  %v417 = vld [vmem:[%s2 + $0x2d0] sm:$0xff]
  %v418 = vld [vmem:[%s2 + $0x2d8] sm:$0xff]
  %v419 = vld [vmem:[%s2 + $0x2e0] sm:$0xff]
  %v420 = vld [vmem:[%s2 + $0x2e8] sm:$0xff]
  %v421 = vld [vmem:[%s2 + $0x2f0] sm:$0xff]
  %v422 = vld [vmem:[%s2 + $0x2f8] sm:$0xff]
  %v423 = vld [vmem:[%s2 + $0x300] sm:$0xff]
  %v424 = vld [vmem:[%s2 + $0x308] sm:$0xff]
  %v425 = vld [vmem:[%s2 + $0x310] sm:$0xff]
  %v426 = vld [vmem:[%s2 + $0x318] sm:$0xff]
  %v427 = vld [vmem:[%s2 + $0x320] sm:$0xff]
  %v428 = vld [vmem:[%s2 + $0x328] sm:$0xff]
  %v429 = vld [vmem:[%s2 + $0x330] sm:$0xff]
  %v430 = vld [vmem:[%s2 + $0x338] sm:$0xff]
  %v431 = vld [vmem:[%s2 + $0x340] sm:$0xff]
  %v432 = vld [vmem:[%s2 + $0x348] sm:$0xff]
  %v433 = vld [vmem:[%s2 + $0x350] sm:$0xff]
  %v434 = vld [vmem:[%s2 + $0x358] sm:$0xff]
  %v435 = vld [vmem:[%s2 + $0x360] sm:$0xff]
  %v436 = vld [vmem:[%s2 + $0x368] sm:$0xff]
  %v437 = vld [vmem:[%s2 + $0x370] sm:$0xff]
  %v438 = vld [vmem:[%s2 + $0x378] sm:$0xff]
  %v439 = vld [vmem:[%s2 + $0x380] sm:$0xff]
  %v440 = vld [vmem:[%s2 + $0x388] sm:$0xff]
  %v441 = vld [vmem:[%s2 + $0x390] sm:$0xff]
  %v442 = vld [vmem:[%s2 + $0x398] sm:$0xff]
  %v443 = vld [vmem:[%s2 + $0x3a0] sm:$0xff]
  %v444 = vld [vmem:[%s2 + $0x3a8] sm:$0xff]
  %v445 = vld [vmem:[%s2 + $0x3b0] sm:$0xff]
  %v446 = vld [vmem:[%s2 + $0x3b8] sm:$0xff]
  %v447 = vld [vmem:[%s2 + $0x3c0] sm:$0xff]
  %v448 = vld [vmem:[%s2 + $0x3c8] sm:$0xff]
  %v449 = vld [vmem:[%s2 + $0x3d0] sm:$0xff]
  %v450 = vld [vmem:[%s2 + $0x3d8] sm:$0xff]
  %v451 = vld [vmem:[%s2 + $0x3e0] sm:$0xff]
  %v452 = vld [vmem:[%s2 + $0x3e8] sm:$0xff]
  %v453 = vld [vmem:[%s2 + $0x3f0] sm:$0xff]
  %v454 = vld [vmem:[%s2 + $0x3f8] sm:$0xff]
  %v455 = vld [vmem:[%s2 + $0x400] sm:$0xff]
  %v456 = vld [vmem:[%s2 + $0x408] sm:$0xff]
  %v457 = vld [vmem:[%s2 + $0x410] sm:$0xff]
  %v458 = vld [vmem:[%s2 + $0x418] sm:$0xff]
  %v459 = vld [vmem:[%s2 + $0x420] sm:$0xff]
  %v460 = vld [vmem:[%s2 + $0x428] sm:$0xff]
  %v461 = vld [vmem:[%s2 + $0x430] sm:$0xff]
  %v462 = vld [vmem:[%s2 + $0x438] sm:$0xff]
  %v463 = vld [vmem:[%s2 + $0x440] sm:$0xff]
  %v464 = vld [vmem:[%s2 + $0x448] sm:$0xff]
  %v465 = vld [vmem:[%s2 + $0x450] sm:$0xff]
  %v466 = vld [vmem:[%s2 + $0x458] sm:$0xff]
  %v467 = vld [vmem:[%s2 + $0x460] sm:$0xff]
  %v468 = vld [vmem:[%s2 + $0x468] sm:$0xff]
  %v469 = vld [vmem:[%s2 + $0x470] sm:$0xff]
  %v470 = vld [vmem:[%s2 + $0x478] sm:$0xff]
  %v471 = vld [vmem:[%s2 + $0x480] sm:$0xff]
  %v472 = vld [vmem:[%s2 + $0x488] sm:$0xff]
  %v473 = vld [vmem:[%s2 + $0x490] sm:$0xff]
  %v474 = vld [vmem:[%s2 + $0x498] sm:$0xff]
  %v475 = vld [vmem:[%s2 + $0x4a0] sm:$0xff]
  %v476 = vld [vmem:[%s2 + $0x4a8] sm:$0xff]
  %v477 = vld [vmem:[%s2 + $0x4b0] sm:$0xff]
  %v478 = vld [vmem:[%s2 + $0x4b8] sm:$0xff]
  %v479 = vld [vmem:[%s2 + $0x4c0] sm:$0xff]
  %v480 = vld [vmem:[%s2 + $0x4c8] sm:$0xff]
  %v481 = vld [vmem:[%s2 + $0x4d0] sm:$0xff]
  %v482 = vld [vmem:[%s2 + $0x4d8] sm:$0xff]
  %v483 = vld [vmem:[%s2 + $0x4e0] sm:$0xff]
  %v484 = vld [vmem:[%s2 + $0x4e8] sm:$0xff]
  %v485 = vld [vmem:[%s2 + $0x4f0] sm:$0xff]
  %v486 = vld [vmem:[%s2 + $0x4f8] sm:$0xff]
  %v487 = vld [vmem:[%s2 + $0x500] sm:$0xff]
  %v488 = vld [vmem:[%s2 + $0x508] sm:$0xff]
  %v489 = vld [vmem:[%s2 + $0x510] sm:$0xff]
  %v490 = vld [vmem:[%s2 + $0x518] sm:$0xff]
  %v491 = vld [vmem:[%s2 + $0x520] sm:$0xff]
  %v492 = vld [vmem:[%s2 + $0x528] sm:$0xff]
  %v493 = vld [vmem:[%s2 + $0x530] sm:$0xff]
  %v494 = vld [vmem:[%s2 + $0x538] sm:$0xff]
  %v495 = vld [vmem:[%s2 + $0x540] sm:$0xff]
  %v496 = vld [vmem:[%s2 + $0x548] sm:$0xff]
  %v497 = vld [vmem:[%s2 + $0x550] sm:$0xff]
  %v498 = vld [vmem:[%s2 + $0x558] sm:$0xff]
  %v499 = vld [vmem:[%s2 + $0x560] sm:$0xff]
  %v500 = vld [vmem:[%s2 + $0x568] sm:$0xff]
  %v501 = vld [vmem:[%s2 + $0x570] sm:$0xff]
  %v502 = vld [vmem:[%s2 + $0x578] sm:$0xff]
  %v503 = vld [vmem:[%s2 + $0x580] sm:$0xff]
  %v504 = vld [vmem:[%s2 + $0x588] sm:$0xff]
  %v505 = vld [vmem:[%s2 + $0x590] sm:$0xff]
  %v506 = vld [vmem:[%s2 + $0x598] sm:$0xff]
  %v507 = vld [vmem:[%s2 + $0x5a0] sm:$0xff]
  %v508 = vld [vmem:[%s2 + $0x5a8] sm:$0xff]
  %v509 = vld [vmem:[%s2 + $0x5b0] sm:$0xff]
  %v510 = vld [vmem:[%s2 + $0x5b8] sm:$0xff]
  %v511 = vld [vmem:[%s2 + $0x5c0] sm:$0xff]
  %v512 = vld [vmem:[%s2 + $0x5c8] sm:$0xff]
  %v513 = vld [vmem:[%s2 + $0x5d0] sm:$0xff]
  %v514 = vld [vmem:[%s2 + $0x5d8] sm:$0xff]
  %v515 = vld [vmem:[%s2 + $0x5e0] sm:$0xff]
  %v516 = vld [vmem:[%s2 + $0x5e8] sm:$0xff]
  %v517 = vld [vmem:[%s2 + $0x5f0] sm:$0xff]
  %v518 = vld [vmem:[%s2 + $0x5f8] sm:$0xff]
  %v519 = vld [vmem:[%s2 + $0x600] sm:$0xff]
  %v520 = vld [vmem:[%s2 + $0x608] sm:$0xff]
  %v521 = vld [vmem:[%s2 + $0x610] sm:$0xff]
  %v522 = vld [vmem:[%s2 + $0x618] sm:$0xff]
  %v523 = vld [vmem:[%s2 + $0x620] sm:$0xff]
  %v524 = vld [vmem:[%s2 + $0x628] sm:$0xff]
  %v525 = vld [vmem:[%s2 + $0x630] sm:$0xff]
  %v526 = vld [vmem:[%s2 + $0x638] sm:$0xff]
  %v527 = vld [vmem:[%s2 + $0x640] sm:$0xff]
  %v528 = vld [vmem:[%s2 + $0x648] sm:$0xff]
  %v529 = vld [vmem:[%s2 + $0x650] sm:$0xff]
  %v530 = vld [vmem:[%s2 + $0x658] sm:$0xff]
  %v531 = vld [vmem:[%s2 + $0x660] sm:$0xff]
  %v532 = vld [vmem:[%s2 + $0x668] sm:$0xff]
  %v533 = vld [vmem:[%s2 + $0x670] sm:$0xff]
  %v534 = vld [vmem:[%s2 + $0x678] sm:$0xff]
  %v535 = vld [vmem:[%s2 + $0x680] sm:$0xff]
  %v536 = vld [vmem:[%s2 + $0x688] sm:$0xff]
  %v537 = vld [vmem:[%s2 + $0x690] sm:$0xff]
  %v538 = vld [vmem:[%s2 + $0x698] sm:$0xff]
  %v539 = vld [vmem:[%s2 + $0x6a0] sm:$0xff]
  %v540 = vld [vmem:[%s2 + $0x6a8] sm:$0xff]
  %v541 = vld [vmem:[%s2 + $0x6b0] sm:$0xff]
  %v542 = vld [vmem:[%s2 + $0x6b8] sm:$0xff]
  %v543 = vld [vmem:[%s2 + $0x6c0] sm:$0xff]
  %v544 = vld [vmem:[%s2 + $0x6c8] sm:$0xff]
  %v545 = vld [vmem:[%s2 + $0x6d0] sm:$0xff]
  %v546 = vld [vmem:[%s2 + $0x6d8] sm:$0xff]
  %v547 = vld [vmem:[%s2 + $0x6e0] sm:$0xff]
  %v548 = vld [vmem:[%s2 + $0x6e8] sm:$0xff]
  %v549 = vld [vmem:[%s2 + $0x6f0] sm:$0xff]
  %v550 = vld [vmem:[%s2 + $0x6f8] sm:$0xff]
  %v551 = vld [vmem:[%s2 + $0x700] sm:$0xff]
  %v552 = vld [vmem:[%s2 + $0x708] sm:$0xff]
  %v553 = vld [vmem:[%s2 + $0x710] sm:$0xff]
  %v554 = vld [vmem:[%s2 + $0x718] sm:$0xff]
  %v555 = vld [vmem:[%s2 + $0x720] sm:$0xff]
  %v556 = vld [vmem:[%s2 + $0x728] sm:$0xff]
  %v557 = vld [vmem:[%s2 + $0x730] sm:$0xff]
  %v558 = vld [vmem:[%s2 + $0x738] sm:$0xff]
  %v559 = vld [vmem:[%s2 + $0x740] sm:$0xff]
  %v560 = vld [vmem:[%s2 + $0x748] sm:$0xff]
  %v561 = vld [vmem:[%s2 + $0x750] sm:$0xff]
  %v562 = vld [vmem:[%s2 + $0x758] sm:$0xff]
  %v563 = vld [vmem:[%s2 + $0x760] sm:$0xff]
  %v564 = vld [vmem:[%s2 + $0x768] sm:$0xff]
  %v565 = vld [vmem:[%s2 + $0x770] sm:$0xff]
  %v566 = vld [vmem:[%s2 + $0x778] sm:$0xff]
  %v567 = vld [vmem:[%s2 + $0x780] sm:$0xff]
  %v568 = vld [vmem:[%s2 + $0x788] sm:$0xff]
  %v569 = vld [vmem:[%s2 + $0x790] sm:$0xff]
  %v570 = vld [vmem:[%s2 + $0x798] sm:$0xff]
  %v571 = vld [vmem:[%s2 + $0x7a0] sm:$0xff]
  %v572 = vld [vmem:[%s2 + $0x7a8] sm:$0xff]
  %v573 = vld [vmem:[%s2 + $0x7b0] sm:$0xff]
  %v574 = vld [vmem:[%s2 + $0x7b8] sm:$0xff]
  %v575 = vld [vmem:[%s2 + $0x7c0] sm:$0xff]
  %v576 = vld [vmem:[%s2 + $0x7c8] sm:$0xff]
  %v577 = vld [vmem:[%s2 + $0x7d0] sm:$0xff]
  %v578 = vld [vmem:[%s2 + $0x7d8] sm:$0xff]
  %v579 = vld [vmem:[%s2 + $0x7e0] sm:$0xff]
  %v580 = vld [vmem:[%s2 + $0x7e8] sm:$0xff]
  %v581 = vld [vmem:[%s2 + $0x7f0] sm:$0xff]
  %v582 = vld [vmem:[%s2 + $0x7f8] sm:$0xff]
  %v585 = vunpack.c.l.b16 %v276
  %v586 = vunpack.c.h.b16 %v276
  %v587 = vunpack.c.l.b16 %v277
  %v588 = vunpack.c.h.b16 %v277
  %v589 = vpack.c.b16 %v585, %v585
  %v590 = vpack.c.b16 %v586, %v586
  %v591 = vpack.c.b16 %v587, %v587
  %v592 = vpack.c.b16 %v588, %v588
  %597 = vxpose.binary.xlu0.c.b16.start [1/16] %v590, %v589, 128
  %598 = vxpose.binary.xlu0.c.b16.cont [2/16] 0, 0, 128
  %599 = vxpose.binary.xlu0.c.b16.cont [3/16] 0, 0, 128
  %600 = vxpose.binary.xlu0.c.b16.cont [4/16] 0, 0, 128
  %601 = vxpose.binary.xlu0.c.b16.cont [5/16] 0, 0, 128
  %602 = vxpose.binary.xlu0.c.b16.cont [6/16] 0, 0, 128
  %603 = vxpose.binary.xlu0.c.b16.cont [7/16] 0, 0, 128
  %604 = vxpose.binary.xlu0.c.b16.end [8/16] 0, 0, 128
  %v605 = vpop.trf.xlu0
  %v606 = vpop.trf.xlu0
  %v607 = vpop.trf.xlu0
  %v608 = vpop.trf.xlu0
  %v609 = vpop.trf.xlu0
  %v610 = vpop.trf.xlu0
  %v611 = vpop.trf.xlu0
  %v612 = vpop.trf.xlu0
  %v613 = vpop.trf.xlu0
  %v614 = vpop.trf.xlu0
  %v615 = vpop.trf.xlu0
  %v616 = vpop.trf.xlu0
  %v617 = vpop.trf.xlu0
  %v618 = vpop.trf.xlu0
  %v619 = vpop.trf.xlu0
  %v620 = vpop.trf.xlu0
  %621 = vxpose.binary.xlu0.c.b16.start [1/16] %v592, %v591, 128
  %622 = vxpose.binary.xlu0.c.b16.cont [2/16] 0, 0, 128
  %623 = vxpose.binary.xlu0.c.b16.cont [3/16] 0, 0, 128
  %624 = vxpose.binary.xlu0.c.b16.cont [4/16] 0, 0, 128
  %625 = vxpose.binary.xlu0.c.b16.cont [5/16] 0, 0, 128
  %626 = vxpose.binary.xlu0.c.b16.cont [6/16] 0, 0, 128
  %627 = vxpose.binary.xlu0.c.b16.cont [7/16] 0, 0, 128
  %628 = vxpose.binary.xlu0.c.b16.end [8/16] 0, 0, 128
  %v629 = vpop.trf.xlu0
  %v630 = vpop.trf.xlu0
  %v631 = vpop.trf.xlu0
  %v632 = vpop.trf.xlu0
  %v633 = vpop.trf.xlu0
  %v634 = vpop.trf.xlu0
  %v635 = vpop.trf.xlu0
  %v636 = vpop.trf.xlu0
  %v637 = vpop.trf.xlu0
  %v638 = vpop.trf.xlu0
  %v639 = vpop.trf.xlu0
  %v640 = vpop.trf.xlu0
  %v641 = vpop.trf.xlu0
  %v642 = vpop.trf.xlu0
  %v643 = vpop.trf.xlu0
  %v644 = vpop.trf.xlu0
  %vm645 = vcmask 64512
  %v647 = vsel %vm645, %v605, 0
  %v650 = vsel %vm645, %v607, 0
  %v653 = vsel %vm645, %v609, 0
  %v656 = vsel %vm645, %v611, 0
  %v659 = vsel %vm645, %v613, 0
  %v662 = vsel %vm645, %v615, 0
  %v665 = vsel %vm645, %v617, 0
  %v668 = vsel %vm645, %v619, 0
  %v671 = vsel %vm645, %v606, 0
  %v674 = vsel %vm645, %v608, 0
  %v677 = vsel %vm645, %v610, 0
  %v680 = vsel %vm645, %v612, 0
  %v683 = vsel %vm645, %v614, 0
  %v686 = vsel %vm645, %v616, 0
  %v689 = vsel %vm645, %v618, 0
  %v692 = vsel %vm645, %v620, 0
  %v695 = vsel %vm645, %v629, 0
  %v698 = vsel %vm645, %v631, 0
  %v701 = vsel %vm645, %v633, 0
  %v704 = vsel %vm645, %v635, 0
  %v707 = vsel %vm645, %v637, 0
  %v710 = vsel %vm645, %v639, 0
  %v713 = vsel %vm645, %v641, 0
  %v716 = vsel %vm645, %v643, 0
  %v719 = vsel %vm645, %v630, 0
  %v722 = vsel %vm645, %v632, 0
  %v725 = vsel %vm645, %v634, 0
  %v728 = vsel %vm645, %v636, 0
  %v731 = vsel %vm645, %v638, 0
  %v734 = vsel %vm645, %v640, 0
  %v737 = vsel %vm645, %v642, 0
  %v740 = vsel %vm645, %v644, 0
  %vm742 = vcmask 1043456
  %v744 = vsel %vm742, %v589, 0
  %v747 = vsel %vm742, %v590, 0
  %v750 = vsel %vm742, %v591, 0
  %v753 = vsel %vm742, %v592, 0
  %755 = vmatpush.bf16.msra.mxu0 0
  %756 = vmatpush.bf16.msra.mxu0 0
  %757 = vmatpush.bf16.msra.mxu0 0
  %758 = vmatpush.bf16.msra.mxu0 0
  %759 = vmatpush.bf16.msra.mxu0 0
  %760 = vmatpush.bf16.msra.mxu0 0
  %761 = vmatpush.bf16.msra.mxu0 0
  %762 = vmatpush.bf16.msra.mxu0 %v744
  %763 = vmatmul.bf16.gmra.mxu0 %v647
  %v764 = vpop.f32.mrf.mxu0
  %v765 = vadd.f32 0.0, %v764
  %v766 = vpop.f32.mrf.mxu0
  %v767 = vadd.f32 0.0, %v766
  %768 = vmatmul.bf16.gmra.mxu0 %v650
  %v769 = vpop.f32.mrf.mxu0
  %v770 = vadd.f32 0.0, %v769
  %v771 = vpop.f32.mrf.mxu0
  %v772 = vadd.f32 0.0, %v771
  %773 = vmatmul.bf16.gmra.mxu0 %v653
  %v774 = vpop.f32.mrf.mxu0
  %v775 = vadd.f32 0.0, %v774
  %v776 = vpop.f32.mrf.mxu0
  %v777 = vadd.f32 0.0, %v776
  %778 = vmatmul.bf16.gmra.mxu0 %v656
  %v779 = vpop.f32.mrf.mxu0
  %v780 = vadd.f32 0.0, %v779
  %v781 = vpop.f32.mrf.mxu0
  %v782 = vadd.f32 0.0, %v781
  %783 = vmatmul.bf16.gmra.mxu0 %v659
  %v784 = vpop.f32.mrf.mxu0
  %v785 = vadd.f32 0.0, %v784
  %v786 = vpop.f32.mrf.mxu0
  %v787 = vadd.f32 0.0, %v786
  %788 = vmatmul.bf16.gmra.mxu0 %v662
  %v789 = vpop.f32.mrf.mxu0
  %v790 = vadd.f32 0.0, %v789
  %v791 = vpop.f32.mrf.mxu0
  %v792 = vadd.f32 0.0, %v791
  %793 = vmatmul.bf16.gmra.mxu0 %v665
  %v794 = vpop.f32.mrf.mxu0
  %v795 = vadd.f32 0.0, %v794
  %v796 = vpop.f32.mrf.mxu0
  %v797 = vadd.f32 0.0, %v796
  %798 = vmatmul.bf16.gmra.mxu0 %v668
  %v799 = vpop.f32.mrf.mxu0
  %v800 = vadd.f32 0.0, %v799
  %v801 = vpop.f32.mrf.mxu0
  %v802 = vadd.f32 0.0, %v801
  %803 = vmatmul.bf16.gmra.mxu0 %v671
  %v804 = vpop.f32.mrf.mxu0
  %v805 = vadd.f32 0.0, %v804
  %v806 = vpop.f32.mrf.mxu0
  %v807 = vadd.f32 0.0, %v806
  %808 = vmatmul.bf16.gmra.mxu0 %v674
  %v809 = vpop.f32.mrf.mxu0
  %v810 = vadd.f32 0.0, %v809
  %v811 = vpop.f32.mrf.mxu0
  %v812 = vadd.f32 0.0, %v811
  %813 = vmatmul.bf16.gmra.mxu0 %v677
  %v814 = vpop.f32.mrf.mxu0
  %v815 = vadd.f32 0.0, %v814
  %v816 = vpop.f32.mrf.mxu0
  %v817 = vadd.f32 0.0, %v816
  %818 = vmatmul.bf16.gmra.mxu0 %v680
  %v819 = vpop.f32.mrf.mxu0
  %v820 = vadd.f32 0.0, %v819
  %v821 = vpop.f32.mrf.mxu0
  %v822 = vadd.f32 0.0, %v821
  %823 = vmatmul.bf16.gmra.mxu0 %v683
  %v824 = vpop.f32.mrf.mxu0
  %v825 = vadd.f32 0.0, %v824
  %v826 = vpop.f32.mrf.mxu0
  %v827 = vadd.f32 0.0, %v826
  %828 = vmatmul.bf16.gmra.mxu0 %v686
  %v829 = vpop.f32.mrf.mxu0
  %v830 = vadd.f32 0.0, %v829
  %v831 = vpop.f32.mrf.mxu0
  %v832 = vadd.f32 0.0, %v831
  %833 = vmatmul.bf16.gmra.mxu0 %v689
  %v834 = vpop.f32.mrf.mxu0
  %v835 = vadd.f32 0.0, %v834
  %v836 = vpop.f32.mrf.mxu0
  %v837 = vadd.f32 0.0, %v836
  %838 = vmatmul.bf16.gmra.mxu0 %v692
  %v839 = vpop.f32.mrf.mxu0
  %v840 = vadd.f32 0.0, %v839
  %v841 = vpop.f32.mrf.mxu0
  %v842 = vadd.f32 0.0, %v841
  %843 = vmatmul.bf16.gmra.mxu0 %v695
  %v844 = vpop.f32.mrf.mxu0
  %v845 = vadd.f32 0.0, %v844
  %v846 = vpop.f32.mrf.mxu0
  %v847 = vadd.f32 0.0, %v846
  %848 = vmatmul.bf16.gmra.mxu0 %v698
  %v849 = vpop.f32.mrf.mxu0
  %v850 = vadd.f32 0.0, %v849
  %v851 = vpop.f32.mrf.mxu0
  %v852 = vadd.f32 0.0, %v851
  %853 = vmatmul.bf16.gmra.mxu0 %v701
  %v854 = vpop.f32.mrf.mxu0
  %v855 = vadd.f32 0.0, %v854
  %v856 = vpop.f32.mrf.mxu0
  %v857 = vadd.f32 0.0, %v856
  %858 = vmatmul.bf16.gmra.mxu0 %v704
  %v859 = vpop.f32.mrf.mxu0
  %v860 = vadd.f32 0.0, %v859
  %v861 = vpop.f32.mrf.mxu0
  %v862 = vadd.f32 0.0, %v861
  %863 = vmatmul.bf16.gmra.mxu0 %v707
  %v864 = vpop.f32.mrf.mxu0
  %v865 = vadd.f32 0.0, %v864
  %v866 = vpop.f32.mrf.mxu0
  %v867 = vadd.f32 0.0, %v866
  %868 = vmatmul.bf16.gmra.mxu0 %v710
  %v869 = vpop.f32.mrf.mxu0
  %v870 = vadd.f32 0.0, %v869
  %v871 = vpop.f32.mrf.mxu0
  %v872 = vadd.f32 0.0, %v871
  %873 = vmatmul.bf16.gmra.mxu0 %v713
  %v874 = vpop.f32.mrf.mxu0
  %v875 = vadd.f32 0.0, %v874
  %v876 = vpop.f32.mrf.mxu0
  %v877 = vadd.f32 0.0, %v876
  %878 = vmatmul.bf16.gmra.mxu0 %v716
  %v879 = vpop.f32.mrf.mxu0
  %v880 = vadd.f32 0.0, %v879
  %v881 = vpop.f32.mrf.mxu0
  %v882 = vadd.f32 0.0, %v881
  %883 = vmatmul.bf16.gmra.mxu0 %v719
  %v884 = vpop.f32.mrf.mxu0
  %v885 = vadd.f32 0.0, %v884
  %v886 = vpop.f32.mrf.mxu0
  %v887 = vadd.f32 0.0, %v886
  %888 = vmatmul.bf16.gmra.mxu0 %v722
  %v889 = vpop.f32.mrf.mxu0
  %v890 = vadd.f32 0.0, %v889
  %v891 = vpop.f32.mrf.mxu0
  %v892 = vadd.f32 0.0, %v891
  %893 = vmatmul.bf16.gmra.mxu0 %v725
  %v894 = vpop.f32.mrf.mxu0
  %v895 = vadd.f32 0.0, %v894
  %v896 = vpop.f32.mrf.mxu0
  %v897 = vadd.f32 0.0, %v896
  %898 = vmatmul.bf16.gmra.mxu0 %v728
  %v899 = vpop.f32.mrf.mxu0
  %v900 = vadd.f32 0.0, %v899
  %v901 = vpop.f32.mrf.mxu0
  %v902 = vadd.f32 0.0, %v901
  %903 = vmatmul.bf16.gmra.mxu0 %v731
  %v904 = vpop.f32.mrf.mxu0
  %v905 = vadd.f32 0.0, %v904
  %v906 = vpop.f32.mrf.mxu0
  %v907 = vadd.f32 0.0, %v906
  %908 = vmatmul.bf16.gmra.mxu0 %v734
  %v909 = vpop.f32.mrf.mxu0
  %v910 = vadd.f32 0.0, %v909
  %v911 = vpop.f32.mrf.mxu0
  %v912 = vadd.f32 0.0, %v911
  %913 = vmatmul.bf16.gmra.mxu0 %v737
  %v914 = vpop.f32.mrf.mxu0
  %v915 = vadd.f32 0.0, %v914
  %v916 = vpop.f32.mrf.mxu0
  %v917 = vadd.f32 0.0, %v916
  %918 = vmatmul.bf16.gmra.mxu0 %v740
  %v919 = vpop.f32.mrf.mxu0
  %v920 = vadd.f32 0.0, %v919
  %v921 = vpop.f32.mrf.mxu0
  %v922 = vadd.f32 0.0, %v921
  %923 = vdwg.mxu0
  %924 = vmatpush.bf16.msra.mxu0 0
  %925 = vmatpush.bf16.msra.mxu0 0
  %926 = vmatpush.bf16.msra.mxu0 0
  %927 = vmatpush.bf16.msra.mxu0 0
  %928 = vmatpush.bf16.msra.mxu0 0
  %929 = vmatpush.bf16.msra.mxu0 0
  %930 = vmatpush.bf16.msra.mxu0 0
  %931 = vmatpush.bf16.msra.mxu0 %v747
  %932 = vmatmul.bf16.gmra.mxu0 %v647
  %v933 = vpop.f32.mrf.mxu0
  %v934 = vadd.f32 0.0, %v933
  %v935 = vpop.f32.mrf.mxu0
  %v936 = vadd.f32 0.0, %v935
  %937 = vmatmul.bf16.gmra.mxu0 %v650
  %v938 = vpop.f32.mrf.mxu0
  %v939 = vadd.f32 0.0, %v938
  %v940 = vpop.f32.mrf.mxu0
  %v941 = vadd.f32 0.0, %v940
  %942 = vmatmul.bf16.gmra.mxu0 %v653
  %v943 = vpop.f32.mrf.mxu0
  %v944 = vadd.f32 0.0, %v943
  %v945 = vpop.f32.mrf.mxu0
  %v946 = vadd.f32 0.0, %v945
  %947 = vmatmul.bf16.gmra.mxu0 %v656
  %v948 = vpop.f32.mrf.mxu0
  %v949 = vadd.f32 0.0, %v948
  %v950 = vpop.f32.mrf.mxu0
  %v951 = vadd.f32 0.0, %v950
  %952 = vmatmul.bf16.gmra.mxu0 %v659
  %v953 = vpop.f32.mrf.mxu0
  %v954 = vadd.f32 0.0, %v953
  %v955 = vpop.f32.mrf.mxu0
  %v956 = vadd.f32 0.0, %v955
  %957 = vmatmul.bf16.gmra.mxu0 %v662
  %v958 = vpop.f32.mrf.mxu0
  %v959 = vadd.f32 0.0, %v958
  %v960 = vpop.f32.mrf.mxu0
  %v961 = vadd.f32 0.0, %v960
  %962 = vmatmul.bf16.gmra.mxu0 %v665
  %v963 = vpop.f32.mrf.mxu0
  %v964 = vadd.f32 0.0, %v963
  %v965 = vpop.f32.mrf.mxu0
  %v966 = vadd.f32 0.0, %v965
  %967 = vmatmul.bf16.gmra.mxu0 %v668
  %v968 = vpop.f32.mrf.mxu0
  %v969 = vadd.f32 0.0, %v968
  %v970 = vpop.f32.mrf.mxu0
  %v971 = vadd.f32 0.0, %v970
  %972 = vmatmul.bf16.gmra.mxu0 %v671
  %v973 = vpop.f32.mrf.mxu0
  %v974 = vadd.f32 0.0, %v973
  %v975 = vpop.f32.mrf.mxu0
  %v976 = vadd.f32 0.0, %v975
  %977 = vmatmul.bf16.gmra.mxu0 %v674
  %v978 = vpop.f32.mrf.mxu0
  %v979 = vadd.f32 0.0, %v978
  %v980 = vpop.f32.mrf.mxu0
  %v981 = vadd.f32 0.0, %v980
  %982 = vmatmul.bf16.gmra.mxu0 %v677
  %v983 = vpop.f32.mrf.mxu0
  %v984 = vadd.f32 0.0, %v983
  %v985 = vpop.f32.mrf.mxu0
  %v986 = vadd.f32 0.0, %v985
  %987 = vmatmul.bf16.gmra.mxu0 %v680
  %v988 = vpop.f32.mrf.mxu0
  %v989 = vadd.f32 0.0, %v988
  %v990 = vpop.f32.mrf.mxu0
  %v991 = vadd.f32 0.0, %v990
  %992 = vmatmul.bf16.gmra.mxu0 %v683
  %v993 = vpop.f32.mrf.mxu0
  %v994 = vadd.f32 0.0, %v993
  %v995 = vpop.f32.mrf.mxu0
  %v996 = vadd.f32 0.0, %v995
  %997 = vmatmul.bf16.gmra.mxu0 %v686
  %v998 = vpop.f32.mrf.mxu0
  %v999 = vadd.f32 0.0, %v998
  %v1000 = vpop.f32.mrf.mxu0
  %v1001 = vadd.f32 0.0, %v1000
  %1002 = vmatmul.bf16.gmra.mxu0 %v689
  %v1003 = vpop.f32.mrf.mxu0
  %v1004 = vadd.f32 0.0, %v1003
  %v1005 = vpop.f32.mrf.mxu0
  %v1006 = vadd.f32 0.0, %v1005
  %1007 = vmatmul.bf16.gmra.mxu0 %v692
  %v1008 = vpop.f32.mrf.mxu0
  %v1009 = vadd.f32 0.0, %v1008
  %v1010 = vpop.f32.mrf.mxu0
  %v1011 = vadd.f32 0.0, %v1010
  %1012 = vmatmul.bf16.gmra.mxu0 %v695
  %v1013 = vpop.f32.mrf.mxu0
  %v1014 = vadd.f32 0.0, %v1013
  %v1015 = vpop.f32.mrf.mxu0
  %v1016 = vadd.f32 0.0, %v1015
  %1017 = vmatmul.bf16.gmra.mxu0 %v698
  %v1018 = vpop.f32.mrf.mxu0
  %v1019 = vadd.f32 0.0, %v1018
  %v1020 = vpop.f32.mrf.mxu0
  %v1021 = vadd.f32 0.0, %v1020
  %1022 = vmatmul.bf16.gmra.mxu0 %v701
  %v1023 = vpop.f32.mrf.mxu0
  %v1024 = vadd.f32 0.0, %v1023
  %v1025 = vpop.f32.mrf.mxu0
  %v1026 = vadd.f32 0.0, %v1025
  %1027 = vmatmul.bf16.gmra.mxu0 %v704
  %v1028 = vpop.f32.mrf.mxu0
  %v1029 = vadd.f32 0.0, %v1028
  %v1030 = vpop.f32.mrf.mxu0
  %v1031 = vadd.f32 0.0, %v1030
  %1032 = vmatmul.bf16.gmra.mxu0 %v707
  %v1033 = vpop.f32.mrf.mxu0
  %v1034 = vadd.f32 0.0, %v1033
  %v1035 = vpop.f32.mrf.mxu0
  %v1036 = vadd.f32 0.0, %v1035
  %1037 = vmatmul.bf16.gmra.mxu0 %v710
  %v1038 = vpop.f32.mrf.mxu0
  %v1039 = vadd.f32 0.0, %v1038
  %v1040 = vpop.f32.mrf.mxu0
  %v1041 = vadd.f32 0.0, %v1040
  %1042 = vmatmul.bf16.gmra.mxu0 %v713
  %v1043 = vpop.f32.mrf.mxu0
  %v1044 = vadd.f32 0.0, %v1043
  %v1045 = vpop.f32.mrf.mxu0
  %v1046 = vadd.f32 0.0, %v1045
  %1047 = vmatmul.bf16.gmra.mxu0 %v716
  %v1048 = vpop.f32.mrf.mxu0
  %v1049 = vadd.f32 0.0, %v1048
  %v1050 = vpop.f32.mrf.mxu0
  %v1051 = vadd.f32 0.0, %v1050
  %1052 = vmatmul.bf16.gmra.mxu0 %v719
  %v1053 = vpop.f32.mrf.mxu0
  %v1054 = vadd.f32 0.0, %v1053
  %v1055 = vpop.f32.mrf.mxu0
  %v1056 = vadd.f32 0.0, %v1055
  %1057 = vmatmul.bf16.gmra.mxu0 %v722
  %v1058 = vpop.f32.mrf.mxu0
  %v1059 = vadd.f32 0.0, %v1058
  %v1060 = vpop.f32.mrf.mxu0
  %v1061 = vadd.f32 0.0, %v1060
  %1062 = vmatmul.bf16.gmra.mxu0 %v725
  %v1063 = vpop.f32.mrf.mxu0
  %v1064 = vadd.f32 0.0, %v1063
  %v1065 = vpop.f32.mrf.mxu0
  %v1066 = vadd.f32 0.0, %v1065
  %1067 = vmatmul.bf16.gmra.mxu0 %v728
  %v1068 = vpop.f32.mrf.mxu0
  %v1069 = vadd.f32 0.0, %v1068
  %v1070 = vpop.f32.mrf.mxu0
  %v1071 = vadd.f32 0.0, %v1070
  %1072 = vmatmul.bf16.gmra.mxu0 %v731
  %v1073 = vpop.f32.mrf.mxu0
  %v1074 = vadd.f32 0.0, %v1073
  %v1075 = vpop.f32.mrf.mxu0
  %v1076 = vadd.f32 0.0, %v1075
  %1077 = vmatmul.bf16.gmra.mxu0 %v734
  %v1078 = vpop.f32.mrf.mxu0
  %v1079 = vadd.f32 0.0, %v1078
  %v1080 = vpop.f32.mrf.mxu0
  %v1081 = vadd.f32 0.0, %v1080
  %1082 = vmatmul.bf16.gmra.mxu0 %v737
  %v1083 = vpop.f32.mrf.mxu0
  %v1084 = vadd.f32 0.0, %v1083
  %v1085 = vpop.f32.mrf.mxu0
  %v1086 = vadd.f32 0.0, %v1085
  %1087 = vmatmul.bf16.gmra.mxu0 %v740
  %v1088 = vpop.f32.mrf.mxu0
  %v1089 = vadd.f32 0.0, %v1088
  %v1090 = vpop.f32.mrf.mxu0
  %v1091 = vadd.f32 0.0, %v1090
  %1092 = vdwg.mxu0
  %1093 = vmatpush.bf16.msra.mxu0 0
  %1094 = vmatpush.bf16.msra.mxu0 0
  %1095 = vmatpush.bf16.msra.mxu0 0
  %1096 = vmatpush.bf16.msra.mxu0 0
  %1097 = vmatpush.bf16.msra.mxu0 0
  %1098 = vmatpush.bf16.msra.mxu0 0
  %1099 = vmatpush.bf16.msra.mxu0 0
  %1100 = vmatpush.bf16.msra.mxu0 %v750
  %1101 = vmatmul.bf16.gmra.mxu0 %v647
  %v1102 = vpop.f32.mrf.mxu0
  %v1103 = vadd.f32 0.0, %v1102
  %v1104 = vpop.f32.mrf.mxu0
  %v1105 = vadd.f32 0.0, %v1104
  %1106 = vmatmul.bf16.gmra.mxu0 %v650
  %v1107 = vpop.f32.mrf.mxu0
  %v1108 = vadd.f32 0.0, %v1107
  %v1109 = vpop.f32.mrf.mxu0
  %v1110 = vadd.f32 0.0, %v1109
  %1111 = vmatmul.bf16.gmra.mxu0 %v653
  %v1112 = vpop.f32.mrf.mxu0
  %v1113 = vadd.f32 0.0, %v1112
  %v1114 = vpop.f32.mrf.mxu0
  %v1115 = vadd.f32 0.0, %v1114
  %1116 = vmatmul.bf16.gmra.mxu0 %v656
  %v1117 = vpop.f32.mrf.mxu0
  %v1118 = vadd.f32 0.0, %v1117
  %v1119 = vpop.f32.mrf.mxu0
  %v1120 = vadd.f32 0.0, %v1119
  %1121 = vmatmul.bf16.gmra.mxu0 %v659
  %v1122 = vpop.f32.mrf.mxu0
  %v1123 = vadd.f32 0.0, %v1122
  %v1124 = vpop.f32.mrf.mxu0
  %v1125 = vadd.f32 0.0, %v1124
  %1126 = vmatmul.bf16.gmra.mxu0 %v662
  %v1127 = vpop.f32.mrf.mxu0
  %v1128 = vadd.f32 0.0, %v1127
  %v1129 = vpop.f32.mrf.mxu0
  %v1130 = vadd.f32 0.0, %v1129
  %1131 = vmatmul.bf16.gmra.mxu0 %v665
  %v1132 = vpop.f32.mrf.mxu0
  %v1133 = vadd.f32 0.0, %v1132
  %v1134 = vpop.f32.mrf.mxu0
  %v1135 = vadd.f32 0.0, %v1134
  %1136 = vmatmul.bf16.gmra.mxu0 %v668
  %v1137 = vpop.f32.mrf.mxu0
  %v1138 = vadd.f32 0.0, %v1137
  %v1139 = vpop.f32.mrf.mxu0
  %v1140 = vadd.f32 0.0, %v1139
  %1141 = vmatmul.bf16.gmra.mxu0 %v671
  %v1142 = vpop.f32.mrf.mxu0
  %v1143 = vadd.f32 0.0, %v1142
  %v1144 = vpop.f32.mrf.mxu0
  %v1145 = vadd.f32 0.0, %v1144
  %1146 = vmatmul.bf16.gmra.mxu0 %v674
  %v1147 = vpop.f32.mrf.mxu0
  %v1148 = vadd.f32 0.0, %v1147
  %v1149 = vpop.f32.mrf.mxu0
  %v1150 = vadd.f32 0.0, %v1149
  %1151 = vmatmul.bf16.gmra.mxu0 %v677
  %v1152 = vpop.f32.mrf.mxu0
  %v1153 = vadd.f32 0.0, %v1152
  %v1154 = vpop.f32.mrf.mxu0
  %v1155 = vadd.f32 0.0, %v1154
  %1156 = vmatmul.bf16.gmra.mxu0 %v680
  %v1157 = vpop.f32.mrf.mxu0
  %v1158 = vadd.f32 0.0, %v1157
  %v1159 = vpop.f32.mrf.mxu0
  %v1160 = vadd.f32 0.0, %v1159
  %1161 = vmatmul.bf16.gmra.mxu0 %v683
  %v1162 = vpop.f32.mrf.mxu0
  %v1163 = vadd.f32 0.0, %v1162
  %v1164 = vpop.f32.mrf.mxu0
  %v1165 = vadd.f32 0.0, %v1164
  %1166 = vmatmul.bf16.gmra.mxu0 %v686
  %v1167 = vpop.f32.mrf.mxu0
  %v1168 = vadd.f32 0.0, %v1167
  %v1169 = vpop.f32.mrf.mxu0
  %v1170 = vadd.f32 0.0, %v1169
  %1171 = vmatmul.bf16.gmra.mxu0 %v689
  %v1172 = vpop.f32.mrf.mxu0
  %v1173 = vadd.f32 0.0, %v1172
  %v1174 = vpop.f32.mrf.mxu0
  %v1175 = vadd.f32 0.0, %v1174
  %1176 = vmatmul.bf16.gmra.mxu0 %v692
  %v1177 = vpop.f32.mrf.mxu0
  %v1178 = vadd.f32 0.0, %v1177
  %v1179 = vpop.f32.mrf.mxu0
  %v1180 = vadd.f32 0.0, %v1179
  %1181 = vmatmul.bf16.gmra.mxu0 %v695
  %v1182 = vpop.f32.mrf.mxu0
  %v1183 = vadd.f32 0.0, %v1182
  %v1184 = vpop.f32.mrf.mxu0
  %v1185 = vadd.f32 0.0, %v1184
  %1186 = vmatmul.bf16.gmra.mxu0 %v698
  %v1187 = vpop.f32.mrf.mxu0
  %v1188 = vadd.f32 0.0, %v1187
  %v1189 = vpop.f32.mrf.mxu0
  %v1190 = vadd.f32 0.0, %v1189
  %1191 = vmatmul.bf16.gmra.mxu0 %v701
  %v1192 = vpop.f32.mrf.mxu0
  %v1193 = vadd.f32 0.0, %v1192
  %v1194 = vpop.f32.mrf.mxu0
  %v1195 = vadd.f32 0.0, %v1194
  %1196 = vmatmul.bf16.gmra.mxu0 %v704
  %v1197 = vpop.f32.mrf.mxu0
  %v1198 = vadd.f32 0.0, %v1197
  %v1199 = vpop.f32.mrf.mxu0
  %v1200 = vadd.f32 0.0, %v1199
  %1201 = vmatmul.bf16.gmra.mxu0 %v707
  %v1202 = vpop.f32.mrf.mxu0
  %v1203 = vadd.f32 0.0, %v1202
  %v1204 = vpop.f32.mrf.mxu0
  %v1205 = vadd.f32 0.0, %v1204
  %1206 = vmatmul.bf16.gmra.mxu0 %v710
  %v1207 = vpop.f32.mrf.mxu0
  %v1208 = vadd.f32 0.0, %v1207
  %v1209 = vpop.f32.mrf.mxu0
  %v1210 = vadd.f32 0.0, %v1209
  %1211 = vmatmul.bf16.gmra.mxu0 %v713
  %v1212 = vpop.f32.mrf.mxu0
  %v1213 = vadd.f32 0.0, %v1212
  %v1214 = vpop.f32.mrf.mxu0
  %v1215 = vadd.f32 0.0, %v1214
  %1216 = vmatmul.bf16.gmra.mxu0 %v716
  %v1217 = vpop.f32.mrf.mxu0
  %v1218 = vadd.f32 0.0, %v1217
  %v1219 = vpop.f32.mrf.mxu0
  %v1220 = vadd.f32 0.0, %v1219
  %1221 = vmatmul.bf16.gmra.mxu0 %v719
  %v1222 = vpop.f32.mrf.mxu0
  %v1223 = vadd.f32 0.0, %v1222
  %v1224 = vpop.f32.mrf.mxu0
  %v1225 = vadd.f32 0.0, %v1224
  %1226 = vmatmul.bf16.gmra.mxu0 %v722
  %v1227 = vpop.f32.mrf.mxu0
  %v1228 = vadd.f32 0.0, %v1227
  %v1229 = vpop.f32.mrf.mxu0
  %v1230 = vadd.f32 0.0, %v1229
  %1231 = vmatmul.bf16.gmra.mxu0 %v725
  %v1232 = vpop.f32.mrf.mxu0
  %v1233 = vadd.f32 0.0, %v1232
  %v1234 = vpop.f32.mrf.mxu0
  %v1235 = vadd.f32 0.0, %v1234
  %1236 = vmatmul.bf16.gmra.mxu0 %v728
  %v1237 = vpop.f32.mrf.mxu0
  %v1238 = vadd.f32 0.0, %v1237
  %v1239 = vpop.f32.mrf.mxu0
  %v1240 = vadd.f32 0.0, %v1239
  %1241 = vmatmul.bf16.gmra.mxu0 %v731
  %v1242 = vpop.f32.mrf.mxu0
  %v1243 = vadd.f32 0.0, %v1242
  %v1244 = vpop.f32.mrf.mxu0
  %v1245 = vadd.f32 0.0, %v1244
  %1246 = vmatmul.bf16.gmra.mxu0 %v734
  %v1247 = vpop.f32.mrf.mxu0
  %v1248 = vadd.f32 0.0, %v1247
  %v1249 = vpop.f32.mrf.mxu0
  %v1250 = vadd.f32 0.0, %v1249
  %1251 = vmatmul.bf16.gmra.mxu0 %v737
  %v1252 = vpop.f32.mrf.mxu0
  %v1253 = vadd.f32 0.0, %v1252
  %v1254 = vpop.f32.mrf.mxu0
  %v1255 = vadd.f32 0.0, %v1254
  %1256 = vmatmul.bf16.gmra.mxu0 %v740
  %v1257 = vpop.f32.mrf.mxu0
  %v1258 = vadd.f32 0.0, %v1257
  %v1259 = vpop.f32.mrf.mxu0
  %v1260 = vadd.f32 0.0, %v1259
  %1261 = vdwg.mxu0
  %1262 = vmatpush.bf16.msra.mxu0 0
  %1263 = vmatpush.bf16.msra.mxu0 0
  %1264 = vmatpush.bf16.msra.mxu0 0
  %1265 = vmatpush.bf16.msra.mxu0 0
  %1266 = vmatpush.bf16.msra.mxu0 0
  %1267 = vmatpush.bf16.msra.mxu0 0
  %1268 = vmatpush.bf16.msra.mxu0 0
  %1269 = vmatpush.bf16.msra.mxu0 %v753
  %1270 = vmatmul.bf16.gmra.mxu0 %v647
  %v1271 = vpop.f32.mrf.mxu0
  %v1272 = vadd.f32 0.0, %v1271
  %v1273 = vpop.f32.mrf.mxu0
  %v1274 = vadd.f32 0.0, %v1273
  %1275 = vmatmul.bf16.gmra.mxu0 %v650
  %v1276 = vpop.f32.mrf.mxu0
  %v1277 = vadd.f32 0.0, %v1276
  %v1278 = vpop.f32.mrf.mxu0
  %v1279 = vadd.f32 0.0, %v1278
  %1280 = vmatmul.bf16.gmra.mxu0 %v653
  %v1281 = vpop.f32.mrf.mxu0
  %v1282 = vadd.f32 0.0, %v1281
  %v1283 = vpop.f32.mrf.mxu0
  %v1284 = vadd.f32 0.0, %v1283
  %1285 = vmatmul.bf16.gmra.mxu0 %v656
  %v1286 = vpop.f32.mrf.mxu0
  %v1287 = vadd.f32 0.0, %v1286
  %v1288 = vpop.f32.mrf.mxu0
  %v1289 = vadd.f32 0.0, %v1288
  %1290 = vmatmul.bf16.gmra.mxu0 %v659
  %v1291 = vpop.f32.mrf.mxu0
  %v1292 = vadd.f32 0.0, %v1291
  %v1293 = vpop.f32.mrf.mxu0
  %v1294 = vadd.f32 0.0, %v1293
  %1295 = vmatmul.bf16.gmra.mxu0 %v662
  %v1296 = vpop.f32.mrf.mxu0
  %v1297 = vadd.f32 0.0, %v1296
  %v1298 = vpop.f32.mrf.mxu0
  %v1299 = vadd.f32 0.0, %v1298
  %1300 = vmatmul.bf16.gmra.mxu0 %v665
  %v1301 = vpop.f32.mrf.mxu0
  %v1302 = vadd.f32 0.0, %v1301
  %v1303 = vpop.f32.mrf.mxu0
  %v1304 = vadd.f32 0.0, %v1303
  %1305 = vmatmul.bf16.gmra.mxu0 %v668
  %v1306 = vpop.f32.mrf.mxu0
  %v1307 = vadd.f32 0.0, %v1306
  %v1308 = vpop.f32.mrf.mxu0
  %v1309 = vadd.f32 0.0, %v1308
  %1310 = vmatmul.bf16.gmra.mxu0 %v671
  %v1311 = vpop.f32.mrf.mxu0
  %v1312 = vadd.f32 0.0, %v1311
  %v1313 = vpop.f32.mrf.mxu0
  %v1314 = vadd.f32 0.0, %v1313
  %1315 = vmatmul.bf16.gmra.mxu0 %v674
  %v1316 = vpop.f32.mrf.mxu0
  %v1317 = vadd.f32 0.0, %v1316
  %v1318 = vpop.f32.mrf.mxu0
  %v1319 = vadd.f32 0.0, %v1318
  %1320 = vmatmul.bf16.gmra.mxu0 %v677
  %v1321 = vpop.f32.mrf.mxu0
  %v1322 = vadd.f32 0.0, %v1321
  %v1323 = vpop.f32.mrf.mxu0
  %v1324 = vadd.f32 0.0, %v1323
  %1325 = vmatmul.bf16.gmra.mxu0 %v680
  %v1326 = vpop.f32.mrf.mxu0
  %v1327 = vadd.f32 0.0, %v1326
  %v1328 = vpop.f32.mrf.mxu0
  %v1329 = vadd.f32 0.0, %v1328
  %1330 = vmatmul.bf16.gmra.mxu0 %v683
  %v1331 = vpop.f32.mrf.mxu0
  %v1332 = vadd.f32 0.0, %v1331
  %v1333 = vpop.f32.mrf.mxu0
  %v1334 = vadd.f32 0.0, %v1333
  %1335 = vmatmul.bf16.gmra.mxu0 %v686
  %v1336 = vpop.f32.mrf.mxu0
  %v1337 = vadd.f32 0.0, %v1336
  %v1338 = vpop.f32.mrf.mxu0
  %v1339 = vadd.f32 0.0, %v1338
  %1340 = vmatmul.bf16.gmra.mxu0 %v689
  %v1341 = vpop.f32.mrf.mxu0
  %v1342 = vadd.f32 0.0, %v1341
  %v1343 = vpop.f32.mrf.mxu0
  %v1344 = vadd.f32 0.0, %v1343
  %1345 = vmatmul.bf16.gmra.mxu0 %v692
  %v1346 = vpop.f32.mrf.mxu0
  %v1347 = vadd.f32 0.0, %v1346
  %v1348 = vpop.f32.mrf.mxu0
  %v1349 = vadd.f32 0.0, %v1348
  %1350 = vmatmul.bf16.gmra.mxu0 %v695
  %v1351 = vpop.f32.mrf.mxu0
  %v1352 = vadd.f32 0.0, %v1351
  %v1353 = vpop.f32.mrf.mxu0
  %v1354 = vadd.f32 0.0, %v1353
  %1355 = vmatmul.bf16.gmra.mxu0 %v698
  %v1356 = vpop.f32.mrf.mxu0
  %v1357 = vadd.f32 0.0, %v1356
  %v1358 = vpop.f32.mrf.mxu0
  %v1359 = vadd.f32 0.0, %v1358
  %1360 = vmatmul.bf16.gmra.mxu0 %v701
  %v1361 = vpop.f32.mrf.mxu0
  %v1362 = vadd.f32 0.0, %v1361
  %v1363 = vpop.f32.mrf.mxu0
  %v1364 = vadd.f32 0.0, %v1363
  %1365 = vmatmul.bf16.gmra.mxu0 %v704
  %v1366 = vpop.f32.mrf.mxu0
  %v1367 = vadd.f32 0.0, %v1366
  %v1368 = vpop.f32.mrf.mxu0
  %v1369 = vadd.f32 0.0, %v1368
  %1370 = vmatmul.bf16.gmra.mxu0 %v707
  %v1371 = vpop.f32.mrf.mxu0
  %v1372 = vadd.f32 0.0, %v1371
  %v1373 = vpop.f32.mrf.mxu0
  %v1374 = vadd.f32 0.0, %v1373
  %1375 = vmatmul.bf16.gmra.mxu0 %v710
  %v1376 = vpop.f32.mrf.mxu0
  %v1377 = vadd.f32 0.0, %v1376
  %v1378 = vpop.f32.mrf.mxu0
  %v1379 = vadd.f32 0.0, %v1378
  %1380 = vmatmul.bf16.gmra.mxu0 %v713
  %v1381 = vpop.f32.mrf.mxu0
  %v1382 = vadd.f32 0.0, %v1381
  %v1383 = vpop.f32.mrf.mxu0
  %v1384 = vadd.f32 0.0, %v1383
  %1385 = vmatmul.bf16.gmra.mxu0 %v716
  %v1386 = vpop.f32.mrf.mxu0
  %v1387 = vadd.f32 0.0, %v1386
  %v1388 = vpop.f32.mrf.mxu0
  %v1389 = vadd.f32 0.0, %v1388
  %1390 = vmatmul.bf16.gmra.mxu0 %v719
  %v1391 = vpop.f32.mrf.mxu0
  %v1392 = vadd.f32 0.0, %v1391
  %v1393 = vpop.f32.mrf.mxu0
  %v1394 = vadd.f32 0.0, %v1393
  %1395 = vmatmul.bf16.gmra.mxu0 %v722
  %v1396 = vpop.f32.mrf.mxu0
  %v1397 = vadd.f32 0.0, %v1396
  %v1398 = vpop.f32.mrf.mxu0
  %v1399 = vadd.f32 0.0, %v1398
  %1400 = vmatmul.bf16.gmra.mxu0 %v725
  %v1401 = vpop.f32.mrf.mxu0
  %v1402 = vadd.f32 0.0, %v1401
  %v1403 = vpop.f32.mrf.mxu0
  %v1404 = vadd.f32 0.0, %v1403
  %1405 = vmatmul.bf16.gmra.mxu0 %v728
  %v1406 = vpop.f32.mrf.mxu0
  %v1407 = vadd.f32 0.0, %v1406
  %v1408 = vpop.f32.mrf.mxu0
  %v1409 = vadd.f32 0.0, %v1408
  %1410 = vmatmul.bf16.gmra.mxu0 %v731
  %v1411 = vpop.f32.mrf.mxu0
  %v1412 = vadd.f32 0.0, %v1411
  %v1413 = vpop.f32.mrf.mxu0
  %v1414 = vadd.f32 0.0, %v1413
  %1415 = vmatmul.bf16.gmra.mxu0 %v734
  %v1416 = vpop.f32.mrf.mxu0
  %v1417 = vadd.f32 0.0, %v1416
  %v1418 = vpop.f32.mrf.mxu0
  %v1419 = vadd.f32 0.0, %v1418
  %1420 = vmatmul.bf16.gmra.mxu0 %v737
  %v1421 = vpop.f32.mrf.mxu0
  %v1422 = vadd.f32 0.0, %v1421
  %v1423 = vpop.f32.mrf.mxu0
  %v1424 = vadd.f32 0.0, %v1423
  %1425 = vmatmul.bf16.gmra.mxu0 %v740
  %v1426 = vpop.f32.mrf.mxu0
  %v1427 = vadd.f32 0.0, %v1426
  %v1428 = vpop.f32.mrf.mxu0
  %v1429 = vadd.f32 0.0, %v1428
  %1430 = vdwg.mxu0
  %v1431 = vadd.f32 %v327, %v765
  %v1432 = vadd.f32 %v328, %v934
  %v1433 = vadd.f32 %v329, %v1103
  %v1434 = vadd.f32 %v330, %v1272
  %v1435 = vadd.f32 %v331, %v767
  %v1436 = vadd.f32 %v332, %v936
  %v1437 = vadd.f32 %v333, %v1105
  %v1438 = vadd.f32 %v334, %v1274
  %v1439 = vadd.f32 %v335, %v770
  %v1440 = vadd.f32 %v336, %v939
  %v1441 = vadd.f32 %v337, %v1108
  %v1442 = vadd.f32 %v338, %v1277
  %v1443 = vadd.f32 %v339, %v772
  %v1444 = vadd.f32 %v340, %v941
  %v1445 = vadd.f32 %v341, %v1110
  %v1446 = vadd.f32 %v342, %v1279
  %v1447 = vadd.f32 %v343, %v775
  %v1448 = vadd.f32 %v344, %v944
  %v1449 = vadd.f32 %v345, %v1113
  %v1450 = vadd.f32 %v346, %v1282
  %v1451 = vadd.f32 %v347, %v777
  %v1452 = vadd.f32 %v348, %v946
  %v1453 = vadd.f32 %v349, %v1115
  %v1454 = vadd.f32 %v350, %v1284
  %v1455 = vadd.f32 %v351, %v780
  %v1456 = vadd.f32 %v352, %v949
  %v1457 = vadd.f32 %v353, %v1118
  %v1458 = vadd.f32 %v354, %v1287
  %v1459 = vadd.f32 %v355, %v782
  %v1460 = vadd.f32 %v356, %v951
  %v1461 = vadd.f32 %v357, %v1120
  %v1462 = vadd.f32 %v358, %v1289
  %v1463 = vadd.f32 %v359, %v785
  %v1464 = vadd.f32 %v360, %v954
  %v1465 = vadd.f32 %v361, %v1123
  %v1466 = vadd.f32 %v362, %v1292
  %v1467 = vadd.f32 %v363, %v787
  %v1468 = vadd.f32 %v364, %v956
  %v1469 = vadd.f32 %v365, %v1125
  %v1470 = vadd.f32 %v366, %v1294
  %v1471 = vadd.f32 %v367, %v790
  %v1472 = vadd.f32 %v368, %v959
  %v1473 = vadd.f32 %v369, %v1128
  %v1474 = vadd.f32 %v370, %v1297
  %v1475 = vadd.f32 %v371, %v792
  %v1476 = vadd.f32 %v372, %v961
  %v1477 = vadd.f32 %v373, %v1130
  %v1478 = vadd.f32 %v374, %v1299
  %v1479 = vadd.f32 %v375, %v795
  %v1480 = vadd.f32 %v376, %v964
  %v1481 = vadd.f32 %v377, %v1133
  %v1482 = vadd.f32 %v378, %v1302
  %v1483 = vadd.f32 %v379, %v797
  %v1484 = vadd.f32 %v380, %v966
  %v1485 = vadd.f32 %v381, %v1135
  %v1486 = vadd.f32 %v382, %v1304
  %v1487 = vadd.f32 %v383, %v800
  %v1488 = vadd.f32 %v384, %v969
  %v1489 = vadd.f32 %v385, %v1138
  %v1490 = vadd.f32 %v386, %v1307
  %v1491 = vadd.f32 %v387, %v802
  %v1492 = vadd.f32 %v388, %v971
  %v1493 = vadd.f32 %v389, %v1140
  %v1494 = vadd.f32 %v390, %v1309
  %v1495 = vadd.f32 %v391, %v805
  %v1496 = vadd.f32 %v392, %v974
  %v1497 = vadd.f32 %v393, %v1143
  %v1498 = vadd.f32 %v394, %v1312
  %v1499 = vadd.f32 %v395, %v807
  %v1500 = vadd.f32 %v396, %v976
  %v1501 = vadd.f32 %v397, %v1145
  %v1502 = vadd.f32 %v398, %v1314
  %v1503 = vadd.f32 %v399, %v810
  %v1504 = vadd.f32 %v400, %v979
  %v1505 = vadd.f32 %v401, %v1148
  %v1506 = vadd.f32 %v402, %v1317
  %v1507 = vadd.f32 %v403, %v812
  %v1508 = vadd.f32 %v404, %v981
  %v1509 = vadd.f32 %v405, %v1150
  %v1510 = vadd.f32 %v406, %v1319
  %v1511 = vadd.f32 %v407, %v815
  %v1512 = vadd.f32 %v408, %v984
  %v1513 = vadd.f32 %v409, %v1153
  %v1514 = vadd.f32 %v410, %v1322
  %v1515 = vadd.f32 %v411, %v817
  %v1516 = vadd.f32 %v412, %v986
  %v1517 = vadd.f32 %v413, %v1155
  %v1518 = vadd.f32 %v414, %v1324
  %v1519 = vadd.f32 %v415, %v820
  %v1520 = vadd.f32 %v416, %v989
  %v1521 = vadd.f32 %v417, %v1158
  %v1522 = vadd.f32 %v418, %v1327
  %v1523 = vadd.f32 %v419, %v822
  %v1524 = vadd.f32 %v420, %v991
  %v1525 = vadd.f32 %v421, %v1160
  %v1526 = vadd.f32 %v422, %v1329
  %v1527 = vadd.f32 %v423, %v825
  %v1528 = vadd.f32 %v424, %v994
  %v1529 = vadd.f32 %v425, %v1163
  %v1530 = vadd.f32 %v426, %v1332
  %v1531 = vadd.f32 %v427, %v827
  %v1532 = vadd.f32 %v428, %v996
  %v1533 = vadd.f32 %v429, %v1165
  %v1534 = vadd.f32 %v430, %v1334
  %v1535 = vadd.f32 %v431, %v830
  %v1536 = vadd.f32 %v432, %v999
  %v1537 = vadd.f32 %v433, %v1168
  %v1538 = vadd.f32 %v434, %v1337
  %v1539 = vadd.f32 %v435, %v832
  %v1540 = vadd.f32 %v436, %v1001
  %v1541 = vadd.f32 %v437, %v1170
  %v1542 = vadd.f32 %v438, %v1339
  %v1543 = vadd.f32 %v439, %v835
  %v1544 = vadd.f32 %v440, %v1004
  %v1545 = vadd.f32 %v441, %v1173
  %v1546 = vadd.f32 %v442, %v1342
  %v1547 = vadd.f32 %v443, %v837
  %v1548 = vadd.f32 %v444, %v1006
  %v1549 = vadd.f32 %v445, %v1175
  %v1550 = vadd.f32 %v446, %v1344
  %v1551 = vadd.f32 %v447, %v840
  %v1552 = vadd.f32 %v448, %v1009
  %v1553 = vadd.f32 %v449, %v1178
  %v1554 = vadd.f32 %v450, %v1347
  %v1555 = vadd.f32 %v451, %v842
  %v1556 = vadd.f32 %v452, %v1011
  %v1557 = vadd.f32 %v453, %v1180
  %v1558 = vadd.f32 %v454, %v1349
  %v1559 = vadd.f32 %v455, %v845
  %v1560 = vadd.f32 %v456, %v1014
  %v1561 = vadd.f32 %v457, %v1183
  %v1562 = vadd.f32 %v458, %v1352
  %v1563 = vadd.f32 %v459, %v847
  %v1564 = vadd.f32 %v460, %v1016
  %v1565 = vadd.f32 %v461, %v1185
  %v1566 = vadd.f32 %v462, %v1354
  %v1567 = vadd.f32 %v463, %v850
  %v1568 = vadd.f32 %v464, %v1019
  %v1569 = vadd.f32 %v465, %v1188
  %v1570 = vadd.f32 %v466, %v1357
  %v1571 = vadd.f32 %v467, %v852
  %v1572 = vadd.f32 %v468, %v1021
  %v1573 = vadd.f32 %v469, %v1190
  %v1574 = vadd.f32 %v470, %v1359
  %v1575 = vadd.f32 %v471, %v855
  %v1576 = vadd.f32 %v472, %v1024
  %v1577 = vadd.f32 %v473, %v1193
  %v1578 = vadd.f32 %v474, %v1362
  %v1579 = vadd.f32 %v475, %v857
  %v1580 = vadd.f32 %v476, %v1026
  %v1581 = vadd.f32 %v477, %v1195
  %v1582 = vadd.f32 %v478, %v1364
  %v1583 = vadd.f32 %v479, %v860
  %v1584 = vadd.f32 %v480, %v1029
  %v1585 = vadd.f32 %v481, %v1198
  %v1586 = vadd.f32 %v482, %v1367
  %v1587 = vadd.f32 %v483, %v862
  %v1588 = vadd.f32 %v484, %v1031
  %v1589 = vadd.f32 %v485, %v1200
  %v1590 = vadd.f32 %v486, %v1369
  %v1591 = vadd.f32 %v487, %v865
  %v1592 = vadd.f32 %v488, %v1034
  %v1593 = vadd.f32 %v489, %v1203
  %v1594 = vadd.f32 %v490, %v1372
  %v1595 = vadd.f32 %v491, %v867
  %v1596 = vadd.f32 %v492, %v1036
  %v1597 = vadd.f32 %v493, %v1205
  %v1598 = vadd.f32 %v494, %v1374
  %v1599 = vadd.f32 %v495, %v870
  %v1600 = vadd.f32 %v496, %v1039
  %v1601 = vadd.f32 %v497, %v1208
  %v1602 = vadd.f32 %v498, %v1377
  %v1603 = vadd.f32 %v499, %v872
  %v1604 = vadd.f32 %v500, %v1041
  %v1605 = vadd.f32 %v501, %v1210
  %v1606 = vadd.f32 %v502, %v1379
  %v1607 = vadd.f32 %v503, %v875
  %v1608 = vadd.f32 %v504, %v1044
  %v1609 = vadd.f32 %v505, %v1213
  %v1610 = vadd.f32 %v506, %v1382
  %v1611 = vadd.f32 %v507, %v877
  %v1612 = vadd.f32 %v508, %v1046
  %v1613 = vadd.f32 %v509, %v1215
  %v1614 = vadd.f32 %v510, %v1384
  %v1615 = vadd.f32 %v511, %v880
  %v1616 = vadd.f32 %v512, %v1049
  %v1617 = vadd.f32 %v513, %v1218
  %v1618 = vadd.f32 %v514, %v1387
  %v1619 = vadd.f32 %v515, %v882
  %v1620 = vadd.f32 %v516, %v1051
  %v1621 = vadd.f32 %v517, %v1220
  %v1622 = vadd.f32 %v518, %v1389
  %v1623 = vadd.f32 %v519, %v885
  %v1624 = vadd.f32 %v520, %v1054
  %v1625 = vadd.f32 %v521, %v1223
  %v1626 = vadd.f32 %v522, %v1392
  %v1627 = vadd.f32 %v523, %v887
  %v1628 = vadd.f32 %v524, %v1056
  %v1629 = vadd.f32 %v525, %v1225
  %v1630 = vadd.f32 %v526, %v1394
  %v1631 = vadd.f32 %v527, %v890
  %v1632 = vadd.f32 %v528, %v1059
  %v1633 = vadd.f32 %v529, %v1228
  %v1634 = vadd.f32 %v530, %v1397
  %v1635 = vadd.f32 %v531, %v892
  %v1636 = vadd.f32 %v532, %v1061
  %v1637 = vadd.f32 %v533, %v1230
  %v1638 = vadd.f32 %v534, %v1399
  %v1639 = vadd.f32 %v535, %v895
  %v1640 = vadd.f32 %v536, %v1064
  %v1641 = vadd.f32 %v537, %v1233
  %v1642 = vadd.f32 %v538, %v1402
  %v1643 = vadd.f32 %v539, %v897
  %v1644 = vadd.f32 %v540, %v1066
  %v1645 = vadd.f32 %v541, %v1235
  %v1646 = vadd.f32 %v542, %v1404
  %v1647 = vadd.f32 %v543, %v900
  %v1648 = vadd.f32 %v544, %v1069
  %v1649 = vadd.f32 %v545, %v1238
  %v1650 = vadd.f32 %v546, %v1407
  %v1651 = vadd.f32 %v547, %v902
  %v1652 = vadd.f32 %v548, %v1071
  %v1653 = vadd.f32 %v549, %v1240
  %v1654 = vadd.f32 %v550, %v1409
  %v1655 = vadd.f32 %v551, %v905
  %v1656 = vadd.f32 %v552, %v1074
  %v1657 = vadd.f32 %v553, %v1243
  %v1658 = vadd.f32 %v554, %v1412
  %v1659 = vadd.f32 %v555, %v907
  %v1660 = vadd.f32 %v556, %v1076
  %v1661 = vadd.f32 %v557, %v1245
  %v1662 = vadd.f32 %v558, %v1414
  %v1663 = vadd.f32 %v559, %v910
  %v1664 = vadd.f32 %v560, %v1079
  %v1665 = vadd.f32 %v561, %v1248
  %v1666 = vadd.f32 %v562, %v1417
  %v1667 = vadd.f32 %v563, %v912
  %v1668 = vadd.f32 %v564, %v1081
  %v1669 = vadd.f32 %v565, %v1250
  %v1670 = vadd.f32 %v566, %v1419
  %v1671 = vadd.f32 %v567, %v915
  %v1672 = vadd.f32 %v568, %v1084
  %v1673 = vadd.f32 %v569, %v1253
  %v1674 = vadd.f32 %v570, %v1422
  %v1675 = vadd.f32 %v571, %v917
  %v1676 = vadd.f32 %v572, %v1086
  %v1677 = vadd.f32 %v573, %v1255
  %v1678 = vadd.f32 %v574, %v1424
  %v1679 = vadd.f32 %v575, %v920
  %v1680 = vadd.f32 %v576, %v1089
  %v1681 = vadd.f32 %v577, %v1258
  %v1682 = vadd.f32 %v578, %v1427
  %v1683 = vadd.f32 %v579, %v922
  %v1684 = vadd.f32 %v580, %v1091
  %v1685 = vadd.f32 %v581, %v1260
  %v1686 = vadd.f32 %v582, %v1429
  %1687 = vst [vmem:[%s2] sm:$0xff] %v1431
  %1688 = vst [vmem:[%s2 + $0x8] sm:$0xff] %v1432
  %1689 = vst [vmem:[%s2 + $0x10] sm:$0xff] %v1433
  %1690 = vst [vmem:[%s2 + $0x18] sm:$0xff] %v1434
  %1691 = vst [vmem:[%s2 + $0x20] sm:$0xff] %v1435
  %1692 = vst [vmem:[%s2 + $0x28] sm:$0xff] %v1436
  %1693 = vst [vmem:[%s2 + $0x30] sm:$0xff] %v1437
  %1694 = vst [vmem:[%s2 + $0x38] sm:$0xff] %v1438
  %1695 = vst [vmem:[%s2 + $0x40] sm:$0xff] %v1439
  %1696 = vst [vmem:[%s2 + $0x48] sm:$0xff] %v1440
  %1697 = vst [vmem:[%s2 + $0x50] sm:$0xff] %v1441
  %1698 = vst [vmem:[%s2 + $0x58] sm:$0xff] %v1442
  %1699 = vst [vmem:[%s2 + $0x60] sm:$0xff] %v1443
  %1700 = vst [vmem:[%s2 + $0x68] sm:$0xff] %v1444
  %1701 = vst [vmem:[%s2 + $0x70] sm:$0xff] %v1445
  %1702 = vst [vmem:[%s2 + $0x78] sm:$0xff] %v1446
  %1703 = vst [vmem:[%s2 + $0x80] sm:$0xff] %v1447
  %1704 = vst [vmem:[%s2 + $0x88] sm:$0xff] %v1448
  %1705 = vst [vmem:[%s2 + $0x90] sm:$0xff] %v1449
  %1706 = vst [vmem:[%s2 + $0x98] sm:$0xff] %v1450
  %1707 = vst [vmem:[%s2 + $0xa0] sm:$0xff] %v1451
  %1708 = vst [vmem:[%s2 + $0xa8] sm:$0xff] %v1452
  %1709 = vst [vmem:[%s2 + $0xb0] sm:$0xff] %v1453
  %1710 = vst [vmem:[%s2 + $0xb8] sm:$0xff] %v1454
  %1711 = vst [vmem:[%s2 + $0xc0] sm:$0xff] %v1455
  %1712 = vst [vmem:[%s2 + $0xc8] sm:$0xff] %v1456
  %1713 = vst [vmem:[%s2 + $0xd0] sm:$0xff] %v1457
  %1714 = vst [vmem:[%s2 + $0xd8] sm:$0xff] %v1458
  %1715 = vst [vmem:[%s2 + $0xe0] sm:$0xff] %v1459
  %1716 = vst [vmem:[%s2 + $0xe8] sm:$0xff] %v1460
  %1717 = vst [vmem:[%s2 + $0xf0] sm:$0xff] %v1461
  %1718 = vst [vmem:[%s2 + $0xf8] sm:$0xff] %v1462
  %1719 = vst [vmem:[%s2 + $0x100] sm:$0xff] %v1463
  %1720 = vst [vmem:[%s2 + $0x108] sm:$0xff] %v1464
  %1721 = vst [vmem:[%s2 + $0x110] sm:$0xff] %v1465
  %1722 = vst [vmem:[%s2 + $0x118] sm:$0xff] %v1466
  %1723 = vst [vmem:[%s2 + $0x120] sm:$0xff] %v1467
  %1724 = vst [vmem:[%s2 + $0x128] sm:$0xff] %v1468
  %1725 = vst [vmem:[%s2 + $0x130] sm:$0xff] %v1469
  %1726 = vst [vmem:[%s2 + $0x138] sm:$0xff] %v1470
  %1727 = vst [vmem:[%s2 + $0x140] sm:$0xff] %v1471
  %1728 = vst [vmem:[%s2 + $0x148] sm:$0xff] %v1472
  %1729 = vst [vmem:[%s2 + $0x150] sm:$0xff] %v1473
  %1730 = vst [vmem:[%s2 + $0x158] sm:$0xff] %v1474
  %1731 = vst [vmem:[%s2 + $0x160] sm:$0xff] %v1475
  %1732 = vst [vmem:[%s2 + $0x168] sm:$0xff] %v1476
  %1733 = vst [vmem:[%s2 + $0x170] sm:$0xff] %v1477
  %1734 = vst [vmem:[%s2 + $0x178] sm:$0xff] %v1478
  %1735 = vst [vmem:[%s2 + $0x180] sm:$0xff] %v1479
  %1736 = vst [vmem:[%s2 + $0x188] sm:$0xff] %v1480
  %1737 = vst [vmem:[%s2 + $0x190] sm:$0xff] %v1481
  %1738 = vst [vmem:[%s2 + $0x198] sm:$0xff] %v1482
  %1739 = vst [vmem:[%s2 + $0x1a0] sm:$0xff] %v1483
  %1740 = vst [vmem:[%s2 + $0x1a8] sm:$0xff] %v1484
  %1741 = vst [vmem:[%s2 + $0x1b0] sm:$0xff] %v1485
  %1742 = vst [vmem:[%s2 + $0x1b8] sm:$0xff] %v1486
  %1743 = vst [vmem:[%s2 + $0x1c0] sm:$0xff] %v1487
  %1744 = vst [vmem:[%s2 + $0x1c8] sm:$0xff] %v1488
  %1745 = vst [vmem:[%s2 + $0x1d0] sm:$0xff] %v1489
  %1746 = vst [vmem:[%s2 + $0x1d8] sm:$0xff] %v1490
  %1747 = vst [vmem:[%s2 + $0x1e0] sm:$0xff] %v1491
  %1748 = vst [vmem:[%s2 + $0x1e8] sm:$0xff] %v1492
  %1749 = vst [vmem:[%s2 + $0x1f0] sm:$0xff] %v1493
  %1750 = vst [vmem:[%s2 + $0x1f8] sm:$0xff] %v1494
  %1751 = vst [vmem:[%s2 + $0x200] sm:$0xff] %v1495
  %1752 = vst [vmem:[%s2 + $0x208] sm:$0xff] %v1496
  %1753 = vst [vmem:[%s2 + $0x210] sm:$0xff] %v1497
  %1754 = vst [vmem:[%s2 + $0x218] sm:$0xff] %v1498
  %1755 = vst [vmem:[%s2 + $0x220] sm:$0xff] %v1499
  %1756 = vst [vmem:[%s2 + $0x228] sm:$0xff] %v1500
  %1757 = vst [vmem:[%s2 + $0x230] sm:$0xff] %v1501
  %1758 = vst [vmem:[%s2 + $0x238] sm:$0xff] %v1502
  %1759 = vst [vmem:[%s2 + $0x240] sm:$0xff] %v1503
  %1760 = vst [vmem:[%s2 + $0x248] sm:$0xff] %v1504
  %1761 = vst [vmem:[%s2 + $0x250] sm:$0xff] %v1505
  %1762 = vst [vmem:[%s2 + $0x258] sm:$0xff] %v1506
  %1763 = vst [vmem:[%s2 + $0x260] sm:$0xff] %v1507
  %1764 = vst [vmem:[%s2 + $0x268] sm:$0xff] %v1508
  %1765 = vst [vmem:[%s2 + $0x270] sm:$0xff] %v1509
  %1766 = vst [vmem:[%s2 + $0x278] sm:$0xff] %v1510
  %1767 = vst [vmem:[%s2 + $0x280] sm:$0xff] %v1511
  %1768 = vst [vmem:[%s2 + $0x288] sm:$0xff] %v1512
  %1769 = vst [vmem:[%s2 + $0x290] sm:$0xff] %v1513
  %1770 = vst [vmem:[%s2 + $0x298] sm:$0xff] %v1514
  %1771 = vst [vmem:[%s2 + $0x2a0] sm:$0xff] %v1515
  %1772 = vst [vmem:[%s2 + $0x2a8] sm:$0xff] %v1516
  %1773 = vst [vmem:[%s2 + $0x2b0] sm:$0xff] %v1517
  %1774 = vst [vmem:[%s2 + $0x2b8] sm:$0xff] %v1518
  %1775 = vst [vmem:[%s2 + $0x2c0] sm:$0xff] %v1519
  %1776 = vst [vmem:[%s2 + $0x2c8] sm:$0xff] %v1520
  %1777 = vst [vmem:[%s2 + $0x2d0] sm:$0xff] %v1521
  %1778 = vst [vmem:[%s2 + $0x2d8] sm:$0xff] %v1522
  %1779 = vst [vmem:[%s2 + $0x2e0] sm:$0xff] %v1523
  %1780 = vst [vmem:[%s2 + $0x2e8] sm:$0xff] %v1524
  %1781 = vst [vmem:[%s2 + $0x2f0] sm:$0xff] %v1525
  %1782 = vst [vmem:[%s2 + $0x2f8] sm:$0xff] %v1526
  %1783 = vst [vmem:[%s2 + $0x300] sm:$0xff] %v1527
  %1784 = vst [vmem:[%s2 + $0x308] sm:$0xff] %v1528
  %1785 = vst [vmem:[%s2 + $0x310] sm:$0xff] %v1529
  %1786 = vst [vmem:[%s2 + $0x318] sm:$0xff] %v1530
  %1787 = vst [vmem:[%s2 + $0x320] sm:$0xff] %v1531
  %1788 = vst [vmem:[%s2 + $0x328] sm:$0xff] %v1532
  %1789 = vst [vmem:[%s2 + $0x330] sm:$0xff] %v1533
  %1790 = vst [vmem:[%s2 + $0x338] sm:$0xff] %v1534
  %1791 = vst [vmem:[%s2 + $0x340] sm:$0xff] %v1535
  %1792 = vst [vmem:[%s2 + $0x348] sm:$0xff] %v1536
  %1793 = vst [vmem:[%s2 + $0x350] sm:$0xff] %v1537
  %1794 = vst [vmem:[%s2 + $0x358] sm:$0xff] %v1538
  %1795 = vst [vmem:[%s2 + $0x360] sm:$0xff] %v1539
  %1796 = vst [vmem:[%s2 + $0x368] sm:$0xff] %v1540
  %1797 = vst [vmem:[%s2 + $0x370] sm:$0xff] %v1541
  %1798 = vst [vmem:[%s2 + $0x378] sm:$0xff] %v1542
  %1799 = vst [vmem:[%s2 + $0x380] sm:$0xff] %v1543
  %1800 = vst [vmem:[%s2 + $0x388] sm:$0xff] %v1544
  %1801 = vst [vmem:[%s2 + $0x390] sm:$0xff] %v1545
  %1802 = vst [vmem:[%s2 + $0x398] sm:$0xff] %v1546
  %1803 = vst [vmem:[%s2 + $0x3a0] sm:$0xff] %v1547
  %1804 = vst [vmem:[%s2 + $0x3a8] sm:$0xff] %v1548
  %1805 = vst [vmem:[%s2 + $0x3b0] sm:$0xff] %v1549
  %1806 = vst [vmem:[%s2 + $0x3b8] sm:$0xff] %v1550
  %1807 = vst [vmem:[%s2 + $0x3c0] sm:$0xff] %v1551
  %1808 = vst [vmem:[%s2 + $0x3c8] sm:$0xff] %v1552
  %1809 = vst [vmem:[%s2 + $0x3d0] sm:$0xff] %v1553
  %1810 = vst [vmem:[%s2 + $0x3d8] sm:$0xff] %v1554
  %1811 = vst [vmem:[%s2 + $0x3e0] sm:$0xff] %v1555
  %1812 = vst [vmem:[%s2 + $0x3e8] sm:$0xff] %v1556
  %1813 = vst [vmem:[%s2 + $0x3f0] sm:$0xff] %v1557
  %1814 = vst [vmem:[%s2 + $0x3f8] sm:$0xff] %v1558
  %1815 = vst [vmem:[%s2 + $0x400] sm:$0xff] %v1559
  %1816 = vst [vmem:[%s2 + $0x408] sm:$0xff] %v1560
  %1817 = vst [vmem:[%s2 + $0x410] sm:$0xff] %v1561
  %1818 = vst [vmem:[%s2 + $0x418] sm:$0xff] %v1562
  %1819 = vst [vmem:[%s2 + $0x420] sm:$0xff] %v1563
  %1820 = vst [vmem:[%s2 + $0x428] sm:$0xff] %v1564
  %1821 = vst [vmem:[%s2 + $0x430] sm:$0xff] %v1565
  %1822 = vst [vmem:[%s2 + $0x438] sm:$0xff] %v1566
  %1823 = vst [vmem:[%s2 + $0x440] sm:$0xff] %v1567
  %1824 = vst [vmem:[%s2 + $0x448] sm:$0xff] %v1568
  %1825 = vst [vmem:[%s2 + $0x450] sm:$0xff] %v1569
  %1826 = vst [vmem:[%s2 + $0x458] sm:$0xff] %v1570
  %1827 = vst [vmem:[%s2 + $0x460] sm:$0xff] %v1571
  %1828 = vst [vmem:[%s2 + $0x468] sm:$0xff] %v1572
  %1829 = vst [vmem:[%s2 + $0x470] sm:$0xff] %v1573
  %1830 = vst [vmem:[%s2 + $0x478] sm:$0xff] %v1574
  %1831 = vst [vmem:[%s2 + $0x480] sm:$0xff] %v1575
  %1832 = vst [vmem:[%s2 + $0x488] sm:$0xff] %v1576
  %1833 = vst [vmem:[%s2 + $0x490] sm:$0xff] %v1577
  %1834 = vst [vmem:[%s2 + $0x498] sm:$0xff] %v1578
  %1835 = vst [vmem:[%s2 + $0x4a0] sm:$0xff] %v1579
  %1836 = vst [vmem:[%s2 + $0x4a8] sm:$0xff] %v1580
  %1837 = vst [vmem:[%s2 + $0x4b0] sm:$0xff] %v1581
  %1838 = vst [vmem:[%s2 + $0x4b8] sm:$0xff] %v1582
  %1839 = vst [vmem:[%s2 + $0x4c0] sm:$0xff] %v1583
  %1840 = vst [vmem:[%s2 + $0x4c8] sm:$0xff] %v1584
  %1841 = vst [vmem:[%s2 + $0x4d0] sm:$0xff] %v1585
  %1842 = vst [vmem:[%s2 + $0x4d8] sm:$0xff] %v1586
  %1843 = vst [vmem:[%s2 + $0x4e0] sm:$0xff] %v1587
  %1844 = vst [vmem:[%s2 + $0x4e8] sm:$0xff] %v1588
  %1845 = vst [vmem:[%s2 + $0x4f0] sm:$0xff] %v1589
  %1846 = vst [vmem:[%s2 + $0x4f8] sm:$0xff] %v1590
  %1847 = vst [vmem:[%s2 + $0x500] sm:$0xff] %v1591
  %1848 = vst [vmem:[%s2 + $0x508] sm:$0xff] %v1592
  %1849 = vst [vmem:[%s2 + $0x510] sm:$0xff] %v1593
  %1850 = vst [vmem:[%s2 + $0x518] sm:$0xff] %v1594
  %1851 = vst [vmem:[%s2 + $0x520] sm:$0xff] %v1595
  %1852 = vst [vmem:[%s2 + $0x528] sm:$0xff] %v1596
  %1853 = vst [vmem:[%s2 + $0x530] sm:$0xff] %v1597
  %1854 = vst [vmem:[%s2 + $0x538] sm:$0xff] %v1598
  %1855 = vst [vmem:[%s2 + $0x540] sm:$0xff] %v1599
  %1856 = vst [vmem:[%s2 + $0x548] sm:$0xff] %v1600
  %1857 = vst [vmem:[%s2 + $0x550] sm:$0xff] %v1601
  %1858 = vst [vmem:[%s2 + $0x558] sm:$0xff] %v1602
  %1859 = vst [vmem:[%s2 + $0x560] sm:$0xff] %v1603
  %1860 = vst [vmem:[%s2 + $0x568] sm:$0xff] %v1604
  %1861 = vst [vmem:[%s2 + $0x570] sm:$0xff] %v1605
  %1862 = vst [vmem:[%s2 + $0x578] sm:$0xff] %v1606
  %1863 = vst [vmem:[%s2 + $0x580] sm:$0xff] %v1607
  %1864 = vst [vmem:[%s2 + $0x588] sm:$0xff] %v1608
  %1865 = vst [vmem:[%s2 + $0x590] sm:$0xff] %v1609
  %1866 = vst [vmem:[%s2 + $0x598] sm:$0xff] %v1610
  %1867 = vst [vmem:[%s2 + $0x5a0] sm:$0xff] %v1611
  %1868 = vst [vmem:[%s2 + $0x5a8] sm:$0xff] %v1612
  %1869 = vst [vmem:[%s2 + $0x5b0] sm:$0xff] %v1613
  %1870 = vst [vmem:[%s2 + $0x5b8] sm:$0xff] %v1614
  %1871 = vst [vmem:[%s2 + $0x5c0] sm:$0xff] %v1615
  %1872 = vst [vmem:[%s2 + $0x5c8] sm:$0xff] %v1616
  %1873 = vst [vmem:[%s2 + $0x5d0] sm:$0xff] %v1617
  %1874 = vst [vmem:[%s2 + $0x5d8] sm:$0xff] %v1618
  %1875 = vst [vmem:[%s2 + $0x5e0] sm:$0xff] %v1619
  %1876 = vst [vmem:[%s2 + $0x5e8] sm:$0xff] %v1620
  %1877 = vst [vmem:[%s2 + $0x5f0] sm:$0xff] %v1621
  %1878 = vst [vmem:[%s2 + $0x5f8] sm:$0xff] %v1622
  %1879 = vst [vmem:[%s2 + $0x600] sm:$0xff] %v1623
  %1880 = vst [vmem:[%s2 + $0x608] sm:$0xff] %v1624
  %1881 = vst [vmem:[%s2 + $0x610] sm:$0xff] %v1625
  %1882 = vst [vmem:[%s2 + $0x618] sm:$0xff] %v1626
  %1883 = vst [vmem:[%s2 + $0x620] sm:$0xff] %v1627
  %1884 = vst [vmem:[%s2 + $0x628] sm:$0xff] %v1628
  %1885 = vst [vmem:[%s2 + $0x630] sm:$0xff] %v1629
  %1886 = vst [vmem:[%s2 + $0x638] sm:$0xff] %v1630
  %1887 = vst [vmem:[%s2 + $0x640] sm:$0xff] %v1631
  %1888 = vst [vmem:[%s2 + $0x648] sm:$0xff] %v1632
  %1889 = vst [vmem:[%s2 + $0x650] sm:$0xff] %v1633
  %1890 = vst [vmem:[%s2 + $0x658] sm:$0xff] %v1634
  %1891 = vst [vmem:[%s2 + $0x660] sm:$0xff] %v1635
  %1892 = vst [vmem:[%s2 + $0x668] sm:$0xff] %v1636
  %1893 = vst [vmem:[%s2 + $0x670] sm:$0xff] %v1637
  %1894 = vst [vmem:[%s2 + $0x678] sm:$0xff] %v1638
  %1895 = vst [vmem:[%s2 + $0x680] sm:$0xff] %v1639
  %1896 = vst [vmem:[%s2 + $0x688] sm:$0xff] %v1640
  %1897 = vst [vmem:[%s2 + $0x690] sm:$0xff] %v1641
  %1898 = vst [vmem:[%s2 + $0x698] sm:$0xff] %v1642
  %1899 = vst [vmem:[%s2 + $0x6a0] sm:$0xff] %v1643
  %1900 = vst [vmem:[%s2 + $0x6a8] sm:$0xff] %v1644
  %1901 = vst [vmem:[%s2 + $0x6b0] sm:$0xff] %v1645
  %1902 = vst [vmem:[%s2 + $0x6b8] sm:$0xff] %v1646
  %1903 = vst [vmem:[%s2 + $0x6c0] sm:$0xff] %v1647
  %1904 = vst [vmem:[%s2 + $0x6c8] sm:$0xff] %v1648
  %1905 = vst [vmem:[%s2 + $0x6d0] sm:$0xff] %v1649
  %1906 = vst [vmem:[%s2 + $0x6d8] sm:$0xff] %v1650
  %1907 = vst [vmem:[%s2 + $0x6e0] sm:$0xff] %v1651
  %1908 = vst [vmem:[%s2 + $0x6e8] sm:$0xff] %v1652
  %1909 = vst [vmem:[%s2 + $0x6f0] sm:$0xff] %v1653
  %1910 = vst [vmem:[%s2 + $0x6f8] sm:$0xff] %v1654
  %1911 = vst [vmem:[%s2 + $0x700] sm:$0xff] %v1655
  %1912 = vst [vmem:[%s2 + $0x708] sm:$0xff] %v1656
  %1913 = vst [vmem:[%s2 + $0x710] sm:$0xff] %v1657
  %1914 = vst [vmem:[%s2 + $0x718] sm:$0xff] %v1658
  %1915 = vst [vmem:[%s2 + $0x720] sm:$0xff] %v1659
  %1916 = vst [vmem:[%s2 + $0x728] sm:$0xff] %v1660
  %1917 = vst [vmem:[%s2 + $0x730] sm:$0xff] %v1661
  %1918 = vst [vmem:[%s2 + $0x738] sm:$0xff] %v1662
  %1919 = vst [vmem:[%s2 + $0x740] sm:$0xff] %v1663
  %1920 = vst [vmem:[%s2 + $0x748] sm:$0xff] %v1664
  %1921 = vst [vmem:[%s2 + $0x750] sm:$0xff] %v1665
  %1922 = vst [vmem:[%s2 + $0x758] sm:$0xff] %v1666
  %1923 = vst [vmem:[%s2 + $0x760] sm:$0xff] %v1667
  %1924 = vst [vmem:[%s2 + $0x768] sm:$0xff] %v1668
  %1925 = vst [vmem:[%s2 + $0x770] sm:$0xff] %v1669
  %1926 = vst [vmem:[%s2 + $0x778] sm:$0xff] %v1670
  %1927 = vst [vmem:[%s2 + $0x780] sm:$0xff] %v1671
  %1928 = vst [vmem:[%s2 + $0x788] sm:$0xff] %v1672
  %1929 = vst [vmem:[%s2 + $0x790] sm:$0xff] %v1673
  %1930 = vst [vmem:[%s2 + $0x798] sm:$0xff] %v1674
  %1931 = vst [vmem:[%s2 + $0x7a0] sm:$0xff] %v1675
  %1932 = vst [vmem:[%s2 + $0x7a8] sm:$0xff] %v1676
  %1933 = vst [vmem:[%s2 + $0x7b0] sm:$0xff] %v1677
  %1934 = vst [vmem:[%s2 + $0x7b8] sm:$0xff] %v1678
  %1935 = vst [vmem:[%s2 + $0x7c0] sm:$0xff] %v1679
  %1936 = vst [vmem:[%s2 + $0x7c8] sm:$0xff] %v1680
  %1937 = vst [vmem:[%s2 + $0x7d0] sm:$0xff] %v1681
  %1938 = vst [vmem:[%s2 + $0x7d8] sm:$0xff] %v1682
  %1939 = vst [vmem:[%s2 + $0x7e0] sm:$0xff] %v1683
  %1940 = vst [vmem:[%s2 + $0x7e8] sm:$0xff] %v1684
  %1941 = vst [vmem:[%s2 + $0x7f0] sm:$0xff] %v1685
  %1942 = vst [vmem:[%s2 + $0x7f8] sm:$0xff] %v1686
  // Predicated region
  $region10: #{channel_distill_forward.14} parent=0 // pred_check
    _
  $region11: #{channel_distill_forward.14} parent=0 // pred_check_branch
    %1944 = sbr.rel (0) target = $region13
  $region12: #{channel_distill_forward.14} parent=0 // pred_region
    _
  $region13: #{channel_distill_forward.14} parent=0 // pred_fallthru
    _
  // Predicated region
  $region14: #{channel_distill_forward.14} parent=0 // pred_check
    _
  $region15: #{channel_distill_forward.14} parent=0 // pred_check_branch
    %1946 = sbr.rel (0) target = $region17
  $region16: #{channel_distill_forward.14} parent=0 // pred_region
    _
  $region17: #{channel_distill_forward.14} parent=0 // pred_fallthru
    _
  // Predicated region
  $region18: #{channel_distill_forward.14} parent=0 // pred_check
    _
  $region19: #{channel_distill_forward.14} parent=0 // pred_check_branch
    %1948 = sbr.rel (0) target = $region21
  $region20: #{channel_distill_forward.14} parent=0 // pred_region
    _
  $region21: #{channel_distill_forward.14} parent=0 // pred_fallthru
    _
  // Predicated region
  $region22: #{channel_distill_forward.14} parent=0 // pred_check
    _
  $region23: #{channel_distill_forward.14} parent=0 // pred_check_branch
    %1950 = sbr.rel (0) target = $region25
  $region24: #{channel_distill_forward.14} parent=0 // pred_region
    _
  $region25: #{channel_distill_forward.14} parent=0 // pred_fallthru
    _

// kernel: channel_distill_forward.12
$region0: #{channel_distill_forward.12}
  #allocation0 [shape = 'u32[]', space=smem, size = 0x4, offset = 0x4, fixed_abs, tag = 'smem constant byte address 0x4 - core index']
  #allocation1 [shape = 'u32[72,128]{1,0:T(1,128)}', space=vmem, size = 0x9000, scoped, tag = 'internal scratch']
  %s0 = inlined_call_operand.vmem [shape: bf16[8,256], index: 0, kind: input, shape index: {}]
  %s1 = inlined_call_operand.vmem [shape: f32[1,256], index: 1, kind: output, shape index: {0}]
  %s2 = inlined_call_operand.vmem [shape: f32[256,256], index: 2, kind: output, shape index: {1}]
  %3 = xla_tuple %s1, %s2
  %s4 = sld [smem:[#allocation0]]
  $region26: #{channel_distill_forward.12} parent=0
    _
  %s6 = ssub.s32 1, %s4
  %s7 = scalar_select 0, %s6, %s4
  // Predicated region
  $region2: #{channel_distill_forward.12} parent=0 // pred_check
    _
  $region3: #{channel_distill_forward.12} parent=0 // pred_check_branch
    %9 = sbr.rel (0) target = $region5
  $region4: #{channel_distill_forward.12} parent=0 // pred_region
    _
  $region5: #{channel_distill_forward.12} parent=0 // pred_fallthru
    _
  %p11 = scmp.eq.s32.totalorder 0, 0
  // Predicated region
  $region6: #{channel_distill_forward.12} parent=0 // pred_check
    %p12 = pneg %p11
  $region7: #{channel_distill_forward.12} parent=0 // pred_check_branch
    %14 = sbr.rel (%p12) target = $region9
  $region8: #{channel_distill_forward.12} parent=0 // pred_region
    %v15 = vlaneseq
    %vm16 = vcmp.ge.s32.totalorder %v15, 0
    %vm17 = vcmp.lt.s32.totalorder %v15, 256
    %vm18 = vmand %vm16, %vm17
    %19 = vst.msk [vmem:[%s1] sm:$0x3] %vm18, 0.0
    %20 = vst [vmem:[%s2] sm:$0xff] 0.0
    %21 = vst [vmem:[%s2 + $0x8] sm:$0xff] 0.0
    %22 = vst [vmem:[%s2 + $0x10] sm:$0xff] 0.0
    %23 = vst [vmem:[%s2 + $0x18] sm:$0xff] 0.0
    %24 = vst [vmem:[%s2 + $0x20] sm:$0xff] 0.0
    %25 = vst [vmem:[%s2 + $0x28] sm:$0xff] 0.0
    %26 = vst [vmem:[%s2 + $0x30] sm:$0xff] 0.0
    %27 = vst [vmem:[%s2 + $0x38] sm:$0xff] 0.0
    %28 = vst [vmem:[%s2 + $0x40] sm:$0xff] 0.0
    %29 = vst [vmem:[%s2 + $0x48] sm:$0xff] 0.0
    %30 = vst [vmem:[%s2 + $0x50] sm:$0xff] 0.0
    %31 = vst [vmem:[%s2 + $0x58] sm:$0xff] 0.0
    %32 = vst [vmem:[%s2 + $0x60] sm:$0xff] 0.0
    %33 = vst [vmem:[%s2 + $0x68] sm:$0xff] 0.0
    %34 = vst [vmem:[%s2 + $0x70] sm:$0xff] 0.0
    %35 = vst [vmem:[%s2 + $0x78] sm:$0xff] 0.0
    %36 = vst [vmem:[%s2 + $0x80] sm:$0xff] 0.0
    %37 = vst [vmem:[%s2 + $0x88] sm:$0xff] 0.0
    %38 = vst [vmem:[%s2 + $0x90] sm:$0xff] 0.0
    %39 = vst [vmem:[%s2 + $0x98] sm:$0xff] 0.0
    %40 = vst [vmem:[%s2 + $0xa0] sm:$0xff] 0.0
    %41 = vst [vmem:[%s2 + $0xa8] sm:$0xff] 0.0
    %42 = vst [vmem:[%s2 + $0xb0] sm:$0xff] 0.0
    %43 = vst [vmem:[%s2 + $0xb8] sm:$0xff] 0.0
    %44 = vst [vmem:[%s2 + $0xc0] sm:$0xff] 0.0
    %45 = vst [vmem:[%s2 + $0xc8] sm:$0xff] 0.0
    %46 = vst [vmem:[%s2 + $0xd0] sm:$0xff] 0.0
    %47 = vst [vmem:[%s2 + $0xd8] sm:$0xff] 0.0
    %48 = vst [vmem:[%s2 + $0xe0] sm:$0xff] 0.0
    %49 = vst [vmem:[%s2 + $0xe8] sm:$0xff] 0.0
    %50 = vst [vmem:[%s2 + $0xf0] sm:$0xff] 0.0
    %51 = vst [vmem:[%s2 + $0xf8] sm:$0xff] 0.0
    %52 = vst [vmem:[%s2 + $0x100] sm:$0xff] 0.0
    %53 = vst [vmem:[%s2 + $0x108] sm:$0xff] 0.0
    %54 = vst [vmem:[%s2 + $0x110] sm:$0xff] 0.0
    %55 = vst [vmem:[%s2 + $0x118] sm:$0xff] 0.0
    %56 = vst [vmem:[%s2 + $0x120] sm:$0xff] 0.0
    %57 = vst [vmem:[%s2 + $0x128] sm:$0xff] 0.0
    %58 = vst [vmem:[%s2 + $0x130] sm:$0xff] 0.0
    %59 = vst [vmem:[%s2 + $0x138] sm:$0xff] 0.0
    %60 = vst [vmem:[%s2 + $0x140] sm:$0xff] 0.0
    %61 = vst [vmem:[%s2 + $0x148] sm:$0xff] 0.0
    %62 = vst [vmem:[%s2 + $0x150] sm:$0xff] 0.0
    %63 = vst [vmem:[%s2 + $0x158] sm:$0xff] 0.0
    %64 = vst [vmem:[%s2 + $0x160] sm:$0xff] 0.0
    %65 = vst [vmem:[%s2 + $0x168] sm:$0xff] 0.0
    %66 = vst [vmem:[%s2 + $0x170] sm:$0xff] 0.0
    %67 = vst [vmem:[%s2 + $0x178] sm:$0xff] 0.0
    %68 = vst [vmem:[%s2 + $0x180] sm:$0xff] 0.0
    %69 = vst [vmem:[%s2 + $0x188] sm:$0xff] 0.0
    %70 = vst [vmem:[%s2 + $0x190] sm:$0xff] 0.0
    %71 = vst [vmem:[%s2 + $0x198] sm:$0xff] 0.0
    %72 = vst [vmem:[%s2 + $0x1a0] sm:$0xff] 0.0
    %73 = vst [vmem:[%s2 + $0x1a8] sm:$0xff] 0.0
    %74 = vst [vmem:[%s2 + $0x1b0] sm:$0xff] 0.0
    %75 = vst [vmem:[%s2 + $0x1b8] sm:$0xff] 0.0
    %76 = vst [vmem:[%s2 + $0x1c0] sm:$0xff] 0.0
    %77 = vst [vmem:[%s2 + $0x1c8] sm:$0xff] 0.0
    %78 = vst [vmem:[%s2 + $0x1d0] sm:$0xff] 0.0
    %79 = vst [vmem:[%s2 + $0x1d8] sm:$0xff] 0.0
    %80 = vst [vmem:[%s2 + $0x1e0] sm:$0xff] 0.0
    %81 = vst [vmem:[%s2 + $0x1e8] sm:$0xff] 0.0
    %82 = vst [vmem:[%s2 + $0x1f0] sm:$0xff] 0.0
    %83 = vst [vmem:[%s2 + $0x1f8] sm:$0xff] 0.0
  $region9: #{channel_distill_forward.12} parent=0 // pred_fallthru
    _
  %v84 = vld [vmem:[%s0] sm:$0xff]
  %v85 = vld [vmem:[%s1] sm:$0x3]
  %v86 = vunpack.c.l.bf16 %v84
  %v87 = vunpack.c.h.bf16 %v84
  %v88 = vrot.slane %v86, 4
  %v89 = vadd.f32 %v86, %v88
  %v90 = vrot.slane %v89, 2
  %v91 = vadd.f32 %v89, %v90
  %v92 = vrot.slane %v91, 1
  %v93 = vadd.f32 %v91, %v92
  %v94 = vrot.slane %v87, 4
  %v95 = vadd.f32 %v87, %v94
  %v96 = vrot.slane %v95, 2
  %v97 = vadd.f32 %v95, %v96
  %v98 = vrot.slane %v97, 1
  %v99 = vadd.f32 %v97, %v98
  %v102 = vrot.slane %v99, 7
  %vm103 = vcmask 1040384
  %v104 = vsel %vm103, %v93, %v102
  %v106 = vadd.f32 %v85, %v104
  %v107 = vlaneseq
  %vm108 = vcmp.ge.s32.totalorder %v107, 0
  %vm109 = vcmp.lt.s32.totalorder %v107, 256
  %vm110 = vmand %vm108, %vm109
  %111 = vst.msk [vmem:[%s1] sm:$0x3] %vm110, %v106
  %v112 = vld [vmem:[%s2] sm:$0xff]
  %v113 = vld [vmem:[%s2 + $0x8] sm:$0xff]
  %v114 = vld [vmem:[%s2 + $0x10] sm:$0xff]
  %v115 = vld [vmem:[%s2 + $0x18] sm:$0xff]
  %v116 = vld [vmem:[%s2 + $0x20] sm:$0xff]
  %v117 = vld [vmem:[%s2 + $0x28] sm:$0xff]
  %v118 = vld [vmem:[%s2 + $0x30] sm:$0xff]
  %v119 = vld [vmem:[%s2 + $0x38] sm:$0xff]
  %v120 = vld [vmem:[%s2 + $0x40] sm:$0xff]
  %v121 = vld [vmem:[%s2 + $0x48] sm:$0xff]
  %v122 = vld [vmem:[%s2 + $0x50] sm:$0xff]
  %v123 = vld [vmem:[%s2 + $0x58] sm:$0xff]
  %v124 = vld [vmem:[%s2 + $0x60] sm:$0xff]
  %v125 = vld [vmem:[%s2 + $0x68] sm:$0xff]
  %v126 = vld [vmem:[%s2 + $0x70] sm:$0xff]
  %v127 = vld [vmem:[%s2 + $0x78] sm:$0xff]
  %v128 = vld [vmem:[%s2 + $0x80] sm:$0xff]
  %v129 = vld [vmem:[%s2 + $0x88] sm:$0xff]
  %v130 = vld [vmem:[%s2 + $0x90] sm:$0xff]
  %v131 = vld [vmem:[%s2 + $0x98] sm:$0xff]
  %v132 = vld [vmem:[%s2 + $0xa0] sm:$0xff]
  %v133 = vld [vmem:[%s2 + $0xa8] sm:$0xff]
  %v134 = vld [vmem:[%s2 + $0xb0] sm:$0xff]
  %v135 = vld [vmem:[%s2 + $0xb8] sm:$0xff]
  %v136 = vld [vmem:[%s2 + $0xc0] sm:$0xff]
  %v137 = vld [vmem:[%s2 + $0xc8] sm:$0xff]
  %v138 = vld [vmem:[%s2 + $0xd0] sm:$0xff]
  %v139 = vld [vmem:[%s2 + $0xd8] sm:$0xff]
  %v140 = vld [vmem:[%s2 + $0xe0] sm:$0xff]
  %v141 = vld [vmem:[%s2 + $0xe8] sm:$0xff]
  %v142 = vld [vmem:[%s2 + $0xf0] sm:$0xff]
  %v143 = vld [vmem:[%s2 + $0xf8] sm:$0xff]
  %v144 = vld [vmem:[%s2 + $0x100] sm:$0xff]
  %v145 = vld [vmem:[%s2 + $0x108] sm:$0xff]
  %v146 = vld [vmem:[%s2 + $0x110] sm:$0xff]
  %v147 = vld [vmem:[%s2 + $0x118] sm:$0xff]
  %v148 = vld [vmem:[%s2 + $0x120] sm:$0xff]
  %v149 = vld [vmem:[%s2 + $0x128] sm:$0xff]
  %v150 = vld [vmem:[%s2 + $0x130] sm:$0xff]
  %v151 = vld [vmem:[%s2 + $0x138] sm:$0xff]
  %v152 = vld [vmem:[%s2 + $0x140] sm:$0xff]
  %v153 = vld [vmem:[%s2 + $0x148] sm:$0xff]
  %v154 = vld [vmem:[%s2 + $0x150] sm:$0xff]
  %v155 = vld [vmem:[%s2 + $0x158] sm:$0xff]
  %v156 = vld [vmem:[%s2 + $0x160] sm:$0xff]
  %v157 = vld [vmem:[%s2 + $0x168] sm:$0xff]
  %v158 = vld [vmem:[%s2 + $0x170] sm:$0xff]
  %v159 = vld [vmem:[%s2 + $0x178] sm:$0xff]
  %v160 = vld [vmem:[%s2 + $0x180] sm:$0xff]
  %v161 = vld [vmem:[%s2 + $0x188] sm:$0xff]
  %v162 = vld [vmem:[%s2 + $0x190] sm:$0xff]
  %v163 = vld [vmem:[%s2 + $0x198] sm:$0xff]
  %v164 = vld [vmem:[%s2 + $0x1a0] sm:$0xff]
  %v165 = vld [vmem:[%s2 + $0x1a8] sm:$0xff]
  %v166 = vld [vmem:[%s2 + $0x1b0] sm:$0xff]
  %v167 = vld [vmem:[%s2 + $0x1b8] sm:$0xff]
  %v168 = vld [vmem:[%s2 + $0x1c0] sm:$0xff]
  %v169 = vld [vmem:[%s2 + $0x1c8] sm:$0xff]
  %v170 = vld [vmem:[%s2 + $0x1d0] sm:$0xff]
  %v171 = vld [vmem:[%s2 + $0x1d8] sm:$0xff]
  %v172 = vld [vmem:[%s2 + $0x1e0] sm:$0xff]
  %v173 = vld [vmem:[%s2 + $0x1e8] sm:$0xff]
  %v174 = vld [vmem:[%s2 + $0x1f0] sm:$0xff]
  %v175 = vld [vmem:[%s2 + $0x1f8] sm:$0xff]
  %v177 = vunpack.c.l.b16 %v84
  %v178 = vunpack.c.h.b16 %v84
  %v179 = vpack.c.b16 %v177, %v177
  %v180 = vpack.c.b16 %v178, %v178
  %183 = vxpose.binary.xlu0.c.b16.start [1/16] %v180, %v179, 128
  %184 = vxpose.binary.xlu0.c.b16.cont [2/16] 0, 0, 128
  %185 = vxpose.binary.xlu0.c.b16.cont [3/16] 0, 0, 128
  %186 = vxpose.binary.xlu0.c.b16.cont [4/16] 0, 0, 128
  %187 = vxpose.binary.xlu0.c.b16.cont [5/16] 0, 0, 128
  %188 = vxpose.binary.xlu0.c.b16.cont [6/16] 0, 0, 128
  %189 = vxpose.binary.xlu0.c.b16.cont [7/16] 0, 0, 128
  %190 = vxpose.binary.xlu0.c.b16.end [8/16] 0, 0, 128
  %v191 = vpop.trf.xlu0
  %v192 = vpop.trf.xlu0
  %v193 = vpop.trf.xlu0
  %v194 = vpop.trf.xlu0
  %v195 = vpop.trf.xlu0
  %v196 = vpop.trf.xlu0
  %v197 = vpop.trf.xlu0
  %v198 = vpop.trf.xlu0
  %v199 = vpop.trf.xlu0
  %v200 = vpop.trf.xlu0
  %v201 = vpop.trf.xlu0
  %v202 = vpop.trf.xlu0
  %v203 = vpop.trf.xlu0
  %v204 = vpop.trf.xlu0
  %v205 = vpop.trf.xlu0
  %v206 = vpop.trf.xlu0
  %vm207 = vcmask 64512
  %v209 = vsel %vm207, %v191, 0
  %v212 = vsel %vm207, %v193, 0
  %v215 = vsel %vm207, %v195, 0
  %v218 = vsel %vm207, %v197, 0
  %v221 = vsel %vm207, %v199, 0
  %v224 = vsel %vm207, %v201, 0
  %v227 = vsel %vm207, %v203, 0
  %v230 = vsel %vm207, %v205, 0
  %v233 = vsel %vm207, %v192, 0
  %v236 = vsel %vm207, %v194, 0
  %v239 = vsel %vm207, %v196, 0
  %v242 = vsel %vm207, %v198, 0
  %v245 = vsel %vm207, %v200, 0
  %v248 = vsel %vm207, %v202, 0
  %v251 = vsel %vm207, %v204, 0
  %v254 = vsel %vm207, %v206, 0
  %vm256 = vcmask 1043456
  %v258 = vsel %vm256, %v179, 0
  %v261 = vsel %vm256, %v180, 0
  %263 = vmatpush.bf16.msra.mxu0 0
  %264 = vmatpush.bf16.msra.mxu0 0
  %265 = vmatpush.bf16.msra.mxu0 0
  %266 = vmatpush.bf16.msra.mxu0 0
  %267 = vmatpush.bf16.msra.mxu0 0
  %268 = vmatpush.bf16.msra.mxu0 0
  %269 = vmatpush.bf16.msra.mxu0 0
  %270 = vmatpush.bf16.msra.mxu0 %v258
  %271 = vmatmul.bf16.gmra.mxu0 %v209
  %v272 = vpop.f32.mrf.mxu0
  %v273 = vadd.f32 0.0, %v272
  %v274 = vpop.f32.mrf.mxu0
  %v275 = vadd.f32 0.0, %v274
  %276 = vmatmul.bf16.gmra.mxu0 %v212
  %v277 = vpop.f32.mrf.mxu0
  %v278 = vadd.f32 0.0, %v277
  %v279 = vpop.f32.mrf.mxu0
  %v280 = vadd.f32 0.0, %v279
  %281 = vmatmul.bf16.gmra.mxu0 %v215
  %v282 = vpop.f32.mrf.mxu0
  %v283 = vadd.f32 0.0, %v282
  %v284 = vpop.f32.mrf.mxu0
  %v285 = vadd.f32 0.0, %v284
  %286 = vmatmul.bf16.gmra.mxu0 %v218
  %v287 = vpop.f32.mrf.mxu0
  %v288 = vadd.f32 0.0, %v287
  %v289 = vpop.f32.mrf.mxu0
  %v290 = vadd.f32 0.0, %v289
  %291 = vmatmul.bf16.gmra.mxu0 %v221
  %v292 = vpop.f32.mrf.mxu0
  %v293 = vadd.f32 0.0, %v292
  %v294 = vpop.f32.mrf.mxu0
  %v295 = vadd.f32 0.0, %v294
  %296 = vmatmul.bf16.gmra.mxu0 %v224
  %v297 = vpop.f32.mrf.mxu0
  %v298 = vadd.f32 0.0, %v297
  %v299 = vpop.f32.mrf.mxu0
  %v300 = vadd.f32 0.0, %v299
  %301 = vmatmul.bf16.gmra.mxu0 %v227
  %v302 = vpop.f32.mrf.mxu0
  %v303 = vadd.f32 0.0, %v302
  %v304 = vpop.f32.mrf.mxu0
  %v305 = vadd.f32 0.0, %v304
  %306 = vmatmul.bf16.gmra.mxu0 %v230
  %v307 = vpop.f32.mrf.mxu0
  %v308 = vadd.f32 0.0, %v307
  %v309 = vpop.f32.mrf.mxu0
  %v310 = vadd.f32 0.0, %v309
  %311 = vmatmul.bf16.gmra.mxu0 %v233
  %v312 = vpop.f32.mrf.mxu0
  %v313 = vadd.f32 0.0, %v312
  %v314 = vpop.f32.mrf.mxu0
  %v315 = vadd.f32 0.0, %v314
  %316 = vmatmul.bf16.gmra.mxu0 %v236
  %v317 = vpop.f32.mrf.mxu0
  %v318 = vadd.f32 0.0, %v317
  %v319 = vpop.f32.mrf.mxu0
  %v320 = vadd.f32 0.0, %v319
  %321 = vmatmul.bf16.gmra.mxu0 %v239
  %v322 = vpop.f32.mrf.mxu0
  %v323 = vadd.f32 0.0, %v322
  %v324 = vpop.f32.mrf.mxu0
  %v325 = vadd.f32 0.0, %v324
  %326 = vmatmul.bf16.gmra.mxu0 %v242
  %v327 = vpop.f32.mrf.mxu0
  %v328 = vadd.f32 0.0, %v327
  %v329 = vpop.f32.mrf.mxu0
  %v330 = vadd.f32 0.0, %v329
  %331 = vmatmul.bf16.gmra.mxu0 %v245
  %v332 = vpop.f32.mrf.mxu0
  %v333 = vadd.f32 0.0, %v332
  %v334 = vpop.f32.mrf.mxu0
  %v335 = vadd.f32 0.0, %v334
  %336 = vmatmul.bf16.gmra.mxu0 %v248
  %v337 = vpop.f32.mrf.mxu0
  %v338 = vadd.f32 0.0, %v337
  %v339 = vpop.f32.mrf.mxu0
  %v340 = vadd.f32 0.0, %v339
  %341 = vmatmul.bf16.gmra.mxu0 %v251
  %v342 = vpop.f32.mrf.mxu0
  %v343 = vadd.f32 0.0, %v342
  %v344 = vpop.f32.mrf.mxu0
  %v345 = vadd.f32 0.0, %v344
  %346 = vmatmul.bf16.gmra.mxu0 %v254
  %v347 = vpop.f32.mrf.mxu0
  %v348 = vadd.f32 0.0, %v347
  %v349 = vpop.f32.mrf.mxu0
  %v350 = vadd.f32 0.0, %v349
  %351 = vdwg.mxu0
  %352 = vmatpush.bf16.msra.mxu0 0
  %353 = vmatpush.bf16.msra.mxu0 0
  %354 = vmatpush.bf16.msra.mxu0 0
  %355 = vmatpush.bf16.msra.mxu0 0
  %356 = vmatpush.bf16.msra.mxu0 0
  %357 = vmatpush.bf16.msra.mxu0 0
  %358 = vmatpush.bf16.msra.mxu0 0
  %359 = vmatpush.bf16.msra.mxu0 %v261
  %360 = vmatmul.bf16.gmra.mxu0 %v209
  %v361 = vpop.f32.mrf.mxu0
  %v362 = vadd.f32 0.0, %v361
  %v363 = vpop.f32.mrf.mxu0
  %v364 = vadd.f32 0.0, %v363
  %365 = vmatmul.bf16.gmra.mxu0 %v212
  %v366 = vpop.f32.mrf.mxu0
  %v367 = vadd.f32 0.0, %v366
  %v368 = vpop.f32.mrf.mxu0
  %v369 = vadd.f32 0.0, %v368
  %370 = vmatmul.bf16.gmra.mxu0 %v215
  %v371 = vpop.f32.mrf.mxu0
  %v372 = vadd.f32 0.0, %v371
  %v373 = vpop.f32.mrf.mxu0
  %v374 = vadd.f32 0.0, %v373
  %375 = vmatmul.bf16.gmra.mxu0 %v218
  %v376 = vpop.f32.mrf.mxu0
  %v377 = vadd.f32 0.0, %v376
  %v378 = vpop.f32.mrf.mxu0
  %v379 = vadd.f32 0.0, %v378
  %380 = vmatmul.bf16.gmra.mxu0 %v221
  %v381 = vpop.f32.mrf.mxu0
  %v382 = vadd.f32 0.0, %v381
  %v383 = vpop.f32.mrf.mxu0
  %v384 = vadd.f32 0.0, %v383
  %385 = vmatmul.bf16.gmra.mxu0 %v224
  %v386 = vpop.f32.mrf.mxu0
  %v387 = vadd.f32 0.0, %v386
  %v388 = vpop.f32.mrf.mxu0
  %v389 = vadd.f32 0.0, %v388
  %390 = vmatmul.bf16.gmra.mxu0 %v227
  %v391 = vpop.f32.mrf.mxu0
  %v392 = vadd.f32 0.0, %v391
  %v393 = vpop.f32.mrf.mxu0
  %v394 = vadd.f32 0.0, %v393
  %395 = vmatmul.bf16.gmra.mxu0 %v230
  %v396 = vpop.f32.mrf.mxu0
  %v397 = vadd.f32 0.0, %v396
  %v398 = vpop.f32.mrf.mxu0
  %v399 = vadd.f32 0.0, %v398
  %400 = vmatmul.bf16.gmra.mxu0 %v233
  %v401 = vpop.f32.mrf.mxu0
  %v402 = vadd.f32 0.0, %v401
  %v403 = vpop.f32.mrf.mxu0
  %v404 = vadd.f32 0.0, %v403
  %405 = vmatmul.bf16.gmra.mxu0 %v236
  %v406 = vpop.f32.mrf.mxu0
  %v407 = vadd.f32 0.0, %v406
  %v408 = vpop.f32.mrf.mxu0
  %v409 = vadd.f32 0.0, %v408
  %410 = vmatmul.bf16.gmra.mxu0 %v239
  %v411 = vpop.f32.mrf.mxu0
  %v412 = vadd.f32 0.0, %v411
  %v413 = vpop.f32.mrf.mxu0
  %v414 = vadd.f32 0.0, %v413
  %415 = vmatmul.bf16.gmra.mxu0 %v242
  %v416 = vpop.f32.mrf.mxu0
  %v417 = vadd.f32 0.0, %v416
  %v418 = vpop.f32.mrf.mxu0
  %v419 = vadd.f32 0.0, %v418
  %420 = vmatmul.bf16.gmra.mxu0 %v245
  %v421 = vpop.f32.mrf.mxu0
  %v422 = vadd.f32 0.0, %v421
  %v423 = vpop.f32.mrf.mxu0
  %v424 = vadd.f32 0.0, %v423
  %425 = vmatmul.bf16.gmra.mxu0 %v248
  %v426 = vpop.f32.mrf.mxu0
  %v427 = vadd.f32 0.0, %v426
  %v428 = vpop.f32.mrf.mxu0
  %v429 = vadd.f32 0.0, %v428
  %430 = vmatmul.bf16.gmra.mxu0 %v251
  %v431 = vpop.f32.mrf.mxu0
  %v432 = vadd.f32 0.0, %v431
  %v433 = vpop.f32.mrf.mxu0
  %v434 = vadd.f32 0.0, %v433
  %435 = vmatmul.bf16.gmra.mxu0 %v254
  %v436 = vpop.f32.mrf.mxu0
  %v437 = vadd.f32 0.0, %v436
  %v438 = vpop.f32.mrf.mxu0
  %v439 = vadd.f32 0.0, %v438
  %440 = vdwg.mxu0
  %v441 = vadd.f32 %v112, %v273
  %v442 = vadd.f32 %v113, %v362
  %v443 = vadd.f32 %v114, %v275
  %v444 = vadd.f32 %v115, %v364
  %v445 = vadd.f32 %v116, %v278
  %v446 = vadd.f32 %v117, %v367
  %v447 = vadd.f32 %v118, %v280
  %v448 = vadd.f32 %v119, %v369
  %v449 = vadd.f32 %v120, %v283
  %v450 = vadd.f32 %v121, %v372
  %v451 = vadd.f32 %v122, %v285
  %v452 = vadd.f32 %v123, %v374
  %v453 = vadd.f32 %v124, %v288
  %v454 = vadd.f32 %v125, %v377
  %v455 = vadd.f32 %v126, %v290
  %v456 = vadd.f32 %v127, %v379
  %v457 = vadd.f32 %v128, %v293
  %v458 = vadd.f32 %v129, %v382
  %v459 = vadd.f32 %v130, %v295
  %v460 = vadd.f32 %v131, %v384
  %v461 = vadd.f32 %v132, %v298
  %v462 = vadd.f32 %v133, %v387
  %v463 = vadd.f32 %v134, %v300
  %v464 = vadd.f32 %v135, %v389
  %v465 = vadd.f32 %v136, %v303
  %v466 = vadd.f32 %v137, %v392
  %v467 = vadd.f32 %v138, %v305
  %v468 = vadd.f32 %v139, %v394
  %v469 = vadd.f32 %v140, %v308
  %v470 = vadd.f32 %v141, %v397
  %v471 = vadd.f32 %v142, %v310
  %v472 = vadd.f32 %v143, %v399
  %v473 = vadd.f32 %v144, %v313
  %v474 = vadd.f32 %v145, %v402
  %v475 = vadd.f32 %v146, %v315
  %v476 = vadd.f32 %v147, %v404
  %v477 = vadd.f32 %v148, %v318
  %v478 = vadd.f32 %v149, %v407
  %v479 = vadd.f32 %v150, %v320
  %v480 = vadd.f32 %v151, %v409
  %v481 = vadd.f32 %v152, %v323
  %v482 = vadd.f32 %v153, %v412
  %v483 = vadd.f32 %v154, %v325
  %v484 = vadd.f32 %v155, %v414
  %v485 = vadd.f32 %v156, %v328
  %v486 = vadd.f32 %v157, %v417
  %v487 = vadd.f32 %v158, %v330
  %v488 = vadd.f32 %v159, %v419
  %v489 = vadd.f32 %v160, %v333
  %v490 = vadd.f32 %v161, %v422
  %v491 = vadd.f32 %v162, %v335
  %v492 = vadd.f32 %v163, %v424
  %v493 = vadd.f32 %v164, %v338
  %v494 = vadd.f32 %v165, %v427
  %v495 = vadd.f32 %v166, %v340
  %v496 = vadd.f32 %v167, %v429
  %v497 = vadd.f32 %v168, %v343
  %v498 = vadd.f32 %v169, %v432
  %v499 = vadd.f32 %v170, %v345
  %v500 = vadd.f32 %v171, %v434
  %v501 = vadd.f32 %v172, %v348
  %v502 = vadd.f32 %v173, %v437
  %v503 = vadd.f32 %v174, %v350
  %v504 = vadd.f32 %v175, %v439
  %505 = vst [vmem:[%s2] sm:$0xff] %v441
  %506 = vst [vmem:[%s2 + $0x8] sm:$0xff] %v442
  %507 = vst [vmem:[%s2 + $0x10] sm:$0xff] %v443
  %508 = vst [vmem:[%s2 + $0x18] sm:$0xff] %v444
  %509 = vst [vmem:[%s2 + $0x20] sm:$0xff] %v445
  %510 = vst [vmem:[%s2 + $0x28] sm:$0xff] %v446
  %511 = vst [vmem:[%s2 + $0x30] sm:$0xff] %v447
  %512 = vst [vmem:[%s2 + $0x38] sm:$0xff] %v448
  %513 = vst [vmem:[%s2 + $0x40] sm:$0xff] %v449
  %514 = vst [vmem:[%s2 + $0x48] sm:$0xff] %v450
  %515 = vst [vmem:[%s2 + $0x50] sm:$0xff] %v451
  %516 = vst [vmem:[%s2 + $0x58] sm:$0xff] %v452
  %517 = vst [vmem:[%s2 + $0x60] sm:$0xff] %v453
  %518 = vst [vmem:[%s2 + $0x68] sm:$0xff] %v454
  %519 = vst [vmem:[%s2 + $0x70] sm:$0xff] %v455
  %520 = vst [vmem:[%s2 + $0x78] sm:$0xff] %v456
  %521 = vst [vmem:[%s2 + $0x80] sm:$0xff] %v457
  %522 = vst [vmem:[%s2 + $0x88] sm:$0xff] %v458
  %523 = vst [vmem:[%s2 + $0x90] sm:$0xff] %v459
  %524 = vst [vmem:[%s2 + $0x98] sm:$0xff] %v460
  %525 = vst [vmem:[%s2 + $0xa0] sm:$0xff] %v461
  %526 = vst [vmem:[%s2 + $0xa8] sm:$0xff] %v462
  %527 = vst [vmem:[%s2 + $0xb0] sm:$0xff] %v463
  %528 = vst [vmem:[%s2 + $0xb8] sm:$0xff] %v464
  %529 = vst [vmem:[%s2 + $0xc0] sm:$0xff] %v465
  %530 = vst [vmem:[%s2 + $0xc8] sm:$0xff] %v466
  %531 = vst [vmem:[%s2 + $0xd0] sm:$0xff] %v467
  %532 = vst [vmem:[%s2 + $0xd8] sm:$0xff] %v468
  %533 = vst [vmem:[%s2 + $0xe0] sm:$0xff] %v469
  %534 = vst [vmem:[%s2 + $0xe8] sm:$0xff] %v470
  %535 = vst [vmem:[%s2 + $0xf0] sm:$0xff] %v471
  %536 = vst [vmem:[%s2 + $0xf8] sm:$0xff] %v472
  %537 = vst [vmem:[%s2 + $0x100] sm:$0xff] %v473
  %538 = vst [vmem:[%s2 + $0x108] sm:$0xff] %v474
  %539 = vst [vmem:[%s2 + $0x110] sm:$0xff] %v475
  %540 = vst [vmem:[%s2 + $0x118] sm:$0xff] %v476
  %541 = vst [vmem:[%s2 + $0x120] sm:$0xff] %v477
  %542 = vst [vmem:[%s2 + $0x128] sm:$0xff] %v478
  %543 = vst [vmem:[%s2 + $0x130] sm:$0xff] %v479
  %544 = vst [vmem:[%s2 + $0x138] sm:$0xff] %v480
  %545 = vst [vmem:[%s2 + $0x140] sm:$0xff] %v481
  %546 = vst [vmem:[%s2 + $0x148] sm:$0xff] %v482
  %547 = vst [vmem:[%s2 + $0x150] sm:$0xff] %v483
  %548 = vst [vmem:[%s2 + $0x158] sm:$0xff] %v484
  %549 = vst [vmem:[%s2 + $0x160] sm:$0xff] %v485
  %550 = vst [vmem:[%s2 + $0x168] sm:$0xff] %v486
  %551 = vst [vmem:[%s2 + $0x170] sm:$0xff] %v487
  %552 = vst [vmem:[%s2 + $0x178] sm:$0xff] %v488
  %553 = vst [vmem:[%s2 + $0x180] sm:$0xff] %v489
  %554 = vst [vmem:[%s2 + $0x188] sm:$0xff] %v490
  %555 = vst [vmem:[%s2 + $0x190] sm:$0xff] %v491
  %556 = vst [vmem:[%s2 + $0x198] sm:$0xff] %v492
  %557 = vst [vmem:[%s2 + $0x1a0] sm:$0xff] %v493
  %558 = vst [vmem:[%s2 + $0x1a8] sm:$0xff] %v494
  %559 = vst [vmem:[%s2 + $0x1b0] sm:$0xff] %v495
  %560 = vst [vmem:[%s2 + $0x1b8] sm:$0xff] %v496
  %561 = vst [vmem:[%s2 + $0x1c0] sm:$0xff] %v497
  %562 = vst [vmem:[%s2 + $0x1c8] sm:$0xff] %v498
  %563 = vst [vmem:[%s2 + $0x1d0] sm:$0xff] %v499
  %564 = vst [vmem:[%s2 + $0x1d8] sm:$0xff] %v500
  %565 = vst [vmem:[%s2 + $0x1e0] sm:$0xff] %v501
  %566 = vst [vmem:[%s2 + $0x1e8] sm:$0xff] %v502
  %567 = vst [vmem:[%s2 + $0x1f0] sm:$0xff] %v503
  %568 = vst [vmem:[%s2 + $0x1f8] sm:$0xff] %v504
  // Predicated region
  $region10: #{channel_distill_forward.12} parent=0 // pred_check
    _
  $region11: #{channel_distill_forward.12} parent=0 // pred_check_branch
    %570 = sbr.rel (0) target = $region13
  $region12: #{channel_distill_forward.12} parent=0 // pred_region
    _
  $region13: #{channel_distill_forward.12} parent=0 // pred_fallthru
    _
  // Predicated region
  $region14: #{channel_distill_forward.12} parent=0 // pred_check
    _
  $region15: #{channel_distill_forward.12} parent=0 // pred_check_branch
    %572 = sbr.rel (0) target = $region17
  $region16: #{channel_distill_forward.12} parent=0 // pred_region
    _
  $region17: #{channel_distill_forward.12} parent=0 // pred_fallthru
    _
  // Predicated region
  $region18: #{channel_distill_forward.12} parent=0 // pred_check
    _
  $region19: #{channel_distill_forward.12} parent=0 // pred_check_branch
    %574 = sbr.rel (0) target = $region21
  $region20: #{channel_distill_forward.12} parent=0 // pred_region
    _
  $region21: #{channel_distill_forward.12} parent=0 // pred_fallthru
    _
  // Predicated region
  $region22: #{channel_distill_forward.12} parent=0 // pred_check
    _
  $region23: #{channel_distill_forward.12} parent=0 // pred_check_branch
    %576 = sbr.rel (0) target = $region25
  $region24: #{channel_distill_forward.12} parent=0 // pred_region
    _
  $region25: #{channel_distill_forward.12} parent=0 // pred_fallthru
    _

// kernel: channel_distill_forward.15
$region0: #{channel_distill_forward.15}
  #allocation0 [shape = 'u32[]', space=smem, size = 0x4, offset = 0x4, fixed_abs, tag = 'smem constant byte address 0x4 - core index']
  #allocation1 [shape = 'u32[72,128]{1,0:T(1,128)}', space=vmem, size = 0x9000, scoped, tag = 'internal scratch']
  %s0 = inlined_call_operand.vmem [shape: bf16[8,512], index: 0, kind: input, shape index: {}]
  %s1 = inlined_call_operand.vmem [shape: bf16[512,2048], index: 1, kind: input, shape index: {}]
  %s2 = inlined_call_operand.vmem [shape: f32[1,2048], index: 2, kind: input, shape index: {}]
  %s3 = inlined_call_operand.vmem [shape: f32[1,2048], index: 3, kind: input, shape index: {}]
  %s4 = inlined_call_operand.vmem [shape: f32[8,2048], index: 4, kind: output, shape index: {}]
  %s5 = sld [smem:[#allocation0]]
  $region26: #{channel_distill_forward.15} parent=0
    _
  %s7 = ssub.s32 1, %s5
  %s8 = scalar_select 0, %s7, %s5
  // Predicated region
  $region2: #{channel_distill_forward.15} parent=0 // pred_check
    _
  $region3: #{channel_distill_forward.15} parent=0 // pred_check_branch
    %10 = sbr.rel (0) target = $region5
  $region4: #{channel_distill_forward.15} parent=0 // pred_region
    _
  $region5: #{channel_distill_forward.15} parent=0 // pred_fallthru
    _
  // Predicated region
  $region6: #{channel_distill_forward.15} parent=0 // pred_check
    _
  $region7: #{channel_distill_forward.15} parent=0 // pred_check_branch
    %12 = sbr.rel (0) target = $region9
  $region8: #{channel_distill_forward.15} parent=0 // pred_region
    _
  $region9: #{channel_distill_forward.15} parent=0 // pred_fallthru
    _
  // Predicated region
  $region10: #{channel_distill_forward.15} parent=0 // pred_check
    _
  $region11: #{channel_distill_forward.15} parent=0 // pred_check_branch
    %14 = sbr.rel (0) target = $region13
  $region12: #{channel_distill_forward.15} parent=0 // pred_region
    _
  $region13: #{channel_distill_forward.15} parent=0 // pred_fallthru
    _
  // Predicated region
  $region14: #{channel_distill_forward.15} parent=0 // pred_check
    _
  $region15: #{channel_distill_forward.15} parent=0 // pred_check_branch
    %16 = sbr.rel (0) target = $region17
  $region16: #{channel_distill_forward.15} parent=0 // pred_region
    _
  $region17: #{channel_distill_forward.15} parent=0 // pred_fallthru
    _
  %v17 = vld [vmem:[%s0] sm:$0xff]
  %v18 = vld [vmem:[%s0 + $0x8] sm:$0xff]
  %v19 = vld [vmem:[%s1] sm:$0xff]
  %v20 = vld [vmem:[%s1 + $0x8] sm:$0xff]
  %v21 = vld [vmem:[%s1 + $0x10] sm:$0xff]
  %v22 = vld [vmem:[%s1 + $0x18] sm:$0xff]
  %v23 = vld [vmem:[%s1 + $0x20] sm:$0xff]
  %v24 = vld [vmem:[%s1 + $0x28] sm:$0xff]
  %v25 = vld [vmem:[%s1 + $0x30] sm:$0xff]
  %v26 = vld [vmem:[%s1 + $0x38] sm:$0xff]
  %v27 = vld [vmem:[%s1 + $0x40] sm:$0xff]
  %v28 = vld [vmem:[%s1 + $0x48] sm:$0xff]
  %v29 = vld [vmem:[%s1 + $0x50] sm:$0xff]
  %v30 = vld [vmem:[%s1 + $0x58] sm:$0xff]
  %v31 = vld [vmem:[%s1 + $0x60] sm:$0xff]
  %v32 = vld [vmem:[%s1 + $0x68] sm:$0xff]
  %v33 = vld [vmem:[%s1 + $0x70] sm:$0xff]
  %v34 = vld [vmem:[%s1 + $0x78] sm:$0xff]
  %v35 = vld [vmem:[%s1 + $0x80] sm:$0xff]
  %v36 = vld [vmem:[%s1 + $0x88] sm:$0xff]
  %v37 = vld [vmem:[%s1 + $0x90] sm:$0xff]
  %v38 = vld [vmem:[%s1 + $0x98] sm:$0xff]
  %v39 = vld [vmem:[%s1 + $0xa0] sm:$0xff]
  %v40 = vld [vmem:[%s1 + $0xa8] sm:$0xff]
  %v41 = vld [vmem:[%s1 + $0xb0] sm:$0xff]
  %v42 = vld [vmem:[%s1 + $0xb8] sm:$0xff]
  %v43 = vld [vmem:[%s1 + $0xc0] sm:$0xff]
  %v44 = vld [vmem:[%s1 + $0xc8] sm:$0xff]
  %v45 = vld [vmem:[%s1 + $0xd0] sm:$0xff]
  %v46 = vld [vmem:[%s1 + $0xd8] sm:$0xff]
  %v47 = vld [vmem:[%s1 + $0xe0] sm:$0xff]
  %v48 = vld [vmem:[%s1 + $0xe8] sm:$0xff]
  %v49 = vld [vmem:[%s1 + $0xf0] sm:$0xff]
  %v50 = vld [vmem:[%s1 + $0xf8] sm:$0xff]
  %v51 = vld [vmem:[%s1 + $0x100] sm:$0xff]
  %v52 = vld [vmem:[%s1 + $0x108] sm:$0xff]
  %v53 = vld [vmem:[%s1 + $0x110] sm:$0xff]
  %v54 = vld [vmem:[%s1 + $0x118] sm:$0xff]
  %v55 = vld [vmem:[%s1 + $0x120] sm:$0xff]
  %v56 = vld [vmem:[%s1 + $0x128] sm:$0xff]
  %v57 = vld [vmem:[%s1 + $0x130] sm:$0xff]
  %v58 = vld [vmem:[%s1 + $0x138] sm:$0xff]
  %v59 = vld [vmem:[%s1 + $0x140] sm:$0xff]
  %v60 = vld [vmem:[%s1 + $0x148] sm:$0xff]
  %v61 = vld [vmem:[%s1 + $0x150] sm:$0xff]
  %v62 = vld [vmem:[%s1 + $0x158] sm:$0xff]
  %v63 = vld [vmem:[%s1 + $0x160] sm:$0xff]
  %v64 = vld [vmem:[%s1 + $0x168] sm:$0xff]
  %v65 = vld [vmem:[%s1 + $0x170] sm:$0xff]
  %v66 = vld [vmem:[%s1 + $0x178] sm:$0xff]
  %v67 = vld [vmem:[%s1 + $0x180] sm:$0xff]
  %v68 = vld [vmem:[%s1 + $0x188] sm:$0xff]
  %v69 = vld [vmem:[%s1 + $0x190] sm:$0xff]
  %v70 = vld [vmem:[%s1 + $0x198] sm:$0xff]
  %v71 = vld [vmem:[%s1 + $0x1a0] sm:$0xff]
  %v72 = vld [vmem:[%s1 + $0x1a8] sm:$0xff]
  %v73 = vld [vmem:[%s1 + $0x1b0] sm:$0xff]
  %v74 = vld [vmem:[%s1 + $0x1b8] sm:$0xff]
  %v75 = vld [vmem:[%s1 + $0x1c0] sm:$0xff]
  %v76 = vld [vmem:[%s1 + $0x1c8] sm:$0xff]
  %v77 = vld [vmem:[%s1 + $0x1d0] sm:$0xff]
  %v78 = vld [vmem:[%s1 + $0x1d8] sm:$0xff]
  %v79 = vld [vmem:[%s1 + $0x1e0] sm:$0xff]
  %v80 = vld [vmem:[%s1 + $0x1e8] sm:$0xff]
  %v81 = vld [vmem:[%s1 + $0x1f0] sm:$0xff]
  %v82 = vld [vmem:[%s1 + $0x1f8] sm:$0xff]
  %v83 = vld [vmem:[%s1 + $0x200] sm:$0xff]
  %v84 = vld [vmem:[%s1 + $0x208] sm:$0xff]
  %v85 = vld [vmem:[%s1 + $0x210] sm:$0xff]
  %v86 = vld [vmem:[%s1 + $0x218] sm:$0xff]
  %v87 = vld [vmem:[%s1 + $0x220] sm:$0xff]
  %v88 = vld [vmem:[%s1 + $0x228] sm:$0xff]
  %v89 = vld [vmem:[%s1 + $0x230] sm:$0xff]
  %v90 = vld [vmem:[%s1 + $0x238] sm:$0xff]
  %v91 = vld [vmem:[%s1 + $0x240] sm:$0xff]
  %v92 = vld [vmem:[%s1 + $0x248] sm:$0xff]
  %v93 = vld [vmem:[%s1 + $0x250] sm:$0xff]
  %v94 = vld [vmem:[%s1 + $0x258] sm:$0xff]
  %v95 = vld [vmem:[%s1 + $0x260] sm:$0xff]
  %v96 = vld [vmem:[%s1 + $0x268] sm:$0xff]
  %v97 = vld [vmem:[%s1 + $0x270] sm:$0xff]
  %v98 = vld [vmem:[%s1 + $0x278] sm:$0xff]
  %v99 = vld [vmem:[%s1 + $0x280] sm:$0xff]
  %v100 = vld [vmem:[%s1 + $0x288] sm:$0xff]
  %v101 = vld [vmem:[%s1 + $0x290] sm:$0xff]
  %v102 = vld [vmem:[%s1 + $0x298] sm:$0xff]
  %v103 = vld [vmem:[%s1 + $0x2a0] sm:$0xff]
  %v104 = vld [vmem:[%s1 + $0x2a8] sm:$0xff]
  %v105 = vld [vmem:[%s1 + $0x2b0] sm:$0xff]
  %v106 = vld [vmem:[%s1 + $0x2b8] sm:$0xff]
  %v107 = vld [vmem:[%s1 + $0x2c0] sm:$0xff]
  %v108 = vld [vmem:[%s1 + $0x2c8] sm:$0xff]
  %v109 = vld [vmem:[%s1 + $0x2d0] sm:$0xff]
  %v110 = vld [vmem:[%s1 + $0x2d8] sm:$0xff]
  %v111 = vld [vmem:[%s1 + $0x2e0] sm:$0xff]
  %v112 = vld [vmem:[%s1 + $0x2e8] sm:$0xff]
  %v113 = vld [vmem:[%s1 + $0x2f0] sm:$0xff]
  %v114 = vld [vmem:[%s1 + $0x2f8] sm:$0xff]
  %v115 = vld [vmem:[%s1 + $0x300] sm:$0xff]
  %v116 = vld [vmem:[%s1 + $0x308] sm:$0xff]
  %v117 = vld [vmem:[%s1 + $0x310] sm:$0xff]
  %v118 = vld [vmem:[%s1 + $0x318] sm:$0xff]
  %v119 = vld [vmem:[%s1 + $0x320] sm:$0xff]
  %v120 = vld [vmem:[%s1 + $0x328] sm:$0xff]
  %v121 = vld [vmem:[%s1 + $0x330] sm:$0xff]
  %v122 = vld [vmem:[%s1 + $0x338] sm:$0xff]
  %v123 = vld [vmem:[%s1 + $0x340] sm:$0xff]
  %v124 = vld [vmem:[%s1 + $0x348] sm:$0xff]
  %v125 = vld [vmem:[%s1 + $0x350] sm:$0xff]
  %v126 = vld [vmem:[%s1 + $0x358] sm:$0xff]
  %v127 = vld [vmem:[%s1 + $0x360] sm:$0xff]
  %v128 = vld [vmem:[%s1 + $0x368] sm:$0xff]
  %v129 = vld [vmem:[%s1 + $0x370] sm:$0xff]
  %v130 = vld [vmem:[%s1 + $0x378] sm:$0xff]
  %v131 = vld [vmem:[%s1 + $0x380] sm:$0xff]
  %v132 = vld [vmem:[%s1 + $0x388] sm:$0xff]
  %v133 = vld [vmem:[%s1 + $0x390] sm:$0xff]
  %v134 = vld [vmem:[%s1 + $0x398] sm:$0xff]
  %v135 = vld [vmem:[%s1 + $0x3a0] sm:$0xff]
  %v136 = vld [vmem:[%s1 + $0x3a8] sm:$0xff]
  %v137 = vld [vmem:[%s1 + $0x3b0] sm:$0xff]
  %v138 = vld [vmem:[%s1 + $0x3b8] sm:$0xff]
  %v139 = vld [vmem:[%s1 + $0x3c0] sm:$0xff]
  %v140 = vld [vmem:[%s1 + $0x3c8] sm:$0xff]
  %v141 = vld [vmem:[%s1 + $0x3d0] sm:$0xff]
  %v142 = vld [vmem:[%s1 + $0x3d8] sm:$0xff]
  %v143 = vld [vmem:[%s1 + $0x3e0] sm:$0xff]
  %v144 = vld [vmem:[%s1 + $0x3e8] sm:$0xff]
  %v145 = vld [vmem:[%s1 + $0x3f0] sm:$0xff]
  %v146 = vld [vmem:[%s1 + $0x3f8] sm:$0xff]
  %v147 = vld [vmem:[%s1 + $0x400] sm:$0xff]
  %v148 = vld [vmem:[%s1 + $0x408] sm:$0xff]
  %v149 = vld [vmem:[%s1 + $0x410] sm:$0xff]
  %v150 = vld [vmem:[%s1 + $0x418] sm:$0xff]
  %v151 = vld [vmem:[%s1 + $0x420] sm:$0xff]
  %v152 = vld [vmem:[%s1 + $0x428] sm:$0xff]
  %v153 = vld [vmem:[%s1 + $0x430] sm:$0xff]
  %v154 = vld [vmem:[%s1 + $0x438] sm:$0xff]
  %v155 = vld [vmem:[%s1 + $0x440] sm:$0xff]
  %v156 = vld [vmem:[%s1 + $0x448] sm:$0xff]
  %v157 = vld [vmem:[%s1 + $0x450] sm:$0xff]
  %v158 = vld [vmem:[%s1 + $0x458] sm:$0xff]
  %v159 = vld [vmem:[%s1 + $0x460] sm:$0xff]
  %v160 = vld [vmem:[%s1 + $0x468] sm:$0xff]
  %v161 = vld [vmem:[%s1 + $0x470] sm:$0xff]
  %v162 = vld [vmem:[%s1 + $0x478] sm:$0xff]
  %v163 = vld [vmem:[%s1 + $0x480] sm:$0xff]
  %v164 = vld [vmem:[%s1 + $0x488] sm:$0xff]
  %v165 = vld [vmem:[%s1 + $0x490] sm:$0xff]
  %v166 = vld [vmem:[%s1 + $0x498] sm:$0xff]
  %v167 = vld [vmem:[%s1 + $0x4a0] sm:$0xff]
  %v168 = vld [vmem:[%s1 + $0x4a8] sm:$0xff]
  %v169 = vld [vmem:[%s1 + $0x4b0] sm:$0xff]
  %v170 = vld [vmem:[%s1 + $0x4b8] sm:$0xff]
  %v171 = vld [vmem:[%s1 + $0x4c0] sm:$0xff]
  %v172 = vld [vmem:[%s1 + $0x4c8] sm:$0xff]
  %v173 = vld [vmem:[%s1 + $0x4d0] sm:$0xff]
  %v174 = vld [vmem:[%s1 + $0x4d8] sm:$0xff]
  %v175 = vld [vmem:[%s1 + $0x4e0] sm:$0xff]
  %v176 = vld [vmem:[%s1 + $0x4e8] sm:$0xff]
  %v177 = vld [vmem:[%s1 + $0x4f0] sm:$0xff]
  %v178 = vld [vmem:[%s1 + $0x4f8] sm:$0xff]
  %v179 = vld [vmem:[%s1 + $0x500] sm:$0xff]
  %v180 = vld [vmem:[%s1 + $0x508] sm:$0xff]
  %v181 = vld [vmem:[%s1 + $0x510] sm:$0xff]
  %v182 = vld [vmem:[%s1 + $0x518] sm:$0xff]
  %v183 = vld [vmem:[%s1 + $0x520] sm:$0xff]
  %v184 = vld [vmem:[%s1 + $0x528] sm:$0xff]
  %v185 = vld [vmem:[%s1 + $0x530] sm:$0xff]
  %v186 = vld [vmem:[%s1 + $0x538] sm:$0xff]
  %v187 = vld [vmem:[%s1 + $0x540] sm:$0xff]
  %v188 = vld [vmem:[%s1 + $0x548] sm:$0xff]
  %v189 = vld [vmem:[%s1 + $0x550] sm:$0xff]
  %v190 = vld [vmem:[%s1 + $0x558] sm:$0xff]
  %v191 = vld [vmem:[%s1 + $0x560] sm:$0xff]
  %v192 = vld [vmem:[%s1 + $0x568] sm:$0xff]
  %v193 = vld [vmem:[%s1 + $0x570] sm:$0xff]
  %v194 = vld [vmem:[%s1 + $0x578] sm:$0xff]
  %v195 = vld [vmem:[%s1 + $0x580] sm:$0xff]
  %v196 = vld [vmem:[%s1 + $0x588] sm:$0xff]
  %v197 = vld [vmem:[%s1 + $0x590] sm:$0xff]
  %v198 = vld [vmem:[%s1 + $0x598] sm:$0xff]
  %v199 = vld [vmem:[%s1 + $0x5a0] sm:$0xff]
  %v200 = vld [vmem:[%s1 + $0x5a8] sm:$0xff]
  %v201 = vld [vmem:[%s1 + $0x5b0] sm:$0xff]
  %v202 = vld [vmem:[%s1 + $0x5b8] sm:$0xff]
  %v203 = vld [vmem:[%s1 + $0x5c0] sm:$0xff]
  %v204 = vld [vmem:[%s1 + $0x5c8] sm:$0xff]
  %v205 = vld [vmem:[%s1 + $0x5d0] sm:$0xff]
  %v206 = vld [vmem:[%s1 + $0x5d8] sm:$0xff]
  %v207 = vld [vmem:[%s1 + $0x5e0] sm:$0xff]
  %v208 = vld [vmem:[%s1 + $0x5e8] sm:$0xff]
  %v209 = vld [vmem:[%s1 + $0x5f0] sm:$0xff]
  %v210 = vld [vmem:[%s1 + $0x5f8] sm:$0xff]
  %v211 = vld [vmem:[%s1 + $0x600] sm:$0xff]
  %v212 = vld [vmem:[%s1 + $0x608] sm:$0xff]
  %v213 = vld [vmem:[%s1 + $0x610] sm:$0xff]
  %v214 = vld [vmem:[%s1 + $0x618] sm:$0xff]
  %v215 = vld [vmem:[%s1 + $0x620] sm:$0xff]
  %v216 = vld [vmem:[%s1 + $0x628] sm:$0xff]
  %v217 = vld [vmem:[%s1 + $0x630] sm:$0xff]
  %v218 = vld [vmem:[%s1 + $0x638] sm:$0xff]
  %v219 = vld [vmem:[%s1 + $0x640] sm:$0xff]
  %v220 = vld [vmem:[%s1 + $0x648] sm:$0xff]
  %v221 = vld [vmem:[%s1 + $0x650] sm:$0xff]
  %v222 = vld [vmem:[%s1 + $0x658] sm:$0xff]
  %v223 = vld [vmem:[%s1 + $0x660] sm:$0xff]
  %v224 = vld [vmem:[%s1 + $0x668] sm:$0xff]
  %v225 = vld [vmem:[%s1 + $0x670] sm:$0xff]
  %v226 = vld [vmem:[%s1 + $0x678] sm:$0xff]
  %v227 = vld [vmem:[%s1 + $0x680] sm:$0xff]
  %v228 = vld [vmem:[%s1 + $0x688] sm:$0xff]
  %v229 = vld [vmem:[%s1 + $0x690] sm:$0xff]
  %v230 = vld [vmem:[%s1 + $0x698] sm:$0xff]
  %v231 = vld [vmem:[%s1 + $0x6a0] sm:$0xff]
  %v232 = vld [vmem:[%s1 + $0x6a8] sm:$0xff]
  %v233 = vld [vmem:[%s1 + $0x6b0] sm:$0xff]
  %v234 = vld [vmem:[%s1 + $0x6b8] sm:$0xff]
  %v235 = vld [vmem:[%s1 + $0x6c0] sm:$0xff]
  %v236 = vld [vmem:[%s1 + $0x6c8] sm:$0xff]
  %v237 = vld [vmem:[%s1 + $0x6d0] sm:$0xff]
  %v238 = vld [vmem:[%s1 + $0x6d8] sm:$0xff]
  %v239 = vld [vmem:[%s1 + $0x6e0] sm:$0xff]
  %v240 = vld [vmem:[%s1 + $0x6e8] sm:$0xff]
  %v241 = vld [vmem:[%s1 + $0x6f0] sm:$0xff]
  %v242 = vld [vmem:[%s1 + $0x6f8] sm:$0xff]
  %v243 = vld [vmem:[%s1 + $0x700] sm:$0xff]
  %v244 = vld [vmem:[%s1 + $0x708] sm:$0xff]
  %v245 = vld [vmem:[%s1 + $0x710] sm:$0xff]
  %v246 = vld [vmem:[%s1 + $0x718] sm:$0xff]
  %v247 = vld [vmem:[%s1 + $0x720] sm:$0xff]
  %v248 = vld [vmem:[%s1 + $0x728] sm:$0xff]
  %v249 = vld [vmem:[%s1 + $0x730] sm:$0xff]
  %v250 = vld [vmem:[%s1 + $0x738] sm:$0xff]
  %v251 = vld [vmem:[%s1 + $0x740] sm:$0xff]
  %v252 = vld [vmem:[%s1 + $0x748] sm:$0xff]
  %v253 = vld [vmem:[%s1 + $0x750] sm:$0xff]
  %v254 = vld [vmem:[%s1 + $0x758] sm:$0xff]
  %v255 = vld [vmem:[%s1 + $0x760] sm:$0xff]
  %v256 = vld [vmem:[%s1 + $0x768] sm:$0xff]
  %v257 = vld [vmem:[%s1 + $0x770] sm:$0xff]
  %v258 = vld [vmem:[%s1 + $0x778] sm:$0xff]
  %v259 = vld [vmem:[%s1 + $0x780] sm:$0xff]
  %v260 = vld [vmem:[%s1 + $0x788] sm:$0xff]
  %v261 = vld [vmem:[%s1 + $0x790] sm:$0xff]
  %v262 = vld [vmem:[%s1 + $0x798] sm:$0xff]
  %v263 = vld [vmem:[%s1 + $0x7a0] sm:$0xff]
  %v264 = vld [vmem:[%s1 + $0x7a8] sm:$0xff]
  %v265 = vld [vmem:[%s1 + $0x7b0] sm:$0xff]
  %v266 = vld [vmem:[%s1 + $0x7b8] sm:$0xff]
  %v267 = vld [vmem:[%s1 + $0x7c0] sm:$0xff]
  %v268 = vld [vmem:[%s1 + $0x7c8] sm:$0xff]
  %v269 = vld [vmem:[%s1 + $0x7d0] sm:$0xff]
  %v270 = vld [vmem:[%s1 + $0x7d8] sm:$0xff]
  %v271 = vld [vmem:[%s1 + $0x7e0] sm:$0xff]
  %v272 = vld [vmem:[%s1 + $0x7e8] sm:$0xff]
  %v273 = vld [vmem:[%s1 + $0x7f0] sm:$0xff]
  %v274 = vld [vmem:[%s1 + $0x7f8] sm:$0xff]
  %v275 = vld [vmem:[%s1 + $0x800] sm:$0xff]
  %v276 = vld [vmem:[%s1 + $0x808] sm:$0xff]
  %v277 = vld [vmem:[%s1 + $0x810] sm:$0xff]
  %v278 = vld [vmem:[%s1 + $0x818] sm:$0xff]
  %v279 = vld [vmem:[%s1 + $0x820] sm:$0xff]
  %v280 = vld [vmem:[%s1 + $0x828] sm:$0xff]
  %v281 = vld [vmem:[%s1 + $0x830] sm:$0xff]
  %v282 = vld [vmem:[%s1 + $0x838] sm:$0xff]
  %v283 = vld [vmem:[%s1 + $0x840] sm:$0xff]
  %v284 = vld [vmem:[%s1 + $0x848] sm:$0xff]
  %v285 = vld [vmem:[%s1 + $0x850] sm:$0xff]
  %v286 = vld [vmem:[%s1 + $0x858] sm:$0xff]
  %v287 = vld [vmem:[%s1 + $0x860] sm:$0xff]
  %v288 = vld [vmem:[%s1 + $0x868] sm:$0xff]
  %v289 = vld [vmem:[%s1 + $0x870] sm:$0xff]
  %v290 = vld [vmem:[%s1 + $0x878] sm:$0xff]
  %v291 = vld [vmem:[%s1 + $0x880] sm:$0xff]
  %v292 = vld [vmem:[%s1 + $0x888] sm:$0xff]
  %v293 = vld [vmem:[%s1 + $0x890] sm:$0xff]
  %v294 = vld [vmem:[%s1 + $0x898] sm:$0xff]
  %v295 = vld [vmem:[%s1 + $0x8a0] sm:$0xff]
  %v296 = vld [vmem:[%s1 + $0x8a8] sm:$0xff]
  %v297 = vld [vmem:[%s1 + $0x8b0] sm:$0xff]
  %v298 = vld [vmem:[%s1 + $0x8b8] sm:$0xff]
  %v299 = vld [vmem:[%s1 + $0x8c0] sm:$0xff]
  %v300 = vld [vmem:[%s1 + $0x8c8] sm:$0xff]
  %v301 = vld [vmem:[%s1 + $0x8d0] sm:$0xff]
  %v302 = vld [vmem:[%s1 + $0x8d8] sm:$0xff]
  %v303 = vld [vmem:[%s1 + $0x8e0] sm:$0xff]
  %v304 = vld [vmem:[%s1 + $0x8e8] sm:$0xff]
  %v305 = vld [vmem:[%s1 + $0x8f0] sm:$0xff]
  %v306 = vld [vmem:[%s1 + $0x8f8] sm:$0xff]
  %v307 = vld [vmem:[%s1 + $0x900] sm:$0xff]
  %v308 = vld [vmem:[%s1 + $0x908] sm:$0xff]
  %v309 = vld [vmem:[%s1 + $0x910] sm:$0xff]
  %v310 = vld [vmem:[%s1 + $0x918] sm:$0xff]
  %v311 = vld [vmem:[%s1 + $0x920] sm:$0xff]
  %v312 = vld [vmem:[%s1 + $0x928] sm:$0xff]
  %v313 = vld [vmem:[%s1 + $0x930] sm:$0xff]
  %v314 = vld [vmem:[%s1 + $0x938] sm:$0xff]
  %v315 = vld [vmem:[%s1 + $0x940] sm:$0xff]
  %v316 = vld [vmem:[%s1 + $0x948] sm:$0xff]
  %v317 = vld [vmem:[%s1 + $0x950] sm:$0xff]
  %v318 = vld [vmem:[%s1 + $0x958] sm:$0xff]
  %v319 = vld [vmem:[%s1 + $0x960] sm:$0xff]
  %v320 = vld [vmem:[%s1 + $0x968] sm:$0xff]
  %v321 = vld [vmem:[%s1 + $0x970] sm:$0xff]
  %v322 = vld [vmem:[%s1 + $0x978] sm:$0xff]
  %v323 = vld [vmem:[%s1 + $0x980] sm:$0xff]
  %v324 = vld [vmem:[%s1 + $0x988] sm:$0xff]
  %v325 = vld [vmem:[%s1 + $0x990] sm:$0xff]
  %v326 = vld [vmem:[%s1 + $0x998] sm:$0xff]
  %v327 = vld [vmem:[%s1 + $0x9a0] sm:$0xff]
  %v328 = vld [vmem:[%s1 + $0x9a8] sm:$0xff]
  %v329 = vld [vmem:[%s1 + $0x9b0] sm:$0xff]
  %v330 = vld [vmem:[%s1 + $0x9b8] sm:$0xff]
  %v331 = vld [vmem:[%s1 + $0x9c0] sm:$0xff]
  %v332 = vld [vmem:[%s1 + $0x9c8] sm:$0xff]
  %v333 = vld [vmem:[%s1 + $0x9d0] sm:$0xff]
  %v334 = vld [vmem:[%s1 + $0x9d8] sm:$0xff]
  %v335 = vld [vmem:[%s1 + $0x9e0] sm:$0xff]
  %v336 = vld [vmem:[%s1 + $0x9e8] sm:$0xff]
  %v337 = vld [vmem:[%s1 + $0x9f0] sm:$0xff]
  %v338 = vld [vmem:[%s1 + $0x9f8] sm:$0xff]
  %v339 = vld [vmem:[%s1 + $0xa00] sm:$0xff]
  %v340 = vld [vmem:[%s1 + $0xa08] sm:$0xff]
  %v341 = vld [vmem:[%s1 + $0xa10] sm:$0xff]
  %v342 = vld [vmem:[%s1 + $0xa18] sm:$0xff]
  %v343 = vld [vmem:[%s1 + $0xa20] sm:$0xff]
  %v344 = vld [vmem:[%s1 + $0xa28] sm:$0xff]
  %v345 = vld [vmem:[%s1 + $0xa30] sm:$0xff]
  %v346 = vld [vmem:[%s1 + $0xa38] sm:$0xff]
  %v347 = vld [vmem:[%s1 + $0xa40] sm:$0xff]
  %v348 = vld [vmem:[%s1 + $0xa48] sm:$0xff]
  %v349 = vld [vmem:[%s1 + $0xa50] sm:$0xff]
  %v350 = vld [vmem:[%s1 + $0xa58] sm:$0xff]
  %v351 = vld [vmem:[%s1 + $0xa60] sm:$0xff]
  %v352 = vld [vmem:[%s1 + $0xa68] sm:$0xff]
  %v353 = vld [vmem:[%s1 + $0xa70] sm:$0xff]
  %v354 = vld [vmem:[%s1 + $0xa78] sm:$0xff]
  %v355 = vld [vmem:[%s1 + $0xa80] sm:$0xff]
  %v356 = vld [vmem:[%s1 + $0xa88] sm:$0xff]
  %v357 = vld [vmem:[%s1 + $0xa90] sm:$0xff]
  %v358 = vld [vmem:[%s1 + $0xa98] sm:$0xff]
  %v359 = vld [vmem:[%s1 + $0xaa0] sm:$0xff]
  %v360 = vld [vmem:[%s1 + $0xaa8] sm:$0xff]
  %v361 = vld [vmem:[%s1 + $0xab0] sm:$0xff]
  %v362 = vld [vmem:[%s1 + $0xab8] sm:$0xff]
  %v363 = vld [vmem:[%s1 + $0xac0] sm:$0xff]
  %v364 = vld [vmem:[%s1 + $0xac8] sm:$0xff]
  %v365 = vld [vmem:[%s1 + $0xad0] sm:$0xff]
  %v366 = vld [vmem:[%s1 + $0xad8] sm:$0xff]
  %v367 = vld [vmem:[%s1 + $0xae0] sm:$0xff]
  %v368 = vld [vmem:[%s1 + $0xae8] sm:$0xff]
  %v369 = vld [vmem:[%s1 + $0xaf0] sm:$0xff]
  %v370 = vld [vmem:[%s1 + $0xaf8] sm:$0xff]
  %v371 = vld [vmem:[%s1 + $0xb00] sm:$0xff]
  %v372 = vld [vmem:[%s1 + $0xb08] sm:$0xff]
  %v373 = vld [vmem:[%s1 + $0xb10] sm:$0xff]
  %v374 = vld [vmem:[%s1 + $0xb18] sm:$0xff]
  %v375 = vld [vmem:[%s1 + $0xb20] sm:$0xff]
  %v376 = vld [vmem:[%s1 + $0xb28] sm:$0xff]
  %v377 = vld [vmem:[%s1 + $0xb30] sm:$0xff]
  %v378 = vld [vmem:[%s1 + $0xb38] sm:$0xff]
  %v379 = vld [vmem:[%s1 + $0xb40] sm:$0xff]
  %v380 = vld [vmem:[%s1 + $0xb48] sm:$0xff]
  %v381 = vld [vmem:[%s1 + $0xb50] sm:$0xff]
  %v382 = vld [vmem:[%s1 + $0xb58] sm:$0xff]
  %v383 = vld [vmem:[%s1 + $0xb60] sm:$0xff]
  %v384 = vld [vmem:[%s1 + $0xb68] sm:$0xff]
  %v385 = vld [vmem:[%s1 + $0xb70] sm:$0xff]
  %v386 = vld [vmem:[%s1 + $0xb78] sm:$0xff]
  %v387 = vld [vmem:[%s1 + $0xb80] sm:$0xff]
  %v388 = vld [vmem:[%s1 + $0xb88] sm:$0xff]
  %v389 = vld [vmem:[%s1 + $0xb90] sm:$0xff]
  %v390 = vld [vmem:[%s1 + $0xb98] sm:$0xff]
  %v391 = vld [vmem:[%s1 + $0xba0] sm:$0xff]
  %v392 = vld [vmem:[%s1 + $0xba8] sm:$0xff]
  %v393 = vld [vmem:[%s1 + $0xbb0] sm:$0xff]
  %v394 = vld [vmem:[%s1 + $0xbb8] sm:$0xff]
  %v395 = vld [vmem:[%s1 + $0xbc0] sm:$0xff]
  %v396 = vld [vmem:[%s1 + $0xbc8] sm:$0xff]
  %v397 = vld [vmem:[%s1 + $0xbd0] sm:$0xff]
  %v398 = vld [vmem:[%s1 + $0xbd8] sm:$0xff]
  %v399 = vld [vmem:[%s1 + $0xbe0] sm:$0xff]
  %v400 = vld [vmem:[%s1 + $0xbe8] sm:$0xff]
  %v401 = vld [vmem:[%s1 + $0xbf0] sm:$0xff]
  %v402 = vld [vmem:[%s1 + $0xbf8] sm:$0xff]
  %v403 = vld [vmem:[%s1 + $0xc00] sm:$0xff]
  %v404 = vld [vmem:[%s1 + $0xc08] sm:$0xff]
  %v405 = vld [vmem:[%s1 + $0xc10] sm:$0xff]
  %v406 = vld [vmem:[%s1 + $0xc18] sm:$0xff]
  %v407 = vld [vmem:[%s1 + $0xc20] sm:$0xff]
  %v408 = vld [vmem:[%s1 + $0xc28] sm:$0xff]
  %v409 = vld [vmem:[%s1 + $0xc30] sm:$0xff]
  %v410 = vld [vmem:[%s1 + $0xc38] sm:$0xff]
  %v411 = vld [vmem:[%s1 + $0xc40] sm:$0xff]
  %v412 = vld [vmem:[%s1 + $0xc48] sm:$0xff]
  %v413 = vld [vmem:[%s1 + $0xc50] sm:$0xff]
  %v414 = vld [vmem:[%s1 + $0xc58] sm:$0xff]
  %v415 = vld [vmem:[%s1 + $0xc60] sm:$0xff]
  %v416 = vld [vmem:[%s1 + $0xc68] sm:$0xff]
  %v417 = vld [vmem:[%s1 + $0xc70] sm:$0xff]
  %v418 = vld [vmem:[%s1 + $0xc78] sm:$0xff]
  %v419 = vld [vmem:[%s1 + $0xc80] sm:$0xff]
  %v420 = vld [vmem:[%s1 + $0xc88] sm:$0xff]
  %v421 = vld [vmem:[%s1 + $0xc90] sm:$0xff]
  %v422 = vld [vmem:[%s1 + $0xc98] sm:$0xff]
  %v423 = vld [vmem:[%s1 + $0xca0] sm:$0xff]
  %v424 = vld [vmem:[%s1 + $0xca8] sm:$0xff]
  %v425 = vld [vmem:[%s1 + $0xcb0] sm:$0xff]
  %v426 = vld [vmem:[%s1 + $0xcb8] sm:$0xff]
  %v427 = vld [vmem:[%s1 + $0xcc0] sm:$0xff]
  %v428 = vld [vmem:[%s1 + $0xcc8] sm:$0xff]
  %v429 = vld [vmem:[%s1 + $0xcd0] sm:$0xff]
  %v430 = vld [vmem:[%s1 + $0xcd8] sm:$0xff]
  %v431 = vld [vmem:[%s1 + $0xce0] sm:$0xff]
  %v432 = vld [vmem:[%s1 + $0xce8] sm:$0xff]
  %v433 = vld [vmem:[%s1 + $0xcf0] sm:$0xff]
  %v434 = vld [vmem:[%s1 + $0xcf8] sm:$0xff]
  %v435 = vld [vmem:[%s1 + $0xd00] sm:$0xff]
  %v436 = vld [vmem:[%s1 + $0xd08] sm:$0xff]
  %v437 = vld [vmem:[%s1 + $0xd10] sm:$0xff]
  %v438 = vld [vmem:[%s1 + $0xd18] sm:$0xff]
  %v439 = vld [vmem:[%s1 + $0xd20] sm:$0xff]
  %v440 = vld [vmem:[%s1 + $0xd28] sm:$0xff]
  %v441 = vld [vmem:[%s1 + $0xd30] sm:$0xff]
  %v442 = vld [vmem:[%s1 + $0xd38] sm:$0xff]
  %v443 = vld [vmem:[%s1 + $0xd40] sm:$0xff]
  %v444 = vld [vmem:[%s1 + $0xd48] sm:$0xff]
  %v445 = vld [vmem:[%s1 + $0xd50] sm:$0xff]
  %v446 = vld [vmem:[%s1 + $0xd58] sm:$0xff]
  %v447 = vld [vmem:[%s1 + $0xd60] sm:$0xff]
  %v448 = vld [vmem:[%s1 + $0xd68] sm:$0xff]
  %v449 = vld [vmem:[%s1 + $0xd70] sm:$0xff]
  %v450 = vld [vmem:[%s1 + $0xd78] sm:$0xff]
  %v451 = vld [vmem:[%s1 + $0xd80] sm:$0xff]
  %v452 = vld [vmem:[%s1 + $0xd88] sm:$0xff]
  %v453 = vld [vmem:[%s1 + $0xd90] sm:$0xff]
  %v454 = vld [vmem:[%s1 + $0xd98] sm:$0xff]
  %v455 = vld [vmem:[%s1 + $0xda0] sm:$0xff]
  %v456 = vld [vmem:[%s1 + $0xda8] sm:$0xff]
  %v457 = vld [vmem:[%s1 + $0xdb0] sm:$0xff]
  %v458 = vld [vmem:[%s1 + $0xdb8] sm:$0xff]
  %v459 = vld [vmem:[%s1 + $0xdc0] sm:$0xff]
  %v460 = vld [vmem:[%s1 + $0xdc8] sm:$0xff]
  %v461 = vld [vmem:[%s1 + $0xdd0] sm:$0xff]
  %v462 = vld [vmem:[%s1 + $0xdd8] sm:$0xff]
  %v463 = vld [vmem:[%s1 + $0xde0] sm:$0xff]
  %v464 = vld [vmem:[%s1 + $0xde8] sm:$0xff]
  %v465 = vld [vmem:[%s1 + $0xdf0] sm:$0xff]
  %v466 = vld [vmem:[%s1 + $0xdf8] sm:$0xff]
  %v467 = vld [vmem:[%s1 + $0xe00] sm:$0xff]
  %v468 = vld [vmem:[%s1 + $0xe08] sm:$0xff]
  %v469 = vld [vmem:[%s1 + $0xe10] sm:$0xff]
  %v470 = vld [vmem:[%s1 + $0xe18] sm:$0xff]
  %v471 = vld [vmem:[%s1 + $0xe20] sm:$0xff]
  %v472 = vld [vmem:[%s1 + $0xe28] sm:$0xff]
  %v473 = vld [vmem:[%s1 + $0xe30] sm:$0xff]
  %v474 = vld [vmem:[%s1 + $0xe38] sm:$0xff]
  %v475 = vld [vmem:[%s1 + $0xe40] sm:$0xff]
  %v476 = vld [vmem:[%s1 + $0xe48] sm:$0xff]
  %v477 = vld [vmem:[%s1 + $0xe50] sm:$0xff]
  %v478 = vld [vmem:[%s1 + $0xe58] sm:$0xff]
  %v479 = vld [vmem:[%s1 + $0xe60] sm:$0xff]
  %v480 = vld [vmem:[%s1 + $0xe68] sm:$0xff]
  %v481 = vld [vmem:[%s1 + $0xe70] sm:$0xff]
  %v482 = vld [vmem:[%s1 + $0xe78] sm:$0xff]
  %v483 = vld [vmem:[%s1 + $0xe80] sm:$0xff]
  %v484 = vld [vmem:[%s1 + $0xe88] sm:$0xff]
  %v485 = vld [vmem:[%s1 + $0xe90] sm:$0xff]
  %v486 = vld [vmem:[%s1 + $0xe98] sm:$0xff]
  %v487 = vld [vmem:[%s1 + $0xea0] sm:$0xff]
  %v488 = vld [vmem:[%s1 + $0xea8] sm:$0xff]
  %v489 = vld [vmem:[%s1 + $0xeb0] sm:$0xff]
  %v490 = vld [vmem:[%s1 + $0xeb8] sm:$0xff]
  %v491 = vld [vmem:[%s1 + $0xec0] sm:$0xff]
  %v492 = vld [vmem:[%s1 + $0xec8] sm:$0xff]
  %v493 = vld [vmem:[%s1 + $0xed0] sm:$0xff]
  %v494 = vld [vmem:[%s1 + $0xed8] sm:$0xff]
  %v495 = vld [vmem:[%s1 + $0xee0] sm:$0xff]
  %v496 = vld [vmem:[%s1 + $0xee8] sm:$0xff]
  %v497 = vld [vmem:[%s1 + $0xef0] sm:$0xff]
  %v498 = vld [vmem:[%s1 + $0xef8] sm:$0xff]
  %v499 = vld [vmem:[%s1 + $0xf00] sm:$0xff]
  %v500 = vld [vmem:[%s1 + $0xf08] sm:$0xff]
  %v501 = vld [vmem:[%s1 + $0xf10] sm:$0xff]
  %v502 = vld [vmem:[%s1 + $0xf18] sm:$0xff]
  %v503 = vld [vmem:[%s1 + $0xf20] sm:$0xff]
  %v504 = vld [vmem:[%s1 + $0xf28] sm:$0xff]
  %v505 = vld [vmem:[%s1 + $0xf30] sm:$0xff]
  %v506 = vld [vmem:[%s1 + $0xf38] sm:$0xff]
  %v507 = vld [vmem:[%s1 + $0xf40] sm:$0xff]
  %v508 = vld [vmem:[%s1 + $0xf48] sm:$0xff]
  %v509 = vld [vmem:[%s1 + $0xf50] sm:$0xff]
  %v510 = vld [vmem:[%s1 + $0xf58] sm:$0xff]
  %v511 = vld [vmem:[%s1 + $0xf60] sm:$0xff]
  %v512 = vld [vmem:[%s1 + $0xf68] sm:$0xff]
  %v513 = vld [vmem:[%s1 + $0xf70] sm:$0xff]
  %v514 = vld [vmem:[%s1 + $0xf78] sm:$0xff]
  %v515 = vld [vmem:[%s1 + $0xf80] sm:$0xff]
  %v516 = vld [vmem:[%s1 + $0xf88] sm:$0xff]
  %v517 = vld [vmem:[%s1 + $0xf90] sm:$0xff]
  %v518 = vld [vmem:[%s1 + $0xf98] sm:$0xff]
  %v519 = vld [vmem:[%s1 + $0xfa0] sm:$0xff]
  %v520 = vld [vmem:[%s1 + $0xfa8] sm:$0xff]
  %v521 = vld [vmem:[%s1 + $0xfb0] sm:$0xff]
  %v522 = vld [vmem:[%s1 + $0xfb8] sm:$0xff]
  %v523 = vld [vmem:[%s1 + $0xfc0] sm:$0xff]
  %v524 = vld [vmem:[%s1 + $0xfc8] sm:$0xff]
  %v525 = vld [vmem:[%s1 + $0xfd0] sm:$0xff]
  %v526 = vld [vmem:[%s1 + $0xfd8] sm:$0xff]
  %v527 = vld [vmem:[%s1 + $0xfe0] sm:$0xff]
  %v528 = vld [vmem:[%s1 + $0xfe8] sm:$0xff]
  %v529 = vld [vmem:[%s1 + $0xff0] sm:$0xff]
  %v530 = vld [vmem:[%s1 + $0xff8] sm:$0xff]
  %v533 = vunpack.c.l.b16 %v17
  %v534 = vunpack.c.h.b16 %v17
  %v535 = vunpack.c.l.b16 %v18
  %v536 = vunpack.c.h.b16 %v18
  %v537 = vpack.c.b16 %v533, %v533
  %v538 = vpack.c.b16 %v534, %v534
  %v539 = vpack.c.b16 %v535, %v535
  %v540 = vpack.c.b16 %v536, %v536
  %v1057 = vunpack.c.l.b16 %v19
  %v1058 = vunpack.c.h.b16 %v19
  %v1059 = vunpack.c.l.b16 %v20
  %v1060 = vunpack.c.h.b16 %v20
  %v1061 = vunpack.c.l.b16 %v21
  %v1062 = vunpack.c.h.b16 %v21
  %v1063 = vunpack.c.l.b16 %v22
  %v1064 = vunpack.c.h.b16 %v22
  %v1065 = vunpack.c.l.b16 %v23
  %v1066 = vunpack.c.h.b16 %v23
  %v1067 = vunpack.c.l.b16 %v24
  %v1068 = vunpack.c.h.b16 %v24
  %v1069 = vunpack.c.l.b16 %v25
  %v1070 = vunpack.c.h.b16 %v25
  %v1071 = vunpack.c.l.b16 %v26
  %v1072 = vunpack.c.h.b16 %v26
  %v1073 = vunpack.c.l.b16 %v27
  %v1074 = vunpack.c.h.b16 %v27
  %v1075 = vunpack.c.l.b16 %v28
  %v1076 = vunpack.c.h.b16 %v28
  %v1077 = vunpack.c.l.b16 %v29
  %v1078 = vunpack.c.h.b16 %v29
  %v1079 = vunpack.c.l.b16 %v30
  %v1080 = vunpack.c.h.b16 %v30
  %v1081 = vunpack.c.l.b16 %v31
  %v1082 = vunpack.c.h.b16 %v31
  %v1083 = vunpack.c.l.b16 %v32
  %v1084 = vunpack.c.h.b16 %v32
  %v1085 = vunpack.c.l.b16 %v33
  %v1086 = vunpack.c.h.b16 %v33
  %v1087 = vunpack.c.l.b16 %v34
  %v1088 = vunpack.c.h.b16 %v34
  %v1089 = vunpack.c.l.b16 %v35
  %v1090 = vunpack.c.h.b16 %v35
  %v1091 = vunpack.c.l.b16 %v36
  %v1092 = vunpack.c.h.b16 %v36
  %v1093 = vunpack.c.l.b16 %v37
  %v1094 = vunpack.c.h.b16 %v37
  %v1095 = vunpack.c.l.b16 %v38
  %v1096 = vunpack.c.h.b16 %v38
  %v1097 = vunpack.c.l.b16 %v39
  %v1098 = vunpack.c.h.b16 %v39
  %v1099 = vunpack.c.l.b16 %v40
  %v1100 = vunpack.c.h.b16 %v40
  %v1101 = vunpack.c.l.b16 %v41
  %v1102 = vunpack.c.h.b16 %v41
  %v1103 = vunpack.c.l.b16 %v42
  %v1104 = vunpack.c.h.b16 %v42
  %v1105 = vunpack.c.l.b16 %v43
  %v1106 = vunpack.c.h.b16 %v43
  %v1107 = vunpack.c.l.b16 %v44
  %v1108 = vunpack.c.h.b16 %v44
  %v1109 = vunpack.c.l.b16 %v45
  %v1110 = vunpack.c.h.b16 %v45
  %v1111 = vunpack.c.l.b16 %v46
  %v1112 = vunpack.c.h.b16 %v46
  %v1113 = vunpack.c.l.b16 %v47
  %v1114 = vunpack.c.h.b16 %v47
  %v1115 = vunpack.c.l.b16 %v48
  %v1116 = vunpack.c.h.b16 %v48
  %v1117 = vunpack.c.l.b16 %v49
  %v1118 = vunpack.c.h.b16 %v49
  %v1119 = vunpack.c.l.b16 %v50
  %v1120 = vunpack.c.h.b16 %v50
  %v1121 = vunpack.c.l.b16 %v51
  %v1122 = vunpack.c.h.b16 %v51
  %v1123 = vunpack.c.l.b16 %v52
  %v1124 = vunpack.c.h.b16 %v52
  %v1125 = vunpack.c.l.b16 %v53
  %v1126 = vunpack.c.h.b16 %v53
  %v1127 = vunpack.c.l.b16 %v54
  %v1128 = vunpack.c.h.b16 %v54
  %v1129 = vunpack.c.l.b16 %v55
  %v1130 = vunpack.c.h.b16 %v55
  %v1131 = vunpack.c.l.b16 %v56
  %v1132 = vunpack.c.h.b16 %v56
  %v1133 = vunpack.c.l.b16 %v57
  %v1134 = vunpack.c.h.b16 %v57
  %v1135 = vunpack.c.l.b16 %v58
  %v1136 = vunpack.c.h.b16 %v58
  %v1137 = vunpack.c.l.b16 %v59
  %v1138 = vunpack.c.h.b16 %v59
  %v1139 = vunpack.c.l.b16 %v60
  %v1140 = vunpack.c.h.b16 %v60
  %v1141 = vunpack.c.l.b16 %v61
  %v1142 = vunpack.c.h.b16 %v61
  %v1143 = vunpack.c.l.b16 %v62
  %v1144 = vunpack.c.h.b16 %v62
  %v1145 = vunpack.c.l.b16 %v63
  %v1146 = vunpack.c.h.b16 %v63
  %v1147 = vunpack.c.l.b16 %v64
  %v1148 = vunpack.c.h.b16 %v64
  %v1149 = vunpack.c.l.b16 %v65
  %v1150 = vunpack.c.h.b16 %v65
  %v1151 = vunpack.c.l.b16 %v66
  %v1152 = vunpack.c.h.b16 %v66
  %v1153 = vunpack.c.l.b16 %v67
  %v1154 = vunpack.c.h.b16 %v67
  %v1155 = vunpack.c.l.b16 %v68
  %v1156 = vunpack.c.h.b16 %v68
  %v1157 = vunpack.c.l.b16 %v69
  %v1158 = vunpack.c.h.b16 %v69
  %v1159 = vunpack.c.l.b16 %v70
  %v1160 = vunpack.c.h.b16 %v70
  %v1161 = vunpack.c.l.b16 %v71
  %v1162 = vunpack.c.h.b16 %v71
  %v1163 = vunpack.c.l.b16 %v72
  %v1164 = vunpack.c.h.b16 %v72
  %v1165 = vunpack.c.l.b16 %v73
  %v1166 = vunpack.c.h.b16 %v73
  %v1167 = vunpack.c.l.b16 %v74
  %v1168 = vunpack.c.h.b16 %v74
  %v1169 = vunpack.c.l.b16 %v75
  %v1170 = vunpack.c.h.b16 %v75
  %v1171 = vunpack.c.l.b16 %v76
  %v1172 = vunpack.c.h.b16 %v76
  %v1173 = vunpack.c.l.b16 %v77
  %v1174 = vunpack.c.h.b16 %v77
  %v1175 = vunpack.c.l.b16 %v78
  %v1176 = vunpack.c.h.b16 %v78
  %v1177 = vunpack.c.l.b16 %v79
  %v1178 = vunpack.c.h.b16 %v79
  %v1179 = vunpack.c.l.b16 %v80
  %v1180 = vunpack.c.h.b16 %v80
  %v1181 = vunpack.c.l.b16 %v81
  %v1182 = vunpack.c.h.b16 %v81
  %v1183 = vunpack.c.l.b16 %v82
  %v1184 = vunpack.c.h.b16 %v82
  %v1185 = vunpack.c.l.b16 %v83
  %v1186 = vunpack.c.h.b16 %v83
  %v1187 = vunpack.c.l.b16 %v84
  %v1188 = vunpack.c.h.b16 %v84
  %v1189 = vunpack.c.l.b16 %v85
  %v1190 = vunpack.c.h.b16 %v85
  %v1191 = vunpack.c.l.b16 %v86
  %v1192 = vunpack.c.h.b16 %v86
  %v1193 = vunpack.c.l.b16 %v87
  %v1194 = vunpack.c.h.b16 %v87
  %v1195 = vunpack.c.l.b16 %v88
  %v1196 = vunpack.c.h.b16 %v88
  %v1197 = vunpack.c.l.b16 %v89
  %v1198 = vunpack.c.h.b16 %v89
  %v1199 = vunpack.c.l.b16 %v90
  %v1200 = vunpack.c.h.b16 %v90
  %v1201 = vunpack.c.l.b16 %v91
  %v1202 = vunpack.c.h.b16 %v91
  %v1203 = vunpack.c.l.b16 %v92
  %v1204 = vunpack.c.h.b16 %v92
  %v1205 = vunpack.c.l.b16 %v93
  %v1206 = vunpack.c.h.b16 %v93
  %v1207 = vunpack.c.l.b16 %v94
  %v1208 = vunpack.c.h.b16 %v94
  %v1209 = vunpack.c.l.b16 %v95
  %v1210 = vunpack.c.h.b16 %v95
  %v1211 = vunpack.c.l.b16 %v96
  %v1212 = vunpack.c.h.b16 %v96
  %v1213 = vunpack.c.l.b16 %v97
  %v1214 = vunpack.c.h.b16 %v97
  %v1215 = vunpack.c.l.b16 %v98
  %v1216 = vunpack.c.h.b16 %v98
  %v1217 = vunpack.c.l.b16 %v99
  %v1218 = vunpack.c.h.b16 %v99
  %v1219 = vunpack.c.l.b16 %v100
  %v1220 = vunpack.c.h.b16 %v100
  %v1221 = vunpack.c.l.b16 %v101
  %v1222 = vunpack.c.h.b16 %v101
  %v1223 = vunpack.c.l.b16 %v102
  %v1224 = vunpack.c.h.b16 %v102
  %v1225 = vunpack.c.l.b16 %v103
  %v1226 = vunpack.c.h.b16 %v103
  %v1227 = vunpack.c.l.b16 %v104
  %v1228 = vunpack.c.h.b16 %v104
  %v1229 = vunpack.c.l.b16 %v105
  %v1230 = vunpack.c.h.b16 %v105
  %v1231 = vunpack.c.l.b16 %v106
  %v1232 = vunpack.c.h.b16 %v106
  %v1233 = vunpack.c.l.b16 %v107
  %v1234 = vunpack.c.h.b16 %v107
  %v1235 = vunpack.c.l.b16 %v108
  %v1236 = vunpack.c.h.b16 %v108
  %v1237 = vunpack.c.l.b16 %v109
  %v1238 = vunpack.c.h.b16 %v109
  %v1239 = vunpack.c.l.b16 %v110
  %v1240 = vunpack.c.h.b16 %v110
  %v1241 = vunpack.c.l.b16 %v111
  %v1242 = vunpack.c.h.b16 %v111
  %v1243 = vunpack.c.l.b16 %v112
  %v1244 = vunpack.c.h.b16 %v112
  %v1245 = vunpack.c.l.b16 %v113
  %v1246 = vunpack.c.h.b16 %v113
  %v1247 = vunpack.c.l.b16 %v114
  %v1248 = vunpack.c.h.b16 %v114
  %v1249 = vunpack.c.l.b16 %v115
  %v1250 = vunpack.c.h.b16 %v115
  %v1251 = vunpack.c.l.b16 %v116
  %v1252 = vunpack.c.h.b16 %v116
  %v1253 = vunpack.c.l.b16 %v117
  %v1254 = vunpack.c.h.b16 %v117
  %v1255 = vunpack.c.l.b16 %v118
  %v1256 = vunpack.c.h.b16 %v118
  %v1257 = vunpack.c.l.b16 %v119
  %v1258 = vunpack.c.h.b16 %v119
  %v1259 = vunpack.c.l.b16 %v120
  %v1260 = vunpack.c.h.b16 %v120
  %v1261 = vunpack.c.l.b16 %v121
  %v1262 = vunpack.c.h.b16 %v121
  %v1263 = vunpack.c.l.b16 %v122
  %v1264 = vunpack.c.h.b16 %v122
  %v1265 = vunpack.c.l.b16 %v123
  %v1266 = vunpack.c.h.b16 %v123
  %v1267 = vunpack.c.l.b16 %v124
  %v1268 = vunpack.c.h.b16 %v124
  %v1269 = vunpack.c.l.b16 %v125
  %v1270 = vunpack.c.h.b16 %v125
  %v1271 = vunpack.c.l.b16 %v126
  %v1272 = vunpack.c.h.b16 %v126
  %v1273 = vunpack.c.l.b16 %v127
  %v1274 = vunpack.c.h.b16 %v127
  %v1275 = vunpack.c.l.b16 %v128
  %v1276 = vunpack.c.h.b16 %v128
  %v1277 = vunpack.c.l.b16 %v129
  %v1278 = vunpack.c.h.b16 %v129
  %v1279 = vunpack.c.l.b16 %v130
  %v1280 = vunpack.c.h.b16 %v130
  %v1281 = vunpack.c.l.b16 %v131
  %v1282 = vunpack.c.h.b16 %v131
  %v1283 = vunpack.c.l.b16 %v132
  %v1284 = vunpack.c.h.b16 %v132
  %v1285 = vunpack.c.l.b16 %v133
  %v1286 = vunpack.c.h.b16 %v133
  %v1287 = vunpack.c.l.b16 %v134
  %v1288 = vunpack.c.h.b16 %v134
  %v1289 = vunpack.c.l.b16 %v135
  %v1290 = vunpack.c.h.b16 %v135
  %v1291 = vunpack.c.l.b16 %v136
  %v1292 = vunpack.c.h.b16 %v136
  %v1293 = vunpack.c.l.b16 %v137
  %v1294 = vunpack.c.h.b16 %v137
  %v1295 = vunpack.c.l.b16 %v138
  %v1296 = vunpack.c.h.b16 %v138
  %v1297 = vunpack.c.l.b16 %v139
  %v1298 = vunpack.c.h.b16 %v139
  %v1299 = vunpack.c.l.b16 %v140
  %v1300 = vunpack.c.h.b16 %v140
  %v1301 = vunpack.c.l.b16 %v141
  %v1302 = vunpack.c.h.b16 %v141
  %v1303 = vunpack.c.l.b16 %v142
  %v1304 = vunpack.c.h.b16 %v142
  %v1305 = vunpack.c.l.b16 %v143
  %v1306 = vunpack.c.h.b16 %v143
  %v1307 = vunpack.c.l.b16 %v144
  %v1308 = vunpack.c.h.b16 %v144
  %v1309 = vunpack.c.l.b16 %v145
  %v1310 = vunpack.c.h.b16 %v145
  %v1311 = vunpack.c.l.b16 %v146
  %v1312 = vunpack.c.h.b16 %v146
  %v1313 = vunpack.c.l.b16 %v147
  %v1314 = vunpack.c.h.b16 %v147
  %v1315 = vunpack.c.l.b16 %v148
  %v1316 = vunpack.c.h.b16 %v148
  %v1317 = vunpack.c.l.b16 %v149
  %v1318 = vunpack.c.h.b16 %v149
  %v1319 = vunpack.c.l.b16 %v150
  %v1320 = vunpack.c.h.b16 %v150
  %v1321 = vunpack.c.l.b16 %v151
  %v1322 = vunpack.c.h.b16 %v151
  %v1323 = vunpack.c.l.b16 %v152
  %v1324 = vunpack.c.h.b16 %v152
  %v1325 = vunpack.c.l.b16 %v153
  %v1326 = vunpack.c.h.b16 %v153
  %v1327 = vunpack.c.l.b16 %v154
  %v1328 = vunpack.c.h.b16 %v154
  %v1329 = vunpack.c.l.b16 %v155
  %v1330 = vunpack.c.h.b16 %v155
  %v1331 = vunpack.c.l.b16 %v156
  %v1332 = vunpack.c.h.b16 %v156
  %v1333 = vunpack.c.l.b16 %v157
  %v1334 = vunpack.c.h.b16 %v157
  %v1335 = vunpack.c.l.b16 %v158
  %v1336 = vunpack.c.h.b16 %v158
  %v1337 = vunpack.c.l.b16 %v159
  %v1338 = vunpack.c.h.b16 %v159
  %v1339 = vunpack.c.l.b16 %v160
  %v1340 = vunpack.c.h.b16 %v160
  %v1341 = vunpack.c.l.b16 %v161
  %v1342 = vunpack.c.h.b16 %v161
  %v1343 = vunpack.c.l.b16 %v162
  %v1344 = vunpack.c.h.b16 %v162
  %v1345 = vunpack.c.l.b16 %v163
  %v1346 = vunpack.c.h.b16 %v163
  %v1347 = vunpack.c.l.b16 %v164
  %v1348 = vunpack.c.h.b16 %v164
  %v1349 = vunpack.c.l.b16 %v165
  %v1350 = vunpack.c.h.b16 %v165
  %v1351 = vunpack.c.l.b16 %v166
  %v1352 = vunpack.c.h.b16 %v166
  %v1353 = vunpack.c.l.b16 %v167
  %v1354 = vunpack.c.h.b16 %v167
  %v1355 = vunpack.c.l.b16 %v168
  %v1356 = vunpack.c.h.b16 %v168
  %v1357 = vunpack.c.l.b16 %v169
  %v1358 = vunpack.c.h.b16 %v169
  %v1359 = vunpack.c.l.b16 %v170
  %v1360 = vunpack.c.h.b16 %v170
  %v1361 = vunpack.c.l.b16 %v171
  %v1362 = vunpack.c.h.b16 %v171
  %v1363 = vunpack.c.l.b16 %v172
  %v1364 = vunpack.c.h.b16 %v172
  %v1365 = vunpack.c.l.b16 %v173
  %v1366 = vunpack.c.h.b16 %v173
  %v1367 = vunpack.c.l.b16 %v174
  %v1368 = vunpack.c.h.b16 %v174
  %v1369 = vunpack.c.l.b16 %v175
  %v1370 = vunpack.c.h.b16 %v175
  %v1371 = vunpack.c.l.b16 %v176
  %v1372 = vunpack.c.h.b16 %v176
  %v1373 = vunpack.c.l.b16 %v177
  %v1374 = vunpack.c.h.b16 %v177
  %v1375 = vunpack.c.l.b16 %v178
  %v1376 = vunpack.c.h.b16 %v178
  %v1377 = vunpack.c.l.b16 %v179
  %v1378 = vunpack.c.h.b16 %v179
  %v1379 = vunpack.c.l.b16 %v180
  %v1380 = vunpack.c.h.b16 %v180
  %v1381 = vunpack.c.l.b16 %v181
  %v1382 = vunpack.c.h.b16 %v181
  %v1383 = vunpack.c.l.b16 %v182
  %v1384 = vunpack.c.h.b16 %v182
  %v1385 = vunpack.c.l.b16 %v183
  %v1386 = vunpack.c.h.b16 %v183
  %v1387 = vunpack.c.l.b16 %v184
  %v1388 = vunpack.c.h.b16 %v184
  %v1389 = vunpack.c.l.b16 %v185
  %v1390 = vunpack.c.h.b16 %v185
  %v1391 = vunpack.c.l.b16 %v186
  %v1392 = vunpack.c.h.b16 %v186
  %v1393 = vunpack.c.l.b16 %v187
  %v1394 = vunpack.c.h.b16 %v187
  %v1395 = vunpack.c.l.b16 %v188
  %v1396 = vunpack.c.h.b16 %v188
  %v1397 = vunpack.c.l.b16 %v189
  %v1398 = vunpack.c.h.b16 %v189
  %v1399 = vunpack.c.l.b16 %v190
  %v1400 = vunpack.c.h.b16 %v190
  %v1401 = vunpack.c.l.b16 %v191
  %v1402 = vunpack.c.h.b16 %v191
  %v1403 = vunpack.c.l.b16 %v192
  %v1404 = vunpack.c.h.b16 %v192
  %v1405 = vunpack.c.l.b16 %v193
  %v1406 = vunpack.c.h.b16 %v193
  %v1407 = vunpack.c.l.b16 %v194
  %v1408 = vunpack.c.h.b16 %v194
  %v1409 = vunpack.c.l.b16 %v195
  %v1410 = vunpack.c.h.b16 %v195
  %v1411 = vunpack.c.l.b16 %v196
  %v1412 = vunpack.c.h.b16 %v196
  %v1413 = vunpack.c.l.b16 %v197
  %v1414 = vunpack.c.h.b16 %v197
  %v1415 = vunpack.c.l.b16 %v198
  %v1416 = vunpack.c.h.b16 %v198
  %v1417 = vunpack.c.l.b16 %v199
  %v1418 = vunpack.c.h.b16 %v199
  %v1419 = vunpack.c.l.b16 %v200
  %v1420 = vunpack.c.h.b16 %v200
  %v1421 = vunpack.c.l.b16 %v201
  %v1422 = vunpack.c.h.b16 %v201
  %v1423 = vunpack.c.l.b16 %v202
  %v1424 = vunpack.c.h.b16 %v202
  %v1425 = vunpack.c.l.b16 %v203
  %v1426 = vunpack.c.h.b16 %v203
  %v1427 = vunpack.c.l.b16 %v204
  %v1428 = vunpack.c.h.b16 %v204
  %v1429 = vunpack.c.l.b16 %v205
  %v1430 = vunpack.c.h.b16 %v205
  %v1431 = vunpack.c.l.b16 %v206
  %v1432 = vunpack.c.h.b16 %v206
  %v1433 = vunpack.c.l.b16 %v207
  %v1434 = vunpack.c.h.b16 %v207
  %v1435 = vunpack.c.l.b16 %v208
  %v1436 = vunpack.c.h.b16 %v208
  %v1437 = vunpack.c.l.b16 %v209
  %v1438 = vunpack.c.h.b16 %v209
  %v1439 = vunpack.c.l.b16 %v210
  %v1440 = vunpack.c.h.b16 %v210
  %v1441 = vunpack.c.l.b16 %v211
  %v1442 = vunpack.c.h.b16 %v211
  %v1443 = vunpack.c.l.b16 %v212
  %v1444 = vunpack.c.h.b16 %v212
  %v1445 = vunpack.c.l.b16 %v213
  %v1446 = vunpack.c.h.b16 %v213
  %v1447 = vunpack.c.l.b16 %v214
  %v1448 = vunpack.c.h.b16 %v214
  %v1449 = vunpack.c.l.b16 %v215
  %v1450 = vunpack.c.h.b16 %v215
  %v1451 = vunpack.c.l.b16 %v216
  %v1452 = vunpack.c.h.b16 %v216
  %v1453 = vunpack.c.l.b16 %v217
  %v1454 = vunpack.c.h.b16 %v217
  %v1455 = vunpack.c.l.b16 %v218
  %v1456 = vunpack.c.h.b16 %v218
  %v1457 = vunpack.c.l.b16 %v219
  %v1458 = vunpack.c.h.b16 %v219
  %v1459 = vunpack.c.l.b16 %v220
  %v1460 = vunpack.c.h.b16 %v220
  %v1461 = vunpack.c.l.b16 %v221
  %v1462 = vunpack.c.h.b16 %v221
  %v1463 = vunpack.c.l.b16 %v222
  %v1464 = vunpack.c.h.b16 %v222
  %v1465 = vunpack.c.l.b16 %v223
  %v1466 = vunpack.c.h.b16 %v223
  %v1467 = vunpack.c.l.b16 %v224
  %v1468 = vunpack.c.h.b16 %v224
  %v1469 = vunpack.c.l.b16 %v225
  %v1470 = vunpack.c.h.b16 %v225
  %v1471 = vunpack.c.l.b16 %v226
  %v1472 = vunpack.c.h.b16 %v226
  %v1473 = vunpack.c.l.b16 %v227
  %v1474 = vunpack.c.h.b16 %v227
  %v1475 = vunpack.c.l.b16 %v228
  %v1476 = vunpack.c.h.b16 %v228
  %v1477 = vunpack.c.l.b16 %v229
  %v1478 = vunpack.c.h.b16 %v229
  %v1479 = vunpack.c.l.b16 %v230
  %v1480 = vunpack.c.h.b16 %v230
  %v1481 = vunpack.c.l.b16 %v231
  %v1482 = vunpack.c.h.b16 %v231
  %v1483 = vunpack.c.l.b16 %v232
  %v1484 = vunpack.c.h.b16 %v232
  %v1485 = vunpack.c.l.b16 %v233
  %v1486 = vunpack.c.h.b16 %v233
  %v1487 = vunpack.c.l.b16 %v234
  %v1488 = vunpack.c.h.b16 %v234
  %v1489 = vunpack.c.l.b16 %v235
  %v1490 = vunpack.c.h.b16 %v235
  %v1491 = vunpack.c.l.b16 %v236
  %v1492 = vunpack.c.h.b16 %v236
  %v1493 = vunpack.c.l.b16 %v237
  %v1494 = vunpack.c.h.b16 %v237
  %v1495 = vunpack.c.l.b16 %v238
  %v1496 = vunpack.c.h.b16 %v238
  %v1497 = vunpack.c.l.b16 %v239
  %v1498 = vunpack.c.h.b16 %v239
  %v1499 = vunpack.c.l.b16 %v240
  %v1500 = vunpack.c.h.b16 %v240
  %v1501 = vunpack.c.l.b16 %v241
  %v1502 = vunpack.c.h.b16 %v241
  %v1503 = vunpack.c.l.b16 %v242
  %v1504 = vunpack.c.h.b16 %v242
  %v1505 = vunpack.c.l.b16 %v243
  %v1506 = vunpack.c.h.b16 %v243
  %v1507 = vunpack.c.l.b16 %v244
  %v1508 = vunpack.c.h.b16 %v244
  %v1509 = vunpack.c.l.b16 %v245
  %v1510 = vunpack.c.h.b16 %v245
  %v1511 = vunpack.c.l.b16 %v246
  %v1512 = vunpack.c.h.b16 %v246
  %v1513 = vunpack.c.l.b16 %v247
  %v1514 = vunpack.c.h.b16 %v247
  %v1515 = vunpack.c.l.b16 %v248
  %v1516 = vunpack.c.h.b16 %v248
  %v1517 = vunpack.c.l.b16 %v249
  %v1518 = vunpack.c.h.b16 %v249
  %v1519 = vunpack.c.l.b16 %v250
  %v1520 = vunpack.c.h.b16 %v250
  %v1521 = vunpack.c.l.b16 %v251
  %v1522 = vunpack.c.h.b16 %v251
  %v1523 = vunpack.c.l.b16 %v252
  %v1524 = vunpack.c.h.b16 %v252
  %v1525 = vunpack.c.l.b16 %v253
  %v1526 = vunpack.c.h.b16 %v253
  %v1527 = vunpack.c.l.b16 %v254
  %v1528 = vunpack.c.h.b16 %v254
  %v1529 = vunpack.c.l.b16 %v255
  %v1530 = vunpack.c.h.b16 %v255
  %v1531 = vunpack.c.l.b16 %v256
  %v1532 = vunpack.c.h.b16 %v256
  %v1533 = vunpack.c.l.b16 %v257
  %v1534 = vunpack.c.h.b16 %v257
  %v1535 = vunpack.c.l.b16 %v258
  %v1536 = vunpack.c.h.b16 %v258
  %v1537 = vunpack.c.l.b16 %v259
  %v1538 = vunpack.c.h.b16 %v259
  %v1539 = vunpack.c.l.b16 %v260
  %v1540 = vunpack.c.h.b16 %v260
  %v1541 = vunpack.c.l.b16 %v261
  %v1542 = vunpack.c.h.b16 %v261
  %v1543 = vunpack.c.l.b16 %v262
  %v1544 = vunpack.c.h.b16 %v262
  %v1545 = vunpack.c.l.b16 %v263
  %v1546 = vunpack.c.h.b16 %v263
  %v1547 = vunpack.c.l.b16 %v264
  %v1548 = vunpack.c.h.b16 %v264
  %v1549 = vunpack.c.l.b16 %v265
  %v1550 = vunpack.c.h.b16 %v265
  %v1551 = vunpack.c.l.b16 %v266
  %v1552 = vunpack.c.h.b16 %v266
  %v1553 = vunpack.c.l.b16 %v267
  %v1554 = vunpack.c.h.b16 %v267
  %v1555 = vunpack.c.l.b16 %v268
  %v1556 = vunpack.c.h.b16 %v268
  %v1557 = vunpack.c.l.b16 %v269
  %v1558 = vunpack.c.h.b16 %v269
  %v1559 = vunpack.c.l.b16 %v270
  %v1560 = vunpack.c.h.b16 %v270
  %v1561 = vunpack.c.l.b16 %v271
  %v1562 = vunpack.c.h.b16 %v271
  %v1563 = vunpack.c.l.b16 %v272
  %v1564 = vunpack.c.h.b16 %v272
  %v1565 = vunpack.c.l.b16 %v273
  %v1566 = vunpack.c.h.b16 %v273
  %v1567 = vunpack.c.l.b16 %v274
  %v1568 = vunpack.c.h.b16 %v274
  %v1569 = vunpack.c.l.b16 %v275
  %v1570 = vunpack.c.h.b16 %v275
  %v1571 = vunpack.c.l.b16 %v276
  %v1572 = vunpack.c.h.b16 %v276
  %v1573 = vunpack.c.l.b16 %v277
  %v1574 = vunpack.c.h.b16 %v277
  %v1575 = vunpack.c.l.b16 %v278
  %v1576 = vunpack.c.h.b16 %v278
  %v1577 = vunpack.c.l.b16 %v279
  %v1578 = vunpack.c.h.b16 %v279
  %v1579 = vunpack.c.l.b16 %v280
  %v1580 = vunpack.c.h.b16 %v280
  %v1581 = vunpack.c.l.b16 %v281
  %v1582 = vunpack.c.h.b16 %v281
  %v1583 = vunpack.c.l.b16 %v282
  %v1584 = vunpack.c.h.b16 %v282
  %v1585 = vunpack.c.l.b16 %v283
  %v1586 = vunpack.c.h.b16 %v283
  %v1587 = vunpack.c.l.b16 %v284
  %v1588 = vunpack.c.h.b16 %v284
  %v1589 = vunpack.c.l.b16 %v285
  %v1590 = vunpack.c.h.b16 %v285
  %v1591 = vunpack.c.l.b16 %v286
  %v1592 = vunpack.c.h.b16 %v286
  %v1593 = vunpack.c.l.b16 %v287
  %v1594 = vunpack.c.h.b16 %v287
  %v1595 = vunpack.c.l.b16 %v288
  %v1596 = vunpack.c.h.b16 %v288
  %v1597 = vunpack.c.l.b16 %v289
  %v1598 = vunpack.c.h.b16 %v289
  %v1599 = vunpack.c.l.b16 %v290
  %v1600 = vunpack.c.h.b16 %v290
  %v1601 = vunpack.c.l.b16 %v291
  %v1602 = vunpack.c.h.b16 %v291
  %v1603 = vunpack.c.l.b16 %v292
  %v1604 = vunpack.c.h.b16 %v292
  %v1605 = vunpack.c.l.b16 %v293
  %v1606 = vunpack.c.h.b16 %v293
  %v1607 = vunpack.c.l.b16 %v294
  %v1608 = vunpack.c.h.b16 %v294
  %v1609 = vunpack.c.l.b16 %v295
  %v1610 = vunpack.c.h.b16 %v295
  %v1611 = vunpack.c.l.b16 %v296
  %v1612 = vunpack.c.h.b16 %v296
  %v1613 = vunpack.c.l.b16 %v297
  %v1614 = vunpack.c.h.b16 %v297
  %v1615 = vunpack.c.l.b16 %v298
  %v1616 = vunpack.c.h.b16 %v298
  %v1617 = vunpack.c.l.b16 %v299
  %v1618 = vunpack.c.h.b16 %v299
  %v1619 = vunpack.c.l.b16 %v300
  %v1620 = vunpack.c.h.b16 %v300
  %v1621 = vunpack.c.l.b16 %v301
  %v1622 = vunpack.c.h.b16 %v301
  %v1623 = vunpack.c.l.b16 %v302
  %v1624 = vunpack.c.h.b16 %v302
  %v1625 = vunpack.c.l.b16 %v303
  %v1626 = vunpack.c.h.b16 %v303
  %v1627 = vunpack.c.l.b16 %v304
  %v1628 = vunpack.c.h.b16 %v304
  %v1629 = vunpack.c.l.b16 %v305
  %v1630 = vunpack.c.h.b16 %v305
  %v1631 = vunpack.c.l.b16 %v306
  %v1632 = vunpack.c.h.b16 %v306
  %v1633 = vunpack.c.l.b16 %v307
  %v1634 = vunpack.c.h.b16 %v307
  %v1635 = vunpack.c.l.b16 %v308
  %v1636 = vunpack.c.h.b16 %v308
  %v1637 = vunpack.c.l.b16 %v309
  %v1638 = vunpack.c.h.b16 %v309
  %v1639 = vunpack.c.l.b16 %v310
  %v1640 = vunpack.c.h.b16 %v310
  %v1641 = vunpack.c.l.b16 %v311
  %v1642 = vunpack.c.h.b16 %v311
  %v1643 = vunpack.c.l.b16 %v312
  %v1644 = vunpack.c.h.b16 %v312
  %v1645 = vunpack.c.l.b16 %v313
  %v1646 = vunpack.c.h.b16 %v313
  %v1647 = vunpack.c.l.b16 %v314
  %v1648 = vunpack.c.h.b16 %v314
  %v1649 = vunpack.c.l.b16 %v315
  %v1650 = vunpack.c.h.b16 %v315
  %v1651 = vunpack.c.l.b16 %v316
  %v1652 = vunpack.c.h.b16 %v316
  %v1653 = vunpack.c.l.b16 %v317
  %v1654 = vunpack.c.h.b16 %v317
  %v1655 = vunpack.c.l.b16 %v318
  %v1656 = vunpack.c.h.b16 %v318
  %v1657 = vunpack.c.l.b16 %v319
  %v1658 = vunpack.c.h.b16 %v319
  %v1659 = vunpack.c.l.b16 %v320
  %v1660 = vunpack.c.h.b16 %v320
  %v1661 = vunpack.c.l.b16 %v321
  %v1662 = vunpack.c.h.b16 %v321
  %v1663 = vunpack.c.l.b16 %v322
  %v1664 = vunpack.c.h.b16 %v322
  %v1665 = vunpack.c.l.b16 %v323
  %v1666 = vunpack.c.h.b16 %v323
  %v1667 = vunpack.c.l.b16 %v324
  %v1668 = vunpack.c.h.b16 %v324
  %v1669 = vunpack.c.l.b16 %v325
  %v1670 = vunpack.c.h.b16 %v325
  %v1671 = vunpack.c.l.b16 %v326
  %v1672 = vunpack.c.h.b16 %v326
  %v1673 = vunpack.c.l.b16 %v327
  %v1674 = vunpack.c.h.b16 %v327
  %v1675 = vunpack.c.l.b16 %v328
  %v1676 = vunpack.c.h.b16 %v328
  %v1677 = vunpack.c.l.b16 %v329
  %v1678 = vunpack.c.h.b16 %v329
  %v1679 = vunpack.c.l.b16 %v330
  %v1680 = vunpack.c.h.b16 %v330
  %v1681 = vunpack.c.l.b16 %v331
  %v1682 = vunpack.c.h.b16 %v331
  %v1683 = vunpack.c.l.b16 %v332
  %v1684 = vunpack.c.h.b16 %v332
  %v1685 = vunpack.c.l.b16 %v333
  %v1686 = vunpack.c.h.b16 %v333
  %v1687 = vunpack.c.l.b16 %v334
  %v1688 = vunpack.c.h.b16 %v334
  %v1689 = vunpack.c.l.b16 %v335
  %v1690 = vunpack.c.h.b16 %v335
  %v1691 = vunpack.c.l.b16 %v336
  %v1692 = vunpack.c.h.b16 %v336
  %v1693 = vunpack.c.l.b16 %v337
  %v1694 = vunpack.c.h.b16 %v337
  %v1695 = vunpack.c.l.b16 %v338
  %v1696 = vunpack.c.h.b16 %v338
  %v1697 = vunpack.c.l.b16 %v339
  %v1698 = vunpack.c.h.b16 %v339
  %v1699 = vunpack.c.l.b16 %v340
  %v1700 = vunpack.c.h.b16 %v340
  %v1701 = vunpack.c.l.b16 %v341
  %v1702 = vunpack.c.h.b16 %v341
  %v1703 = vunpack.c.l.b16 %v342
  %v1704 = vunpack.c.h.b16 %v342
  %v1705 = vunpack.c.l.b16 %v343
  %v1706 = vunpack.c.h.b16 %v343
  %v1707 = vunpack.c.l.b16 %v344
  %v1708 = vunpack.c.h.b16 %v344
  %v1709 = vunpack.c.l.b16 %v345
  %v1710 = vunpack.c.h.b16 %v345
  %v1711 = vunpack.c.l.b16 %v346
  %v1712 = vunpack.c.h.b16 %v346
  %v1713 = vunpack.c.l.b16 %v347
  %v1714 = vunpack.c.h.b16 %v347
  %v1715 = vunpack.c.l.b16 %v348
  %v1716 = vunpack.c.h.b16 %v348
  %v1717 = vunpack.c.l.b16 %v349
  %v1718 = vunpack.c.h.b16 %v349
  %v1719 = vunpack.c.l.b16 %v350
  %v1720 = vunpack.c.h.b16 %v350
  %v1721 = vunpack.c.l.b16 %v351
  %v1722 = vunpack.c.h.b16 %v351
  %v1723 = vunpack.c.l.b16 %v352
  %v1724 = vunpack.c.h.b16 %v352
  %v1725 = vunpack.c.l.b16 %v353
  %v1726 = vunpack.c.h.b16 %v353
  %v1727 = vunpack.c.l.b16 %v354
  %v1728 = vunpack.c.h.b16 %v354
  %v1729 = vunpack.c.l.b16 %v355
  %v1730 = vunpack.c.h.b16 %v355
  %v1731 = vunpack.c.l.b16 %v356
  %v1732 = vunpack.c.h.b16 %v356
  %v1733 = vunpack.c.l.b16 %v357
  %v1734 = vunpack.c.h.b16 %v357
  %v1735 = vunpack.c.l.b16 %v358
  %v1736 = vunpack.c.h.b16 %v358
  %v1737 = vunpack.c.l.b16 %v359
  %v1738 = vunpack.c.h.b16 %v359
  %v1739 = vunpack.c.l.b16 %v360
  %v1740 = vunpack.c.h.b16 %v360
  %v1741 = vunpack.c.l.b16 %v361
  %v1742 = vunpack.c.h.b16 %v361
  %v1743 = vunpack.c.l.b16 %v362
  %v1744 = vunpack.c.h.b16 %v362
  %v1745 = vunpack.c.l.b16 %v363
  %v1746 = vunpack.c.h.b16 %v363
  %v1747 = vunpack.c.l.b16 %v364
  %v1748 = vunpack.c.h.b16 %v364
  %v1749 = vunpack.c.l.b16 %v365
  %v1750 = vunpack.c.h.b16 %v365
  %v1751 = vunpack.c.l.b16 %v366
  %v1752 = vunpack.c.h.b16 %v366
  %v1753 = vunpack.c.l.b16 %v367
  %v1754 = vunpack.c.h.b16 %v367
  %v1755 = vunpack.c.l.b16 %v368
  %v1756 = vunpack.c.h.b16 %v368
  %v1757 = vunpack.c.l.b16 %v369
  %v1758 = vunpack.c.h.b16 %v369
  %v1759 = vunpack.c.l.b16 %v370
  %v1760 = vunpack.c.h.b16 %v370
  %v1761 = vunpack.c.l.b16 %v371
  %v1762 = vunpack.c.h.b16 %v371
  %v1763 = vunpack.c.l.b16 %v372
  %v1764 = vunpack.c.h.b16 %v372
  %v1765 = vunpack.c.l.b16 %v373
  %v1766 = vunpack.c.h.b16 %v373
  %v1767 = vunpack.c.l.b16 %v374
  %v1768 = vunpack.c.h.b16 %v374
  %v1769 = vunpack.c.l.b16 %v375
  %v1770 = vunpack.c.h.b16 %v375
  %v1771 = vunpack.c.l.b16 %v376
  %v1772 = vunpack.c.h.b16 %v376
  %v1773 = vunpack.c.l.b16 %v377
  %v1774 = vunpack.c.h.b16 %v377
  %v1775 = vunpack.c.l.b16 %v378
  %v1776 = vunpack.c.h.b16 %v378
  %v1777 = vunpack.c.l.b16 %v379
  %v1778 = vunpack.c.h.b16 %v379
  %v1779 = vunpack.c.l.b16 %v380
  %v1780 = vunpack.c.h.b16 %v380
  %v1781 = vunpack.c.l.b16 %v381
  %v1782 = vunpack.c.h.b16 %v381
  %v1783 = vunpack.c.l.b16 %v382
  %v1784 = vunpack.c.h.b16 %v382
  %v1785 = vunpack.c.l.b16 %v383
  %v1786 = vunpack.c.h.b16 %v383
  %v1787 = vunpack.c.l.b16 %v384
  %v1788 = vunpack.c.h.b16 %v384
  %v1789 = vunpack.c.l.b16 %v385
  %v1790 = vunpack.c.h.b16 %v385
  %v1791 = vunpack.c.l.b16 %v386
  %v1792 = vunpack.c.h.b16 %v386
  %v1793 = vunpack.c.l.b16 %v387
  %v1794 = vunpack.c.h.b16 %v387
  %v1795 = vunpack.c.l.b16 %v388
  %v1796 = vunpack.c.h.b16 %v388
  %v1797 = vunpack.c.l.b16 %v389
  %v1798 = vunpack.c.h.b16 %v389
  %v1799 = vunpack.c.l.b16 %v390
  %v1800 = vunpack.c.h.b16 %v390
  %v1801 = vunpack.c.l.b16 %v391
  %v1802 = vunpack.c.h.b16 %v391
  %v1803 = vunpack.c.l.b16 %v392
  %v1804 = vunpack.c.h.b16 %v392
  %v1805 = vunpack.c.l.b16 %v393
  %v1806 = vunpack.c.h.b16 %v393
  %v1807 = vunpack.c.l.b16 %v394
  %v1808 = vunpack.c.h.b16 %v394
  %v1809 = vunpack.c.l.b16 %v395
  %v1810 = vunpack.c.h.b16 %v395
  %v1811 = vunpack.c.l.b16 %v396
  %v1812 = vunpack.c.h.b16 %v396
  %v1813 = vunpack.c.l.b16 %v397
  %v1814 = vunpack.c.h.b16 %v397
  %v1815 = vunpack.c.l.b16 %v398
  %v1816 = vunpack.c.h.b16 %v398
  %v1817 = vunpack.c.l.b16 %v399
  %v1818 = vunpack.c.h.b16 %v399
  %v1819 = vunpack.c.l.b16 %v400
  %v1820 = vunpack.c.h.b16 %v400
  %v1821 = vunpack.c.l.b16 %v401
  %v1822 = vunpack.c.h.b16 %v401
  %v1823 = vunpack.c.l.b16 %v402
  %v1824 = vunpack.c.h.b16 %v402
  %v1825 = vunpack.c.l.b16 %v403
  %v1826 = vunpack.c.h.b16 %v403
  %v1827 = vunpack.c.l.b16 %v404
  %v1828 = vunpack.c.h.b16 %v404
  %v1829 = vunpack.c.l.b16 %v405
  %v1830 = vunpack.c.h.b16 %v405
  %v1831 = vunpack.c.l.b16 %v406
  %v1832 = vunpack.c.h.b16 %v406
  %v1833 = vunpack.c.l.b16 %v407
  %v1834 = vunpack.c.h.b16 %v407
  %v1835 = vunpack.c.l.b16 %v408
  %v1836 = vunpack.c.h.b16 %v408
  %v1837 = vunpack.c.l.b16 %v409
  %v1838 = vunpack.c.h.b16 %v409
  %v1839 = vunpack.c.l.b16 %v410
  %v1840 = vunpack.c.h.b16 %v410
  %v1841 = vunpack.c.l.b16 %v411
  %v1842 = vunpack.c.h.b16 %v411
  %v1843 = vunpack.c.l.b16 %v412
  %v1844 = vunpack.c.h.b16 %v412
  %v1845 = vunpack.c.l.b16 %v413
  %v1846 = vunpack.c.h.b16 %v413
  %v1847 = vunpack.c.l.b16 %v414
  %v1848 = vunpack.c.h.b16 %v414
  %v1849 = vunpack.c.l.b16 %v415
  %v1850 = vunpack.c.h.b16 %v415
  %v1851 = vunpack.c.l.b16 %v416
  %v1852 = vunpack.c.h.b16 %v416
  %v1853 = vunpack.c.l.b16 %v417
  %v1854 = vunpack.c.h.b16 %v417
  %v1855 = vunpack.c.l.b16 %v418
  %v1856 = vunpack.c.h.b16 %v418
  %v1857 = vunpack.c.l.b16 %v419
  %v1858 = vunpack.c.h.b16 %v419
  %v1859 = vunpack.c.l.b16 %v420
  %v1860 = vunpack.c.h.b16 %v420
  %v1861 = vunpack.c.l.b16 %v421
  %v1862 = vunpack.c.h.b16 %v421
  %v1863 = vunpack.c.l.b16 %v422
  %v1864 = vunpack.c.h.b16 %v422
  %v1865 = vunpack.c.l.b16 %v423
  %v1866 = vunpack.c.h.b16 %v423
  %v1867 = vunpack.c.l.b16 %v424
  %v1868 = vunpack.c.h.b16 %v424
  %v1869 = vunpack.c.l.b16 %v425
  %v1870 = vunpack.c.h.b16 %v425
  %v1871 = vunpack.c.l.b16 %v426
  %v1872 = vunpack.c.h.b16 %v426
  %v1873 = vunpack.c.l.b16 %v427
  %v1874 = vunpack.c.h.b16 %v427
  %v1875 = vunpack.c.l.b16 %v428
  %v1876 = vunpack.c.h.b16 %v428
  %v1877 = vunpack.c.l.b16 %v429
  %v1878 = vunpack.c.h.b16 %v429
  %v1879 = vunpack.c.l.b16 %v430
  %v1880 = vunpack.c.h.b16 %v430
  %v1881 = vunpack.c.l.b16 %v431
  %v1882 = vunpack.c.h.b16 %v431
  %v1883 = vunpack.c.l.b16 %v432
  %v1884 = vunpack.c.h.b16 %v432
  %v1885 = vunpack.c.l.b16 %v433
  %v1886 = vunpack.c.h.b16 %v433
  %v1887 = vunpack.c.l.b16 %v434
  %v1888 = vunpack.c.h.b16 %v434
  %v1889 = vunpack.c.l.b16 %v435
  %v1890 = vunpack.c.h.b16 %v435
  %v1891 = vunpack.c.l.b16 %v436
  %v1892 = vunpack.c.h.b16 %v436
  %v1893 = vunpack.c.l.b16 %v437
  %v1894 = vunpack.c.h.b16 %v437
  %v1895 = vunpack.c.l.b16 %v438
  %v1896 = vunpack.c.h.b16 %v438
  %v1897 = vunpack.c.l.b16 %v439
  %v1898 = vunpack.c.h.b16 %v439
  %v1899 = vunpack.c.l.b16 %v440
  %v1900 = vunpack.c.h.b16 %v440
  %v1901 = vunpack.c.l.b16 %v441
  %v1902 = vunpack.c.h.b16 %v441
  %v1903 = vunpack.c.l.b16 %v442
  %v1904 = vunpack.c.h.b16 %v442
  %v1905 = vunpack.c.l.b16 %v443
  %v1906 = vunpack.c.h.b16 %v443
  %v1907 = vunpack.c.l.b16 %v444
  %v1908 = vunpack.c.h.b16 %v444
  %v1909 = vunpack.c.l.b16 %v445
  %v1910 = vunpack.c.h.b16 %v445
  %v1911 = vunpack.c.l.b16 %v446
  %v1912 = vunpack.c.h.b16 %v446
  %v1913 = vunpack.c.l.b16 %v447
  %v1914 = vunpack.c.h.b16 %v447
  %v1915 = vunpack.c.l.b16 %v448
  %v1916 = vunpack.c.h.b16 %v448
  %v1917 = vunpack.c.l.b16 %v449
  %v1918 = vunpack.c.h.b16 %v449
  %v1919 = vunpack.c.l.b16 %v450
  %v1920 = vunpack.c.h.b16 %v450
  %v1921 = vunpack.c.l.b16 %v451
  %v1922 = vunpack.c.h.b16 %v451
  %v1923 = vunpack.c.l.b16 %v452
  %v1924 = vunpack.c.h.b16 %v452
  %v1925 = vunpack.c.l.b16 %v453
  %v1926 = vunpack.c.h.b16 %v453
  %v1927 = vunpack.c.l.b16 %v454
  %v1928 = vunpack.c.h.b16 %v454
  %v1929 = vunpack.c.l.b16 %v455
  %v1930 = vunpack.c.h.b16 %v455
  %v1931 = vunpack.c.l.b16 %v456
  %v1932 = vunpack.c.h.b16 %v456
  %v1933 = vunpack.c.l.b16 %v457
  %v1934 = vunpack.c.h.b16 %v457
  %v1935 = vunpack.c.l.b16 %v458
  %v1936 = vunpack.c.h.b16 %v458
  %v1937 = vunpack.c.l.b16 %v459
  %v1938 = vunpack.c.h.b16 %v459
  %v1939 = vunpack.c.l.b16 %v460
  %v1940 = vunpack.c.h.b16 %v460
  %v1941 = vunpack.c.l.b16 %v461
  %v1942 = vunpack.c.h.b16 %v461
  %v1943 = vunpack.c.l.b16 %v462
  %v1944 = vunpack.c.h.b16 %v462
  %v1945 = vunpack.c.l.b16 %v463
  %v1946 = vunpack.c.h.b16 %v463
  %v1947 = vunpack.c.l.b16 %v464
  %v1948 = vunpack.c.h.b16 %v464
  %v1949 = vunpack.c.l.b16 %v465
  %v1950 = vunpack.c.h.b16 %v465
  %v1951 = vunpack.c.l.b16 %v466
  %v1952 = vunpack.c.h.b16 %v466
  %v1953 = vunpack.c.l.b16 %v467
  %v1954 = vunpack.c.h.b16 %v467
  %v1955 = vunpack.c.l.b16 %v468
  %v1956 = vunpack.c.h.b16 %v468
  %v1957 = vunpack.c.l.b16 %v469
  %v1958 = vunpack.c.h.b16 %v469
  %v1959 = vunpack.c.l.b16 %v470
  %v1960 = vunpack.c.h.b16 %v470
  %v1961 = vunpack.c.l.b16 %v471
  %v1962 = vunpack.c.h.b16 %v471
  %v1963 = vunpack.c.l.b16 %v472
  %v1964 = vunpack.c.h.b16 %v472
  %v1965 = vunpack.c.l.b16 %v473
  %v1966 = vunpack.c.h.b16 %v473
  %v1967 = vunpack.c.l.b16 %v474
  %v1968 = vunpack.c.h.b16 %v474
  %v1969 = vunpack.c.l.b16 %v475
  %v1970 = vunpack.c.h.b16 %v475
  %v1971 = vunpack.c.l.b16 %v476
  %v1972 = vunpack.c.h.b16 %v476
  %v1973 = vunpack.c.l.b16 %v477
  %v1974 = vunpack.c.h.b16 %v477
  %v1975 = vunpack.c.l.b16 %v478
  %v1976 = vunpack.c.h.b16 %v478
  %v1977 = vunpack.c.l.b16 %v479
  %v1978 = vunpack.c.h.b16 %v479
  %v1979 = vunpack.c.l.b16 %v480
  %v1980 = vunpack.c.h.b16 %v480
  %v1981 = vunpack.c.l.b16 %v481
  %v1982 = vunpack.c.h.b16 %v481
  %v1983 = vunpack.c.l.b16 %v482
  %v1984 = vunpack.c.h.b16 %v482
  %v1985 = vunpack.c.l.b16 %v483
  %v1986 = vunpack.c.h.b16 %v483
  %v1987 = vunpack.c.l.b16 %v484
  %v1988 = vunpack.c.h.b16 %v484
  %v1989 = vunpack.c.l.b16 %v485
  %v1990 = vunpack.c.h.b16 %v485
  %v1991 = vunpack.c.l.b16 %v486
  %v1992 = vunpack.c.h.b16 %v486
  %v1993 = vunpack.c.l.b16 %v487
  %v1994 = vunpack.c.h.b16 %v487
  %v1995 = vunpack.c.l.b16 %v488
  %v1996 = vunpack.c.h.b16 %v488
  %v1997 = vunpack.c.l.b16 %v489
  %v1998 = vunpack.c.h.b16 %v489
  %v1999 = vunpack.c.l.b16 %v490
  %v2000 = vunpack.c.h.b16 %v490
  %v2001 = vunpack.c.l.b16 %v491
  %v2002 = vunpack.c.h.b16 %v491
  %v2003 = vunpack.c.l.b16 %v492
  %v2004 = vunpack.c.h.b16 %v492
  %v2005 = vunpack.c.l.b16 %v493
  %v2006 = vunpack.c.h.b16 %v493
  %v2007 = vunpack.c.l.b16 %v494
  %v2008 = vunpack.c.h.b16 %v494
  %v2009 = vunpack.c.l.b16 %v495
  %v2010 = vunpack.c.h.b16 %v495
  %v2011 = vunpack.c.l.b16 %v496
  %v2012 = vunpack.c.h.b16 %v496
  %v2013 = vunpack.c.l.b16 %v497
  %v2014 = vunpack.c.h.b16 %v497
  %v2015 = vunpack.c.l.b16 %v498
  %v2016 = vunpack.c.h.b16 %v498
  %v2017 = vunpack.c.l.b16 %v499
  %v2018 = vunpack.c.h.b16 %v499
  %v2019 = vunpack.c.l.b16 %v500
  %v2020 = vunpack.c.h.b16 %v500
  %v2021 = vunpack.c.l.b16 %v501
  %v2022 = vunpack.c.h.b16 %v501
  %v2023 = vunpack.c.l.b16 %v502
  %v2024 = vunpack.c.h.b16 %v502
  %v2025 = vunpack.c.l.b16 %v503
  %v2026 = vunpack.c.h.b16 %v503
  %v2027 = vunpack.c.l.b16 %v504
  %v2028 = vunpack.c.h.b16 %v504
  %v2029 = vunpack.c.l.b16 %v505
  %v2030 = vunpack.c.h.b16 %v505
  %v2031 = vunpack.c.l.b16 %v506
  %v2032 = vunpack.c.h.b16 %v506
  %v2033 = vunpack.c.l.b16 %v507
  %v2034 = vunpack.c.h.b16 %v507
  %v2035 = vunpack.c.l.b16 %v508
  %v2036 = vunpack.c.h.b16 %v508
  %v2037 = vunpack.c.l.b16 %v509
  %v2038 = vunpack.c.h.b16 %v509
  %v2039 = vunpack.c.l.b16 %v510
  %v2040 = vunpack.c.h.b16 %v510
  %v2041 = vunpack.c.l.b16 %v511
  %v2042 = vunpack.c.h.b16 %v511
  %v2043 = vunpack.c.l.b16 %v512
  %v2044 = vunpack.c.h.b16 %v512
  %v2045 = vunpack.c.l.b16 %v513
  %v2046 = vunpack.c.h.b16 %v513
  %v2047 = vunpack.c.l.b16 %v514
  %v2048 = vunpack.c.h.b16 %v514
  %v2049 = vunpack.c.l.b16 %v515
  %v2050 = vunpack.c.h.b16 %v515
  %v2051 = vunpack.c.l.b16 %v516
  %v2052 = vunpack.c.h.b16 %v516
  %v2053 = vunpack.c.l.b16 %v517
  %v2054 = vunpack.c.h.b16 %v517
  %v2055 = vunpack.c.l.b16 %v518
  %v2056 = vunpack.c.h.b16 %v518
  %v2057 = vunpack.c.l.b16 %v519
  %v2058 = vunpack.c.h.b16 %v519
  %v2059 = vunpack.c.l.b16 %v520
  %v2060 = vunpack.c.h.b16 %v520
  %v2061 = vunpack.c.l.b16 %v521
  %v2062 = vunpack.c.h.b16 %v521
  %v2063 = vunpack.c.l.b16 %v522
  %v2064 = vunpack.c.h.b16 %v522
  %v2065 = vunpack.c.l.b16 %v523
  %v2066 = vunpack.c.h.b16 %v523
  %v2067 = vunpack.c.l.b16 %v524
  %v2068 = vunpack.c.h.b16 %v524
  %v2069 = vunpack.c.l.b16 %v525
  %v2070 = vunpack.c.h.b16 %v525
  %v2071 = vunpack.c.l.b16 %v526
  %v2072 = vunpack.c.h.b16 %v526
  %v2073 = vunpack.c.l.b16 %v527
  %v2074 = vunpack.c.h.b16 %v527
  %v2075 = vunpack.c.l.b16 %v528
  %v2076 = vunpack.c.h.b16 %v528
  %v2077 = vunpack.c.l.b16 %v529
  %v2078 = vunpack.c.h.b16 %v529
  %v2079 = vunpack.c.l.b16 %v530
  %v2080 = vunpack.c.h.b16 %v530
  %v2081 = vpack.c.b16 %v1073, %v1057
  %v2082 = vpack.c.b16 %v1074, %v1058
  %v2083 = vpack.c.b16 %v1075, %v1059
  %v2084 = vpack.c.b16 %v1076, %v1060
  %v2085 = vpack.c.b16 %v1077, %v1061
  %v2086 = vpack.c.b16 %v1078, %v1062
  %v2087 = vpack.c.b16 %v1079, %v1063
  %v2088 = vpack.c.b16 %v1080, %v1064
  %v2089 = vpack.c.b16 %v1081, %v1065
  %v2090 = vpack.c.b16 %v1082, %v1066
  %v2091 = vpack.c.b16 %v1083, %v1067
  %v2092 = vpack.c.b16 %v1084, %v1068
  %v2093 = vpack.c.b16 %v1085, %v1069
  %v2094 = vpack.c.b16 %v1086, %v1070
  %v2095 = vpack.c.b16 %v1087, %v1071
  %v2096 = vpack.c.b16 %v1088, %v1072
  %v2097 = vpack.c.b16 %v1105, %v1089
  %v2098 = vpack.c.b16 %v1106, %v1090
  %v2099 = vpack.c.b16 %v1107, %v1091
  %v2100 = vpack.c.b16 %v1108, %v1092
  %v2101 = vpack.c.b16 %v1109, %v1093
  %v2102 = vpack.c.b16 %v1110, %v1094
  %v2103 = vpack.c.b16 %v1111, %v1095
  %v2104 = vpack.c.b16 %v1112, %v1096
  %v2105 = vpack.c.b16 %v1113, %v1097
  %v2106 = vpack.c.b16 %v1114, %v1098
  %v2107 = vpack.c.b16 %v1115, %v1099
  %v2108 = vpack.c.b16 %v1116, %v1100
  %v2109 = vpack.c.b16 %v1117, %v1101
  %v2110 = vpack.c.b16 %v1118, %v1102
  %v2111 = vpack.c.b16 %v1119, %v1103
  %v2112 = vpack.c.b16 %v1120, %v1104
  %v2113 = vpack.c.b16 %v1137, %v1121
  %v2114 = vpack.c.b16 %v1138, %v1122
  %v2115 = vpack.c.b16 %v1139, %v1123
  %v2116 = vpack.c.b16 %v1140, %v1124
  %v2117 = vpack.c.b16 %v1141, %v1125
  %v2118 = vpack.c.b16 %v1142, %v1126
  %v2119 = vpack.c.b16 %v1143, %v1127
  %v2120 = vpack.c.b16 %v1144, %v1128
  %v2121 = vpack.c.b16 %v1145, %v1129
  %v2122 = vpack.c.b16 %v1146, %v1130
  %v2123 = vpack.c.b16 %v1147, %v1131
  %v2124 = vpack.c.b16 %v1148, %v1132
  %v2125 = vpack.c.b16 %v1149, %v1133
  %v2126 = vpack.c.b16 %v1150, %v1134
  %v2127 = vpack.c.b16 %v1151, %v1135
  %v2128 = vpack.c.b16 %v1152, %v1136
  %v2129 = vpack.c.b16 %v1169, %v1153
  %v2130 = vpack.c.b16 %v1170, %v1154
  %v2131 = vpack.c.b16 %v1171, %v1155
  %v2132 = vpack.c.b16 %v1172, %v1156
  %v2133 = vpack.c.b16 %v1173, %v1157
  %v2134 = vpack.c.b16 %v1174, %v1158
  %v2135 = vpack.c.b16 %v1175, %v1159
  %v2136 = vpack.c.b16 %v1176, %v1160
  %v2137 = vpack.c.b16 %v1177, %v1161
  %v2138 = vpack.c.b16 %v1178, %v1162
  %v2139 = vpack.c.b16 %v1179, %v1163
  %v2140 = vpack.c.b16 %v1180, %v1164
  %v2141 = vpack.c.b16 %v1181, %v1165
  %v2142 = vpack.c.b16 %v1182, %v1166
  %v2143 = vpack.c.b16 %v1183, %v1167
  %v2144 = vpack.c.b16 %v1184, %v1168
  %v2145 = vpack.c.b16 %v1201, %v1185
  %v2146 = vpack.c.b16 %v1202, %v1186
  %v2147 = vpack.c.b16 %v1203, %v1187
  %v2148 = vpack.c.b16 %v1204, %v1188
  %v2149 = vpack.c.b16 %v1205, %v1189
  %v2150 = vpack.c.b16 %v1206, %v1190
  %v2151 = vpack.c.b16 %v1207, %v1191
  %v2152 = vpack.c.b16 %v1208, %v1192
  %v2153 = vpack.c.b16 %v1209, %v1193
  %v2154 = vpack.c.b16 %v1210, %v1194
  %v2155 = vpack.c.b16 %v1211, %v1195
  %v2156 = vpack.c.b16 %v1212, %v1196
  %v2157 = vpack.c.b16 %v1213, %v1197
  %v2158 = vpack.c.b16 %v1214, %v1198
  %v2159 = vpack.c.b16 %v1215, %v1199
  %v2160 = vpack.c.b16 %v1216, %v1200
  %v2161 = vpack.c.b16 %v1233, %v1217
  %v2162 = vpack.c.b16 %v1234, %v1218
  %v2163 = vpack.c.b16 %v1235, %v1219
  %v2164 = vpack.c.b16 %v1236, %v1220
  %v2165 = vpack.c.b16 %v1237, %v1221
  %v2166 = vpack.c.b16 %v1238, %v1222
  %v2167 = vpack.c.b16 %v1239, %v1223
  %v2168 = vpack.c.b16 %v1240, %v1224
  %v2169 = vpack.c.b16 %v1241, %v1225
  %v2170 = vpack.c.b16 %v1242, %v1226
  %v2171 = vpack.c.b16 %v1243, %v1227
  %v2172 = vpack.c.b16 %v1244, %v1228
  %v2173 = vpack.c.b16 %v1245, %v1229
  %v2174 = vpack.c.b16 %v1246, %v1230
  %v2175 = vpack.c.b16 %v1247, %v1231
  %v2176 = vpack.c.b16 %v1248, %v1232
  %v2177 = vpack.c.b16 %v1265, %v1249
  %v2178 = vpack.c.b16 %v1266, %v1250
  %v2179 = vpack.c.b16 %v1267, %v1251
  %v2180 = vpack.c.b16 %v1268, %v1252
  %v2181 = vpack.c.b16 %v1269, %v1253
  %v2182 = vpack.c.b16 %v1270, %v1254
  %v2183 = vpack.c.b16 %v1271, %v1255
  %v2184 = vpack.c.b16 %v1272, %v1256
  %v2185 = vpack.c.b16 %v1273, %v1257
  %v2186 = vpack.c.b16 %v1274, %v1258
  %v2187 = vpack.c.b16 %v1275, %v1259
  %v2188 = vpack.c.b16 %v1276, %v1260
  %v2189 = vpack.c.b16 %v1277, %v1261
  %v2190 = vpack.c.b16 %v1278, %v1262
  %v2191 = vpack.c.b16 %v1279, %v1263
  %v2192 = vpack.c.b16 %v1280, %v1264
  %v2193 = vpack.c.b16 %v1297, %v1281
  %v2194 = vpack.c.b16 %v1298, %v1282
  %v2195 = vpack.c.b16 %v1299, %v1283
  %v2196 = vpack.c.b16 %v1300, %v1284
  %v2197 = vpack.c.b16 %v1301, %v1285
  %v2198 = vpack.c.b16 %v1302, %v1286
  %v2199 = vpack.c.b16 %v1303, %v1287
  %v2200 = vpack.c.b16 %v1304, %v1288
  %v2201 = vpack.c.b16 %v1305, %v1289
  %v2202 = vpack.c.b16 %v1306, %v1290
  %v2203 = vpack.c.b16 %v1307, %v1291
  %v2204 = vpack.c.b16 %v1308, %v1292
  %v2205 = vpack.c.b16 %v1309, %v1293
  %v2206 = vpack.c.b16 %v1310, %v1294
  %v2207 = vpack.c.b16 %v1311, %v1295
  %v2208 = vpack.c.b16 %v1312, %v1296
  %v2209 = vpack.c.b16 %v1329, %v1313
  %v2210 = vpack.c.b16 %v1330, %v1314
  %v2211 = vpack.c.b16 %v1331, %v1315
  %v2212 = vpack.c.b16 %v1332, %v1316
  %v2213 = vpack.c.b16 %v1333, %v1317
  %v2214 = vpack.c.b16 %v1334, %v1318
  %v2215 = vpack.c.b16 %v1335, %v1319
  %v2216 = vpack.c.b16 %v1336, %v1320
  %v2217 = vpack.c.b16 %v1337, %v1321
  %v2218 = vpack.c.b16 %v1338, %v1322
  %v2219 = vpack.c.b16 %v1339, %v1323
  %v2220 = vpack.c.b16 %v1340, %v1324
  %v2221 = vpack.c.b16 %v1341, %v1325
  %v2222 = vpack.c.b16 %v1342, %v1326
  %v2223 = vpack.c.b16 %v1343, %v1327
  %v2224 = vpack.c.b16 %v1344, %v1328
  %v2225 = vpack.c.b16 %v1361, %v1345
  %v2226 = vpack.c.b16 %v1362, %v1346
  %v2227 = vpack.c.b16 %v1363, %v1347
  %v2228 = vpack.c.b16 %v1364, %v1348
  %v2229 = vpack.c.b16 %v1365, %v1349
  %v2230 = vpack.c.b16 %v1366, %v1350
  %v2231 = vpack.c.b16 %v1367, %v1351
  %v2232 = vpack.c.b16 %v1368, %v1352
  %v2233 = vpack.c.b16 %v1369, %v1353
  %v2234 = vpack.c.b16 %v1370, %v1354
  %v2235 = vpack.c.b16 %v1371, %v1355
  %v2236 = vpack.c.b16 %v1372, %v1356
  %v2237 = vpack.c.b16 %v1373, %v1357
  %v2238 = vpack.c.b16 %v1374, %v1358
  %v2239 = vpack.c.b16 %v1375, %v1359
  %v2240 = vpack.c.b16 %v1376, %v1360
  %v2241 = vpack.c.b16 %v1393, %v1377
  %v2242 = vpack.c.b16 %v1394, %v1378
  %v2243 = vpack.c.b16 %v1395, %v1379
  %v2244 = vpack.c.b16 %v1396, %v1380
  %v2245 = vpack.c.b16 %v1397, %v1381
  %v2246 = vpack.c.b16 %v1398, %v1382
  %v2247 = vpack.c.b16 %v1399, %v1383
  %v2248 = vpack.c.b16 %v1400, %v1384
  %v2249 = vpack.c.b16 %v1401, %v1385
  %v2250 = vpack.c.b16 %v1402, %v1386
  %v2251 = vpack.c.b16 %v1403, %v1387
  %v2252 = vpack.c.b16 %v1404, %v1388
  %v2253 = vpack.c.b16 %v1405, %v1389
  %v2254 = vpack.c.b16 %v1406, %v1390
  %v2255 = vpack.c.b16 %v1407, %v1391
  %v2256 = vpack.c.b16 %v1408, %v1392
  %v2257 = vpack.c.b16 %v1425, %v1409
  %v2258 = vpack.c.b16 %v1426, %v1410
  %v2259 = vpack.c.b16 %v1427, %v1411
  %v2260 = vpack.c.b16 %v1428, %v1412
  %v2261 = vpack.c.b16 %v1429, %v1413
  %v2262 = vpack.c.b16 %v1430, %v1414
  %v2263 = vpack.c.b16 %v1431, %v1415
  %v2264 = vpack.c.b16 %v1432, %v1416
  %v2265 = vpack.c.b16 %v1433, %v1417
  %v2266 = vpack.c.b16 %v1434, %v1418
  %v2267 = vpack.c.b16 %v1435, %v1419
  %v2268 = vpack.c.b16 %v1436, %v1420
  %v2269 = vpack.c.b16 %v1437, %v1421
  %v2270 = vpack.c.b16 %v1438, %v1422
  %v2271 = vpack.c.b16 %v1439, %v1423
  %v2272 = vpack.c.b16 %v1440, %v1424
  %v2273 = vpack.c.b16 %v1457, %v1441
  %v2274 = vpack.c.b16 %v1458, %v1442
  %v2275 = vpack.c.b16 %v1459, %v1443
  %v2276 = vpack.c.b16 %v1460, %v1444
  %v2277 = vpack.c.b16 %v1461, %v1445
  %v2278 = vpack.c.b16 %v1462, %v1446
  %v2279 = vpack.c.b16 %v1463, %v1447
  %v2280 = vpack.c.b16 %v1464, %v1448
  %v2281 = vpack.c.b16 %v1465, %v1449
  %v2282 = vpack.c.b16 %v1466, %v1450
  %v2283 = vpack.c.b16 %v1467, %v1451
  %v2284 = vpack.c.b16 %v1468, %v1452
  %v2285 = vpack.c.b16 %v1469, %v1453
  %v2286 = vpack.c.b16 %v1470, %v1454
  %v2287 = vpack.c.b16 %v1471, %v1455
  %v2288 = vpack.c.b16 %v1472, %v1456
  %v2289 = vpack.c.b16 %v1489, %v1473
  %v2290 = vpack.c.b16 %v1490, %v1474
  %v2291 = vpack.c.b16 %v1491, %v1475
  %v2292 = vpack.c.b16 %v1492, %v1476
  %v2293 = vpack.c.b16 %v1493, %v1477
  %v2294 = vpack.c.b16 %v1494, %v1478
  %v2295 = vpack.c.b16 %v1495, %v1479
  %v2296 = vpack.c.b16 %v1496, %v1480
  %v2297 = vpack.c.b16 %v1497, %v1481
  %v2298 = vpack.c.b16 %v1498, %v1482
  %v2299 = vpack.c.b16 %v1499, %v1483
  %v2300 = vpack.c.b16 %v1500, %v1484
  %v2301 = vpack.c.b16 %v1501, %v1485
  %v2302 = vpack.c.b16 %v1502, %v1486
  %v2303 = vpack.c.b16 %v1503, %v1487
  %v2304 = vpack.c.b16 %v1504, %v1488
  %v2305 = vpack.c.b16 %v1521, %v1505
  %v2306 = vpack.c.b16 %v1522, %v1506
  %v2307 = vpack.c.b16 %v1523, %v1507
  %v2308 = vpack.c.b16 %v1524, %v1508
  %v2309 = vpack.c.b16 %v1525, %v1509
  %v2310 = vpack.c.b16 %v1526, %v1510
  %v2311 = vpack.c.b16 %v1527, %v1511
  %v2312 = vpack.c.b16 %v1528, %v1512
  %v2313 = vpack.c.b16 %v1529, %v1513
  %v2314 = vpack.c.b16 %v1530, %v1514
  %v2315 = vpack.c.b16 %v1531, %v1515
  %v2316 = vpack.c.b16 %v1532, %v1516
  %v2317 = vpack.c.b16 %v1533, %v1517
  %v2318 = vpack.c.b16 %v1534, %v1518
  %v2319 = vpack.c.b16 %v1535, %v1519
  %v2320 = vpack.c.b16 %v1536, %v1520
  %v2321 = vpack.c.b16 %v1553, %v1537
  %v2322 = vpack.c.b16 %v1554, %v1538
  %v2323 = vpack.c.b16 %v1555, %v1539
  %v2324 = vpack.c.b16 %v1556, %v1540
  %v2325 = vpack.c.b16 %v1557, %v1541
  %v2326 = vpack.c.b16 %v1558, %v1542
  %v2327 = vpack.c.b16 %v1559, %v1543
  %v2328 = vpack.c.b16 %v1560, %v1544
  %v2329 = vpack.c.b16 %v1561, %v1545
  %v2330 = vpack.c.b16 %v1562, %v1546
  %v2331 = vpack.c.b16 %v1563, %v1547
  %v2332 = vpack.c.b16 %v1564, %v1548
  %v2333 = vpack.c.b16 %v1565, %v1549
  %v2334 = vpack.c.b16 %v1566, %v1550
  %v2335 = vpack.c.b16 %v1567, %v1551
  %v2336 = vpack.c.b16 %v1568, %v1552
  %v2337 = vpack.c.b16 %v1585, %v1569
  %v2338 = vpack.c.b16 %v1586, %v1570
  %v2339 = vpack.c.b16 %v1587, %v1571
  %v2340 = vpack.c.b16 %v1588, %v1572
  %v2341 = vpack.c.b16 %v1589, %v1573
  %v2342 = vpack.c.b16 %v1590, %v1574
  %v2343 = vpack.c.b16 %v1591, %v1575
  %v2344 = vpack.c.b16 %v1592, %v1576
  %v2345 = vpack.c.b16 %v1593, %v1577
  %v2346 = vpack.c.b16 %v1594, %v1578
  %v2347 = vpack.c.b16 %v1595, %v1579
  %v2348 = vpack.c.b16 %v1596, %v1580
  %v2349 = vpack.c.b16 %v1597, %v1581
  %v2350 = vpack.c.b16 %v1598, %v1582
  %v2351 = vpack.c.b16 %v1599, %v1583
  %v2352 = vpack.c.b16 %v1600, %v1584
  %v2353 = vpack.c.b16 %v1617, %v1601
  %v2354 = vpack.c.b16 %v1618, %v1602
  %v2355 = vpack.c.b16 %v1619, %v1603
  %v2356 = vpack.c.b16 %v1620, %v1604
  %v2357 = vpack.c.b16 %v1621, %v1605
  %v2358 = vpack.c.b16 %v1622, %v1606
  %v2359 = vpack.c.b16 %v1623, %v1607
  %v2360 = vpack.c.b16 %v1624, %v1608
  %v2361 = vpack.c.b16 %v1625, %v1609
  %v2362 = vpack.c.b16 %v1626, %v1610
  %v2363 = vpack.c.b16 %v1627, %v1611
  %v2364 = vpack.c.b16 %v1628, %v1612
  %v2365 = vpack.c.b16 %v1629, %v1613
  %v2366 = vpack.c.b16 %v1630, %v1614
  %v2367 = vpack.c.b16 %v1631, %v1615
  %v2368 = vpack.c.b16 %v1632, %v1616
  %v2369 = vpack.c.b16 %v1649, %v1633
  %v2370 = vpack.c.b16 %v1650, %v1634
  %v2371 = vpack.c.b16 %v1651, %v1635
  %v2372 = vpack.c.b16 %v1652, %v1636
  %v2373 = vpack.c.b16 %v1653, %v1637
  %v2374 = vpack.c.b16 %v1654, %v1638
  %v2375 = vpack.c.b16 %v1655, %v1639
  %v2376 = vpack.c.b16 %v1656, %v1640
  %v2377 = vpack.c.b16 %v1657, %v1641
  %v2378 = vpack.c.b16 %v1658, %v1642
  %v2379 = vpack.c.b16 %v1659, %v1643
  %v2380 = vpack.c.b16 %v1660, %v1644
  %v2381 = vpack.c.b16 %v1661, %v1645
  %v2382 = vpack.c.b16 %v1662, %v1646
  %v2383 = vpack.c.b16 %v1663, %v1647
  %v2384 = vpack.c.b16 %v1664, %v1648
  %v2385 = vpack.c.b16 %v1681, %v1665
  %v2386 = vpack.c.b16 %v1682, %v1666
  %v2387 = vpack.c.b16 %v1683, %v1667
  %v2388 = vpack.c.b16 %v1684, %v1668
  %v2389 = vpack.c.b16 %v1685, %v1669
  %v2390 = vpack.c.b16 %v1686, %v1670
  %v2391 = vpack.c.b16 %v1687, %v1671
  %v2392 = vpack.c.b16 %v1688, %v1672
  %v2393 = vpack.c.b16 %v1689, %v1673
  %v2394 = vpack.c.b16 %v1690, %v1674
  %v2395 = vpack.c.b16 %v1691, %v1675
  %v2396 = vpack.c.b16 %v1692, %v1676
  %v2397 = vpack.c.b16 %v1693, %v1677
  %v2398 = vpack.c.b16 %v1694, %v1678
  %v2399 = vpack.c.b16 %v1695, %v1679
  %v2400 = vpack.c.b16 %v1696, %v1680
  %v2401 = vpack.c.b16 %v1713, %v1697
  %v2402 = vpack.c.b16 %v1714, %v1698
  %v2403 = vpack.c.b16 %v1715, %v1699
  %v2404 = vpack.c.b16 %v1716, %v1700
  %v2405 = vpack.c.b16 %v1717, %v1701
  %v2406 = vpack.c.b16 %v1718, %v1702
  %v2407 = vpack.c.b16 %v1719, %v1703
  %v2408 = vpack.c.b16 %v1720, %v1704
  %v2409 = vpack.c.b16 %v1721, %v1705
  %v2410 = vpack.c.b16 %v1722, %v1706
  %v2411 = vpack.c.b16 %v1723, %v1707
  %v2412 = vpack.c.b16 %v1724, %v1708
  %v2413 = vpack.c.b16 %v1725, %v1709
  %v2414 = vpack.c.b16 %v1726, %v1710
  %v2415 = vpack.c.b16 %v1727, %v1711
  %v2416 = vpack.c.b16 %v1728, %v1712
  %v2417 = vpack.c.b16 %v1745, %v1729
  %v2418 = vpack.c.b16 %v1746, %v1730
  %v2419 = vpack.c.b16 %v1747, %v1731
  %v2420 = vpack.c.b16 %v1748, %v1732
  %v2421 = vpack.c.b16 %v1749, %v1733
  %v2422 = vpack.c.b16 %v1750, %v1734
  %v2423 = vpack.c.b16 %v1751, %v1735
  %v2424 = vpack.c.b16 %v1752, %v1736
  %v2425 = vpack.c.b16 %v1753, %v1737
  %v2426 = vpack.c.b16 %v1754, %v1738
  %v2427 = vpack.c.b16 %v1755, %v1739
  %v2428 = vpack.c.b16 %v1756, %v1740
  %v2429 = vpack.c.b16 %v1757, %v1741
  %v2430 = vpack.c.b16 %v1758, %v1742
  %v2431 = vpack.c.b16 %v1759, %v1743
  %v2432 = vpack.c.b16 %v1760, %v1744
  %v2433 = vpack.c.b16 %v1777, %v1761
  %v2434 = vpack.c.b16 %v1778, %v1762
  %v2435 = vpack.c.b16 %v1779, %v1763
  %v2436 = vpack.c.b16 %v1780, %v1764
  %v2437 = vpack.c.b16 %v1781, %v1765
  %v2438 = vpack.c.b16 %v1782, %v1766
  %v2439 = vpack.c.b16 %v1783, %v1767
  %v2440 = vpack.c.b16 %v1784, %v1768
  %v2441 = vpack.c.b16 %v1785, %v1769
  %v2442 = vpack.c.b16 %v1786, %v1770
  %v2443 = vpack.c.b16 %v1787, %v1771
  %v2444 = vpack.c.b16 %v1788, %v1772
  %v2445 = vpack.c.b16 %v1789, %v1773
  %v2446 = vpack.c.b16 %v1790, %v1774
  %v2447 = vpack.c.b16 %v1791, %v1775
  %v2448 = vpack.c.b16 %v1792, %v1776
  %v2449 = vpack.c.b16 %v1809, %v1793
  %v2450 = vpack.c.b16 %v1810, %v1794
  %v2451 = vpack.c.b16 %v1811, %v1795
  %v2452 = vpack.c.b16 %v1812, %v1796
  %v2453 = vpack.c.b16 %v1813, %v1797
  %v2454 = vpack.c.b16 %v1814, %v1798
  %v2455 = vpack.c.b16 %v1815, %v1799
  %v2456 = vpack.c.b16 %v1816, %v1800
  %v2457 = vpack.c.b16 %v1817, %v1801
  %v2458 = vpack.c.b16 %v1818, %v1802
  %v2459 = vpack.c.b16 %v1819, %v1803
  %v2460 = vpack.c.b16 %v1820, %v1804
  %v2461 = vpack.c.b16 %v1821, %v1805
  %v2462 = vpack.c.b16 %v1822, %v1806
  %v2463 = vpack.c.b16 %v1823, %v1807
  %v2464 = vpack.c.b16 %v1824, %v1808
  %v2465 = vpack.c.b16 %v1841, %v1825
  %v2466 = vpack.c.b16 %v1842, %v1826
  %v2467 = vpack.c.b16 %v1843, %v1827
  %v2468 = vpack.c.b16 %v1844, %v1828
  %v2469 = vpack.c.b16 %v1845, %v1829
  %v2470 = vpack.c.b16 %v1846, %v1830
  %v2471 = vpack.c.b16 %v1847, %v1831
  %v2472 = vpack.c.b16 %v1848, %v1832
  %v2473 = vpack.c.b16 %v1849, %v1833
  %v2474 = vpack.c.b16 %v1850, %v1834
  %v2475 = vpack.c.b16 %v1851, %v1835
  %v2476 = vpack.c.b16 %v1852, %v1836
  %v2477 = vpack.c.b16 %v1853, %v1837
  %v2478 = vpack.c.b16 %v1854, %v1838
  %v2479 = vpack.c.b16 %v1855, %v1839
  %v2480 = vpack.c.b16 %v1856, %v1840
  %v2481 = vpack.c.b16 %v1873, %v1857
  %v2482 = vpack.c.b16 %v1874, %v1858
  %v2483 = vpack.c.b16 %v1875, %v1859
  %v2484 = vpack.c.b16 %v1876, %v1860
  %v2485 = vpack.c.b16 %v1877, %v1861
  %v2486 = vpack.c.b16 %v1878, %v1862
  %v2487 = vpack.c.b16 %v1879, %v1863
  %v2488 = vpack.c.b16 %v1880, %v1864
  %v2489 = vpack.c.b16 %v1881, %v1865
  %v2490 = vpack.c.b16 %v1882, %v1866
  %v2491 = vpack.c.b16 %v1883, %v1867
  %v2492 = vpack.c.b16 %v1884, %v1868
  %v2493 = vpack.c.b16 %v1885, %v1869
  %v2494 = vpack.c.b16 %v1886, %v1870
  %v2495 = vpack.c.b16 %v1887, %v1871
  %v2496 = vpack.c.b16 %v1888, %v1872
  %v2497 = vpack.c.b16 %v1905, %v1889
  %v2498 = vpack.c.b16 %v1906, %v1890
  %v2499 = vpack.c.b16 %v1907, %v1891
  %v2500 = vpack.c.b16 %v1908, %v1892
  %v2501 = vpack.c.b16 %v1909, %v1893
  %v2502 = vpack.c.b16 %v1910, %v1894
  %v2503 = vpack.c.b16 %v1911, %v1895
  %v2504 = vpack.c.b16 %v1912, %v1896
  %v2505 = vpack.c.b16 %v1913, %v1897
  %v2506 = vpack.c.b16 %v1914, %v1898
  %v2507 = vpack.c.b16 %v1915, %v1899
  %v2508 = vpack.c.b16 %v1916, %v1900
  %v2509 = vpack.c.b16 %v1917, %v1901
  %v2510 = vpack.c.b16 %v1918, %v1902
  %v2511 = vpack.c.b16 %v1919, %v1903
  %v2512 = vpack.c.b16 %v1920, %v1904
  %v2513 = vpack.c.b16 %v1937, %v1921
  %v2514 = vpack.c.b16 %v1938, %v1922
  %v2515 = vpack.c.b16 %v1939, %v1923
  %v2516 = vpack.c.b16 %v1940, %v1924
  %v2517 = vpack.c.b16 %v1941, %v1925
  %v2518 = vpack.c.b16 %v1942, %v1926
  %v2519 = vpack.c.b16 %v1943, %v1927
  %v2520 = vpack.c.b16 %v1944, %v1928
  %v2521 = vpack.c.b16 %v1945, %v1929
  %v2522 = vpack.c.b16 %v1946, %v1930
  %v2523 = vpack.c.b16 %v1947, %v1931
  %v2524 = vpack.c.b16 %v1948, %v1932
  %v2525 = vpack.c.b16 %v1949, %v1933
  %v2526 = vpack.c.b16 %v1950, %v1934
  %v2527 = vpack.c.b16 %v1951, %v1935
  %v2528 = vpack.c.b16 %v1952, %v1936
  %v2529 = vpack.c.b16 %v1969, %v1953
  %v2530 = vpack.c.b16 %v1970, %v1954
  %v2531 = vpack.c.b16 %v1971, %v1955
  %v2532 = vpack.c.b16 %v1972, %v1956
  %v2533 = vpack.c.b16 %v1973, %v1957
  %v2534 = vpack.c.b16 %v1974, %v1958
  %v2535 = vpack.c.b16 %v1975, %v1959
  %v2536 = vpack.c.b16 %v1976, %v1960
  %v2537 = vpack.c.b16 %v1977, %v1961
  %v2538 = vpack.c.b16 %v1978, %v1962
  %v2539 = vpack.c.b16 %v1979, %v1963
  %v2540 = vpack.c.b16 %v1980, %v1964
  %v2541 = vpack.c.b16 %v1981, %v1965
  %v2542 = vpack.c.b16 %v1982, %v1966
  %v2543 = vpack.c.b16 %v1983, %v1967
  %v2544 = vpack.c.b16 %v1984, %v1968
  %v2545 = vpack.c.b16 %v2001, %v1985
  %v2546 = vpack.c.b16 %v2002, %v1986
  %v2547 = vpack.c.b16 %v2003, %v1987
  %v2548 = vpack.c.b16 %v2004, %v1988
  %v2549 = vpack.c.b16 %v2005, %v1989
  %v2550 = vpack.c.b16 %v2006, %v1990
  %v2551 = vpack.c.b16 %v2007, %v1991
  %v2552 = vpack.c.b16 %v2008, %v1992
  %v2553 = vpack.c.b16 %v2009, %v1993
  %v2554 = vpack.c.b16 %v2010, %v1994
  %v2555 = vpack.c.b16 %v2011, %v1995
  %v2556 = vpack.c.b16 %v2012, %v1996
  %v2557 = vpack.c.b16 %v2013, %v1997
  %v2558 = vpack.c.b16 %v2014, %v1998
  %v2559 = vpack.c.b16 %v2015, %v1999
  %v2560 = vpack.c.b16 %v2016, %v2000
  %v2561 = vpack.c.b16 %v2033, %v2017
  %v2562 = vpack.c.b16 %v2034, %v2018
  %v2563 = vpack.c.b16 %v2035, %v2019
  %v2564 = vpack.c.b16 %v2036, %v2020
  %v2565 = vpack.c.b16 %v2037, %v2021
  %v2566 = vpack.c.b16 %v2038, %v2022
  %v2567 = vpack.c.b16 %v2039, %v2023
  %v2568 = vpack.c.b16 %v2040, %v2024
  %v2569 = vpack.c.b16 %v2041, %v2025
  %v2570 = vpack.c.b16 %v2042, %v2026
  %v2571 = vpack.c.b16 %v2043, %v2027
  %v2572 = vpack.c.b16 %v2044, %v2028
  %v2573 = vpack.c.b16 %v2045, %v2029
  %v2574 = vpack.c.b16 %v2046, %v2030
  %v2575 = vpack.c.b16 %v2047, %v2031
  %v2576 = vpack.c.b16 %v2048, %v2032
  %v2577 = vpack.c.b16 %v2065, %v2049
  %v2578 = vpack.c.b16 %v2066, %v2050
  %v2579 = vpack.c.b16 %v2067, %v2051
  %v2580 = vpack.c.b16 %v2068, %v2052
  %v2581 = vpack.c.b16 %v2069, %v2053
  %v2582 = vpack.c.b16 %v2070, %v2054
  %v2583 = vpack.c.b16 %v2071, %v2055
  %v2584 = vpack.c.b16 %v2072, %v2056
  %v2585 = vpack.c.b16 %v2073, %v2057
  %v2586 = vpack.c.b16 %v2074, %v2058
  %v2587 = vpack.c.b16 %v2075, %v2059
  %v2588 = vpack.c.b16 %v2076, %v2060
  %v2589 = vpack.c.b16 %v2077, %v2061
  %v2590 = vpack.c.b16 %v2078, %v2062
  %v2591 = vpack.c.b16 %v2079, %v2063
  %v2592 = vpack.c.b16 %v2080, %v2064
  %3105 = vmatpush.bf16.msra.mxu0 %v2193
  %3106 = vmatpush.bf16.msra.mxu0 %v2177
  %3107 = vmatpush.bf16.msra.mxu0 %v2161
  %3108 = vmatpush.bf16.msra.mxu0 %v2145
  %3109 = vmatpush.bf16.msra.mxu0 %v2129
  %3110 = vmatpush.bf16.msra.mxu0 %v2113
  %3111 = vmatpush.bf16.msra.mxu0 %v2097
  %3112 = vmatpush.bf16.msra.mxu0 %v2081
  %3113 = vmatmul.bf16.gmra.mxu0 %v537
  %v3114 = vpop.f32.mrf.mxu0
  %v3115 = vadd.f32 0.0, %v3114
  %v3116 = vpop.f32.mrf.mxu0
  %3117 = vdwg.mxu0
  %3118 = vmatpush.bf16.msra.mxu0 %v2321
  %3119 = vmatpush.bf16.msra.mxu0 %v2305
  %3120 = vmatpush.bf16.msra.mxu0 %v2289
  %3121 = vmatpush.bf16.msra.mxu0 %v2273
  %3122 = vmatpush.bf16.msra.mxu0 %v2257
  %3123 = vmatpush.bf16.msra.mxu0 %v2241
  %3124 = vmatpush.bf16.msra.mxu0 %v2225
  %3125 = vmatpush.bf16.msra.mxu0 %v2209
  %3126 = vmatmul.bf16.gmra.mxu0 %v538
  %v3127 = vpop.f32.mrf.mxu0
  %v3128 = vadd.f32 %v3115, %v3127
  %v3129 = vpop.f32.mrf.mxu0
  %3130 = vdwg.mxu0
  %3131 = vmatpush.bf16.msra.mxu0 %v2449
  %3132 = vmatpush.bf16.msra.mxu0 %v2433
  %3133 = vmatpush.bf16.msra.mxu0 %v2417
  %3134 = vmatpush.bf16.msra.mxu0 %v2401
  %3135 = vmatpush.bf16.msra.mxu0 %v2385
  %3136 = vmatpush.bf16.msra.mxu0 %v2369
  %3137 = vmatpush.bf16.msra.mxu0 %v2353
  %3138 = vmatpush.bf16.msra.mxu0 %v2337
  %3139 = vmatmul.bf16.gmra.mxu0 %v539
  %v3140 = vpop.f32.mrf.mxu0
  %v3141 = vadd.f32 %v3128, %v3140
  %v3142 = vpop.f32.mrf.mxu0
  %3143 = vdwg.mxu0
  %3144 = vmatpush.bf16.msra.mxu0 %v2577
  %3145 = vmatpush.bf16.msra.mxu0 %v2561
  %3146 = vmatpush.bf16.msra.mxu0 %v2545
  %3147 = vmatpush.bf16.msra.mxu0 %v2529
  %3148 = vmatpush.bf16.msra.mxu0 %v2513
  %3149 = vmatpush.bf16.msra.mxu0 %v2497
  %3150 = vmatpush.bf16.msra.mxu0 %v2481
  %3151 = vmatpush.bf16.msra.mxu0 %v2465
  %3152 = vmatmul.bf16.gmra.mxu0 %v540
  %v3153 = vpop.f32.mrf.mxu0
  %v3154 = vadd.f32 %v3141, %v3153
  %v3155 = vpop.f32.mrf.mxu0
  %3156 = vdwg.mxu0
  %3157 = vmatpush.bf16.msra.mxu0 %v2194
  %3158 = vmatpush.bf16.msra.mxu0 %v2178
  %3159 = vmatpush.bf16.msra.mxu0 %v2162
  %3160 = vmatpush.bf16.msra.mxu0 %v2146
  %3161 = vmatpush.bf16.msra.mxu0 %v2130
  %3162 = vmatpush.bf16.msra.mxu0 %v2114
  %3163 = vmatpush.bf16.msra.mxu0 %v2098
  %3164 = vmatpush.bf16.msra.mxu0 %v2082
  %3165 = vmatmul.bf16.gmra.mxu0 %v537
  %v3166 = vpop.f32.mrf.mxu0
  %v3167 = vadd.f32 0.0, %v3166
  %v3168 = vpop.f32.mrf.mxu0
  %3169 = vdwg.mxu0
  %3170 = vmatpush.bf16.msra.mxu0 %v2322
  %3171 = vmatpush.bf16.msra.mxu0 %v2306
  %3172 = vmatpush.bf16.msra.mxu0 %v2290
  %3173 = vmatpush.bf16.msra.mxu0 %v2274
  %3174 = vmatpush.bf16.msra.mxu0 %v2258
  %3175 = vmatpush.bf16.msra.mxu0 %v2242
  %3176 = vmatpush.bf16.msra.mxu0 %v2226
  %3177 = vmatpush.bf16.msra.mxu0 %v2210
  %3178 = vmatmul.bf16.gmra.mxu0 %v538
  %v3179 = vpop.f32.mrf.mxu0
  %v3180 = vadd.f32 %v3167, %v3179
  %v3181 = vpop.f32.mrf.mxu0
  %3182 = vdwg.mxu0
  %3183 = vmatpush.bf16.msra.mxu0 %v2450
  %3184 = vmatpush.bf16.msra.mxu0 %v2434
  %3185 = vmatpush.bf16.msra.mxu0 %v2418
  %3186 = vmatpush.bf16.msra.mxu0 %v2402
  %3187 = vmatpush.bf16.msra.mxu0 %v2386
  %3188 = vmatpush.bf16.msra.mxu0 %v2370
  %3189 = vmatpush.bf16.msra.mxu0 %v2354
  %3190 = vmatpush.bf16.msra.mxu0 %v2338
  %3191 = vmatmul.bf16.gmra.mxu0 %v539
  %v3192 = vpop.f32.mrf.mxu0
  %v3193 = vadd.f32 %v3180, %v3192
  %v3194 = vpop.f32.mrf.mxu0
  %3195 = vdwg.mxu0
  %3196 = vmatpush.bf16.msra.mxu0 %v2578
  %3197 = vmatpush.bf16.msra.mxu0 %v2562
  %3198 = vmatpush.bf16.msra.mxu0 %v2546
  %3199 = vmatpush.bf16.msra.mxu0 %v2530
  %3200 = vmatpush.bf16.msra.mxu0 %v2514
  %3201 = vmatpush.bf16.msra.mxu0 %v2498
  %3202 = vmatpush.bf16.msra.mxu0 %v2482
  %3203 = vmatpush.bf16.msra.mxu0 %v2466
  %3204 = vmatmul.bf16.gmra.mxu0 %v540
  %v3205 = vpop.f32.mrf.mxu0
  %v3206 = vadd.f32 %v3193, %v3205
  %v3207 = vpop.f32.mrf.mxu0
  %3208 = vdwg.mxu0
  %3209 = vmatpush.bf16.msra.mxu0 %v2195
  %3210 = vmatpush.bf16.msra.mxu0 %v2179
  %3211 = vmatpush.bf16.msra.mxu0 %v2163
  %3212 = vmatpush.bf16.msra.mxu0 %v2147
  %3213 = vmatpush.bf16.msra.mxu0 %v2131
  %3214 = vmatpush.bf16.msra.mxu0 %v2115
  %3215 = vmatpush.bf16.msra.mxu0 %v2099
  %3216 = vmatpush.bf16.msra.mxu0 %v2083
  %3217 = vmatmul.bf16.gmra.mxu0 %v537
  %v3218 = vpop.f32.mrf.mxu0
  %v3219 = vadd.f32 0.0, %v3218
  %v3220 = vpop.f32.mrf.mxu0
  %3221 = vdwg.mxu0
  %3222 = vmatpush.bf16.msra.mxu0 %v2323
  %3223 = vmatpush.bf16.msra.mxu0 %v2307
  %3224 = vmatpush.bf16.msra.mxu0 %v2291
  %3225 = vmatpush.bf16.msra.mxu0 %v2275
  %3226 = vmatpush.bf16.msra.mxu0 %v2259
  %3227 = vmatpush.bf16.msra.mxu0 %v2243
  %3228 = vmatpush.bf16.msra.mxu0 %v2227
  %3229 = vmatpush.bf16.msra.mxu0 %v2211
  %3230 = vmatmul.bf16.gmra.mxu0 %v538
  %v3231 = vpop.f32.mrf.mxu0
  %v3232 = vadd.f32 %v3219, %v3231
  %v3233 = vpop.f32.mrf.mxu0
  %3234 = vdwg.mxu0
  %3235 = vmatpush.bf16.msra.mxu0 %v2451
  %3236 = vmatpush.bf16.msra.mxu0 %v2435
  %3237 = vmatpush.bf16.msra.mxu0 %v2419
  %3238 = vmatpush.bf16.msra.mxu0 %v2403
  %3239 = vmatpush.bf16.msra.mxu0 %v2387
  %3240 = vmatpush.bf16.msra.mxu0 %v2371
  %3241 = vmatpush.bf16.msra.mxu0 %v2355
  %3242 = vmatpush.bf16.msra.mxu0 %v2339
  %3243 = vmatmul.bf16.gmra.mxu0 %v539
  %v3244 = vpop.f32.mrf.mxu0
  %v3245 = vadd.f32 %v3232, %v3244
  %v3246 = vpop.f32.mrf.mxu0
  %3247 = vdwg.mxu0
  %3248 = vmatpush.bf16.msra.mxu0 %v2579
  %3249 = vmatpush.bf16.msra.mxu0 %v2563
  %3250 = vmatpush.bf16.msra.mxu0 %v2547
  %3251 = vmatpush.bf16.msra.mxu0 %v2531
  %3252 = vmatpush.bf16.msra.mxu0 %v2515
  %3253 = vmatpush.bf16.msra.mxu0 %v2499
  %3254 = vmatpush.bf16.msra.mxu0 %v2483
  %3255 = vmatpush.bf16.msra.mxu0 %v2467
  %3256 = vmatmul.bf16.gmra.mxu0 %v540
  %v3257 = vpop.f32.mrf.mxu0
  %v3258 = vadd.f32 %v3245, %v3257
  %v3259 = vpop.f32.mrf.mxu0
  %3260 = vdwg.mxu0
  %3261 = vmatpush.bf16.msra.mxu0 %v2196
  %3262 = vmatpush.bf16.msra.mxu0 %v2180
  %3263 = vmatpush.bf16.msra.mxu0 %v2164
  %3264 = vmatpush.bf16.msra.mxu0 %v2148
  %3265 = vmatpush.bf16.msra.mxu0 %v2132
  %3266 = vmatpush.bf16.msra.mxu0 %v2116
  %3267 = vmatpush.bf16.msra.mxu0 %v2100
  %3268 = vmatpush.bf16.msra.mxu0 %v2084
  %3269 = vmatmul.bf16.gmra.mxu0 %v537
  %v3270 = vpop.f32.mrf.mxu0
  %v3271 = vadd.f32 0.0, %v3270
  %v3272 = vpop.f32.mrf.mxu0
  %3273 = vdwg.mxu0
  %3274 = vmatpush.bf16.msra.mxu0 %v2324
  %3275 = vmatpush.bf16.msra.mxu0 %v2308
  %3276 = vmatpush.bf16.msra.mxu0 %v2292
  %3277 = vmatpush.bf16.msra.mxu0 %v2276
  %3278 = vmatpush.bf16.msra.mxu0 %v2260
  %3279 = vmatpush.bf16.msra.mxu0 %v2244
  %3280 = vmatpush.bf16.msra.mxu0 %v2228
  %3281 = vmatpush.bf16.msra.mxu0 %v2212
  %3282 = vmatmul.bf16.gmra.mxu0 %v538
  %v3283 = vpop.f32.mrf.mxu0
  %v3284 = vadd.f32 %v3271, %v3283
  %v3285 = vpop.f32.mrf.mxu0
  %3286 = vdwg.mxu0
  %3287 = vmatpush.bf16.msra.mxu0 %v2452
  %3288 = vmatpush.bf16.msra.mxu0 %v2436
  %3289 = vmatpush.bf16.msra.mxu0 %v2420
  %3290 = vmatpush.bf16.msra.mxu0 %v2404
  %3291 = vmatpush.bf16.msra.mxu0 %v2388
  %3292 = vmatpush.bf16.msra.mxu0 %v2372
  %3293 = vmatpush.bf16.msra.mxu0 %v2356
  %3294 = vmatpush.bf16.msra.mxu0 %v2340
  %3295 = vmatmul.bf16.gmra.mxu0 %v539
  %v3296 = vpop.f32.mrf.mxu0
  %v3297 = vadd.f32 %v3284, %v3296
  %v3298 = vpop.f32.mrf.mxu0
  %3299 = vdwg.mxu0
  %3300 = vmatpush.bf16.msra.mxu0 %v2580
  %3301 = vmatpush.bf16.msra.mxu0 %v2564
  %3302 = vmatpush.bf16.msra.mxu0 %v2548
  %3303 = vmatpush.bf16.msra.mxu0 %v2532
  %3304 = vmatpush.bf16.msra.mxu0 %v2516
  %3305 = vmatpush.bf16.msra.mxu0 %v2500
  %3306 = vmatpush.bf16.msra.mxu0 %v2484
  %3307 = vmatpush.bf16.msra.mxu0 %v2468
  %3308 = vmatmul.bf16.gmra.mxu0 %v540
  %v3309 = vpop.f32.mrf.mxu0
  %v3310 = vadd.f32 %v3297, %v3309
  %v3311 = vpop.f32.mrf.mxu0
  %3312 = vdwg.mxu0
  %3313 = vmatpush.bf16.msra.mxu0 %v2197
  %3314 = vmatpush.bf16.msra.mxu0 %v2181
  %3315 = vmatpush.bf16.msra.mxu0 %v2165
  %3316 = vmatpush.bf16.msra.mxu0 %v2149
  %3317 = vmatpush.bf16.msra.mxu0 %v2133
  %3318 = vmatpush.bf16.msra.mxu0 %v2117
  %3319 = vmatpush.bf16.msra.mxu0 %v2101
  %3320 = vmatpush.bf16.msra.mxu0 %v2085
  %3321 = vmatmul.bf16.gmra.mxu0 %v537
  %v3322 = vpop.f32.mrf.mxu0
  %v3323 = vadd.f32 0.0, %v3322
  %v3324 = vpop.f32.mrf.mxu0
  %3325 = vdwg.mxu0
  %3326 = vmatpush.bf16.msra.mxu0 %v2325
  %3327 = vmatpush.bf16.msra.mxu0 %v2309
  %3328 = vmatpush.bf16.msra.mxu0 %v2293
  %3329 = vmatpush.bf16.msra.mxu0 %v2277
  %3330 = vmatpush.bf16.msra.mxu0 %v2261
  %3331 = vmatpush.bf16.msra.mxu0 %v2245
  %3332 = vmatpush.bf16.msra.mxu0 %v2229
  %3333 = vmatpush.bf16.msra.mxu0 %v2213
  %3334 = vmatmul.bf16.gmra.mxu0 %v538
  %v3335 = vpop.f32.mrf.mxu0
  %v3336 = vadd.f32 %v3323, %v3335
  %v3337 = vpop.f32.mrf.mxu0
  %3338 = vdwg.mxu0
  %3339 = vmatpush.bf16.msra.mxu0 %v2453
  %3340 = vmatpush.bf16.msra.mxu0 %v2437
  %3341 = vmatpush.bf16.msra.mxu0 %v2421
  %3342 = vmatpush.bf16.msra.mxu0 %v2405
  %3343 = vmatpush.bf16.msra.mxu0 %v2389
  %3344 = vmatpush.bf16.msra.mxu0 %v2373
  %3345 = vmatpush.bf16.msra.mxu0 %v2357
  %3346 = vmatpush.bf16.msra.mxu0 %v2341
  %3347 = vmatmul.bf16.gmra.mxu0 %v539
  %v3348 = vpop.f32.mrf.mxu0
  %v3349 = vadd.f32 %v3336, %v3348
  %v3350 = vpop.f32.mrf.mxu0
  %3351 = vdwg.mxu0
  %3352 = vmatpush.bf16.msra.mxu0 %v2581
  %3353 = vmatpush.bf16.msra.mxu0 %v2565
  %3354 = vmatpush.bf16.msra.mxu0 %v2549
  %3355 = vmatpush.bf16.msra.mxu0 %v2533
  %3356 = vmatpush.bf16.msra.mxu0 %v2517
  %3357 = vmatpush.bf16.msra.mxu0 %v2501
  %3358 = vmatpush.bf16.msra.mxu0 %v2485
  %3359 = vmatpush.bf16.msra.mxu0 %v2469
  %3360 = vmatmul.bf16.gmra.mxu0 %v540
  %v3361 = vpop.f32.mrf.mxu0
  %v3362 = vadd.f32 %v3349, %v3361
  %v3363 = vpop.f32.mrf.mxu0
  %3364 = vdwg.mxu0
  %3365 = vmatpush.bf16.msra.mxu0 %v2198
  %3366 = vmatpush.bf16.msra.mxu0 %v2182
  %3367 = vmatpush.bf16.msra.mxu0 %v2166
  %3368 = vmatpush.bf16.msra.mxu0 %v2150
  %3369 = vmatpush.bf16.msra.mxu0 %v2134
  %3370 = vmatpush.bf16.msra.mxu0 %v2118
  %3371 = vmatpush.bf16.msra.mxu0 %v2102
  %3372 = vmatpush.bf16.msra.mxu0 %v2086
  %3373 = vmatmul.bf16.gmra.mxu0 %v537
  %v3374 = vpop.f32.mrf.mxu0
  %v3375 = vadd.f32 0.0, %v3374
  %v3376 = vpop.f32.mrf.mxu0
  %3377 = vdwg.mxu0
  %3378 = vmatpush.bf16.msra.mxu0 %v2326
  %3379 = vmatpush.bf16.msra.mxu0 %v2310
  %3380 = vmatpush.bf16.msra.mxu0 %v2294
  %3381 = vmatpush.bf16.msra.mxu0 %v2278
  %3382 = vmatpush.bf16.msra.mxu0 %v2262
  %3383 = vmatpush.bf16.msra.mxu0 %v2246
  %3384 = vmatpush.bf16.msra.mxu0 %v2230
  %3385 = vmatpush.bf16.msra.mxu0 %v2214
  %3386 = vmatmul.bf16.gmra.mxu0 %v538
  %v3387 = vpop.f32.mrf.mxu0
  %v3388 = vadd.f32 %v3375, %v3387
  %v3389 = vpop.f32.mrf.mxu0
  %3390 = vdwg.mxu0
  %3391 = vmatpush.bf16.msra.mxu0 %v2454
  %3392 = vmatpush.bf16.msra.mxu0 %v2438
  %3393 = vmatpush.bf16.msra.mxu0 %v2422
  %3394 = vmatpush.bf16.msra.mxu0 %v2406
  %3395 = vmatpush.bf16.msra.mxu0 %v2390
  %3396 = vmatpush.bf16.msra.mxu0 %v2374
  %3397 = vmatpush.bf16.msra.mxu0 %v2358
  %3398 = vmatpush.bf16.msra.mxu0 %v2342
  %3399 = vmatmul.bf16.gmra.mxu0 %v539
  %v3400 = vpop.f32.mrf.mxu0
  %v3401 = vadd.f32 %v3388, %v3400
  %v3402 = vpop.f32.mrf.mxu0
  %3403 = vdwg.mxu0
  %3404 = vmatpush.bf16.msra.mxu0 %v2582
  %3405 = vmatpush.bf16.msra.mxu0 %v2566
  %3406 = vmatpush.bf16.msra.mxu0 %v2550
  %3407 = vmatpush.bf16.msra.mxu0 %v2534
  %3408 = vmatpush.bf16.msra.mxu0 %v2518
  %3409 = vmatpush.bf16.msra.mxu0 %v2502
  %3410 = vmatpush.bf16.msra.mxu0 %v2486
  %3411 = vmatpush.bf16.msra.mxu0 %v2470
  %3412 = vmatmul.bf16.gmra.mxu0 %v540
  %v3413 = vpop.f32.mrf.mxu0
  %v3414 = vadd.f32 %v3401, %v3413
  %v3415 = vpop.f32.mrf.mxu0
  %3416 = vdwg.mxu0
  %3417 = vmatpush.bf16.msra.mxu0 %v2199
  %3418 = vmatpush.bf16.msra.mxu0 %v2183
  %3419 = vmatpush.bf16.msra.mxu0 %v2167
  %3420 = vmatpush.bf16.msra.mxu0 %v2151
  %3421 = vmatpush.bf16.msra.mxu0 %v2135
  %3422 = vmatpush.bf16.msra.mxu0 %v2119
  %3423 = vmatpush.bf16.msra.mxu0 %v2103
  %3424 = vmatpush.bf16.msra.mxu0 %v2087
  %3425 = vmatmul.bf16.gmra.mxu0 %v537
  %v3426 = vpop.f32.mrf.mxu0
  %v3427 = vadd.f32 0.0, %v3426
  %v3428 = vpop.f32.mrf.mxu0
  %3429 = vdwg.mxu0
  %3430 = vmatpush.bf16.msra.mxu0 %v2327
  %3431 = vmatpush.bf16.msra.mxu0 %v2311
  %3432 = vmatpush.bf16.msra.mxu0 %v2295
  %3433 = vmatpush.bf16.msra.mxu0 %v2279
  %3434 = vmatpush.bf16.msra.mxu0 %v2263
  %3435 = vmatpush.bf16.msra.mxu0 %v2247
  %3436 = vmatpush.bf16.msra.mxu0 %v2231
  %3437 = vmatpush.bf16.msra.mxu0 %v2215
  %3438 = vmatmul.bf16.gmra.mxu0 %v538
  %v3439 = vpop.f32.mrf.mxu0
  %v3440 = vadd.f32 %v3427, %v3439
  %v3441 = vpop.f32.mrf.mxu0
  %3442 = vdwg.mxu0
  %3443 = vmatpush.bf16.msra.mxu0 %v2455
  %3444 = vmatpush.bf16.msra.mxu0 %v2439
  %3445 = vmatpush.bf16.msra.mxu0 %v2423
  %3446 = vmatpush.bf16.msra.mxu0 %v2407
  %3447 = vmatpush.bf16.msra.mxu0 %v2391
  %3448 = vmatpush.bf16.msra.mxu0 %v2375
  %3449 = vmatpush.bf16.msra.mxu0 %v2359
  %3450 = vmatpush.bf16.msra.mxu0 %v2343
  %3451 = vmatmul.bf16.gmra.mxu0 %v539
  %v3452 = vpop.f32.mrf.mxu0
  %v3453 = vadd.f32 %v3440, %v3452
  %v3454 = vpop.f32.mrf.mxu0
  %3455 = vdwg.mxu0
  %3456 = vmatpush.bf16.msra.mxu0 %v2583
  %3457 = vmatpush.bf16.msra.mxu0 %v2567
  %3458 = vmatpush.bf16.msra.mxu0 %v2551
  %3459 = vmatpush.bf16.msra.mxu0 %v2535
  %3460 = vmatpush.bf16.msra.mxu0 %v2519
  %3461 = vmatpush.bf16.msra.mxu0 %v2503
  %3462 = vmatpush.bf16.msra.mxu0 %v2487
  %3463 = vmatpush.bf16.msra.mxu0 %v2471
  %3464 = vmatmul.bf16.gmra.mxu0 %v540
  %v3465 = vpop.f32.mrf.mxu0
  %v3466 = vadd.f32 %v3453, %v3465
  %v3467 = vpop.f32.mrf.mxu0
  %3468 = vdwg.mxu0
  %3469 = vmatpush.bf16.msra.mxu0 %v2200
  %3470 = vmatpush.bf16.msra.mxu0 %v2184
  %3471 = vmatpush.bf16.msra.mxu0 %v2168
  %3472 = vmatpush.bf16.msra.mxu0 %v2152
  %3473 = vmatpush.bf16.msra.mxu0 %v2136
  %3474 = vmatpush.bf16.msra.mxu0 %v2120
  %3475 = vmatpush.bf16.msra.mxu0 %v2104
  %3476 = vmatpush.bf16.msra.mxu0 %v2088
  %3477 = vmatmul.bf16.gmra.mxu0 %v537
  %v3478 = vpop.f32.mrf.mxu0
  %v3479 = vadd.f32 0.0, %v3478
  %v3480 = vpop.f32.mrf.mxu0
  %3481 = vdwg.mxu0
  %3482 = vmatpush.bf16.msra.mxu0 %v2328
  %3483 = vmatpush.bf16.msra.mxu0 %v2312
  %3484 = vmatpush.bf16.msra.mxu0 %v2296
  %3485 = vmatpush.bf16.msra.mxu0 %v2280
  %3486 = vmatpush.bf16.msra.mxu0 %v2264
  %3487 = vmatpush.bf16.msra.mxu0 %v2248
  %3488 = vmatpush.bf16.msra.mxu0 %v2232
  %3489 = vmatpush.bf16.msra.mxu0 %v2216
  %3490 = vmatmul.bf16.gmra.mxu0 %v538
  %v3491 = vpop.f32.mrf.mxu0
  %v3492 = vadd.f32 %v3479, %v3491
  %v3493 = vpop.f32.mrf.mxu0
  %3494 = vdwg.mxu0
  %3495 = vmatpush.bf16.msra.mxu0 %v2456
  %3496 = vmatpush.bf16.msra.mxu0 %v2440
  %3497 = vmatpush.bf16.msra.mxu0 %v2424
  %3498 = vmatpush.bf16.msra.mxu0 %v2408
  %3499 = vmatpush.bf16.msra.mxu0 %v2392
  %3500 = vmatpush.bf16.msra.mxu0 %v2376
  %3501 = vmatpush.bf16.msra.mxu0 %v2360
  %3502 = vmatpush.bf16.msra.mxu0 %v2344
  %3503 = vmatmul.bf16.gmra.mxu0 %v539
  %v3504 = vpop.f32.mrf.mxu0
  %v3505 = vadd.f32 %v3492, %v3504
  %v3506 = vpop.f32.mrf.mxu0
  %3507 = vdwg.mxu0
  %3508 = vmatpush.bf16.msra.mxu0 %v2584
  %3509 = vmatpush.bf16.msra.mxu0 %v2568
  %3510 = vmatpush.bf16.msra.mxu0 %v2552
  %3511 = vmatpush.bf16.msra.mxu0 %v2536
  %3512 = vmatpush.bf16.msra.mxu0 %v2520
  %3513 = vmatpush.bf16.msra.mxu0 %v2504
  %3514 = vmatpush.bf16.msra.mxu0 %v2488
  %3515 = vmatpush.bf16.msra.mxu0 %v2472
  %3516 = vmatmul.bf16.gmra.mxu0 %v540
  %v3517 = vpop.f32.mrf.mxu0
  %v3518 = vadd.f32 %v3505, %v3517
  %v3519 = vpop.f32.mrf.mxu0
  %3520 = vdwg.mxu0
  %3521 = vmatpush.bf16.msra.mxu0 %v2201
  %3522 = vmatpush.bf16.msra.mxu0 %v2185
  %3523 = vmatpush.bf16.msra.mxu0 %v2169
  %3524 = vmatpush.bf16.msra.mxu0 %v2153
  %3525 = vmatpush.bf16.msra.mxu0 %v2137
  %3526 = vmatpush.bf16.msra.mxu0 %v2121
  %3527 = vmatpush.bf16.msra.mxu0 %v2105
  %3528 = vmatpush.bf16.msra.mxu0 %v2089
  %3529 = vmatmul.bf16.gmra.mxu0 %v537
  %v3530 = vpop.f32.mrf.mxu0
  %v3531 = vadd.f32 0.0, %v3530
  %v3532 = vpop.f32.mrf.mxu0
  %3533 = vdwg.mxu0
  %3534 = vmatpush.bf16.msra.mxu0 %v2329
  %3535 = vmatpush.bf16.msra.mxu0 %v2313
  %3536 = vmatpush.bf16.msra.mxu0 %v2297
  %3537 = vmatpush.bf16.msra.mxu0 %v2281
  %3538 = vmatpush.bf16.msra.mxu0 %v2265
  %3539 = vmatpush.bf16.msra.mxu0 %v2249
  %3540 = vmatpush.bf16.msra.mxu0 %v2233
  %3541 = vmatpush.bf16.msra.mxu0 %v2217
  %3542 = vmatmul.bf16.gmra.mxu0 %v538
  %v3543 = vpop.f32.mrf.mxu0
  %v3544 = vadd.f32 %v3531, %v3543
  %v3545 = vpop.f32.mrf.mxu0
  %3546 = vdwg.mxu0
  %3547 = vmatpush.bf16.msra.mxu0 %v2457
  %3548 = vmatpush.bf16.msra.mxu0 %v2441
  %3549 = vmatpush.bf16.msra.mxu0 %v2425
  %3550 = vmatpush.bf16.msra.mxu0 %v2409
  %3551 = vmatpush.bf16.msra.mxu0 %v2393
  %3552 = vmatpush.bf16.msra.mxu0 %v2377
  %3553 = vmatpush.bf16.msra.mxu0 %v2361
  %3554 = vmatpush.bf16.msra.mxu0 %v2345
  %3555 = vmatmul.bf16.gmra.mxu0 %v539
  %v3556 = vpop.f32.mrf.mxu0
  %v3557 = vadd.f32 %v3544, %v3556
  %v3558 = vpop.f32.mrf.mxu0
  %3559 = vdwg.mxu0
  %3560 = vmatpush.bf16.msra.mxu0 %v2585
  %3561 = vmatpush.bf16.msra.mxu0 %v2569
  %3562 = vmatpush.bf16.msra.mxu0 %v2553
  %3563 = vmatpush.bf16.msra.mxu0 %v2537
  %3564 = vmatpush.bf16.msra.mxu0 %v2521
  %3565 = vmatpush.bf16.msra.mxu0 %v2505
  %3566 = vmatpush.bf16.msra.mxu0 %v2489
  %3567 = vmatpush.bf16.msra.mxu0 %v2473
  %3568 = vmatmul.bf16.gmra.mxu0 %v540
  %v3569 = vpop.f32.mrf.mxu0
  %v3570 = vadd.f32 %v3557, %v3569
  %v3571 = vpop.f32.mrf.mxu0
  %3572 = vdwg.mxu0
  %3573 = vmatpush.bf16.msra.mxu0 %v2202
  %3574 = vmatpush.bf16.msra.mxu0 %v2186
  %3575 = vmatpush.bf16.msra.mxu0 %v2170
  %3576 = vmatpush.bf16.msra.mxu0 %v2154
  %3577 = vmatpush.bf16.msra.mxu0 %v2138
  %3578 = vmatpush.bf16.msra.mxu0 %v2122
  %3579 = vmatpush.bf16.msra.mxu0 %v2106
  %3580 = vmatpush.bf16.msra.mxu0 %v2090
  %3581 = vmatmul.bf16.gmra.mxu0 %v537
  %v3582 = vpop.f32.mrf.mxu0
  %v3583 = vadd.f32 0.0, %v3582
  %v3584 = vpop.f32.mrf.mxu0
  %3585 = vdwg.mxu0
  %3586 = vmatpush.bf16.msra.mxu0 %v2330
  %3587 = vmatpush.bf16.msra.mxu0 %v2314
  %3588 = vmatpush.bf16.msra.mxu0 %v2298
  %3589 = vmatpush.bf16.msra.mxu0 %v2282
  %3590 = vmatpush.bf16.msra.mxu0 %v2266
  %3591 = vmatpush.bf16.msra.mxu0 %v2250
  %3592 = vmatpush.bf16.msra.mxu0 %v2234
  %3593 = vmatpush.bf16.msra.mxu0 %v2218
  %3594 = vmatmul.bf16.gmra.mxu0 %v538
  %v3595 = vpop.f32.mrf.mxu0
  %v3596 = vadd.f32 %v3583, %v3595
  %v3597 = vpop.f32.mrf.mxu0
  %3598 = vdwg.mxu0
  %3599 = vmatpush.bf16.msra.mxu0 %v2458
  %3600 = vmatpush.bf16.msra.mxu0 %v2442
  %3601 = vmatpush.bf16.msra.mxu0 %v2426
  %3602 = vmatpush.bf16.msra.mxu0 %v2410
  %3603 = vmatpush.bf16.msra.mxu0 %v2394
  %3604 = vmatpush.bf16.msra.mxu0 %v2378
  %3605 = vmatpush.bf16.msra.mxu0 %v2362
  %3606 = vmatpush.bf16.msra.mxu0 %v2346
  %3607 = vmatmul.bf16.gmra.mxu0 %v539
  %v3608 = vpop.f32.mrf.mxu0
  %v3609 = vadd.f32 %v3596, %v3608
  %v3610 = vpop.f32.mrf.mxu0
  %3611 = vdwg.mxu0
  %3612 = vmatpush.bf16.msra.mxu0 %v2586
  %3613 = vmatpush.bf16.msra.mxu0 %v2570
  %3614 = vmatpush.bf16.msra.mxu0 %v2554
  %3615 = vmatpush.bf16.msra.mxu0 %v2538
  %3616 = vmatpush.bf16.msra.mxu0 %v2522
  %3617 = vmatpush.bf16.msra.mxu0 %v2506
  %3618 = vmatpush.bf16.msra.mxu0 %v2490
  %3619 = vmatpush.bf16.msra.mxu0 %v2474
  %3620 = vmatmul.bf16.gmra.mxu0 %v540
  %v3621 = vpop.f32.mrf.mxu0
  %v3622 = vadd.f32 %v3609, %v3621
  %v3623 = vpop.f32.mrf.mxu0
  %3624 = vdwg.mxu0
  %3625 = vmatpush.bf16.msra.mxu0 %v2203
  %3626 = vmatpush.bf16.msra.mxu0 %v2187
  %3627 = vmatpush.bf16.msra.mxu0 %v2171
  %3628 = vmatpush.bf16.msra.mxu0 %v2155
  %3629 = vmatpush.bf16.msra.mxu0 %v2139
  %3630 = vmatpush.bf16.msra.mxu0 %v2123
  %3631 = vmatpush.bf16.msra.mxu0 %v2107
  %3632 = vmatpush.bf16.msra.mxu0 %v2091
  %3633 = vmatmul.bf16.gmra.mxu0 %v537
  %v3634 = vpop.f32.mrf.mxu0
  %v3635 = vadd.f32 0.0, %v3634
  %v3636 = vpop.f32.mrf.mxu0
  %3637 = vdwg.mxu0
  %3638 = vmatpush.bf16.msra.mxu0 %v2331
  %3639 = vmatpush.bf16.msra.mxu0 %v2315
  %3640 = vmatpush.bf16.msra.mxu0 %v2299
  %3641 = vmatpush.bf16.msra.mxu0 %v2283
  %3642 = vmatpush.bf16.msra.mxu0 %v2267
  %3643 = vmatpush.bf16.msra.mxu0 %v2251
  %3644 = vmatpush.bf16.msra.mxu0 %v2235
  %3645 = vmatpush.bf16.msra.mxu0 %v2219
  %3646 = vmatmul.bf16.gmra.mxu0 %v538
  %v3647 = vpop.f32.mrf.mxu0
  %v3648 = vadd.f32 %v3635, %v3647
  %v3649 = vpop.f32.mrf.mxu0
  %3650 = vdwg.mxu0
  %3651 = vmatpush.bf16.msra.mxu0 %v2459
  %3652 = vmatpush.bf16.msra.mxu0 %v2443
  %3653 = vmatpush.bf16.msra.mxu0 %v2427
  %3654 = vmatpush.bf16.msra.mxu0 %v2411
  %3655 = vmatpush.bf16.msra.mxu0 %v2395
  %3656 = vmatpush.bf16.msra.mxu0 %v2379
  %3657 = vmatpush.bf16.msra.mxu0 %v2363
  %3658 = vmatpush.bf16.msra.mxu0 %v2347
  %3659 = vmatmul.bf16.gmra.mxu0 %v539
  %v3660 = vpop.f32.mrf.mxu0
  %v3661 = vadd.f32 %v3648, %v3660
  %v3662 = vpop.f32.mrf.mxu0
  %3663 = vdwg.mxu0
  %3664 = vmatpush.bf16.msra.mxu0 %v2587
  %3665 = vmatpush.bf16.msra.mxu0 %v2571
  %3666 = vmatpush.bf16.msra.mxu0 %v2555
  %3667 = vmatpush.bf16.msra.mxu0 %v2539
  %3668 = vmatpush.bf16.msra.mxu0 %v2523
  %3669 = vmatpush.bf16.msra.mxu0 %v2507
  %3670 = vmatpush.bf16.msra.mxu0 %v2491
  %3671 = vmatpush.bf16.msra.mxu0 %v2475
  %3672 = vmatmul.bf16.gmra.mxu0 %v540
  %v3673 = vpop.f32.mrf.mxu0
  %v3674 = vadd.f32 %v3661, %v3673
  %v3675 = vpop.f32.mrf.mxu0
  %3676 = vdwg.mxu0
  %3677 = vmatpush.bf16.msra.mxu0 %v2204
  %3678 = vmatpush.bf16.msra.mxu0 %v2188
  %3679 = vmatpush.bf16.msra.mxu0 %v2172
  %3680 = vmatpush.bf16.msra.mxu0 %v2156
  %3681 = vmatpush.bf16.msra.mxu0 %v2140
  %3682 = vmatpush.bf16.msra.mxu0 %v2124
  %3683 = vmatpush.bf16.msra.mxu0 %v2108
  %3684 = vmatpush.bf16.msra.mxu0 %v2092
  %3685 = vmatmul.bf16.gmra.mxu0 %v537
  %v3686 = vpop.f32.mrf.mxu0
  %v3687 = vadd.f32 0.0, %v3686
  %v3688 = vpop.f32.mrf.mxu0
  %3689 = vdwg.mxu0
  %3690 = vmatpush.bf16.msra.mxu0 %v2332
  %3691 = vmatpush.bf16.msra.mxu0 %v2316
  %3692 = vmatpush.bf16.msra.mxu0 %v2300
  %3693 = vmatpush.bf16.msra.mxu0 %v2284
  %3694 = vmatpush.bf16.msra.mxu0 %v2268
  %3695 = vmatpush.bf16.msra.mxu0 %v2252
  %3696 = vmatpush.bf16.msra.mxu0 %v2236
  %3697 = vmatpush.bf16.msra.mxu0 %v2220
  %3698 = vmatmul.bf16.gmra.mxu0 %v538
  %v3699 = vpop.f32.mrf.mxu0
  %v3700 = vadd.f32 %v3687, %v3699
  %v3701 = vpop.f32.mrf.mxu0
  %3702 = vdwg.mxu0
  %3703 = vmatpush.bf16.msra.mxu0 %v2460
  %3704 = vmatpush.bf16.msra.mxu0 %v2444
  %3705 = vmatpush.bf16.msra.mxu0 %v2428
  %3706 = vmatpush.bf16.msra.mxu0 %v2412
  %3707 = vmatpush.bf16.msra.mxu0 %v2396
  %3708 = vmatpush.bf16.msra.mxu0 %v2380
  %3709 = vmatpush.bf16.msra.mxu0 %v2364
  %3710 = vmatpush.bf16.msra.mxu0 %v2348
  %3711 = vmatmul.bf16.gmra.mxu0 %v539
  %v3712 = vpop.f32.mrf.mxu0
  %v3713 = vadd.f32 %v3700, %v3712
  %v3714 = vpop.f32.mrf.mxu0
  %3715 = vdwg.mxu0
  %3716 = vmatpush.bf16.msra.mxu0 %v2588
  %3717 = vmatpush.bf16.msra.mxu0 %v2572
  %3718 = vmatpush.bf16.msra.mxu0 %v2556
  %3719 = vmatpush.bf16.msra.mxu0 %v2540
  %3720 = vmatpush.bf16.msra.mxu0 %v2524
  %3721 = vmatpush.bf16.msra.mxu0 %v2508
  %3722 = vmatpush.bf16.msra.mxu0 %v2492
  %3723 = vmatpush.bf16.msra.mxu0 %v2476
  %3724 = vmatmul.bf16.gmra.mxu0 %v540
  %v3725 = vpop.f32.mrf.mxu0
  %v3726 = vadd.f32 %v3713, %v3725
  %v3727 = vpop.f32.mrf.mxu0
  %3728 = vdwg.mxu0
  %3729 = vmatpush.bf16.msra.mxu0 %v2205
  %3730 = vmatpush.bf16.msra.mxu0 %v2189
  %3731 = vmatpush.bf16.msra.mxu0 %v2173
  %3732 = vmatpush.bf16.msra.mxu0 %v2157
  %3733 = vmatpush.bf16.msra.mxu0 %v2141
  %3734 = vmatpush.bf16.msra.mxu0 %v2125
  %3735 = vmatpush.bf16.msra.mxu0 %v2109
  %3736 = vmatpush.bf16.msra.mxu0 %v2093
  %3737 = vmatmul.bf16.gmra.mxu0 %v537
  %v3738 = vpop.f32.mrf.mxu0
  %v3739 = vadd.f32 0.0, %v3738
  %v3740 = vpop.f32.mrf.mxu0
  %3741 = vdwg.mxu0
  %3742 = vmatpush.bf16.msra.mxu0 %v2333
  %3743 = vmatpush.bf16.msra.mxu0 %v2317
  %3744 = vmatpush.bf16.msra.mxu0 %v2301
  %3745 = vmatpush.bf16.msra.mxu0 %v2285
  %3746 = vmatpush.bf16.msra.mxu0 %v2269
  %3747 = vmatpush.bf16.msra.mxu0 %v2253
  %3748 = vmatpush.bf16.msra.mxu0 %v2237
  %3749 = vmatpush.bf16.msra.mxu0 %v2221
  %3750 = vmatmul.bf16.gmra.mxu0 %v538
  %v3751 = vpop.f32.mrf.mxu0
  %v3752 = vadd.f32 %v3739, %v3751
  %v3753 = vpop.f32.mrf.mxu0
  %3754 = vdwg.mxu0
  %3755 = vmatpush.bf16.msra.mxu0 %v2461
  %3756 = vmatpush.bf16.msra.mxu0 %v2445
  %3757 = vmatpush.bf16.msra.mxu0 %v2429
  %3758 = vmatpush.bf16.msra.mxu0 %v2413
  %3759 = vmatpush.bf16.msra.mxu0 %v2397
  %3760 = vmatpush.bf16.msra.mxu0 %v2381
  %3761 = vmatpush.bf16.msra.mxu0 %v2365
  %3762 = vmatpush.bf16.msra.mxu0 %v2349
  %3763 = vmatmul.bf16.gmra.mxu0 %v539
  %v3764 = vpop.f32.mrf.mxu0
  %v3765 = vadd.f32 %v3752, %v3764
  %v3766 = vpop.f32.mrf.mxu0
  %3767 = vdwg.mxu0
  %3768 = vmatpush.bf16.msra.mxu0 %v2589
  %3769 = vmatpush.bf16.msra.mxu0 %v2573
  %3770 = vmatpush.bf16.msra.mxu0 %v2557
  %3771 = vmatpush.bf16.msra.mxu0 %v2541
  %3772 = vmatpush.bf16.msra.mxu0 %v2525
  %3773 = vmatpush.bf16.msra.mxu0 %v2509
  %3774 = vmatpush.bf16.msra.mxu0 %v2493
  %3775 = vmatpush.bf16.msra.mxu0 %v2477
  %3776 = vmatmul.bf16.gmra.mxu0 %v540
  %v3777 = vpop.f32.mrf.mxu0
  %v3778 = vadd.f32 %v3765, %v3777
  %v3779 = vpop.f32.mrf.mxu0
  %3780 = vdwg.mxu0
  %3781 = vmatpush.bf16.msra.mxu0 %v2206
  %3782 = vmatpush.bf16.msra.mxu0 %v2190
  %3783 = vmatpush.bf16.msra.mxu0 %v2174
  %3784 = vmatpush.bf16.msra.mxu0 %v2158
  %3785 = vmatpush.bf16.msra.mxu0 %v2142
  %3786 = vmatpush.bf16.msra.mxu0 %v2126
  %3787 = vmatpush.bf16.msra.mxu0 %v2110
  %3788 = vmatpush.bf16.msra.mxu0 %v2094
  %3789 = vmatmul.bf16.gmra.mxu0 %v537
  %v3790 = vpop.f32.mrf.mxu0
  %v3791 = vadd.f32 0.0, %v3790
  %v3792 = vpop.f32.mrf.mxu0
  %3793 = vdwg.mxu0
  %3794 = vmatpush.bf16.msra.mxu0 %v2334
  %3795 = vmatpush.bf16.msra.mxu0 %v2318
  %3796 = vmatpush.bf16.msra.mxu0 %v2302
  %3797 = vmatpush.bf16.msra.mxu0 %v2286
  %3798 = vmatpush.bf16.msra.mxu0 %v2270
  %3799 = vmatpush.bf16.msra.mxu0 %v2254
  %3800 = vmatpush.bf16.msra.mxu0 %v2238
  %3801 = vmatpush.bf16.msra.mxu0 %v2222
  %3802 = vmatmul.bf16.gmra.mxu0 %v538
  %v3803 = vpop.f32.mrf.mxu0
  %v3804 = vadd.f32 %v3791, %v3803
  %v3805 = vpop.f32.mrf.mxu0
  %3806 = vdwg.mxu0
  %3807 = vmatpush.bf16.msra.mxu0 %v2462
  %3808 = vmatpush.bf16.msra.mxu0 %v2446
  %3809 = vmatpush.bf16.msra.mxu0 %v2430
  %3810 = vmatpush.bf16.msra.mxu0 %v2414
  %3811 = vmatpush.bf16.msra.mxu0 %v2398
  %3812 = vmatpush.bf16.msra.mxu0 %v2382
  %3813 = vmatpush.bf16.msra.mxu0 %v2366
  %3814 = vmatpush.bf16.msra.mxu0 %v2350
  %3815 = vmatmul.bf16.gmra.mxu0 %v539
  %v3816 = vpop.f32.mrf.mxu0
  %v3817 = vadd.f32 %v3804, %v3816
  %v3818 = vpop.f32.mrf.mxu0
  %3819 = vdwg.mxu0
  %3820 = vmatpush.bf16.msra.mxu0 %v2590
  %3821 = vmatpush.bf16.msra.mxu0 %v2574
  %3822 = vmatpush.bf16.msra.mxu0 %v2558
  %3823 = vmatpush.bf16.msra.mxu0 %v2542
  %3824 = vmatpush.bf16.msra.mxu0 %v2526
  %3825 = vmatpush.bf16.msra.mxu0 %v2510
  %3826 = vmatpush.bf16.msra.mxu0 %v2494
  %3827 = vmatpush.bf16.msra.mxu0 %v2478
  %3828 = vmatmul.bf16.gmra.mxu0 %v540
  %v3829 = vpop.f32.mrf.mxu0
  %v3830 = vadd.f32 %v3817, %v3829
  %v3831 = vpop.f32.mrf.mxu0
  %3832 = vdwg.mxu0
  %3833 = vmatpush.bf16.msra.mxu0 %v2207
  %3834 = vmatpush.bf16.msra.mxu0 %v2191
  %3835 = vmatpush.bf16.msra.mxu0 %v2175
  %3836 = vmatpush.bf16.msra.mxu0 %v2159
  %3837 = vmatpush.bf16.msra.mxu0 %v2143
  %3838 = vmatpush.bf16.msra.mxu0 %v2127
  %3839 = vmatpush.bf16.msra.mxu0 %v2111
  %3840 = vmatpush.bf16.msra.mxu0 %v2095
  %3841 = vmatmul.bf16.gmra.mxu0 %v537
  %v3842 = vpop.f32.mrf.mxu0
  %v3843 = vadd.f32 0.0, %v3842
  %v3844 = vpop.f32.mrf.mxu0
  %3845 = vdwg.mxu0
  %3846 = vmatpush.bf16.msra.mxu0 %v2335
  %3847 = vmatpush.bf16.msra.mxu0 %v2319
  %3848 = vmatpush.bf16.msra.mxu0 %v2303
  %3849 = vmatpush.bf16.msra.mxu0 %v2287
  %3850 = vmatpush.bf16.msra.mxu0 %v2271
  %3851 = vmatpush.bf16.msra.mxu0 %v2255
  %3852 = vmatpush.bf16.msra.mxu0 %v2239
  %3853 = vmatpush.bf16.msra.mxu0 %v2223
  %3854 = vmatmul.bf16.gmra.mxu0 %v538
  %v3855 = vpop.f32.mrf.mxu0
  %v3856 = vadd.f32 %v3843, %v3855
  %v3857 = vpop.f32.mrf.mxu0
  %3858 = vdwg.mxu0
  %3859 = vmatpush.bf16.msra.mxu0 %v2463
  %3860 = vmatpush.bf16.msra.mxu0 %v2447
  %3861 = vmatpush.bf16.msra.mxu0 %v2431
  %3862 = vmatpush.bf16.msra.mxu0 %v2415
  %3863 = vmatpush.bf16.msra.mxu0 %v2399
  %3864 = vmatpush.bf16.msra.mxu0 %v2383
  %3865 = vmatpush.bf16.msra.mxu0 %v2367
  %3866 = vmatpush.bf16.msra.mxu0 %v2351
  %3867 = vmatmul.bf16.gmra.mxu0 %v539
  %v3868 = vpop.f32.mrf.mxu0
  %v3869 = vadd.f32 %v3856, %v3868
  %v3870 = vpop.f32.mrf.mxu0
  %3871 = vdwg.mxu0
  %3872 = vmatpush.bf16.msra.mxu0 %v2591
  %3873 = vmatpush.bf16.msra.mxu0 %v2575
  %3874 = vmatpush.bf16.msra.mxu0 %v2559
  %3875 = vmatpush.bf16.msra.mxu0 %v2543
  %3876 = vmatpush.bf16.msra.mxu0 %v2527
  %3877 = vmatpush.bf16.msra.mxu0 %v2511
  %3878 = vmatpush.bf16.msra.mxu0 %v2495
  %3879 = vmatpush.bf16.msra.mxu0 %v2479
  %3880 = vmatmul.bf16.gmra.mxu0 %v540
  %v3881 = vpop.f32.mrf.mxu0
  %v3882 = vadd.f32 %v3869, %v3881
  %v3883 = vpop.f32.mrf.mxu0
  %3884 = vdwg.mxu0
  %3885 = vmatpush.bf16.msra.mxu0 %v2208
  %3886 = vmatpush.bf16.msra.mxu0 %v2192
  %3887 = vmatpush.bf16.msra.mxu0 %v2176
  %3888 = vmatpush.bf16.msra.mxu0 %v2160
  %3889 = vmatpush.bf16.msra.mxu0 %v2144
  %3890 = vmatpush.bf16.msra.mxu0 %v2128
  %3891 = vmatpush.bf16.msra.mxu0 %v2112
  %3892 = vmatpush.bf16.msra.mxu0 %v2096
  %3893 = vmatmul.bf16.gmra.mxu0 %v537
  %v3894 = vpop.f32.mrf.mxu0
  %v3895 = vadd.f32 0.0, %v3894
  %v3896 = vpop.f32.mrf.mxu0
  %3897 = vdwg.mxu0
  %3898 = vmatpush.bf16.msra.mxu0 %v2336
  %3899 = vmatpush.bf16.msra.mxu0 %v2320
  %3900 = vmatpush.bf16.msra.mxu0 %v2304
  %3901 = vmatpush.bf16.msra.mxu0 %v2288
  %3902 = vmatpush.bf16.msra.mxu0 %v2272
  %3903 = vmatpush.bf16.msra.mxu0 %v2256
  %3904 = vmatpush.bf16.msra.mxu0 %v2240
  %3905 = vmatpush.bf16.msra.mxu0 %v2224
  %3906 = vmatmul.bf16.gmra.mxu0 %v538
  %v3907 = vpop.f32.mrf.mxu0
  %v3908 = vadd.f32 %v3895, %v3907
  %v3909 = vpop.f32.mrf.mxu0
  %3910 = vdwg.mxu0
  %3911 = vmatpush.bf16.msra.mxu0 %v2464
  %3912 = vmatpush.bf16.msra.mxu0 %v2448
  %3913 = vmatpush.bf16.msra.mxu0 %v2432
  %3914 = vmatpush.bf16.msra.mxu0 %v2416
  %3915 = vmatpush.bf16.msra.mxu0 %v2400
  %3916 = vmatpush.bf16.msra.mxu0 %v2384
  %3917 = vmatpush.bf16.msra.mxu0 %v2368
  %3918 = vmatpush.bf16.msra.mxu0 %v2352
  %3919 = vmatmul.bf16.gmra.mxu0 %v539
  %v3920 = vpop.f32.mrf.mxu0
  %v3921 = vadd.f32 %v3908, %v3920
  %v3922 = vpop.f32.mrf.mxu0
  %3923 = vdwg.mxu0
  %3924 = vmatpush.bf16.msra.mxu0 %v2592
  %3925 = vmatpush.bf16.msra.mxu0 %v2576
  %3926 = vmatpush.bf16.msra.mxu0 %v2560
  %3927 = vmatpush.bf16.msra.mxu0 %v2544
  %3928 = vmatpush.bf16.msra.mxu0 %v2528
  %3929 = vmatpush.bf16.msra.mxu0 %v2512
  %3930 = vmatpush.bf16.msra.mxu0 %v2496
  %3931 = vmatpush.bf16.msra.mxu0 %v2480
  %3932 = vmatmul.bf16.gmra.mxu0 %v540
  %v3933 = vpop.f32.mrf.mxu0
  %v3934 = vadd.f32 %v3921, %v3933
  %v3935 = vpop.f32.mrf.mxu0
  %3936 = vdwg.mxu0
  %v3937 = vld [vmem:[%s2] sm:$0xff]
  %v3938 = vld [vmem:[%s2 + $0x8] sm:$0xff]
  %v3941 = vperm.slane %v3937, 0
  %v3942 = vperm.slane %v3937, 1
  %v3943 = vperm.slane %v3937, 2
  %v3944 = vperm.slane %v3937, 3
  %v3945 = vperm.slane %v3937, 4
  %v3946 = vperm.slane %v3937, 5
  %v3947 = vperm.slane %v3937, 6
  %v3948 = vperm.slane %v3937, 7
  %v3949 = vperm.slane %v3938, 0
  %v3950 = vperm.slane %v3938, 1
  %v3951 = vperm.slane %v3938, 2
  %v3952 = vperm.slane %v3938, 3
  %v3953 = vperm.slane %v3938, 4
  %v3954 = vperm.slane %v3938, 5
  %v3955 = vperm.slane %v3938, 6
  %v3956 = vperm.slane %v3938, 7
  %v3973 = vmul.f32 %v3154, %v3941
  %v3974 = vmul.f32 %v3206, %v3942
  %v3975 = vmul.f32 %v3258, %v3943
  %v3976 = vmul.f32 %v3310, %v3944
  %v3977 = vmul.f32 %v3362, %v3945
  %v3978 = vmul.f32 %v3414, %v3946
  %v3979 = vmul.f32 %v3466, %v3947
  %v3980 = vmul.f32 %v3518, %v3948
  %v3981 = vmul.f32 %v3570, %v3949
  %v3982 = vmul.f32 %v3622, %v3950
  %v3983 = vmul.f32 %v3674, %v3951
  %v3984 = vmul.f32 %v3726, %v3952
  %v3985 = vmul.f32 %v3778, %v3953
  %v3986 = vmul.f32 %v3830, %v3954
  %v3987 = vmul.f32 %v3882, %v3955
  %v3988 = vmul.f32 %v3934, %v3956
  %v3989 = vld [vmem:[%s3] sm:$0xff]
  %v3990 = vld [vmem:[%s3 + $0x8] sm:$0xff]
  %v3993 = vperm.slane %v3989, 0
  %v3994 = vperm.slane %v3989, 1
  %v3995 = vperm.slane %v3989, 2
  %v3996 = vperm.slane %v3989, 3
  %v3997 = vperm.slane %v3989, 4
  %v3998 = vperm.slane %v3989, 5
  %v3999 = vperm.slane %v3989, 6
  %v4000 = vperm.slane %v3989, 7
  %v4001 = vperm.slane %v3990, 0
  %v4002 = vperm.slane %v3990, 1
  %v4003 = vperm.slane %v3990, 2
  %v4004 = vperm.slane %v3990, 3
  %v4005 = vperm.slane %v3990, 4
  %v4006 = vperm.slane %v3990, 5
  %v4007 = vperm.slane %v3990, 6
  %v4008 = vperm.slane %v3990, 7
  %v4025 = vadd.f32 %v3973, %v3993
  %v4026 = vadd.f32 %v3974, %v3994
  %v4027 = vadd.f32 %v3975, %v3995
  %v4028 = vadd.f32 %v3976, %v3996
  %v4029 = vadd.f32 %v3977, %v3997
  %v4030 = vadd.f32 %v3978, %v3998
  %v4031 = vadd.f32 %v3979, %v3999
  %v4032 = vadd.f32 %v3980, %v4000
  %v4033 = vadd.f32 %v3981, %v4001
  %v4034 = vadd.f32 %v3982, %v4002
  %v4035 = vadd.f32 %v3983, %v4003
  %v4036 = vadd.f32 %v3984, %v4004
  %v4037 = vadd.f32 %v3985, %v4005
  %v4038 = vadd.f32 %v3986, %v4006
  %v4039 = vadd.f32 %v3987, %v4007
  %v4040 = vadd.f32 %v3988, %v4008
  %v4041 = vmax.f32 %v4025, 0.0
  %v4042 = vmax.f32 %v4026, 0.0
  %v4043 = vmax.f32 %v4027, 0.0
  %v4044 = vmax.f32 %v4028, 0.0
  %v4045 = vmax.f32 %v4029, 0.0
  %v4046 = vmax.f32 %v4030, 0.0
  %v4047 = vmax.f32 %v4031, 0.0
  %v4048 = vmax.f32 %v4032, 0.0
  %v4049 = vmax.f32 %v4033, 0.0
  %v4050 = vmax.f32 %v4034, 0.0
  %v4051 = vmax.f32 %v4035, 0.0
  %v4052 = vmax.f32 %v4036, 0.0
  %v4053 = vmax.f32 %v4037, 0.0
  %v4054 = vmax.f32 %v4038, 0.0
  %v4055 = vmax.f32 %v4039, 0.0
  %v4056 = vmax.f32 %v4040, 0.0
  %4057 = vst [vmem:[%s4] sm:$0xff] %v4041
  %4058 = vst [vmem:[%s4 + $0x8] sm:$0xff] %v4042
  %4059 = vst [vmem:[%s4 + $0x10] sm:$0xff] %v4043
  %4060 = vst [vmem:[%s4 + $0x18] sm:$0xff] %v4044
  %4061 = vst [vmem:[%s4 + $0x20] sm:$0xff] %v4045
  %4062 = vst [vmem:[%s4 + $0x28] sm:$0xff] %v4046
  %4063 = vst [vmem:[%s4 + $0x30] sm:$0xff] %v4047
  %4064 = vst [vmem:[%s4 + $0x38] sm:$0xff] %v4048
  %4065 = vst [vmem:[%s4 + $0x40] sm:$0xff] %v4049
  %4066 = vst [vmem:[%s4 + $0x48] sm:$0xff] %v4050
  %4067 = vst [vmem:[%s4 + $0x50] sm:$0xff] %v4051
  %4068 = vst [vmem:[%s4 + $0x58] sm:$0xff] %v4052
  %4069 = vst [vmem:[%s4 + $0x60] sm:$0xff] %v4053
  %4070 = vst [vmem:[%s4 + $0x68] sm:$0xff] %v4054
  %4071 = vst [vmem:[%s4 + $0x70] sm:$0xff] %v4055
  %4072 = vst [vmem:[%s4 + $0x78] sm:$0xff] %v4056
  // Predicated region
  $region18: #{channel_distill_forward.15} parent=0 // pred_check
    _
  $region19: #{channel_distill_forward.15} parent=0 // pred_check_branch
    %4074 = sbr.rel (0) target = $region21
  $region20: #{channel_distill_forward.15} parent=0 // pred_region
    _
  $region21: #{channel_distill_forward.15} parent=0 // pred_fallthru
    _
  // Predicated region
  $region22: #{channel_distill_forward.15} parent=0 // pred_check
    _
  $region23: #{channel_distill_forward.15} parent=0 // pred_check_branch
    %4076 = sbr.rel (0) target = $region25
  $region24: #{channel_distill_forward.15} parent=0 // pred_region
    _
  $region25: #{channel_distill_forward.15} parent=0 // pred_fallthru
    _

// kernel: channel_distill_forward.13
$region0: #{channel_distill_forward.13}
  #allocation0 [shape = 'u32[]', space=smem, size = 0x4, offset = 0x4, fixed_abs, tag = 'smem constant byte address 0x4 - core index']
  #allocation1 [shape = 'u32[72,128]{1,0:T(1,128)}', space=vmem, size = 0x9000, scoped, tag = 'internal scratch']
  %s0 = inlined_call_operand.vmem [shape: bf16[8,256], index: 0, kind: input, shape index: {}]
  %s1 = inlined_call_operand.vmem [shape: bf16[256,1024], index: 1, kind: input, shape index: {}]
  %s2 = inlined_call_operand.vmem [shape: f32[1,1024], index: 2, kind: input, shape index: {}]
  %s3 = inlined_call_operand.vmem [shape: f32[1,1024], index: 3, kind: input, shape index: {}]
  %s4 = inlined_call_operand.vmem [shape: f32[8,1024], index: 4, kind: output, shape index: {}]
  %s5 = sld [smem:[#allocation0]]
  $region26: #{channel_distill_forward.13} parent=0
    _
  %s7 = ssub.s32 1, %s5
  %s8 = scalar_select 0, %s7, %s5
  // Predicated region
  $region2: #{channel_distill_forward.13} parent=0 // pred_check
    _
  $region3: #{channel_distill_forward.13} parent=0 // pred_check_branch
    %10 = sbr.rel (0) target = $region5
  $region4: #{channel_distill_forward.13} parent=0 // pred_region
    _
  $region5: #{channel_distill_forward.13} parent=0 // pred_fallthru
    _
  // Predicated region
  $region6: #{channel_distill_forward.13} parent=0 // pred_check
    _
  $region7: #{channel_distill_forward.13} parent=0 // pred_check_branch
    %12 = sbr.rel (0) target = $region9
  $region8: #{channel_distill_forward.13} parent=0 // pred_region
    _
  $region9: #{channel_distill_forward.13} parent=0 // pred_fallthru
    _
  // Predicated region
  $region10: #{channel_distill_forward.13} parent=0 // pred_check
    _
  $region11: #{channel_distill_forward.13} parent=0 // pred_check_branch
    %14 = sbr.rel (0) target = $region13
  $region12: #{channel_distill_forward.13} parent=0 // pred_region
    _
  $region13: #{channel_distill_forward.13} parent=0 // pred_fallthru
    _
  // Predicated region
  $region14: #{channel_distill_forward.13} parent=0 // pred_check
    _
  $region15: #{channel_distill_forward.13} parent=0 // pred_check_branch
    %16 = sbr.rel (0) target = $region17
  $region16: #{channel_distill_forward.13} parent=0 // pred_region
    _
  $region17: #{channel_distill_forward.13} parent=0 // pred_fallthru
    _
  %v17 = vld [vmem:[%s0] sm:$0xff]
  %v18 = vld [vmem:[%s1] sm:$0xff]
  %v19 = vld [vmem:[%s1 + $0x8] sm:$0xff]
  %v20 = vld [vmem:[%s1 + $0x10] sm:$0xff]
  %v21 = vld [vmem:[%s1 + $0x18] sm:$0xff]
  %v22 = vld [vmem:[%s1 + $0x20] sm:$0xff]
  %v23 = vld [vmem:[%s1 + $0x28] sm:$0xff]
  %v24 = vld [vmem:[%s1 + $0x30] sm:$0xff]
  %v25 = vld [vmem:[%s1 + $0x38] sm:$0xff]
  %v26 = vld [vmem:[%s1 + $0x40] sm:$0xff]
  %v27 = vld [vmem:[%s1 + $0x48] sm:$0xff]
  %v28 = vld [vmem:[%s1 + $0x50] sm:$0xff]
  %v29 = vld [vmem:[%s1 + $0x58] sm:$0xff]
  %v30 = vld [vmem:[%s1 + $0x60] sm:$0xff]
  %v31 = vld [vmem:[%s1 + $0x68] sm:$0xff]
  %v32 = vld [vmem:[%s1 + $0x70] sm:$0xff]
  %v33 = vld [vmem:[%s1 + $0x78] sm:$0xff]
  %v34 = vld [vmem:[%s1 + $0x80] sm:$0xff]
  %v35 = vld [vmem:[%s1 + $0x88] sm:$0xff]
  %v36 = vld [vmem:[%s1 + $0x90] sm:$0xff]
  %v37 = vld [vmem:[%s1 + $0x98] sm:$0xff]
  %v38 = vld [vmem:[%s1 + $0xa0] sm:$0xff]
  %v39 = vld [vmem:[%s1 + $0xa8] sm:$0xff]
  %v40 = vld [vmem:[%s1 + $0xb0] sm:$0xff]
  %v41 = vld [vmem:[%s1 + $0xb8] sm:$0xff]
  %v42 = vld [vmem:[%s1 + $0xc0] sm:$0xff]
  %v43 = vld [vmem:[%s1 + $0xc8] sm:$0xff]
  %v44 = vld [vmem:[%s1 + $0xd0] sm:$0xff]
  %v45 = vld [vmem:[%s1 + $0xd8] sm:$0xff]
  %v46 = vld [vmem:[%s1 + $0xe0] sm:$0xff]
  %v47 = vld [vmem:[%s1 + $0xe8] sm:$0xff]
  %v48 = vld [vmem:[%s1 + $0xf0] sm:$0xff]
  %v49 = vld [vmem:[%s1 + $0xf8] sm:$0xff]
  %v50 = vld [vmem:[%s1 + $0x100] sm:$0xff]
  %v51 = vld [vmem:[%s1 + $0x108] sm:$0xff]
  %v52 = vld [vmem:[%s1 + $0x110] sm:$0xff]
  %v53 = vld [vmem:[%s1 + $0x118] sm:$0xff]
  %v54 = vld [vmem:[%s1 + $0x120] sm:$0xff]
  %v55 = vld [vmem:[%s1 + $0x128] sm:$0xff]
  %v56 = vld [vmem:[%s1 + $0x130] sm:$0xff]
  %v57 = vld [vmem:[%s1 + $0x138] sm:$0xff]
  %v58 = vld [vmem:[%s1 + $0x140] sm:$0xff]
  %v59 = vld [vmem:[%s1 + $0x148] sm:$0xff]
  %v60 = vld [vmem:[%s1 + $0x150] sm:$0xff]
  %v61 = vld [vmem:[%s1 + $0x158] sm:$0xff]
  %v62 = vld [vmem:[%s1 + $0x160] sm:$0xff]
  %v63 = vld [vmem:[%s1 + $0x168] sm:$0xff]
  %v64 = vld [vmem:[%s1 + $0x170] sm:$0xff]
  %v65 = vld [vmem:[%s1 + $0x178] sm:$0xff]
  %v66 = vld [vmem:[%s1 + $0x180] sm:$0xff]
  %v67 = vld [vmem:[%s1 + $0x188] sm:$0xff]
  %v68 = vld [vmem:[%s1 + $0x190] sm:$0xff]
  %v69 = vld [vmem:[%s1 + $0x198] sm:$0xff]
  %v70 = vld [vmem:[%s1 + $0x1a0] sm:$0xff]
  %v71 = vld [vmem:[%s1 + $0x1a8] sm:$0xff]
  %v72 = vld [vmem:[%s1 + $0x1b0] sm:$0xff]
  %v73 = vld [vmem:[%s1 + $0x1b8] sm:$0xff]
  %v74 = vld [vmem:[%s1 + $0x1c0] sm:$0xff]
  %v75 = vld [vmem:[%s1 + $0x1c8] sm:$0xff]
  %v76 = vld [vmem:[%s1 + $0x1d0] sm:$0xff]
  %v77 = vld [vmem:[%s1 + $0x1d8] sm:$0xff]
  %v78 = vld [vmem:[%s1 + $0x1e0] sm:$0xff]
  %v79 = vld [vmem:[%s1 + $0x1e8] sm:$0xff]
  %v80 = vld [vmem:[%s1 + $0x1f0] sm:$0xff]
  %v81 = vld [vmem:[%s1 + $0x1f8] sm:$0xff]
  %v82 = vld [vmem:[%s1 + $0x200] sm:$0xff]
  %v83 = vld [vmem:[%s1 + $0x208] sm:$0xff]
  %v84 = vld [vmem:[%s1 + $0x210] sm:$0xff]
  %v85 = vld [vmem:[%s1 + $0x218] sm:$0xff]
  %v86 = vld [vmem:[%s1 + $0x220] sm:$0xff]
  %v87 = vld [vmem:[%s1 + $0x228] sm:$0xff]
  %v88 = vld [vmem:[%s1 + $0x230] sm:$0xff]
  %v89 = vld [vmem:[%s1 + $0x238] sm:$0xff]
  %v90 = vld [vmem:[%s1 + $0x240] sm:$0xff]
  %v91 = vld [vmem:[%s1 + $0x248] sm:$0xff]
  %v92 = vld [vmem:[%s1 + $0x250] sm:$0xff]
  %v93 = vld [vmem:[%s1 + $0x258] sm:$0xff]
  %v94 = vld [vmem:[%s1 + $0x260] sm:$0xff]
  %v95 = vld [vmem:[%s1 + $0x268] sm:$0xff]
  %v96 = vld [vmem:[%s1 + $0x270] sm:$0xff]
  %v97 = vld [vmem:[%s1 + $0x278] sm:$0xff]
  %v98 = vld [vmem:[%s1 + $0x280] sm:$0xff]
  %v99 = vld [vmem:[%s1 + $0x288] sm:$0xff]
  %v100 = vld [vmem:[%s1 + $0x290] sm:$0xff]
  %v101 = vld [vmem:[%s1 + $0x298] sm:$0xff]
  %v102 = vld [vmem:[%s1 + $0x2a0] sm:$0xff]
  %v103 = vld [vmem:[%s1 + $0x2a8] sm:$0xff]
  %v104 = vld [vmem:[%s1 + $0x2b0] sm:$0xff]
  %v105 = vld [vmem:[%s1 + $0x2b8] sm:$0xff]
  %v106 = vld [vmem:[%s1 + $0x2c0] sm:$0xff]
  %v107 = vld [vmem:[%s1 + $0x2c8] sm:$0xff]
  %v108 = vld [vmem:[%s1 + $0x2d0] sm:$0xff]
  %v109 = vld [vmem:[%s1 + $0x2d8] sm:$0xff]
  %v110 = vld [vmem:[%s1 + $0x2e0] sm:$0xff]
  %v111 = vld [vmem:[%s1 + $0x2e8] sm:$0xff]
  %v112 = vld [vmem:[%s1 + $0x2f0] sm:$0xff]
  %v113 = vld [vmem:[%s1 + $0x2f8] sm:$0xff]
  %v114 = vld [vmem:[%s1 + $0x300] sm:$0xff]
  %v115 = vld [vmem:[%s1 + $0x308] sm:$0xff]
  %v116 = vld [vmem:[%s1 + $0x310] sm:$0xff]
  %v117 = vld [vmem:[%s1 + $0x318] sm:$0xff]
  %v118 = vld [vmem:[%s1 + $0x320] sm:$0xff]
  %v119 = vld [vmem:[%s1 + $0x328] sm:$0xff]
  %v120 = vld [vmem:[%s1 + $0x330] sm:$0xff]
  %v121 = vld [vmem:[%s1 + $0x338] sm:$0xff]
  %v122 = vld [vmem:[%s1 + $0x340] sm:$0xff]
  %v123 = vld [vmem:[%s1 + $0x348] sm:$0xff]
  %v124 = vld [vmem:[%s1 + $0x350] sm:$0xff]
  %v125 = vld [vmem:[%s1 + $0x358] sm:$0xff]
  %v126 = vld [vmem:[%s1 + $0x360] sm:$0xff]
  %v127 = vld [vmem:[%s1 + $0x368] sm:$0xff]
  %v128 = vld [vmem:[%s1 + $0x370] sm:$0xff]
  %v129 = vld [vmem:[%s1 + $0x378] sm:$0xff]
  %v130 = vld [vmem:[%s1 + $0x380] sm:$0xff]
  %v131 = vld [vmem:[%s1 + $0x388] sm:$0xff]
  %v132 = vld [vmem:[%s1 + $0x390] sm:$0xff]
  %v133 = vld [vmem:[%s1 + $0x398] sm:$0xff]
  %v134 = vld [vmem:[%s1 + $0x3a0] sm:$0xff]
  %v135 = vld [vmem:[%s1 + $0x3a8] sm:$0xff]
  %v136 = vld [vmem:[%s1 + $0x3b0] sm:$0xff]
  %v137 = vld [vmem:[%s1 + $0x3b8] sm:$0xff]
  %v138 = vld [vmem:[%s1 + $0x3c0] sm:$0xff]
  %v139 = vld [vmem:[%s1 + $0x3c8] sm:$0xff]
  %v140 = vld [vmem:[%s1 + $0x3d0] sm:$0xff]
  %v141 = vld [vmem:[%s1 + $0x3d8] sm:$0xff]
  %v142 = vld [vmem:[%s1 + $0x3e0] sm:$0xff]
  %v143 = vld [vmem:[%s1 + $0x3e8] sm:$0xff]
  %v144 = vld [vmem:[%s1 + $0x3f0] sm:$0xff]
  %v145 = vld [vmem:[%s1 + $0x3f8] sm:$0xff]
  %v147 = vunpack.c.l.b16 %v17
  %v148 = vunpack.c.h.b16 %v17
  %v149 = vpack.c.b16 %v147, %v147
  %v150 = vpack.c.b16 %v148, %v148
  %v281 = vunpack.c.l.b16 %v18
  %v282 = vunpack.c.h.b16 %v18
  %v283 = vunpack.c.l.b16 %v19
  %v284 = vunpack.c.h.b16 %v19
  %v285 = vunpack.c.l.b16 %v20
  %v286 = vunpack.c.h.b16 %v20
  %v287 = vunpack.c.l.b16 %v21
  %v288 = vunpack.c.h.b16 %v21
  %v289 = vunpack.c.l.b16 %v22
  %v290 = vunpack.c.h.b16 %v22
  %v291 = vunpack.c.l.b16 %v23
  %v292 = vunpack.c.h.b16 %v23
  %v293 = vunpack.c.l.b16 %v24
  %v294 = vunpack.c.h.b16 %v24
  %v295 = vunpack.c.l.b16 %v25
  %v296 = vunpack.c.h.b16 %v25
  %v297 = vunpack.c.l.b16 %v26
  %v298 = vunpack.c.h.b16 %v26
  %v299 = vunpack.c.l.b16 %v27
  %v300 = vunpack.c.h.b16 %v27
  %v301 = vunpack.c.l.b16 %v28
  %v302 = vunpack.c.h.b16 %v28
  %v303 = vunpack.c.l.b16 %v29
  %v304 = vunpack.c.h.b16 %v29
  %v305 = vunpack.c.l.b16 %v30
  %v306 = vunpack.c.h.b16 %v30
  %v307 = vunpack.c.l.b16 %v31
  %v308 = vunpack.c.h.b16 %v31
  %v309 = vunpack.c.l.b16 %v32
  %v310 = vunpack.c.h.b16 %v32
  %v311 = vunpack.c.l.b16 %v33
  %v312 = vunpack.c.h.b16 %v33
  %v313 = vunpack.c.l.b16 %v34
  %v314 = vunpack.c.h.b16 %v34
  %v315 = vunpack.c.l.b16 %v35
  %v316 = vunpack.c.h.b16 %v35
  %v317 = vunpack.c.l.b16 %v36
  %v318 = vunpack.c.h.b16 %v36
  %v319 = vunpack.c.l.b16 %v37
  %v320 = vunpack.c.h.b16 %v37
  %v321 = vunpack.c.l.b16 %v38
  %v322 = vunpack.c.h.b16 %v38
  %v323 = vunpack.c.l.b16 %v39
  %v324 = vunpack.c.h.b16 %v39
  %v325 = vunpack.c.l.b16 %v40
  %v326 = vunpack.c.h.b16 %v40
  %v327 = vunpack.c.l.b16 %v41
  %v328 = vunpack.c.h.b16 %v41
  %v329 = vunpack.c.l.b16 %v42
  %v330 = vunpack.c.h.b16 %v42
  %v331 = vunpack.c.l.b16 %v43
  %v332 = vunpack.c.h.b16 %v43
  %v333 = vunpack.c.l.b16 %v44
  %v334 = vunpack.c.h.b16 %v44
  %v335 = vunpack.c.l.b16 %v45
  %v336 = vunpack.c.h.b16 %v45
  %v337 = vunpack.c.l.b16 %v46
  %v338 = vunpack.c.h.b16 %v46
  %v339 = vunpack.c.l.b16 %v47
  %v340 = vunpack.c.h.b16 %v47
  %v341 = vunpack.c.l.b16 %v48
  %v342 = vunpack.c.h.b16 %v48
  %v343 = vunpack.c.l.b16 %v49
  %v344 = vunpack.c.h.b16 %v49
  %v345 = vunpack.c.l.b16 %v50
  %v346 = vunpack.c.h.b16 %v50
  %v347 = vunpack.c.l.b16 %v51
  %v348 = vunpack.c.h.b16 %v51
  %v349 = vunpack.c.l.b16 %v52
  %v350 = vunpack.c.h.b16 %v52
  %v351 = vunpack.c.l.b16 %v53
  %v352 = vunpack.c.h.b16 %v53
  %v353 = vunpack.c.l.b16 %v54
  %v354 = vunpack.c.h.b16 %v54
  %v355 = vunpack.c.l.b16 %v55
  %v356 = vunpack.c.h.b16 %v55
  %v357 = vunpack.c.l.b16 %v56
  %v358 = vunpack.c.h.b16 %v56
  %v359 = vunpack.c.l.b16 %v57
  %v360 = vunpack.c.h.b16 %v57
  %v361 = vunpack.c.l.b16 %v58
  %v362 = vunpack.c.h.b16 %v58
  %v363 = vunpack.c.l.b16 %v59
  %v364 = vunpack.c.h.b16 %v59
  %v365 = vunpack.c.l.b16 %v60
  %v366 = vunpack.c.h.b16 %v60
  %v367 = vunpack.c.l.b16 %v61
  %v368 = vunpack.c.h.b16 %v61
  %v369 = vunpack.c.l.b16 %v62
  %v370 = vunpack.c.h.b16 %v62
  %v371 = vunpack.c.l.b16 %v63
  %v372 = vunpack.c.h.b16 %v63
  %v373 = vunpack.c.l.b16 %v64
  %v374 = vunpack.c.h.b16 %v64
  %v375 = vunpack.c.l.b16 %v65
  %v376 = vunpack.c.h.b16 %v65
  %v377 = vunpack.c.l.b16 %v66
  %v378 = vunpack.c.h.b16 %v66
  %v379 = vunpack.c.l.b16 %v67
  %v380 = vunpack.c.h.b16 %v67
  %v381 = vunpack.c.l.b16 %v68
  %v382 = vunpack.c.h.b16 %v68
  %v383 = vunpack.c.l.b16 %v69
  %v384 = vunpack.c.h.b16 %v69
  %v385 = vunpack.c.l.b16 %v70
  %v386 = vunpack.c.h.b16 %v70
  %v387 = vunpack.c.l.b16 %v71
  %v388 = vunpack.c.h.b16 %v71
  %v389 = vunpack.c.l.b16 %v72
  %v390 = vunpack.c.h.b16 %v72
  %v391 = vunpack.c.l.b16 %v73
  %v392 = vunpack.c.h.b16 %v73
  %v393 = vunpack.c.l.b16 %v74
  %v394 = vunpack.c.h.b16 %v74
  %v395 = vunpack.c.l.b16 %v75
  %v396 = vunpack.c.h.b16 %v75
  %v397 = vunpack.c.l.b16 %v76
  %v398 = vunpack.c.h.b16 %v76
  %v399 = vunpack.c.l.b16 %v77
  %v400 = vunpack.c.h.b16 %v77
  %v401 = vunpack.c.l.b16 %v78
  %v402 = vunpack.c.h.b16 %v78
  %v403 = vunpack.c.l.b16 %v79
  %v404 = vunpack.c.h.b16 %v79
  %v405 = vunpack.c.l.b16 %v80
  %v406 = vunpack.c.h.b16 %v80
  %v407 = vunpack.c.l.b16 %v81
  %v408 = vunpack.c.h.b16 %v81
  %v409 = vunpack.c.l.b16 %v82
  %v410 = vunpack.c.h.b16 %v82
  %v411 = vunpack.c.l.b16 %v83
  %v412 = vunpack.c.h.b16 %v83
  %v413 = vunpack.c.l.b16 %v84
  %v414 = vunpack.c.h.b16 %v84
  %v415 = vunpack.c.l.b16 %v85
  %v416 = vunpack.c.h.b16 %v85
  %v417 = vunpack.c.l.b16 %v86
  %v418 = vunpack.c.h.b16 %v86
  %v419 = vunpack.c.l.b16 %v87
  %v420 = vunpack.c.h.b16 %v87
  %v421 = vunpack.c.l.b16 %v88
  %v422 = vunpack.c.h.b16 %v88
  %v423 = vunpack.c.l.b16 %v89
  %v424 = vunpack.c.h.b16 %v89
  %v425 = vunpack.c.l.b16 %v90
  %v426 = vunpack.c.h.b16 %v90
  %v427 = vunpack.c.l.b16 %v91
  %v428 = vunpack.c.h.b16 %v91
  %v429 = vunpack.c.l.b16 %v92
  %v430 = vunpack.c.h.b16 %v92
  %v431 = vunpack.c.l.b16 %v93
  %v432 = vunpack.c.h.b16 %v93
  %v433 = vunpack.c.l.b16 %v94
  %v434 = vunpack.c.h.b16 %v94
  %v435 = vunpack.c.l.b16 %v95
  %v436 = vunpack.c.h.b16 %v95
  %v437 = vunpack.c.l.b16 %v96
  %v438 = vunpack.c.h.b16 %v96
  %v439 = vunpack.c.l.b16 %v97
  %v440 = vunpack.c.h.b16 %v97
  %v441 = vunpack.c.l.b16 %v98
  %v442 = vunpack.c.h.b16 %v98
  %v443 = vunpack.c.l.b16 %v99
  %v444 = vunpack.c.h.b16 %v99
  %v445 = vunpack.c.l.b16 %v100
  %v446 = vunpack.c.h.b16 %v100
  %v447 = vunpack.c.l.b16 %v101
  %v448 = vunpack.c.h.b16 %v101
  %v449 = vunpack.c.l.b16 %v102
  %v450 = vunpack.c.h.b16 %v102
  %v451 = vunpack.c.l.b16 %v103
  %v452 = vunpack.c.h.b16 %v103
  %v453 = vunpack.c.l.b16 %v104
  %v454 = vunpack.c.h.b16 %v104
  %v455 = vunpack.c.l.b16 %v105
  %v456 = vunpack.c.h.b16 %v105
  %v457 = vunpack.c.l.b16 %v106
  %v458 = vunpack.c.h.b16 %v106
  %v459 = vunpack.c.l.b16 %v107
  %v460 = vunpack.c.h.b16 %v107
  %v461 = vunpack.c.l.b16 %v108
  %v462 = vunpack.c.h.b16 %v108
  %v463 = vunpack.c.l.b16 %v109
  %v464 = vunpack.c.h.b16 %v109
  %v465 = vunpack.c.l.b16 %v110
  %v466 = vunpack.c.h.b16 %v110
  %v467 = vunpack.c.l.b16 %v111
  %v468 = vunpack.c.h.b16 %v111
  %v469 = vunpack.c.l.b16 %v112
  %v470 = vunpack.c.h.b16 %v112
  %v471 = vunpack.c.l.b16 %v113
  %v472 = vunpack.c.h.b16 %v113
  %v473 = vunpack.c.l.b16 %v114
  %v474 = vunpack.c.h.b16 %v114
  %v475 = vunpack.c.l.b16 %v115
  %v476 = vunpack.c.h.b16 %v115
  %v477 = vunpack.c.l.b16 %v116
  %v478 = vunpack.c.h.b16 %v116
  %v479 = vunpack.c.l.b16 %v117
  %v480 = vunpack.c.h.b16 %v117
  %v481 = vunpack.c.l.b16 %v118
  %v482 = vunpack.c.h.b16 %v118
  %v483 = vunpack.c.l.b16 %v119
  %v484 = vunpack.c.h.b16 %v119
  %v485 = vunpack.c.l.b16 %v120
  %v486 = vunpack.c.h.b16 %v120
  %v487 = vunpack.c.l.b16 %v121
  %v488 = vunpack.c.h.b16 %v121
  %v489 = vunpack.c.l.b16 %v122
  %v490 = vunpack.c.h.b16 %v122
  %v491 = vunpack.c.l.b16 %v123
  %v492 = vunpack.c.h.b16 %v123
  %v493 = vunpack.c.l.b16 %v124
  %v494 = vunpack.c.h.b16 %v124
  %v495 = vunpack.c.l.b16 %v125
  %v496 = vunpack.c.h.b16 %v125
  %v497 = vunpack.c.l.b16 %v126
  %v498 = vunpack.c.h.b16 %v126
  %v499 = vunpack.c.l.b16 %v127
  %v500 = vunpack.c.h.b16 %v127
  %v501 = vunpack.c.l.b16 %v128
  %v502 = vunpack.c.h.b16 %v128
  %v503 = vunpack.c.l.b16 %v129
  %v504 = vunpack.c.h.b16 %v129
  %v505 = vunpack.c.l.b16 %v130
  %v506 = vunpack.c.h.b16 %v130
  %v507 = vunpack.c.l.b16 %v131
  %v508 = vunpack.c.h.b16 %v131
  %v509 = vunpack.c.l.b16 %v132
  %v510 = vunpack.c.h.b16 %v132
  %v511 = vunpack.c.l.b16 %v133
  %v512 = vunpack.c.h.b16 %v133
  %v513 = vunpack.c.l.b16 %v134
  %v514 = vunpack.c.h.b16 %v134
  %v515 = vunpack.c.l.b16 %v135
  %v516 = vunpack.c.h.b16 %v135
  %v517 = vunpack.c.l.b16 %v136
  %v518 = vunpack.c.h.b16 %v136
  %v519 = vunpack.c.l.b16 %v137
  %v520 = vunpack.c.h.b16 %v137
  %v521 = vunpack.c.l.b16 %v138
  %v522 = vunpack.c.h.b16 %v138
  %v523 = vunpack.c.l.b16 %v139
  %v524 = vunpack.c.h.b16 %v139
  %v525 = vunpack.c.l.b16 %v140
  %v526 = vunpack.c.h.b16 %v140
  %v527 = vunpack.c.l.b16 %v141
  %v528 = vunpack.c.h.b16 %v141
  %v529 = vunpack.c.l.b16 %v142
  %v530 = vunpack.c.h.b16 %v142
  %v531 = vunpack.c.l.b16 %v143
  %v532 = vunpack.c.h.b16 %v143
  %v533 = vunpack.c.l.b16 %v144
  %v534 = vunpack.c.h.b16 %v144
  %v535 = vunpack.c.l.b16 %v145
  %v536 = vunpack.c.h.b16 %v145
  %v537 = vpack.c.b16 %v289, %v281
  %v538 = vpack.c.b16 %v290, %v282
  %v539 = vpack.c.b16 %v291, %v283
  %v540 = vpack.c.b16 %v292, %v284
  %v541 = vpack.c.b16 %v293, %v285
  %v542 = vpack.c.b16 %v294, %v286
  %v543 = vpack.c.b16 %v295, %v287
  %v544 = vpack.c.b16 %v296, %v288
  %v545 = vpack.c.b16 %v305, %v297
  %v546 = vpack.c.b16 %v306, %v298
  %v547 = vpack.c.b16 %v307, %v299
  %v548 = vpack.c.b16 %v308, %v300
  %v549 = vpack.c.b16 %v309, %v301
  %v550 = vpack.c.b16 %v310, %v302
  %v551 = vpack.c.b16 %v311, %v303
  %v552 = vpack.c.b16 %v312, %v304
  %v553 = vpack.c.b16 %v321, %v313
  %v554 = vpack.c.b16 %v322, %v314
  %v555 = vpack.c.b16 %v323, %v315
  %v556 = vpack.c.b16 %v324, %v316
  %v557 = vpack.c.b16 %v325, %v317
  %v558 = vpack.c.b16 %v326, %v318
  %v559 = vpack.c.b16 %v327, %v319
  %v560 = vpack.c.b16 %v328, %v320
  %v561 = vpack.c.b16 %v337, %v329
  %v562 = vpack.c.b16 %v338, %v330
  %v563 = vpack.c.b16 %v339, %v331
  %v564 = vpack.c.b16 %v340, %v332
  %v565 = vpack.c.b16 %v341, %v333
  %v566 = vpack.c.b16 %v342, %v334
  %v567 = vpack.c.b16 %v343, %v335
  %v568 = vpack.c.b16 %v344, %v336
  %v569 = vpack.c.b16 %v353, %v345
  %v570 = vpack.c.b16 %v354, %v346
  %v571 = vpack.c.b16 %v355, %v347
  %v572 = vpack.c.b16 %v356, %v348
  %v573 = vpack.c.b16 %v357, %v349
  %v574 = vpack.c.b16 %v358, %v350
  %v575 = vpack.c.b16 %v359, %v351
  %v576 = vpack.c.b16 %v360, %v352
  %v577 = vpack.c.b16 %v369, %v361
  %v578 = vpack.c.b16 %v370, %v362
  %v579 = vpack.c.b16 %v371, %v363
  %v580 = vpack.c.b16 %v372, %v364
  %v581 = vpack.c.b16 %v373, %v365
  %v582 = vpack.c.b16 %v374, %v366
  %v583 = vpack.c.b16 %v375, %v367
  %v584 = vpack.c.b16 %v376, %v368
  %v585 = vpack.c.b16 %v385, %v377
  %v586 = vpack.c.b16 %v386, %v378
  %v587 = vpack.c.b16 %v387, %v379
  %v588 = vpack.c.b16 %v388, %v380
  %v589 = vpack.c.b16 %v389, %v381
  %v590 = vpack.c.b16 %v390, %v382
  %v591 = vpack.c.b16 %v391, %v383
  %v592 = vpack.c.b16 %v392, %v384
  %v593 = vpack.c.b16 %v401, %v393
  %v594 = vpack.c.b16 %v402, %v394
  %v595 = vpack.c.b16 %v403, %v395
  %v596 = vpack.c.b16 %v404, %v396
  %v597 = vpack.c.b16 %v405, %v397
  %v598 = vpack.c.b16 %v406, %v398
  %v599 = vpack.c.b16 %v407, %v399
  %v600 = vpack.c.b16 %v408, %v400
  %v601 = vpack.c.b16 %v417, %v409
  %v602 = vpack.c.b16 %v418, %v410
  %v603 = vpack.c.b16 %v419, %v411
  %v604 = vpack.c.b16 %v420, %v412
  %v605 = vpack.c.b16 %v421, %v413
  %v606 = vpack.c.b16 %v422, %v414
  %v607 = vpack.c.b16 %v423, %v415
  %v608 = vpack.c.b16 %v424, %v416
  %v609 = vpack.c.b16 %v433, %v425
  %v610 = vpack.c.b16 %v434, %v426
  %v611 = vpack.c.b16 %v435, %v427
  %v612 = vpack.c.b16 %v436, %v428
  %v613 = vpack.c.b16 %v437, %v429
  %v614 = vpack.c.b16 %v438, %v430
  %v615 = vpack.c.b16 %v439, %v431
  %v616 = vpack.c.b16 %v440, %v432
  %v617 = vpack.c.b16 %v449, %v441
  %v618 = vpack.c.b16 %v450, %v442
  %v619 = vpack.c.b16 %v451, %v443
  %v620 = vpack.c.b16 %v452, %v444
  %v621 = vpack.c.b16 %v453, %v445
  %v622 = vpack.c.b16 %v454, %v446
  %v623 = vpack.c.b16 %v455, %v447
  %v624 = vpack.c.b16 %v456, %v448
  %v625 = vpack.c.b16 %v465, %v457
  %v626 = vpack.c.b16 %v466, %v458
  %v627 = vpack.c.b16 %v467, %v459
  %v628 = vpack.c.b16 %v468, %v460
  %v629 = vpack.c.b16 %v469, %v461
  %v630 = vpack.c.b16 %v470, %v462
  %v631 = vpack.c.b16 %v471, %v463
  %v632 = vpack.c.b16 %v472, %v464
  %v633 = vpack.c.b16 %v481, %v473
  %v634 = vpack.c.b16 %v482, %v474
  %v635 = vpack.c.b16 %v483, %v475
  %v636 = vpack.c.b16 %v484, %v476
  %v637 = vpack.c.b16 %v485, %v477
  %v638 = vpack.c.b16 %v486, %v478
  %v639 = vpack.c.b16 %v487, %v479
  %v640 = vpack.c.b16 %v488, %v480
  %v641 = vpack.c.b16 %v497, %v489
  %v642 = vpack.c.b16 %v498, %v490
  %v643 = vpack.c.b16 %v499, %v491
  %v644 = vpack.c.b16 %v500, %v492
  %v645 = vpack.c.b16 %v501, %v493
  %v646 = vpack.c.b16 %v502, %v494
  %v647 = vpack.c.b16 %v503, %v495
  %v648 = vpack.c.b16 %v504, %v496
  %v649 = vpack.c.b16 %v513, %v505
  %v650 = vpack.c.b16 %v514, %v506
  %v651 = vpack.c.b16 %v515, %v507
  %v652 = vpack.c.b16 %v516, %v508
  %v653 = vpack.c.b16 %v517, %v509
  %v654 = vpack.c.b16 %v518, %v510
  %v655 = vpack.c.b16 %v519, %v511
  %v656 = vpack.c.b16 %v520, %v512
  %v657 = vpack.c.b16 %v529, %v521
  %v658 = vpack.c.b16 %v530, %v522
  %v659 = vpack.c.b16 %v531, %v523
  %v660 = vpack.c.b16 %v532, %v524
  %v661 = vpack.c.b16 %v533, %v525
  %v662 = vpack.c.b16 %v534, %v526
  %v663 = vpack.c.b16 %v535, %v527
  %v664 = vpack.c.b16 %v536, %v528
  %793 = vmatpush.bf16.msra.mxu0 %v593
  %794 = vmatpush.bf16.msra.mxu0 %v585
  %795 = vmatpush.bf16.msra.mxu0 %v577
  %796 = vmatpush.bf16.msra.mxu0 %v569
  %797 = vmatpush.bf16.msra.mxu0 %v561
  %798 = vmatpush.bf16.msra.mxu0 %v553
  %799 = vmatpush.bf16.msra.mxu0 %v545
  %800 = vmatpush.bf16.msra.mxu0 %v537
  %801 = vmatmul.bf16.gmra.mxu0 %v149
  %v802 = vpop.f32.mrf.mxu0
  %v803 = vadd.f32 0.0, %v802
  %v804 = vpop.f32.mrf.mxu0
  %805 = vdwg.mxu0
  %806 = vmatpush.bf16.msra.mxu0 %v657
  %807 = vmatpush.bf16.msra.mxu0 %v649
  %808 = vmatpush.bf16.msra.mxu0 %v641
  %809 = vmatpush.bf16.msra.mxu0 %v633
  %810 = vmatpush.bf16.msra.mxu0 %v625
  %811 = vmatpush.bf16.msra.mxu0 %v617
  %812 = vmatpush.bf16.msra.mxu0 %v609
  %813 = vmatpush.bf16.msra.mxu0 %v601
  %814 = vmatmul.bf16.gmra.mxu0 %v150
  %v815 = vpop.f32.mrf.mxu0
  %v816 = vadd.f32 %v803, %v815
  %v817 = vpop.f32.mrf.mxu0
  %818 = vdwg.mxu0
  %819 = vmatpush.bf16.msra.mxu0 %v594
  %820 = vmatpush.bf16.msra.mxu0 %v586
  %821 = vmatpush.bf16.msra.mxu0 %v578
  %822 = vmatpush.bf16.msra.mxu0 %v570
  %823 = vmatpush.bf16.msra.mxu0 %v562
  %824 = vmatpush.bf16.msra.mxu0 %v554
  %825 = vmatpush.bf16.msra.mxu0 %v546
  %826 = vmatpush.bf16.msra.mxu0 %v538
  %827 = vmatmul.bf16.gmra.mxu0 %v149
  %v828 = vpop.f32.mrf.mxu0
  %v829 = vadd.f32 0.0, %v828
  %v830 = vpop.f32.mrf.mxu0
  %831 = vdwg.mxu0
  %832 = vmatpush.bf16.msra.mxu0 %v658
  %833 = vmatpush.bf16.msra.mxu0 %v650
  %834 = vmatpush.bf16.msra.mxu0 %v642
  %835 = vmatpush.bf16.msra.mxu0 %v634
  %836 = vmatpush.bf16.msra.mxu0 %v626
  %837 = vmatpush.bf16.msra.mxu0 %v618
  %838 = vmatpush.bf16.msra.mxu0 %v610
  %839 = vmatpush.bf16.msra.mxu0 %v602
  %840 = vmatmul.bf16.gmra.mxu0 %v150
  %v841 = vpop.f32.mrf.mxu0
  %v842 = vadd.f32 %v829, %v841
  %v843 = vpop.f32.mrf.mxu0
  %844 = vdwg.mxu0
  %845 = vmatpush.bf16.msra.mxu0 %v595
  %846 = vmatpush.bf16.msra.mxu0 %v587
  %847 = vmatpush.bf16.msra.mxu0 %v579
  %848 = vmatpush.bf16.msra.mxu0 %v571
  %849 = vmatpush.bf16.msra.mxu0 %v563
  %850 = vmatpush.bf16.msra.mxu0 %v555
  %851 = vmatpush.bf16.msra.mxu0 %v547
  %852 = vmatpush.bf16.msra.mxu0 %v539
  %853 = vmatmul.bf16.gmra.mxu0 %v149
  %v854 = vpop.f32.mrf.mxu0
  %v855 = vadd.f32 0.0, %v854
  %v856 = vpop.f32.mrf.mxu0
  %857 = vdwg.mxu0
  %858 = vmatpush.bf16.msra.mxu0 %v659
  %859 = vmatpush.bf16.msra.mxu0 %v651
  %860 = vmatpush.bf16.msra.mxu0 %v643
  %861 = vmatpush.bf16.msra.mxu0 %v635
  %862 = vmatpush.bf16.msra.mxu0 %v627
  %863 = vmatpush.bf16.msra.mxu0 %v619
  %864 = vmatpush.bf16.msra.mxu0 %v611
  %865 = vmatpush.bf16.msra.mxu0 %v603
  %866 = vmatmul.bf16.gmra.mxu0 %v150
  %v867 = vpop.f32.mrf.mxu0
  %v868 = vadd.f32 %v855, %v867
  %v869 = vpop.f32.mrf.mxu0
  %870 = vdwg.mxu0
  %871 = vmatpush.bf16.msra.mxu0 %v596
  %872 = vmatpush.bf16.msra.mxu0 %v588
  %873 = vmatpush.bf16.msra.mxu0 %v580
  %874 = vmatpush.bf16.msra.mxu0 %v572
  %875 = vmatpush.bf16.msra.mxu0 %v564
  %876 = vmatpush.bf16.msra.mxu0 %v556
  %877 = vmatpush.bf16.msra.mxu0 %v548
  %878 = vmatpush.bf16.msra.mxu0 %v540
  %879 = vmatmul.bf16.gmra.mxu0 %v149
  %v880 = vpop.f32.mrf.mxu0
  %v881 = vadd.f32 0.0, %v880
  %v882 = vpop.f32.mrf.mxu0
  %883 = vdwg.mxu0
  %884 = vmatpush.bf16.msra.mxu0 %v660
  %885 = vmatpush.bf16.msra.mxu0 %v652
  %886 = vmatpush.bf16.msra.mxu0 %v644
  %887 = vmatpush.bf16.msra.mxu0 %v636
  %888 = vmatpush.bf16.msra.mxu0 %v628
  %889 = vmatpush.bf16.msra.mxu0 %v620
  %890 = vmatpush.bf16.msra.mxu0 %v612
  %891 = vmatpush.bf16.msra.mxu0 %v604
  %892 = vmatmul.bf16.gmra.mxu0 %v150
  %v893 = vpop.f32.mrf.mxu0
  %v894 = vadd.f32 %v881, %v893
  %v895 = vpop.f32.mrf.mxu0
  %896 = vdwg.mxu0
  %897 = vmatpush.bf16.msra.mxu0 %v597
  %898 = vmatpush.bf16.msra.mxu0 %v589
  %899 = vmatpush.bf16.msra.mxu0 %v581
  %900 = vmatpush.bf16.msra.mxu0 %v573
  %901 = vmatpush.bf16.msra.mxu0 %v565
  %902 = vmatpush.bf16.msra.mxu0 %v557
  %903 = vmatpush.bf16.msra.mxu0 %v549
  %904 = vmatpush.bf16.msra.mxu0 %v541
  %905 = vmatmul.bf16.gmra.mxu0 %v149
  %v906 = vpop.f32.mrf.mxu0
  %v907 = vadd.f32 0.0, %v906
  %v908 = vpop.f32.mrf.mxu0
  %909 = vdwg.mxu0
  %910 = vmatpush.bf16.msra.mxu0 %v661
  %911 = vmatpush.bf16.msra.mxu0 %v653
  %912 = vmatpush.bf16.msra.mxu0 %v645
  %913 = vmatpush.bf16.msra.mxu0 %v637
  %914 = vmatpush.bf16.msra.mxu0 %v629
  %915 = vmatpush.bf16.msra.mxu0 %v621
  %916 = vmatpush.bf16.msra.mxu0 %v613
  %917 = vmatpush.bf16.msra.mxu0 %v605
  %918 = vmatmul.bf16.gmra.mxu0 %v150
  %v919 = vpop.f32.mrf.mxu0
  %v920 = vadd.f32 %v907, %v919
  %v921 = vpop.f32.mrf.mxu0
  %922 = vdwg.mxu0
  %923 = vmatpush.bf16.msra.mxu0 %v598
  %924 = vmatpush.bf16.msra.mxu0 %v590
  %925 = vmatpush.bf16.msra.mxu0 %v582
  %926 = vmatpush.bf16.msra.mxu0 %v574
  %927 = vmatpush.bf16.msra.mxu0 %v566
  %928 = vmatpush.bf16.msra.mxu0 %v558
  %929 = vmatpush.bf16.msra.mxu0 %v550
  %930 = vmatpush.bf16.msra.mxu0 %v542
  %931 = vmatmul.bf16.gmra.mxu0 %v149
  %v932 = vpop.f32.mrf.mxu0
  %v933 = vadd.f32 0.0, %v932
  %v934 = vpop.f32.mrf.mxu0
  %935 = vdwg.mxu0
  %936 = vmatpush.bf16.msra.mxu0 %v662
  %937 = vmatpush.bf16.msra.mxu0 %v654
  %938 = vmatpush.bf16.msra.mxu0 %v646
  %939 = vmatpush.bf16.msra.mxu0 %v638
  %940 = vmatpush.bf16.msra.mxu0 %v630
  %941 = vmatpush.bf16.msra.mxu0 %v622
  %942 = vmatpush.bf16.msra.mxu0 %v614
  %943 = vmatpush.bf16.msra.mxu0 %v606
  %944 = vmatmul.bf16.gmra.mxu0 %v150
  %v945 = vpop.f32.mrf.mxu0
  %v946 = vadd.f32 %v933, %v945
  %v947 = vpop.f32.mrf.mxu0
  %948 = vdwg.mxu0
  %949 = vmatpush.bf16.msra.mxu0 %v599
  %950 = vmatpush.bf16.msra.mxu0 %v591
  %951 = vmatpush.bf16.msra.mxu0 %v583
  %952 = vmatpush.bf16.msra.mxu0 %v575
  %953 = vmatpush.bf16.msra.mxu0 %v567
  %954 = vmatpush.bf16.msra.mxu0 %v559
  %955 = vmatpush.bf16.msra.mxu0 %v551
  %956 = vmatpush.bf16.msra.mxu0 %v543
  %957 = vmatmul.bf16.gmra.mxu0 %v149
  %v958 = vpop.f32.mrf.mxu0
  %v959 = vadd.f32 0.0, %v958
  %v960 = vpop.f32.mrf.mxu0
  %961 = vdwg.mxu0
  %962 = vmatpush.bf16.msra.mxu0 %v663
  %963 = vmatpush.bf16.msra.mxu0 %v655
  %964 = vmatpush.bf16.msra.mxu0 %v647
  %965 = vmatpush.bf16.msra.mxu0 %v639
  %966 = vmatpush.bf16.msra.mxu0 %v631
  %967 = vmatpush.bf16.msra.mxu0 %v623
  %968 = vmatpush.bf16.msra.mxu0 %v615
  %969 = vmatpush.bf16.msra.mxu0 %v607
  %970 = vmatmul.bf16.gmra.mxu0 %v150
  %v971 = vpop.f32.mrf.mxu0
  %v972 = vadd.f32 %v959, %v971
  %v973 = vpop.f32.mrf.mxu0
  %974 = vdwg.mxu0
  %975 = vmatpush.bf16.msra.mxu0 %v600
  %976 = vmatpush.bf16.msra.mxu0 %v592
  %977 = vmatpush.bf16.msra.mxu0 %v584
  %978 = vmatpush.bf16.msra.mxu0 %v576
  %979 = vmatpush.bf16.msra.mxu0 %v568
  %980 = vmatpush.bf16.msra.mxu0 %v560
  %981 = vmatpush.bf16.msra.mxu0 %v552
  %982 = vmatpush.bf16.msra.mxu0 %v544
  %983 = vmatmul.bf16.gmra.mxu0 %v149
  %v984 = vpop.f32.mrf.mxu0
  %v985 = vadd.f32 0.0, %v984
  %v986 = vpop.f32.mrf.mxu0
  %987 = vdwg.mxu0
  %988 = vmatpush.bf16.msra.mxu0 %v664
  %989 = vmatpush.bf16.msra.mxu0 %v656
  %990 = vmatpush.bf16.msra.mxu0 %v648
  %991 = vmatpush.bf16.msra.mxu0 %v640
  %992 = vmatpush.bf16.msra.mxu0 %v632
  %993 = vmatpush.bf16.msra.mxu0 %v624
  %994 = vmatpush.bf16.msra.mxu0 %v616
  %995 = vmatpush.bf16.msra.mxu0 %v608
  %996 = vmatmul.bf16.gmra.mxu0 %v150
  %v997 = vpop.f32.mrf.mxu0
  %v998 = vadd.f32 %v985, %v997
  %v999 = vpop.f32.mrf.mxu0
  %1000 = vdwg.mxu0
  %v1001 = vld [vmem:[%s2] sm:$0xff]
  %v1003 = vperm.slane %v1001, 0
  %v1004 = vperm.slane %v1001, 1
  %v1005 = vperm.slane %v1001, 2
  %v1006 = vperm.slane %v1001, 3
  %v1007 = vperm.slane %v1001, 4
  %v1008 = vperm.slane %v1001, 5
  %v1009 = vperm.slane %v1001, 6
  %v1010 = vperm.slane %v1001, 7
  %v1019 = vmul.f32 %v816, %v1003
  %v1020 = vmul.f32 %v842, %v1004
  %v1021 = vmul.f32 %v868, %v1005
  %v1022 = vmul.f32 %v894, %v1006
  %v1023 = vmul.f32 %v920, %v1007
  %v1024 = vmul.f32 %v946, %v1008
  %v1025 = vmul.f32 %v972, %v1009
  %v1026 = vmul.f32 %v998, %v1010
  %v1027 = vld [vmem:[%s3] sm:$0xff]
  %v1029 = vperm.slane %v1027, 0
  %v1030 = vperm.slane %v1027, 1
  %v1031 = vperm.slane %v1027, 2
  %v1032 = vperm.slane %v1027, 3
  %v1033 = vperm.slane %v1027, 4
  %v1034 = vperm.slane %v1027, 5
  %v1035 = vperm.slane %v1027, 6
  %v1036 = vperm.slane %v1027, 7
  %v1045 = vadd.f32 %v1019, %v1029
  %v1046 = vadd.f32 %v1020, %v1030
  %v1047 = vadd.f32 %v1021, %v1031
  %v1048 = vadd.f32 %v1022, %v1032
  %v1049 = vadd.f32 %v1023, %v1033
  %v1050 = vadd.f32 %v1024, %v1034
  %v1051 = vadd.f32 %v1025, %v1035
  %v1052 = vadd.f32 %v1026, %v1036
  %v1053 = vmax.f32 %v1045, 0.0
  %v1054 = vmax.f32 %v1046, 0.0
  %v1055 = vmax.f32 %v1047, 0.0
  %v1056 = vmax.f32 %v1048, 0.0
  %v1057 = vmax.f32 %v1049, 0.0
  %v1058 = vmax.f32 %v1050, 0.0
  %v1059 = vmax.f32 %v1051, 0.0
  %v1060 = vmax.f32 %v1052, 0.0
  %1061 = vst [vmem:[%s4] sm:$0xff] %v1053
  %1062 = vst [vmem:[%s4 + $0x8] sm:$0xff] %v1054
  %1063 = vst [vmem:[%s4 + $0x10] sm:$0xff] %v1055
  %1064 = vst [vmem:[%s4 + $0x18] sm:$0xff] %v1056
  %1065 = vst [vmem:[%s4 + $0x20] sm:$0xff] %v1057
  %1066 = vst [vmem:[%s4 + $0x28] sm:$0xff] %v1058
  %1067 = vst [vmem:[%s4 + $0x30] sm:$0xff] %v1059
  %1068 = vst [vmem:[%s4 + $0x38] sm:$0xff] %v1060
  // Predicated region
  $region18: #{channel_distill_forward.13} parent=0 // pred_check
    _
  $region19: #{channel_distill_forward.13} parent=0 // pred_check_branch
    %1070 = sbr.rel (0) target = $region21
  $region20: #{channel_distill_forward.13} parent=0 // pred_region
    _
  $region21: #{channel_distill_forward.13} parent=0 // pred_fallthru
    _
  // Predicated region
  $region22: #{channel_distill_forward.13} parent=0 // pred_check
    _
  $region23: #{channel_distill_forward.13} parent=0 // pred_check_branch
    %1072 = sbr.rel (0) target = $region25
  $region24: #{channel_distill_forward.13} parent=0 // pred_region
    _
  $region25: #{channel_distill_forward.13} parent=0 // pred_fallthru
    _

// kernel: channel_distill_forward.10
$region0: #{channel_distill_forward.10}
  #allocation0 [shape = 'u32[]', space=smem, size = 0x4, offset = 0x4, fixed_abs, tag = 'smem constant byte address 0x4 - core index']
  #allocation1 [shape = 'u32[72,128]{1,0:T(1,128)}', space=vmem, size = 0x9000, scoped, tag = 'internal scratch']
  %s0 = inlined_call_operand.vmem [shape: bf16[32,128], index: 0, kind: input, shape index: {}]
  %s1 = inlined_call_operand.vmem [shape: f32[1,128], index: 1, kind: output, shape index: {0}]
  %s2 = inlined_call_operand.vmem [shape: f32[128,128], index: 2, kind: output, shape index: {1}]
  %3 = xla_tuple %s1, %s2
  %s4 = sld [smem:[#allocation0]]
  $region26: #{channel_distill_forward.10} parent=0
    _
  %s6 = ssub.s32 1, %s4
  %s7 = scalar_select 0, %s6, %s4
  // Predicated region
  $region2: #{channel_distill_forward.10} parent=0 // pred_check
    _
  $region3: #{channel_distill_forward.10} parent=0 // pred_check_branch
    %9 = sbr.rel (0) target = $region5
  $region4: #{channel_distill_forward.10} parent=0 // pred_region
    _
  $region5: #{channel_distill_forward.10} parent=0 // pred_fallthru
    _
  %p11 = scmp.eq.s32.totalorder 0, 0
  // Predicated region
  $region6: #{channel_distill_forward.10} parent=0 // pred_check
    %p12 = pneg %p11
  $region7: #{channel_distill_forward.10} parent=0 // pred_check_branch
    %14 = sbr.rel (%p12) target = $region9
  $region8: #{channel_distill_forward.10} parent=0 // pred_region
    %15 = vst [vmem:[%s1] sm:$0x1] 0.0
    %16 = vst [vmem:[%s2] sm:$0xff] 0.0
    %17 = vst [vmem:[%s2 + $0x8] sm:$0xff] 0.0
    %18 = vst [vmem:[%s2 + $0x10] sm:$0xff] 0.0
    %19 = vst [vmem:[%s2 + $0x18] sm:$0xff] 0.0
    %20 = vst [vmem:[%s2 + $0x20] sm:$0xff] 0.0
    %21 = vst [vmem:[%s2 + $0x28] sm:$0xff] 0.0
    %22 = vst [vmem:[%s2 + $0x30] sm:$0xff] 0.0
    %23 = vst [vmem:[%s2 + $0x38] sm:$0xff] 0.0
    %24 = vst [vmem:[%s2 + $0x40] sm:$0xff] 0.0
    %25 = vst [vmem:[%s2 + $0x48] sm:$0xff] 0.0
    %26 = vst [vmem:[%s2 + $0x50] sm:$0xff] 0.0
    %27 = vst [vmem:[%s2 + $0x58] sm:$0xff] 0.0
    %28 = vst [vmem:[%s2 + $0x60] sm:$0xff] 0.0
    %29 = vst [vmem:[%s2 + $0x68] sm:$0xff] 0.0
    %30 = vst [vmem:[%s2 + $0x70] sm:$0xff] 0.0
    %31 = vst [vmem:[%s2 + $0x78] sm:$0xff] 0.0
  $region9: #{channel_distill_forward.10} parent=0 // pred_fallthru
    _
  %v32 = vld [vmem:[%s0] sm:$0xf]
  %v33 = vld [vmem:[%s0 + $0x4] sm:$0xf]
  %v34 = vld [vmem:[%s0 + $0x8] sm:$0xf]
  %v35 = vld [vmem:[%s0 + $0xc] sm:$0xf]
  %v36 = vld [vmem:[%s1] sm:$0x1]
  %v37 = vunpack.c.l.bf16 %v32
  %v38 = vunpack.c.l.bf16 %v33
  %v39 = vunpack.c.l.bf16 %v34
  %v40 = vunpack.c.l.bf16 %v35
  %v41 = vadd.f32 %v37, %v38
  %v42 = vadd.f32 %v41, %v39
  %v43 = vadd.f32 %v42, %v40
  %v44 = vrot.slane %v43, 4
  %v45 = vadd.f32 %v43, %v44
  %v46 = vrot.slane %v45, 2
  %v47 = vadd.f32 %v45, %v46
  %v48 = vrot.slane %v47, 1
  %v49 = vadd.f32 %v47, %v48
  %v50 = vadd.f32 %v36, %v49
  %51 = vst [vmem:[%s1] sm:$0x1] %v50
  %v52 = vld [vmem:[%s2] sm:$0xff]
  %v53 = vld [vmem:[%s2 + $0x8] sm:$0xff]
  %v54 = vld [vmem:[%s2 + $0x10] sm:$0xff]
  %v55 = vld [vmem:[%s2 + $0x18] sm:$0xff]
  %v56 = vld [vmem:[%s2 + $0x20] sm:$0xff]
  %v57 = vld [vmem:[%s2 + $0x28] sm:$0xff]
  %v58 = vld [vmem:[%s2 + $0x30] sm:$0xff]
  %v59 = vld [vmem:[%s2 + $0x38] sm:$0xff]
  %v60 = vld [vmem:[%s2 + $0x40] sm:$0xff]
  %v61 = vld [vmem:[%s2 + $0x48] sm:$0xff]
  %v62 = vld [vmem:[%s2 + $0x50] sm:$0xff]
  %v63 = vld [vmem:[%s2 + $0x58] sm:$0xff]
  %v64 = vld [vmem:[%s2 + $0x60] sm:$0xff]
  %v65 = vld [vmem:[%s2 + $0x68] sm:$0xff]
  %v66 = vld [vmem:[%s2 + $0x70] sm:$0xff]
  %v67 = vld [vmem:[%s2 + $0x78] sm:$0xff]
  %v72 = vunpack.c.l.b16 %v32
  %v73 = vunpack.c.l.b16 %v33
  %v74 = vunpack.c.l.b16 %v34
  %v75 = vunpack.c.l.b16 %v35
  %v76 = vpack.c.b16 %v73, %v72
  %v77 = vpack.c.b16 %v75, %v74
  %80 = vxpose.xlu0.c.b16.start [1/8] %v76, 128
  %81 = vxpose.xlu0.c.b16.cont [2/8] %v77, 128
  %82 = vxpose.xlu0.c.b16.cont [3/8] 0, 128
  %83 = vxpose.xlu0.c.b16.cont [4/8] 0, 128
  %84 = vxpose.xlu0.c.b16.cont [5/8] 0, 128
  %85 = vxpose.xlu0.c.b16.cont [6/8] 0, 128
  %86 = vxpose.xlu0.c.b16.cont [7/8] 0, 128
  %87 = vxpose.xlu0.c.b16.end [8/8] 0, 128
  %v88 = vpop.trf.xlu0
  %v89 = vpop.trf.xlu0
  %v90 = vpop.trf.xlu0
  %v91 = vpop.trf.xlu0
  %v92 = vpop.trf.xlu0
  %v93 = vpop.trf.xlu0
  %v94 = vpop.trf.xlu0
  %v95 = vpop.trf.xlu0
  %vm96 = vcmask 261120
  %v98 = vsel %vm96, %v88, 0
  %v101 = vsel %vm96, %v89, 0
  %v104 = vsel %vm96, %v90, 0
  %v107 = vsel %vm96, %v91, 0
  %v110 = vsel %vm96, %v92, 0
  %v113 = vsel %vm96, %v93, 0
  %v116 = vsel %vm96, %v94, 0
  %v119 = vsel %vm96, %v95, 0
  %121 = vmatpush.bf16.msra.mxu0 0
  %122 = vmatpush.bf16.msra.mxu0 0
  %123 = vmatpush.bf16.msra.mxu0 0
  %124 = vmatpush.bf16.msra.mxu0 0
  %125 = vmatpush.bf16.msra.mxu0 0
  %126 = vmatpush.bf16.msra.mxu0 0
  %127 = vmatpush.bf16.msra.mxu0 %v77
  %128 = vmatpush.bf16.msra.mxu0 %v76
  %129 = vmatmul.bf16.gmra.mxu0 %v98
  %v130 = vpop.f32.mrf.mxu0
  %v131 = vadd.f32 0.0, %v130
  %v132 = vpop.f32.mrf.mxu0
  %v133 = vadd.f32 0.0, %v132
  %134 = vmatmul.bf16.gmra.mxu0 %v101
  %v135 = vpop.f32.mrf.mxu0
  %v136 = vadd.f32 0.0, %v135
  %v137 = vpop.f32.mrf.mxu0
  %v138 = vadd.f32 0.0, %v137
  %139 = vmatmul.bf16.gmra.mxu0 %v104
  %v140 = vpop.f32.mrf.mxu0
  %v141 = vadd.f32 0.0, %v140
  %v142 = vpop.f32.mrf.mxu0
  %v143 = vadd.f32 0.0, %v142
  %144 = vmatmul.bf16.gmra.mxu0 %v107
  %v145 = vpop.f32.mrf.mxu0
  %v146 = vadd.f32 0.0, %v145
  %v147 = vpop.f32.mrf.mxu0
  %v148 = vadd.f32 0.0, %v147
  %149 = vmatmul.bf16.gmra.mxu0 %v110
  %v150 = vpop.f32.mrf.mxu0
  %v151 = vadd.f32 0.0, %v150
  %v152 = vpop.f32.mrf.mxu0
  %v153 = vadd.f32 0.0, %v152
  %154 = vmatmul.bf16.gmra.mxu0 %v113
  %v155 = vpop.f32.mrf.mxu0
  %v156 = vadd.f32 0.0, %v155
  %v157 = vpop.f32.mrf.mxu0
  %v158 = vadd.f32 0.0, %v157
  %159 = vmatmul.bf16.gmra.mxu0 %v116
  %v160 = vpop.f32.mrf.mxu0
  %v161 = vadd.f32 0.0, %v160
  %v162 = vpop.f32.mrf.mxu0
  %v163 = vadd.f32 0.0, %v162
  %164 = vmatmul.bf16.gmra.mxu0 %v119
  %v165 = vpop.f32.mrf.mxu0
  %v166 = vadd.f32 0.0, %v165
  %v167 = vpop.f32.mrf.mxu0
  %v168 = vadd.f32 0.0, %v167
  %169 = vdwg.mxu0
  %v170 = vadd.f32 %v52, %v131
  %v171 = vadd.f32 %v53, %v133
  %v172 = vadd.f32 %v54, %v136
  %v173 = vadd.f32 %v55, %v138
  %v174 = vadd.f32 %v56, %v141
  %v175 = vadd.f32 %v57, %v143
  %v176 = vadd.f32 %v58, %v146
  %v177 = vadd.f32 %v59, %v148
  %v178 = vadd.f32 %v60, %v151
  %v179 = vadd.f32 %v61, %v153
  %v180 = vadd.f32 %v62, %v156
  %v181 = vadd.f32 %v63, %v158
  %v182 = vadd.f32 %v64, %v161
  %v183 = vadd.f32 %v65, %v163
  %v184 = vadd.f32 %v66, %v166
  %v185 = vadd.f32 %v67, %v168
  %186 = vst [vmem:[%s2] sm:$0xff] %v170
  %187 = vst [vmem:[%s2 + $0x8] sm:$0xff] %v171
  %188 = vst [vmem:[%s2 + $0x10] sm:$0xff] %v172
  %189 = vst [vmem:[%s2 + $0x18] sm:$0xff] %v173
  %190 = vst [vmem:[%s2 + $0x20] sm:$0xff] %v174
  %191 = vst [vmem:[%s2 + $0x28] sm:$0xff] %v175
  %192 = vst [vmem:[%s2 + $0x30] sm:$0xff] %v176
  %193 = vst [vmem:[%s2 + $0x38] sm:$0xff] %v177
  %194 = vst [vmem:[%s2 + $0x40] sm:$0xff] %v178
  %195 = vst [vmem:[%s2 + $0x48] sm:$0xff] %v179
  %196 = vst [vmem:[%s2 + $0x50] sm:$0xff] %v180
  %197 = vst [vmem:[%s2 + $0x58] sm:$0xff] %v181
  %198 = vst [vmem:[%s2 + $0x60] sm:$0xff] %v182
  %199 = vst [vmem:[%s2 + $0x68] sm:$0xff] %v183
  %200 = vst [vmem:[%s2 + $0x70] sm:$0xff] %v184
  %201 = vst [vmem:[%s2 + $0x78] sm:$0xff] %v185
  // Predicated region
  $region10: #{channel_distill_forward.10} parent=0 // pred_check
    _
  $region11: #{channel_distill_forward.10} parent=0 // pred_check_branch
    %203 = sbr.rel (0) target = $region13
  $region12: #{channel_distill_forward.10} parent=0 // pred_region
    _
  $region13: #{channel_distill_forward.10} parent=0 // pred_fallthru
    _
  // Predicated region
  $region14: #{channel_distill_forward.10} parent=0 // pred_check
    _
  $region15: #{channel_distill_forward.10} parent=0 // pred_check_branch
    %205 = sbr.rel (0) target = $region17
  $region16: #{channel_distill_forward.10} parent=0 // pred_region
    _
  $region17: #{channel_distill_forward.10} parent=0 // pred_fallthru
    _
  // Predicated region
  $region18: #{channel_distill_forward.10} parent=0 // pred_check
    _
  $region19: #{channel_distill_forward.10} parent=0 // pred_check_branch
    %207 = sbr.rel (0) target = $region21
  $region20: #{channel_distill_forward.10} parent=0 // pred_region
    _
  $region21: #{channel_distill_forward.10} parent=0 // pred_fallthru
    _
  // Predicated region
  $region22: #{channel_distill_forward.10} parent=0 // pred_check
    _
  $region23: #{channel_distill_forward.10} parent=0 // pred_check_branch
    %209 = sbr.rel (0) target = $region25
  $region24: #{channel_distill_forward.10} parent=0 // pred_region
    _
  $region25: #{channel_distill_forward.10} parent=0 // pred_fallthru
    _

// kernel: channel_distill_forward.11
$region0: #{channel_distill_forward.11}
  #allocation0 [shape = 'u32[]', space=smem, size = 0x4, offset = 0x4, fixed_abs, tag = 'smem constant byte address 0x4 - core index']
  #allocation1 [shape = 'u32[72,128]{1,0:T(1,128)}', space=vmem, size = 0x9000, scoped, tag = 'internal scratch']
  %s0 = inlined_call_operand.vmem [shape: bf16[32,128], index: 0, kind: input, shape index: {}]
  %s1 = inlined_call_operand.vmem [shape: bf16[128,512], index: 1, kind: input, shape index: {}]
  %s2 = inlined_call_operand.vmem [shape: f32[1,512], index: 2, kind: input, shape index: {}]
  %s3 = inlined_call_operand.vmem [shape: f32[1,512], index: 3, kind: input, shape index: {}]
  %s4 = inlined_call_operand.vmem [shape: f32[32,512], index: 4, kind: output, shape index: {}]
  %s5 = sld [smem:[#allocation0]]
  $region26: #{channel_distill_forward.11} parent=0
    _
  %s7 = ssub.s32 1, %s5
  %s8 = scalar_select 0, %s7, %s5
  // Predicated region
  $region2: #{channel_distill_forward.11} parent=0 // pred_check
    _
  $region3: #{channel_distill_forward.11} parent=0 // pred_check_branch
    %10 = sbr.rel (0) target = $region5
  $region4: #{channel_distill_forward.11} parent=0 // pred_region
    _
  $region5: #{channel_distill_forward.11} parent=0 // pred_fallthru
    _
  // Predicated region
  $region6: #{channel_distill_forward.11} parent=0 // pred_check
    _
  $region7: #{channel_distill_forward.11} parent=0 // pred_check_branch
    %12 = sbr.rel (0) target = $region9
  $region8: #{channel_distill_forward.11} parent=0 // pred_region
    _
  $region9: #{channel_distill_forward.11} parent=0 // pred_fallthru
    _
  // Predicated region
  $region10: #{channel_distill_forward.11} parent=0 // pred_check
    _
  $region11: #{channel_distill_forward.11} parent=0 // pred_check_branch
    %14 = sbr.rel (0) target = $region13
  $region12: #{channel_distill_forward.11} parent=0 // pred_region
    _
  $region13: #{channel_distill_forward.11} parent=0 // pred_fallthru
    _
  // Predicated region
  $region14: #{channel_distill_forward.11} parent=0 // pred_check
    _
  $region15: #{channel_distill_forward.11} parent=0 // pred_check_branch
    %16 = sbr.rel (0) target = $region17
  $region16: #{channel_distill_forward.11} parent=0 // pred_region
    _
  $region17: #{channel_distill_forward.11} parent=0 // pred_fallthru
    _
  %v17 = vld [vmem:[%s0] sm:$0xf]
  %v18 = vld [vmem:[%s0 + $0x4] sm:$0xf]
  %v19 = vld [vmem:[%s0 + $0x8] sm:$0xf]
  %v20 = vld [vmem:[%s0 + $0xc] sm:$0xf]
  %v21 = vld [vmem:[%s1] sm:$0xff]
  %v22 = vld [vmem:[%s1 + $0x8] sm:$0xff]
  %v23 = vld [vmem:[%s1 + $0x10] sm:$0xff]
  %v24 = vld [vmem:[%s1 + $0x18] sm:$0xff]
  %v25 = vld [vmem:[%s1 + $0x20] sm:$0xff]
  %v26 = vld [vmem:[%s1 + $0x28] sm:$0xff]
  %v27 = vld [vmem:[%s1 + $0x30] sm:$0xff]
  %v28 = vld [vmem:[%s1 + $0x38] sm:$0xff]
  %v29 = vld [vmem:[%s1 + $0x40] sm:$0xff]
  %v30 = vld [vmem:[%s1 + $0x48] sm:$0xff]
  %v31 = vld [vmem:[%s1 + $0x50] sm:$0xff]
  %v32 = vld [vmem:[%s1 + $0x58] sm:$0xff]
  %v33 = vld [vmem:[%s1 + $0x60] sm:$0xff]
  %v34 = vld [vmem:[%s1 + $0x68] sm:$0xff]
  %v35 = vld [vmem:[%s1 + $0x70] sm:$0xff]
  %v36 = vld [vmem:[%s1 + $0x78] sm:$0xff]
  %v37 = vld [vmem:[%s1 + $0x80] sm:$0xff]
  %v38 = vld [vmem:[%s1 + $0x88] sm:$0xff]
  %v39 = vld [vmem:[%s1 + $0x90] sm:$0xff]
  %v40 = vld [vmem:[%s1 + $0x98] sm:$0xff]
  %v41 = vld [vmem:[%s1 + $0xa0] sm:$0xff]
  %v42 = vld [vmem:[%s1 + $0xa8] sm:$0xff]
  %v43 = vld [vmem:[%s1 + $0xb0] sm:$0xff]
  %v44 = vld [vmem:[%s1 + $0xb8] sm:$0xff]
  %v45 = vld [vmem:[%s1 + $0xc0] sm:$0xff]
  %v46 = vld [vmem:[%s1 + $0xc8] sm:$0xff]
  %v47 = vld [vmem:[%s1 + $0xd0] sm:$0xff]
  %v48 = vld [vmem:[%s1 + $0xd8] sm:$0xff]
  %v49 = vld [vmem:[%s1 + $0xe0] sm:$0xff]
  %v50 = vld [vmem:[%s1 + $0xe8] sm:$0xff]
  %v51 = vld [vmem:[%s1 + $0xf0] sm:$0xff]
  %v52 = vld [vmem:[%s1 + $0xf8] sm:$0xff]
  %v57 = vunpack.c.l.b16 %v17
  %v58 = vunpack.c.l.b16 %v18
  %v59 = vunpack.c.l.b16 %v19
  %v60 = vunpack.c.l.b16 %v20
  %v61 = vpack.c.b16 %v58, %v57
  %v62 = vpack.c.b16 %v60, %v59
  %v97 = vunpack.c.l.b16 %v21
  %v98 = vunpack.c.h.b16 %v21
  %v99 = vunpack.c.l.b16 %v22
  %v100 = vunpack.c.h.b16 %v22
  %v101 = vunpack.c.l.b16 %v23
  %v102 = vunpack.c.h.b16 %v23
  %v103 = vunpack.c.l.b16 %v24
  %v104 = vunpack.c.h.b16 %v24
  %v105 = vunpack.c.l.b16 %v25
  %v106 = vunpack.c.h.b16 %v25
  %v107 = vunpack.c.l.b16 %v26
  %v108 = vunpack.c.h.b16 %v26
  %v109 = vunpack.c.l.b16 %v27
  %v110 = vunpack.c.h.b16 %v27
  %v111 = vunpack.c.l.b16 %v28
  %v112 = vunpack.c.h.b16 %v28
  %v113 = vunpack.c.l.b16 %v29
  %v114 = vunpack.c.h.b16 %v29
  %v115 = vunpack.c.l.b16 %v30
  %v116 = vunpack.c.h.b16 %v30
  %v117 = vunpack.c.l.b16 %v31
  %v118 = vunpack.c.h.b16 %v31
  %v119 = vunpack.c.l.b16 %v32
  %v120 = vunpack.c.h.b16 %v32
  %v121 = vunpack.c.l.b16 %v33
  %v122 = vunpack.c.h.b16 %v33
  %v123 = vunpack.c.l.b16 %v34
  %v124 = vunpack.c.h.b16 %v34
  %v125 = vunpack.c.l.b16 %v35
  %v126 = vunpack.c.h.b16 %v35
  %v127 = vunpack.c.l.b16 %v36
  %v128 = vunpack.c.h.b16 %v36
  %v129 = vunpack.c.l.b16 %v37
  %v130 = vunpack.c.h.b16 %v37
  %v131 = vunpack.c.l.b16 %v38
  %v132 = vunpack.c.h.b16 %v38
  %v133 = vunpack.c.l.b16 %v39
  %v134 = vunpack.c.h.b16 %v39
  %v135 = vunpack.c.l.b16 %v40
  %v136 = vunpack.c.h.b16 %v40
  %v137 = vunpack.c.l.b16 %v41
  %v138 = vunpack.c.h.b16 %v41
  %v139 = vunpack.c.l.b16 %v42
  %v140 = vunpack.c.h.b16 %v42
  %v141 = vunpack.c.l.b16 %v43
  %v142 = vunpack.c.h.b16 %v43
  %v143 = vunpack.c.l.b16 %v44
  %v144 = vunpack.c.h.b16 %v44
  %v145 = vunpack.c.l.b16 %v45
  %v146 = vunpack.c.h.b16 %v45
  %v147 = vunpack.c.l.b16 %v46
  %v148 = vunpack.c.h.b16 %v46
  %v149 = vunpack.c.l.b16 %v47
  %v150 = vunpack.c.h.b16 %v47
  %v151 = vunpack.c.l.b16 %v48
  %v152 = vunpack.c.h.b16 %v48
  %v153 = vunpack.c.l.b16 %v49
  %v154 = vunpack.c.h.b16 %v49
  %v155 = vunpack.c.l.b16 %v50
  %v156 = vunpack.c.h.b16 %v50
  %v157 = vunpack.c.l.b16 %v51
  %v158 = vunpack.c.h.b16 %v51
  %v159 = vunpack.c.l.b16 %v52
  %v160 = vunpack.c.h.b16 %v52
  %v161 = vpack.c.b16 %v101, %v97
  %v162 = vpack.c.b16 %v102, %v98
  %v163 = vpack.c.b16 %v103, %v99
  %v164 = vpack.c.b16 %v104, %v100
  %v165 = vpack.c.b16 %v109, %v105
  %v166 = vpack.c.b16 %v110, %v106
  %v167 = vpack.c.b16 %v111, %v107
  %v168 = vpack.c.b16 %v112, %v108
  %v169 = vpack.c.b16 %v117, %v113
  %v170 = vpack.c.b16 %v118, %v114
  %v171 = vpack.c.b16 %v119, %v115
  %v172 = vpack.c.b16 %v120, %v116
  %v173 = vpack.c.b16 %v125, %v121
  %v174 = vpack.c.b16 %v126, %v122
  %v175 = vpack.c.b16 %v127, %v123
  %v176 = vpack.c.b16 %v128, %v124
  %v177 = vpack.c.b16 %v133, %v129
  %v178 = vpack.c.b16 %v134, %v130
  %v179 = vpack.c.b16 %v135, %v131
  %v180 = vpack.c.b16 %v136, %v132
  %v181 = vpack.c.b16 %v141, %v137
  %v182 = vpack.c.b16 %v142, %v138
  %v183 = vpack.c.b16 %v143, %v139
  %v184 = vpack.c.b16 %v144, %v140
  %v185 = vpack.c.b16 %v149, %v145
  %v186 = vpack.c.b16 %v150, %v146
  %v187 = vpack.c.b16 %v151, %v147
  %v188 = vpack.c.b16 %v152, %v148
  %v189 = vpack.c.b16 %v157, %v153
  %v190 = vpack.c.b16 %v158, %v154
  %v191 = vpack.c.b16 %v159, %v155
  %v192 = vpack.c.b16 %v160, %v156
  %225 = vmatpush.bf16.msra.mxu0 %v189
  %226 = vmatpush.bf16.msra.mxu0 %v185
  %227 = vmatpush.bf16.msra.mxu0 %v181
  %228 = vmatpush.bf16.msra.mxu0 %v177
  %229 = vmatpush.bf16.msra.mxu0 %v173
  %230 = vmatpush.bf16.msra.mxu0 %v169
  %231 = vmatpush.bf16.msra.mxu0 %v165
  %232 = vmatpush.bf16.msra.mxu0 %v161
  %233 = vmatmul.bf16.gmra.mxu0 %v61
  %v234 = vpop.f32.mrf.mxu0
  %v235 = vadd.f32 0.0, %v234
  %v236 = vpop.f32.mrf.mxu0
  %v237 = vadd.f32 0.0, %v236
  %238 = vmatmul.bf16.gmra.mxu0 %v62
  %v239 = vpop.f32.mrf.mxu0
  %v240 = vadd.f32 0.0, %v239
  %v241 = vpop.f32.mrf.mxu0
  %v242 = vadd.f32 0.0, %v241
  %243 = vdwg.mxu0
  %244 = vmatpush.bf16.msra.mxu0 %v190
  %245 = vmatpush.bf16.msra.mxu0 %v186
  %246 = vmatpush.bf16.msra.mxu0 %v182
  %247 = vmatpush.bf16.msra.mxu0 %v178
  %248 = vmatpush.bf16.msra.mxu0 %v174
  %249 = vmatpush.bf16.msra.mxu0 %v170
  %250 = vmatpush.bf16.msra.mxu0 %v166
  %251 = vmatpush.bf16.msra.mxu0 %v162
  %252 = vmatmul.bf16.gmra.mxu0 %v61
  %v253 = vpop.f32.mrf.mxu0
  %v254 = vadd.f32 0.0, %v253
  %v255 = vpop.f32.mrf.mxu0
  %v256 = vadd.f32 0.0, %v255
  %257 = vmatmul.bf16.gmra.mxu0 %v62
  %v258 = vpop.f32.mrf.mxu0
  %v259 = vadd.f32 0.0, %v258
  %v260 = vpop.f32.mrf.mxu0
  %v261 = vadd.f32 0.0, %v260
  %262 = vdwg.mxu0
  %263 = vmatpush.bf16.msra.mxu0 %v191
  %264 = vmatpush.bf16.msra.mxu0 %v187
  %265 = vmatpush.bf16.msra.mxu0 %v183
  %266 = vmatpush.bf16.msra.mxu0 %v179
  %267 = vmatpush.bf16.msra.mxu0 %v175
  %268 = vmatpush.bf16.msra.mxu0 %v171
  %269 = vmatpush.bf16.msra.mxu0 %v167
  %270 = vmatpush.bf16.msra.mxu0 %v163
  %271 = vmatmul.bf16.gmra.mxu0 %v61
  %v272 = vpop.f32.mrf.mxu0
  %v273 = vadd.f32 0.0, %v272
  %v274 = vpop.f32.mrf.mxu0
  %v275 = vadd.f32 0.0, %v274
  %276 = vmatmul.bf16.gmra.mxu0 %v62
  %v277 = vpop.f32.mrf.mxu0
  %v278 = vadd.f32 0.0, %v277
  %v279 = vpop.f32.mrf.mxu0
  %v280 = vadd.f32 0.0, %v279
  %281 = vdwg.mxu0
  %282 = vmatpush.bf16.msra.mxu0 %v192
  %283 = vmatpush.bf16.msra.mxu0 %v188
  %284 = vmatpush.bf16.msra.mxu0 %v184
  %285 = vmatpush.bf16.msra.mxu0 %v180
  %286 = vmatpush.bf16.msra.mxu0 %v176
  %287 = vmatpush.bf16.msra.mxu0 %v172
  %288 = vmatpush.bf16.msra.mxu0 %v168
  %289 = vmatpush.bf16.msra.mxu0 %v164
  %290 = vmatmul.bf16.gmra.mxu0 %v61
  %v291 = vpop.f32.mrf.mxu0
  %v292 = vadd.f32 0.0, %v291
  %v293 = vpop.f32.mrf.mxu0
  %v294 = vadd.f32 0.0, %v293
  %295 = vmatmul.bf16.gmra.mxu0 %v62
  %v296 = vpop.f32.mrf.mxu0
  %v297 = vadd.f32 0.0, %v296
  %v298 = vpop.f32.mrf.mxu0
  %v299 = vadd.f32 0.0, %v298
  %300 = vdwg.mxu0
  %v301 = vld [vmem:[%s2] sm:$0xf]
  %v303 = vperm.slane %v301, 0
  %v304 = vperm.slane %v301, 1
  %v305 = vperm.slane %v301, 2
  %v306 = vperm.slane %v301, 3
  %v311 = vmul.f32 %v235, %v303
  %v312 = vmul.f32 %v254, %v304
  %v313 = vmul.f32 %v273, %v305
  %v314 = vmul.f32 %v292, %v306
  %v315 = vmul.f32 %v237, %v303
  %v316 = vmul.f32 %v256, %v304
  %v317 = vmul.f32 %v275, %v305
  %v318 = vmul.f32 %v294, %v306
  %v319 = vmul.f32 %v240, %v303
  %v320 = vmul.f32 %v259, %v304
  %v321 = vmul.f32 %v278, %v305
  %v322 = vmul.f32 %v297, %v306
  %v323 = vmul.f32 %v242, %v303
  %v324 = vmul.f32 %v261, %v304
  %v325 = vmul.f32 %v280, %v305
  %v326 = vmul.f32 %v299, %v306
  %v327 = vld [vmem:[%s3] sm:$0xf]
  %v329 = vperm.slane %v327, 0
  %v330 = vperm.slane %v327, 1
  %v331 = vperm.slane %v327, 2
  %v332 = vperm.slane %v327, 3
  %v337 = vadd.f32 %v311, %v329
  %v338 = vadd.f32 %v312, %v330
  %v339 = vadd.f32 %v313, %v331
  %v340 = vadd.f32 %v314, %v332
  %v341 = vadd.f32 %v315, %v329
  %v342 = vadd.f32 %v316, %v330
  %v343 = vadd.f32 %v317, %v331
  %v344 = vadd.f32 %v318, %v332
  %v345 = vadd.f32 %v319, %v329
  %v346 = vadd.f32 %v320, %v330
  %v347 = vadd.f32 %v321, %v331
  %v348 = vadd.f32 %v322, %v332
  %v349 = vadd.f32 %v323, %v329
  %v350 = vadd.f32 %v324, %v330
  %v351 = vadd.f32 %v325, %v331
  %v352 = vadd.f32 %v326, %v332
  %v353 = vmax.f32 %v337, 0.0
  %v354 = vmax.f32 %v338, 0.0
  %v355 = vmax.f32 %v339, 0.0
  %v356 = vmax.f32 %v340, 0.0
  %v357 = vmax.f32 %v341, 0.0
  %v358 = vmax.f32 %v342, 0.0
  %v359 = vmax.f32 %v343, 0.0
  %v360 = vmax.f32 %v344, 0.0
  %v361 = vmax.f32 %v345, 0.0
  %v362 = vmax.f32 %v346, 0.0
  %v363 = vmax.f32 %v347, 0.0
  %v364 = vmax.f32 %v348, 0.0
  %v365 = vmax.f32 %v349, 0.0
  %v366 = vmax.f32 %v350, 0.0
  %v367 = vmax.f32 %v351, 0.0
  %v368 = vmax.f32 %v352, 0.0
  %369 = vst [vmem:[%s4] sm:$0xff] %v353
  %370 = vst [vmem:[%s4 + $0x8] sm:$0xff] %v354
  %371 = vst [vmem:[%s4 + $0x10] sm:$0xff] %v355
  %372 = vst [vmem:[%s4 + $0x18] sm:$0xff] %v356
  %373 = vst [vmem:[%s4 + $0x20] sm:$0xff] %v357
  %374 = vst [vmem:[%s4 + $0x28] sm:$0xff] %v358
  %375 = vst [vmem:[%s4 + $0x30] sm:$0xff] %v359
  %376 = vst [vmem:[%s4 + $0x38] sm:$0xff] %v360
  %377 = vst [vmem:[%s4 + $0x40] sm:$0xff] %v361
  %378 = vst [vmem:[%s4 + $0x48] sm:$0xff] %v362
  %379 = vst [vmem:[%s4 + $0x50] sm:$0xff] %v363
  %380 = vst [vmem:[%s4 + $0x58] sm:$0xff] %v364
  %381 = vst [vmem:[%s4 + $0x60] sm:$0xff] %v365
  %382 = vst [vmem:[%s4 + $0x68] sm:$0xff] %v366
  %383 = vst [vmem:[%s4 + $0x70] sm:$0xff] %v367
  %384 = vst [vmem:[%s4 + $0x78] sm:$0xff] %v368
  // Predicated region
  $region18: #{channel_distill_forward.11} parent=0 // pred_check
    _
  $region19: #{channel_distill_forward.11} parent=0 // pred_check_branch
    %386 = sbr.rel (0) target = $region21
  $region20: #{channel_distill_forward.11} parent=0 // pred_region
    _
  $region21: #{channel_distill_forward.11} parent=0 // pred_fallthru
    _
  // Predicated region
  $region22: #{channel_distill_forward.11} parent=0 // pred_check
    _
  $region23: #{channel_distill_forward.11} parent=0 // pred_check_branch
    %388 = sbr.rel (0) target = $region25
  $region24: #{channel_distill_forward.11} parent=0 // pred_region
    _
  $region25: #{channel_distill_forward.11} parent=0 // pred_fallthru
    _

// kernel: channel_distill_forward.8
$region0: #{channel_distill_forward.8}
  #allocation0 [shape = 'u32[]', space=smem, size = 0x4, offset = 0x4, fixed_abs, tag = 'smem constant byte address 0x4 - core index']
  #allocation1 [shape = 'u32[72,128]{1,0:T(1,128)}', space=vmem, size = 0x9000, scoped, tag = 'internal scratch']
  %s0 = inlined_call_operand.vmem [shape: bf16[128,64], index: 0, kind: input, shape index: {}]
  %s1 = inlined_call_operand.vmem [shape: f32[1,64], index: 1, kind: output, shape index: {0}]
  %s2 = inlined_call_operand.vmem [shape: f32[64,64], index: 2, kind: output, shape index: {1}]
  %3 = xla_tuple %s1, %s2
  %s4 = sld [smem:[#allocation0]]
  $region26: #{channel_distill_forward.8} parent=0
    _
  %s6 = ssub.s32 1, %s4
  %s7 = scalar_select 0, %s6, %s4
  // Predicated region
  $region2: #{channel_distill_forward.8} parent=0 // pred_check
    _
  $region3: #{channel_distill_forward.8} parent=0 // pred_check_branch
    %9 = sbr.rel (0) target = $region5
  $region4: #{channel_distill_forward.8} parent=0 // pred_region
    _
  $region5: #{channel_distill_forward.8} parent=0 // pred_fallthru
    _
  %p10 = scmp.eq.s32.totalorder 0, 0
  // Predicated region
  $region6: #{channel_distill_forward.8} parent=0 // pred_check
    %p11 = pneg %p10
  $region7: #{channel_distill_forward.8} parent=0 // pred_check_branch
    %13 = sbr.rel (%p11) target = $region9
  $region8: #{channel_distill_forward.8} parent=0 // pred_region
    %vm14 = vcmask 516096
    %15 = vst.msk [vmem:[%s1] sm:$0x1] %vm14, 0.0
    %vm16 = vcmask 523264
    %17 = vst.msk [vmem:[%s2] sm:$0xff] %vm16, 0.0
    %18 = vst.msk [vmem:[%s2 + $0x8] sm:$0xff] %vm16, 0.0
    %19 = vst.msk [vmem:[%s2 + $0x10] sm:$0xff] %vm16, 0.0
    %20 = vst.msk [vmem:[%s2 + $0x18] sm:$0xff] %vm16, 0.0
    %21 = vst.msk [vmem:[%s2 + $0x20] sm:$0xff] %vm16, 0.0
    %22 = vst.msk [vmem:[%s2 + $0x28] sm:$0xff] %vm16, 0.0
    %23 = vst.msk [vmem:[%s2 + $0x30] sm:$0xff] %vm16, 0.0
    %24 = vst.msk [vmem:[%s2 + $0x38] sm:$0xff] %vm16, 0.0
  $region9: #{channel_distill_forward.8} parent=0 // pred_fallthru
    _
  %v25 = vld [vmem:[%s0] sm:$0xf]
  %v26 = vld [vmem:[%s0 + $0x4] sm:$0xf]
  %v27 = vld [vmem:[%s0 + $0x8] sm:$0xf]
  %v28 = vld [vmem:[%s0 + $0xc] sm:$0xf]
  %v29 = vld [vmem:[%s0 + $0x10] sm:$0xf]
  %v30 = vld [vmem:[%s0 + $0x14] sm:$0xf]
  %v31 = vld [vmem:[%s0 + $0x18] sm:$0xf]
  %v32 = vld [vmem:[%s0 + $0x1c] sm:$0xf]
  %v33 = vld [vmem:[%s0 + $0x20] sm:$0xf]
  %v34 = vld [vmem:[%s0 + $0x24] sm:$0xf]
  %v35 = vld [vmem:[%s0 + $0x28] sm:$0xf]
  %v36 = vld [vmem:[%s0 + $0x2c] sm:$0xf]
  %v37 = vld [vmem:[%s0 + $0x30] sm:$0xf]
  %v38 = vld [vmem:[%s0 + $0x34] sm:$0xf]
  %v39 = vld [vmem:[%s0 + $0x38] sm:$0xf]
  %v40 = vld [vmem:[%s0 + $0x3c] sm:$0xf]
  %v41 = vld [vmem:[%s1] sm:$0x1]
  %v42 = vunpack.c.l.bf16 %v25
  %v43 = vunpack.c.l.bf16 %v26
  %v44 = vunpack.c.l.bf16 %v27
  %v45 = vunpack.c.l.bf16 %v28
  %v46 = vunpack.c.l.bf16 %v29
  %v47 = vunpack.c.l.bf16 %v30
  %v48 = vunpack.c.l.bf16 %v31
  %v49 = vunpack.c.l.bf16 %v32
  %v50 = vunpack.c.l.bf16 %v33
  %v51 = vunpack.c.l.bf16 %v34
  %v52 = vunpack.c.l.bf16 %v35
  %v53 = vunpack.c.l.bf16 %v36
  %v54 = vunpack.c.l.bf16 %v37
  %v55 = vunpack.c.l.bf16 %v38
  %v56 = vunpack.c.l.bf16 %v39
  %v57 = vunpack.c.l.bf16 %v40
  %vm58 = vcmask 523264
  %v59 = vsel %vm58, %v42, 0.0
  %v60 = vsel %vm58, %v43, 0.0
  %v61 = vadd.f32 %v59, %v60
  %v62 = vsel %vm58, %v44, 0.0
  %v63 = vadd.f32 %v61, %v62
  %v64 = vsel %vm58, %v45, 0.0
  %v65 = vadd.f32 %v63, %v64
  %v66 = vsel %vm58, %v46, 0.0
  %v67 = vadd.f32 %v65, %v66
  %v68 = vsel %vm58, %v47, 0.0
  %v69 = vadd.f32 %v67, %v68
  %v70 = vsel %vm58, %v48, 0.0
  %v71 = vadd.f32 %v69, %v70
  %v72 = vsel %vm58, %v49, 0.0
  %v73 = vadd.f32 %v71, %v72
  %v74 = vsel %vm58, %v50, 0.0
  %v75 = vadd.f32 %v73, %v74
  %v76 = vsel %vm58, %v51, 0.0
  %v77 = vadd.f32 %v75, %v76
  %v78 = vsel %vm58, %v52, 0.0
  %v79 = vadd.f32 %v77, %v78
  %v80 = vsel %vm58, %v53, 0.0
  %v81 = vadd.f32 %v79, %v80
  %v82 = vsel %vm58, %v54, 0.0
  %v83 = vadd.f32 %v81, %v82
  %v84 = vsel %vm58, %v55, 0.0
  %v85 = vadd.f32 %v83, %v84
  %v86 = vsel %vm58, %v56, 0.0
  %v87 = vadd.f32 %v85, %v86
  %v88 = vsel %vm58, %v57, 0.0
  %v89 = vadd.f32 %v87, %v88
  %v90 = vrot.slane %v89, 4
  %v91 = vadd.f32 %v89, %v90
  %v92 = vrot.slane %v91, 2
  %v93 = vadd.f32 %v91, %v92
  %v94 = vrot.slane %v93, 1
  %v95 = vadd.f32 %v93, %v94
  %v96 = vadd.f32 %v41, %v95
  %vm97 = vcmask 516096
  %98 = vst.msk [vmem:[%s1] sm:$0x1] %vm97, %v96
  %v99 = vld [vmem:[%s2] sm:$0xff]
  %v100 = vld [vmem:[%s2 + $0x8] sm:$0xff]
  %v101 = vld [vmem:[%s2 + $0x10] sm:$0xff]
  %v102 = vld [vmem:[%s2 + $0x18] sm:$0xff]
  %v103 = vld [vmem:[%s2 + $0x20] sm:$0xff]
  %v104 = vld [vmem:[%s2 + $0x28] sm:$0xff]
  %v105 = vld [vmem:[%s2 + $0x30] sm:$0xff]
  %v106 = vld [vmem:[%s2 + $0x38] sm:$0xff]
  %v123 = vunpack.c.l.b16 %v25
  %v124 = vunpack.c.l.b16 %v26
  %v125 = vunpack.c.l.b16 %v27
  %v126 = vunpack.c.l.b16 %v28
  %v127 = vunpack.c.l.b16 %v29
  %v128 = vunpack.c.l.b16 %v30
  %v129 = vunpack.c.l.b16 %v31
  %v130 = vunpack.c.l.b16 %v32
  %v131 = vunpack.c.l.b16 %v33
  %v132 = vunpack.c.l.b16 %v34
  %v133 = vunpack.c.l.b16 %v35
  %v134 = vunpack.c.l.b16 %v36
  %v135 = vunpack.c.l.b16 %v37
  %v136 = vunpack.c.l.b16 %v38
  %v137 = vunpack.c.l.b16 %v39
  %v138 = vunpack.c.l.b16 %v40
  %v139 = vpack.c.b16 %v124, %v123
  %v140 = vpack.c.b16 %v126, %v125
  %v141 = vpack.c.b16 %v128, %v127
  %v142 = vpack.c.b16 %v130, %v129
  %v143 = vpack.c.b16 %v132, %v131
  %v144 = vpack.c.b16 %v134, %v133
  %v145 = vpack.c.b16 %v136, %v135
  %v146 = vpack.c.b16 %v138, %v137
  %155 = vxpose.xlu0.c.b16.start [1/8] %v139, 128
  %156 = vxpose.xlu0.c.b16.cont [2/8] %v140, 128
  %157 = vxpose.xlu0.c.b16.cont [3/8] %v141, 128
  %158 = vxpose.xlu0.c.b16.cont [4/8] %v142, 128
  %159 = vxpose.xlu0.c.b16.cont [5/8] %v143, 128
  %160 = vxpose.xlu0.c.b16.cont [6/8] %v144, 128
  %161 = vxpose.xlu0.c.b16.cont [7/8] %v145, 128
  %162 = vxpose.xlu0.c.b16.end [8/8] %v146, 128
  %v163 = vpop.trf.xlu0
  %v164 = vpop.trf.xlu0
  %v165 = vpop.trf.xlu0
  %v166 = vpop.trf.xlu0
  %v167 = vpop.trf.xlu0
  %v168 = vpop.trf.xlu0
  %v169 = vpop.trf.xlu0
  %v170 = vpop.trf.xlu0
  %171 = vmatpush.bf16.msra.mxu0 %v146
  %172 = vmatpush.bf16.msra.mxu0 %v145
  %173 = vmatpush.bf16.msra.mxu0 %v144
  %174 = vmatpush.bf16.msra.mxu0 %v143
  %175 = vmatpush.bf16.msra.mxu0 %v142
  %176 = vmatpush.bf16.msra.mxu0 %v141
  %177 = vmatpush.bf16.msra.mxu0 %v140
  %178 = vmatpush.bf16.msra.mxu0 %v139
  %179 = vmatmul.bf16.gmra.mxu0 %v163
  %v180 = vpop.f32.mrf.mxu0
  %v181 = vadd.f32 0.0, %v180
  %v182 = vpop.f32.mrf.mxu0
  %v183 = vadd.f32 0.0, %v182
  %184 = vmatmul.bf16.gmra.mxu0 %v164
  %v185 = vpop.f32.mrf.mxu0
  %v186 = vadd.f32 0.0, %v185
  %v187 = vpop.f32.mrf.mxu0
  %v188 = vadd.f32 0.0, %v187
  %189 = vmatmul.bf16.gmra.mxu0 %v165
  %v190 = vpop.f32.mrf.mxu0
  %v191 = vadd.f32 0.0, %v190
  %v192 = vpop.f32.mrf.mxu0
  %v193 = vadd.f32 0.0, %v192
  %194 = vmatmul.bf16.gmra.mxu0 %v166
  %v195 = vpop.f32.mrf.mxu0
  %v196 = vadd.f32 0.0, %v195
  %v197 = vpop.f32.mrf.mxu0
  %v198 = vadd.f32 0.0, %v197
  %199 = vdwg.mxu0
  %v200 = vadd.f32 %v99, %v181
  %v201 = vadd.f32 %v100, %v183
  %v202 = vadd.f32 %v101, %v186
  %v203 = vadd.f32 %v102, %v188
  %v204 = vadd.f32 %v103, %v191
  %v205 = vadd.f32 %v104, %v193
  %v206 = vadd.f32 %v105, %v196
  %v207 = vadd.f32 %v106, %v198
  %208 = vst.msk [vmem:[%s2] sm:$0xff] %vm58, %v200
  %209 = vst.msk [vmem:[%s2 + $0x8] sm:$0xff] %vm58, %v201
  %210 = vst.msk [vmem:[%s2 + $0x10] sm:$0xff] %vm58, %v202
  %211 = vst.msk [vmem:[%s2 + $0x18] sm:$0xff] %vm58, %v203
  %212 = vst.msk [vmem:[%s2 + $0x20] sm:$0xff] %vm58, %v204
  %213 = vst.msk [vmem:[%s2 + $0x28] sm:$0xff] %vm58, %v205
  %214 = vst.msk [vmem:[%s2 + $0x30] sm:$0xff] %vm58, %v206
  %215 = vst.msk [vmem:[%s2 + $0x38] sm:$0xff] %vm58, %v207
  // Predicated region
  $region10: #{channel_distill_forward.8} parent=0 // pred_check
    _
  $region11: #{channel_distill_forward.8} parent=0 // pred_check_branch
    %217 = sbr.rel (0) target = $region13
  $region12: #{channel_distill_forward.8} parent=0 // pred_region
    _
  $region13: #{channel_distill_forward.8} parent=0 // pred_fallthru
    _
  // Predicated region
  $region14: #{channel_distill_forward.8} parent=0 // pred_check
    _
  $region15: #{channel_distill_forward.8} parent=0 // pred_check_branch
    %219 = sbr.rel (0) target = $region17
  $region16: #{channel_distill_forward.8} parent=0 // pred_region
    _
  $region17: #{channel_distill_forward.8} parent=0 // pred_fallthru
    _
  // Predicated region
  $region18: #{channel_distill_forward.8} parent=0 // pred_check
    _
  $region19: #{channel_distill_forward.8} parent=0 // pred_check_branch
    %221 = sbr.rel (0) target = $region21
  $region20: #{channel_distill_forward.8} parent=0 // pred_region
    _
  $region21: #{channel_distill_forward.8} parent=0 // pred_fallthru
    _
  // Predicated region
  $region22: #{channel_distill_forward.8} parent=0 // pred_check
    _
  $region23: #{channel_distill_forward.8} parent=0 // pred_check_branch
    %223 = sbr.rel (0) target = $region25
  $region24: #{channel_distill_forward.8} parent=0 // pred_region
    _
  $region25: #{channel_distill_forward.8} parent=0 // pred_fallthru
    _

// kernel: channel_distill_forward.9
$region0: #{channel_distill_forward.9}
  #allocation0 [shape = 'u32[]', space=smem, size = 0x4, offset = 0x4, fixed_abs, tag = 'smem constant byte address 0x4 - core index']
  #allocation1 [shape = 'u32[72,128]{1,0:T(1,128)}', space=vmem, size = 0x9000, scoped, tag = 'internal scratch']
  %s0 = inlined_call_operand.vmem [shape: bf16[128,64], index: 0, kind: input, shape index: {}]
  %s1 = inlined_call_operand.vmem [shape: bf16[64,256], index: 1, kind: input, shape index: {}]
  %s2 = inlined_call_operand.vmem [shape: f32[1,256], index: 2, kind: input, shape index: {}]
  %s3 = inlined_call_operand.vmem [shape: f32[1,256], index: 3, kind: input, shape index: {}]
  %s4 = inlined_call_operand.hbm [shape: f32[128,256], index: 4, kind: output, shape index: {}]
  %s5 = sld [smem:[#allocation0]]
  $region26: #{channel_distill_forward.9} parent=0
    _
  %s7 = ssub.s32 1, %s5
  %s8 = scalar_select 0, %s7, %s5
  $region1: #{channel_distill_forward.9} parent=0
    #allocation2 [shape = 'u8[131072]{0}', space=vmem, size = 0x20000, scoped, tag = 'output window, operand 0, single buffered']
    #allocation3 [shape = 's32[1]{0}', space=sflag, size = 0x4, scoped, tag = 'scoped memory for channel_distill_forward.9']
    %9 = vsyncpa [#allocation3], 0
    // Predicated region
    $region2: #{channel_distill_forward.9} parent=1 // pred_check
      _
    $region3: #{channel_distill_forward.9} parent=1 // pred_check_branch
      %11 = sbr.rel (0) target = $region5
    $region4: #{channel_distill_forward.9} parent=1 // pred_region
      _
    $region5: #{channel_distill_forward.9} parent=1 // pred_fallthru
      _
    // Predicated region
    $region6: #{channel_distill_forward.9} parent=1 // pred_check
      _
    $region7: #{channel_distill_forward.9} parent=1 // pred_check_branch
      %13 = sbr.rel (0) target = $region9
    $region8: #{channel_distill_forward.9} parent=1 // pred_region
      _
    $region9: #{channel_distill_forward.9} parent=1 // pred_fallthru
      _
    // Predicated region
    $region10: #{channel_distill_forward.9} parent=1 // pred_check
      _
    $region11: #{channel_distill_forward.9} parent=1 // pred_check_branch
      %15 = sbr.rel (0) target = $region13
    $region12: #{channel_distill_forward.9} parent=1 // pred_region
      _
    $region13: #{channel_distill_forward.9} parent=1 // pred_fallthru
      _
    // Predicated region
    $region14: #{channel_distill_forward.9} parent=1 // pred_check
      _
    $region15: #{channel_distill_forward.9} parent=1 // pred_check_branch
      %17 = sbr.rel (0) target = $region17
    $region16: #{channel_distill_forward.9} parent=1 // pred_region
      _
    $region17: #{channel_distill_forward.9} parent=1 // pred_fallthru
      _
    %v19 = vld [vmem:[%s0] sm:$0xf]
    %v20 = vld [vmem:[%s0 + $0x4] sm:$0xf]
    %v21 = vld [vmem:[%s0 + $0x8] sm:$0xf]
    %v22 = vld [vmem:[%s0 + $0xc] sm:$0xf]
    %v23 = vld [vmem:[%s0 + $0x10] sm:$0xf]
    %v24 = vld [vmem:[%s0 + $0x14] sm:$0xf]
    %v25 = vld [vmem:[%s0 + $0x18] sm:$0xf]
    %v26 = vld [vmem:[%s0 + $0x1c] sm:$0xf]
    %v27 = vld [vmem:[%s0 + $0x20] sm:$0xf]
    %v28 = vld [vmem:[%s0 + $0x24] sm:$0xf]
    %v29 = vld [vmem:[%s0 + $0x28] sm:$0xf]
    %v30 = vld [vmem:[%s0 + $0x2c] sm:$0xf]
    %v31 = vld [vmem:[%s0 + $0x30] sm:$0xf]
    %v32 = vld [vmem:[%s0 + $0x34] sm:$0xf]
    %v33 = vld [vmem:[%s0 + $0x38] sm:$0xf]
    %v34 = vld [vmem:[%s0 + $0x3c] sm:$0xf]
    %v35 = vld [vmem:[%s1] sm:$0xff]
    %v36 = vld [vmem:[%s1 + $0x8] sm:$0xff]
    %v37 = vld [vmem:[%s1 + $0x10] sm:$0xff]
    %v38 = vld [vmem:[%s1 + $0x18] sm:$0xff]
    %v39 = vld [vmem:[%s1 + $0x20] sm:$0xff]
    %v40 = vld [vmem:[%s1 + $0x28] sm:$0xff]
    %v41 = vld [vmem:[%s1 + $0x30] sm:$0xff]
    %v42 = vld [vmem:[%s1 + $0x38] sm:$0xff]
    %v59 = vunpack.c.l.b16 %v19
    %v60 = vunpack.c.l.b16 %v20
    %v61 = vunpack.c.l.b16 %v21
    %v62 = vunpack.c.l.b16 %v22
    %v63 = vunpack.c.l.b16 %v23
    %v64 = vunpack.c.l.b16 %v24
    %v65 = vunpack.c.l.b16 %v25
    %v66 = vunpack.c.l.b16 %v26
    %v67 = vunpack.c.l.b16 %v27
    %v68 = vunpack.c.l.b16 %v28
    %v69 = vunpack.c.l.b16 %v29
    %v70 = vunpack.c.l.b16 %v30
    %v71 = vunpack.c.l.b16 %v31
    %v72 = vunpack.c.l.b16 %v32
    %v73 = vunpack.c.l.b16 %v33
    %v74 = vunpack.c.l.b16 %v34
    %v75 = vpack.c.b16 %v60, %v59
    %v76 = vpack.c.b16 %v62, %v61
    %v77 = vpack.c.b16 %v64, %v63
    %v78 = vpack.c.b16 %v66, %v65
    %v79 = vpack.c.b16 %v68, %v67
    %v80 = vpack.c.b16 %v70, %v69
    %v81 = vpack.c.b16 %v72, %v71
    %v82 = vpack.c.b16 %v74, %v73
    %v91 = vunpack.c.l.b16 %v35
    %v92 = vunpack.c.h.b16 %v35
    %v93 = vunpack.c.l.b16 %v36
    %v94 = vunpack.c.h.b16 %v36
    %v95 = vunpack.c.l.b16 %v37
    %v96 = vunpack.c.h.b16 %v37
    %v97 = vunpack.c.l.b16 %v38
    %v98 = vunpack.c.h.b16 %v38
    %v99 = vunpack.c.l.b16 %v39
    %v100 = vunpack.c.h.b16 %v39
    %v101 = vunpack.c.l.b16 %v40
    %v102 = vunpack.c.h.b16 %v40
    %v103 = vunpack.c.l.b16 %v41
    %v104 = vunpack.c.h.b16 %v41
    %v105 = vunpack.c.l.b16 %v42
    %v106 = vunpack.c.h.b16 %v42
    %v107 = vpack.c.b16 %v93, %v91
    %v108 = vpack.c.b16 %v94, %v92
    %v109 = vpack.c.b16 %v97, %v95
    %v110 = vpack.c.b16 %v98, %v96
    %v111 = vpack.c.b16 %v101, %v99
    %v112 = vpack.c.b16 %v102, %v100
    %v113 = vpack.c.b16 %v105, %v103
    %v114 = vpack.c.b16 %v106, %v104
    %vm123 = vcmask 523264
    %v125 = vsel %vm123, %v75, 0
    %v128 = vsel %vm123, %v76, 0
    %v131 = vsel %vm123, %v77, 0
    %v134 = vsel %vm123, %v78, 0
    %v137 = vsel %vm123, %v79, 0
    %v140 = vsel %vm123, %v80, 0
    %v143 = vsel %vm123, %v81, 0
    %v146 = vsel %vm123, %v82, 0
    %148 = vmatpush.bf16.msra.mxu0 0
    %149 = vmatpush.bf16.msra.mxu0 0
    %150 = vmatpush.bf16.msra.mxu0 0
    %151 = vmatpush.bf16.msra.mxu0 0
    %152 = vmatpush.bf16.msra.mxu0 %v113
    %153 = vmatpush.bf16.msra.mxu0 %v111
    %154 = vmatpush.bf16.msra.mxu0 %v109
    %155 = vmatpush.bf16.msra.mxu0 %v107
    %156 = vmatmul.bf16.gmra.mxu0 %v125
    %v157 = vpop.f32.mrf.mxu0
    %v158 = vadd.f32 0.0, %v157
    %v159 = vpop.f32.mrf.mxu0
    %v160 = vadd.f32 0.0, %v159
    %161 = vmatmul.bf16.gmra.mxu0 %v128
    %v162 = vpop.f32.mrf.mxu0
    %v163 = vadd.f32 0.0, %v162
    %v164 = vpop.f32.mrf.mxu0
    %v165 = vadd.f32 0.0, %v164
    %166 = vmatmul.bf16.gmra.mxu0 %v131
    %v167 = vpop.f32.mrf.mxu0
    %v168 = vadd.f32 0.0, %v167
    %v169 = vpop.f32.mrf.mxu0
    %v170 = vadd.f32 0.0, %v169
    %171 = vmatmul.bf16.gmra.mxu0 %v134
    %v172 = vpop.f32.mrf.mxu0
    %v173 = vadd.f32 0.0, %v172
    %v174 = vpop.f32.mrf.mxu0
    %v175 = vadd.f32 0.0, %v174
    %176 = vmatmul.bf16.gmra.mxu0 %v137
    %v177 = vpop.f32.mrf.mxu0
    %v178 = vadd.f32 0.0, %v177
    %v179 = vpop.f32.mrf.mxu0
    %v180 = vadd.f32 0.0, %v179
    %181 = vmatmul.bf16.gmra.mxu0 %v140
    %v182 = vpop.f32.mrf.mxu0
    %v183 = vadd.f32 0.0, %v182
    %v184 = vpop.f32.mrf.mxu0
    %v185 = vadd.f32 0.0, %v184
    %186 = vmatmul.bf16.gmra.mxu0 %v143
    %v187 = vpop.f32.mrf.mxu0
    %v188 = vadd.f32 0.0, %v187
    %v189 = vpop.f32.mrf.mxu0
    %v190 = vadd.f32 0.0, %v189
    %191 = vmatmul.bf16.gmra.mxu0 %v146
    %v192 = vpop.f32.mrf.mxu0
    %v193 = vadd.f32 0.0, %v192
    %v194 = vpop.f32.mrf.mxu0
    %v195 = vadd.f32 0.0, %v194
    %196 = vdwg.mxu0
    %197 = vmatpush.bf16.msra.mxu0 0
    %198 = vmatpush.bf16.msra.mxu0 0
    %199 = vmatpush.bf16.msra.mxu0 0
    %200 = vmatpush.bf16.msra.mxu0 0
    %201 = vmatpush.bf16.msra.mxu0 %v114
    %202 = vmatpush.bf16.msra.mxu0 %v112
    %203 = vmatpush.bf16.msra.mxu0 %v110
    %204 = vmatpush.bf16.msra.mxu0 %v108
    %205 = vmatmul.bf16.gmra.mxu0 %v125
    %v206 = vpop.f32.mrf.mxu0
    %v207 = vadd.f32 0.0, %v206
    %v208 = vpop.f32.mrf.mxu0
    %v209 = vadd.f32 0.0, %v208
    %210 = vmatmul.bf16.gmra.mxu0 %v128
    %v211 = vpop.f32.mrf.mxu0
    %v212 = vadd.f32 0.0, %v211
    %v213 = vpop.f32.mrf.mxu0
    %v214 = vadd.f32 0.0, %v213
    %215 = vmatmul.bf16.gmra.mxu0 %v131
    %v216 = vpop.f32.mrf.mxu0
    %v217 = vadd.f32 0.0, %v216
    %v218 = vpop.f32.mrf.mxu0
    %v219 = vadd.f32 0.0, %v218
    %220 = vmatmul.bf16.gmra.mxu0 %v134
    %v221 = vpop.f32.mrf.mxu0
    %v222 = vadd.f32 0.0, %v221
    %v223 = vpop.f32.mrf.mxu0
    %v224 = vadd.f32 0.0, %v223
    %225 = vmatmul.bf16.gmra.mxu0 %v137
    %v226 = vpop.f32.mrf.mxu0
    %v227 = vadd.f32 0.0, %v226
    %v228 = vpop.f32.mrf.mxu0
    %v229 = vadd.f32 0.0, %v228
    %230 = vmatmul.bf16.gmra.mxu0 %v140
    %v231 = vpop.f32.mrf.mxu0
    %v232 = vadd.f32 0.0, %v231
    %v233 = vpop.f32.mrf.mxu0
    %v234 = vadd.f32 0.0, %v233
    %235 = vmatmul.bf16.gmra.mxu0 %v143
    %v236 = vpop.f32.mrf.mxu0
    %v237 = vadd.f32 0.0, %v236
    %v238 = vpop.f32.mrf.mxu0
    %v239 = vadd.f32 0.0, %v238
    %240 = vmatmul.bf16.gmra.mxu0 %v146
    %v241 = vpop.f32.mrf.mxu0
    %v242 = vadd.f32 0.0, %v241
    %v243 = vpop.f32.mrf.mxu0
    %v244 = vadd.f32 0.0, %v243
    %245 = vdwg.mxu0
    %v246 = vld [vmem:[%s2] sm:$0x3]
    %v248 = vperm.slane %v246, 0
    %v249 = vperm.slane %v246, 1
    %v252 = vmul.f32 %v158, %v248
    %v253 = vmul.f32 %v207, %v249
    %v254 = vmul.f32 %v160, %v248
    %v255 = vmul.f32 %v209, %v249
    %v256 = vmul.f32 %v163, %v248
    %v257 = vmul.f32 %v212, %v249
    %v258 = vmul.f32 %v165, %v248
    %v259 = vmul.f32 %v214, %v249
    %v260 = vmul.f32 %v168, %v248
    %v261 = vmul.f32 %v217, %v249
    %v262 = vmul.f32 %v170, %v248
    %v263 = vmul.f32 %v219, %v249
    %v264 = vmul.f32 %v173, %v248
    %v265 = vmul.f32 %v222, %v249
    %v266 = vmul.f32 %v175, %v248
    %v267 = vmul.f32 %v224, %v249
    %v268 = vmul.f32 %v178, %v248
    %v269 = vmul.f32 %v227, %v249
    %v270 = vmul.f32 %v180, %v248
    %v271 = vmul.f32 %v229, %v249
    %v272 = vmul.f32 %v183, %v248
    %v273 = vmul.f32 %v232, %v249
    %v274 = vmul.f32 %v185, %v248
    %v275 = vmul.f32 %v234, %v249
    %v276 = vmul.f32 %v188, %v248
    %v277 = vmul.f32 %v237, %v249
    %v278 = vmul.f32 %v190, %v248
    %v279 = vmul.f32 %v239, %v249
    %v280 = vmul.f32 %v193, %v248
    %v281 = vmul.f32 %v242, %v249
    %v282 = vmul.f32 %v195, %v248
    %v283 = vmul.f32 %v244, %v249
    %v284 = vld [vmem:[%s3] sm:$0x3]
    %v286 = vperm.slane %v284, 0
    %v287 = vperm.slane %v284, 1
    %v290 = vadd.f32 %v252, %v286
    %v291 = vadd.f32 %v253, %v287
    %v292 = vadd.f32 %v254, %v286
    %v293 = vadd.f32 %v255, %v287
    %v294 = vadd.f32 %v256, %v286
    %v295 = vadd.f32 %v257, %v287
    %v296 = vadd.f32 %v258, %v286
    %v297 = vadd.f32 %v259, %v287
    %v298 = vadd.f32 %v260, %v286
    %v299 = vadd.f32 %v261, %v287
    %v300 = vadd.f32 %v262, %v286
    %v301 = vadd.f32 %v263, %v287
    %v302 = vadd.f32 %v264, %v286
    %v303 = vadd.f32 %v265, %v287
    %v304 = vadd.f32 %v266, %v286
    %v305 = vadd.f32 %v267, %v287
    %v306 = vadd.f32 %v268, %v286
    %v307 = vadd.f32 %v269, %v287
    %v308 = vadd.f32 %v270, %v286
    %v309 = vadd.f32 %v271, %v287
    %v310 = vadd.f32 %v272, %v286
    %v311 = vadd.f32 %v273, %v287
    %v312 = vadd.f32 %v274, %v286
    %v313 = vadd.f32 %v275, %v287
    %v314 = vadd.f32 %v276, %v286
    %v315 = vadd.f32 %v277, %v287
    %v316 = vadd.f32 %v278, %v286
    %v317 = vadd.f32 %v279, %v287
    %v318 = vadd.f32 %v280, %v286
    %v319 = vadd.f32 %v281, %v287
    %v320 = vadd.f32 %v282, %v286
    %v321 = vadd.f32 %v283, %v287
    %v322 = vmax.f32 %v290, 0.0
    %v323 = vmax.f32 %v291, 0.0
    %v324 = vmax.f32 %v292, 0.0
    %v325 = vmax.f32 %v293, 0.0
    %v326 = vmax.f32 %v294, 0.0
    %v327 = vmax.f32 %v295, 0.0
    %v328 = vmax.f32 %v296, 0.0
    %v329 = vmax.f32 %v297, 0.0
    %v330 = vmax.f32 %v298, 0.0
    %v331 = vmax.f32 %v299, 0.0
    %v332 = vmax.f32 %v300, 0.0
    %v333 = vmax.f32 %v301, 0.0
    %v334 = vmax.f32 %v302, 0.0
    %v335 = vmax.f32 %v303, 0.0
    %v336 = vmax.f32 %v304, 0.0
    %v337 = vmax.f32 %v305, 0.0
    %v338 = vmax.f32 %v306, 0.0
    %v339 = vmax.f32 %v307, 0.0
    %v340 = vmax.f32 %v308, 0.0
    %v341 = vmax.f32 %v309, 0.0
    %v342 = vmax.f32 %v310, 0.0
    %v343 = vmax.f32 %v311, 0.0
    %v344 = vmax.f32 %v312, 0.0
    %v345 = vmax.f32 %v313, 0.0
    %v346 = vmax.f32 %v314, 0.0
    %v347 = vmax.f32 %v315, 0.0
    %v348 = vmax.f32 %v316, 0.0
    %v349 = vmax.f32 %v317, 0.0
    %v350 = vmax.f32 %v318, 0.0
    %v351 = vmax.f32 %v319, 0.0
    %v352 = vmax.f32 %v320, 0.0
    %v353 = vmax.f32 %v321, 0.0
    %354 = vst [vmem:[#allocation2] sm:$0xff] %v322
    %355 = vst [vmem:[#allocation2 + $0x8] sm:$0xff] %v323
    %356 = vst [vmem:[#allocation2 + $0x10] sm:$0xff] %v324
    %357 = vst [vmem:[#allocation2 + $0x18] sm:$0xff] %v325
    %358 = vst [vmem:[#allocation2 + $0x20] sm:$0xff] %v326
    %359 = vst [vmem:[#allocation2 + $0x28] sm:$0xff] %v327
    %360 = vst [vmem:[#allocation2 + $0x30] sm:$0xff] %v328
    %361 = vst [vmem:[#allocation2 + $0x38] sm:$0xff] %v329
    %362 = vst [vmem:[#allocation2 + $0x40] sm:$0xff] %v330
    %363 = vst [vmem:[#allocation2 + $0x48] sm:$0xff] %v331
    %364 = vst [vmem:[#allocation2 + $0x50] sm:$0xff] %v332
    %365 = vst [vmem:[#allocation2 + $0x58] sm:$0xff] %v333
    %366 = vst [vmem:[#allocation2 + $0x60] sm:$0xff] %v334
    %367 = vst [vmem:[#allocation2 + $0x68] sm:$0xff] %v335
    %368 = vst [vmem:[#allocation2 + $0x70] sm:$0xff] %v336
    %369 = vst [vmem:[#allocation2 + $0x78] sm:$0xff] %v337
    %370 = vst [vmem:[#allocation2 + $0x80] sm:$0xff] %v338
    %371 = vst [vmem:[#allocation2 + $0x88] sm:$0xff] %v339
    %372 = vst [vmem:[#allocation2 + $0x90] sm:$0xff] %v340
    %373 = vst [vmem:[#allocation2 + $0x98] sm:$0xff] %v341
    %374 = vst [vmem:[#allocation2 + $0xa0] sm:$0xff] %v342
    %375 = vst [vmem:[#allocation2 + $0xa8] sm:$0xff] %v343
    %376 = vst [vmem:[#allocation2 + $0xb0] sm:$0xff] %v344
    %377 = vst [vmem:[#allocation2 + $0xb8] sm:$0xff] %v345
    %378 = vst [vmem:[#allocation2 + $0xc0] sm:$0xff] %v346
    %379 = vst [vmem:[#allocation2 + $0xc8] sm:$0xff] %v347
    %380 = vst [vmem:[#allocation2 + $0xd0] sm:$0xff] %v348
    %381 = vst [vmem:[#allocation2 + $0xd8] sm:$0xff] %v349
    %382 = vst [vmem:[#allocation2 + $0xe0] sm:$0xff] %v350
    %383 = vst [vmem:[#allocation2 + $0xe8] sm:$0xff] %v351
    %384 = vst [vmem:[#allocation2 + $0xf0] sm:$0xff] %v352
    %385 = vst [vmem:[#allocation2 + $0xf8] sm:$0xff] %v353
    // Predicated region
    $region18: #{channel_distill_forward.9} parent=1 // pred_check
      _
    $region19: #{channel_distill_forward.9} parent=1 // pred_check_branch
      %387 = sbr.rel (0) target = $region21
    $region20: #{channel_distill_forward.9} parent=1 // pred_region
      %389 = vsyncadd [#allocation3], 0
      %s390 = sshll.u32 [#allocation2], 4
      %s391 = int_to_ptr.vmem [resolvable:$true] %s390
      %s392 = sshll.u32 %s4, 4
      %s393 = int_to_ptr.hbm [resolvable:$true] %s392
      %398 = dma.vmem_to_hbm [thread:$0]  %s391, 4096, %s393, [#allocation3], 256, 256, 16
    $region21: #{channel_distill_forward.9} parent=1 // pred_fallthru
      _
    // Predicated region
    $region22: #{channel_distill_forward.9} parent=1 // pred_check
      _
    $region23: #{channel_distill_forward.9} parent=1 // pred_check_branch
      %400 = sbr.rel (0) target = $region25
    $region24: #{channel_distill_forward.9} parent=1 // pred_region
      %402 = dma.done [#allocation3], 4096
    $region25: #{channel_distill_forward.9} parent=1 // pred_fallthru
      _
    %403 = vsyncpa [#allocation3], 1

</llo_original>
